<compile_context>
chip_gen: v5e
topology: v5e:2x2
jax: 0.10.0
libtpu: 0.0.40
codegen_flags: <defaults>
</compile_context>

<pallas_src>
import functools
import math

import jax
import jax.numpy as jnp
from jax.experimental import pallas as pl
from jax.experimental.pallas import tpu as pltpu

BN_EPS = 1e-5
LANE = 128                       # TPU lane width: keep matmul outputs lane-dense
VMEM_LIMIT = 32 * 1024 * 1024    # explicit scoped-VMEM budget (safe on v5e/v6e/v7x)


def _round_up(x, m):
    return ((x + m - 1) // m) * m


def _pick_tile(dim, candidates=(512, 384, 256, 128)):
    for c in candidates:
        if dim % c == 0:
            return c
    return 128


# --------------------------------------------------------------------------
# Pallas kernel: out = act( (x @ w) * scale + bias [+ residual] )
#   bf16 operands on the MXU, f32 accumulation in VMEM scratch, K grid axis.
# --------------------------------------------------------------------------
def _fused_matmul_kernel(*refs, apply_relu: bool, has_scale: bool,
                         has_residual: bool):
    it = iter(refs)
    x_ref = next(it)
    w_ref = next(it)
    s_ref = next(it) if has_scale else None
    b_ref = next(it)
    r_ref = next(it) if has_residual else None
    o_ref = next(it)
    acc_ref = next(it)

    k = pl.program_id(2)

    @pl.when(k == 0)
    def _():
        acc_ref[...] = jnp.zeros_like(acc_ref)

    acc_ref[...] += jnp.dot(x_ref[...], w_ref[...],
                            preferred_element_type=jnp.float32)

    @pl.when(k == pl.num_programs(2) - 1)
    def _():
        out = acc_ref[...]
        if has_scale:
            out = out * s_ref[...]
        out = out + b_ref[...]
        if has_residual:
            out = out + r_ref[...].astype(jnp.float32)
        if apply_relu:
            out = jnp.maximum(out, 0.0)
        o_ref[...] = out.astype(o_ref.dtype)


# --------------------------------------------------------------------------
# Pallas wrapper
# --------------------------------------------------------------------------
def fused_matmul(x, w, scale, bias, residual=None, apply_relu=True,
                 out_dtype=jnp.bfloat16):
    """x: (M, K), w: (K, N), scale/bias: (N,) f32 (scale may be None),
    residual: (M, N) or None.  Returns (M, N) in out_dtype."""
    M, K = x.shape
    Kw, N = w.shape
    assert Kw == K

    # ---- lane-dense output: pad N up to a multiple of 128, slice in caller.
    N_pad = _round_up(N, LANE)
    if N_pad != N:
        w = jnp.pad(w, ((0, 0), (0, N_pad - N)))
        bias = jnp.pad(bias, (0, N_pad - N))
        if scale is not None:
            scale = jnp.pad(scale, (0, N_pad - N))
        if residual is not None:
            residual = jnp.pad(residual, ((0, 0), (0, N_pad - N)))

    # ---- K (reduction) tiling: whole-K block when small, else 128x tiles.
    if K <= 512:
        bk, K_pad = K, K
    else:
        K_pad = _round_up(K, LANE)
        bk = _pick_tile(K_pad)
    if K_pad != K:
        x = jnp.pad(x, ((0, 0), (0, K_pad - K)))
        w = jnp.pad(w, ((0, K_pad - K), (0, 0)))

    # ---- N tiling.
    bn = N_pad if N_pad <= 512 else _pick_tile(N_pad)

    # ---- M tiling: fixed tiles + ragged last block; >=2 row tiles when
    #      possible so both v7x TensorCores get work on the parallel axis.
    if M >= 1024:
        bm = 512
    elif M > 8:
        bm = _round_up(pl.cdiv(M, 2), 8)
    else:
        bm = M
    grid = (pl.cdiv(M, bm), N_pad // bn, K_pad // bk)

    x = x.astype(jnp.bfloat16)
    w = w.astype(jnp.bfloat16)
    scale2 = None if scale is None else scale.reshape(1, N_pad).astype(jnp.float32)
    bias2 = bias.reshape(1, N_pad).astype(jnp.float32)

    in_specs = [
        pl.BlockSpec((bm, bk), lambda i, j, k: (i, k)),   # patches / features
        pl.BlockSpec((bk, bn), lambda i, j, k: (k, j)),   # weights
    ]
    args = [x, w]
    if scale2 is not None:
        in_specs.append(pl.BlockSpec((1, bn), lambda i, j, k: (0, j)))
        args.append(scale2)
    in_specs.append(pl.BlockSpec((1, bn), lambda i, j, k: (0, j)))
    args.append(bias2)
    if residual is not None:
        in_specs.append(pl.BlockSpec((bm, bn), lambda i, j, k: (i, j)))
        args.append(residual.astype(jnp.bfloat16))

    kernel = functools.partial(
        _fused_matmul_kernel,
        apply_relu=apply_relu,
        has_scale=scale2 is not None,
        has_residual=residual is not None,
    )

    out = pl.pallas_call(
        kernel,
        out_shape=jax.ShapeDtypeStruct((M, N_pad), out_dtype),
        grid=grid,
        in_specs=in_specs,
        out_specs=pl.BlockSpec((bm, bn), lambda i, j, k: (i, j)),
        scratch_shapes=[pltpu.VMEM((bm, bn), jnp.float32)],
        compiler_params=pltpu.CompilerParams(
            dimension_semantics=("parallel", "parallel", "arbitrary"),
            vmem_limit_bytes=VMEM_LIMIT),
    )(*args)
    return out if N_pad == N else out[:, :N]


# --------------------------------------------------------------------------
# Glue: im2col, BN fold, per-conv prepared matrices
# --------------------------------------------------------------------------
def im2col(x, kh, kw, stride, pad):
    """x: (N, H, W, C) -> patches (N*Ho*Wo, kh*kw*C), matching PyTorch conv."""
    if pad > 0:
        x = jnp.pad(x, ((0, 0), (pad, pad), (pad, pad), (0, 0)))
    n, hp, wp, c = x.shape
    ho = (hp - kh) // stride + 1
    wo = (wp - kw) // stride + 1
    pieces = []
    for i in range(kh):
        for j in range(kw):
            pieces.append(
                x[:, i: i + stride * (ho - 1) + 1: stride,
                     j: j + stride * (wo - 1) + 1: stride, :]
            )
    patches = jnp.stack(pieces, axis=3)              # (N, Ho, Wo, kh*kw, C)
    # TODO(synk): fold the kh*kw tap loop into the Pallas grid (index_map into
    # the padded NHWC activation) to avoid materializing im2col in HBM; for now
    # the patches are emitted in bf16, halving that traffic.
    return patches.reshape(n * ho * wo, kh * kw * c), (n, ho, wo)


def fold_bn(bn):
    scale = bn["gamma"] / jnp.sqrt(bn["var"] + BN_EPS)
    bias = bn["beta"] - bn["mean"] * scale
    return scale, bias


def _prep_conv(w, bn):
    """PyTorch (C_out, C_in, KH, KW) weight + BN -> kernel-ready matrices."""
    cout, cin, kh, kw = w.shape
    w_mat = jnp.transpose(w, (2, 3, 1, 0)).reshape(kh * kw * cin, cout)
    scale, bias = fold_bn(bn)
    return {"w": w_mat.astype(jnp.bfloat16),
            "scale": scale.astype(jnp.float32),
            "bias": bias.astype(jnp.float32),
            "kh": kh, "kw": kw, "cout": cout}


def conv_bn_act(x, conv, stride, pad, apply_relu, residual=None):
    """x, residual: NHWC bf16.  Fused conv + BN (+ residual) (+ ReLU)."""
    patches, (n, ho, wo) = im2col(x, conv["kh"], conv["kw"], stride, pad)
    res2d = None
    if residual is not None:
        res2d = residual.reshape(n * ho * wo, conv["cout"])
    out = fused_matmul(patches, conv["w"], conv["scale"], conv["bias"],
                       residual=res2d, apply_relu=apply_relu,
                       out_dtype=jnp.bfloat16)
    return out.reshape(n, ho, wo, conv["cout"])


# --------------------------------------------------------------------------
# Parameter construction (deterministic, mirrors the PyTorch __init__)
# --------------------------------------------------------------------------
def _kaiming_uniform(key, shape, fan_in):
    bound = math.sqrt(6.0 / fan_in)            # kaiming_uniform_, fan_in, relu
    return jax.random.uniform(key, shape, jnp.float32, -bound, bound)


def _default_bn(ch):
    return dict(gamma=jnp.ones((ch,), jnp.float32),
                beta=jnp.zeros((ch,), jnp.float32),
                mean=jnp.zeros((ch,), jnp.float32),
                var=jnp.ones((ch,), jnp.float32))


def init_resnet(key, N, B, C, F, K, P, num_classes=10):
    params = {"P": P}
    key, k0 = jax.random.split(key)
    params["conv1_w"] = _kaiming_uniform(k0, (C[0], 3, F[0], F[0]), 3 * F[0] * F[0])
    params["bn1"] = _default_bn(C[0])

    strides_per_layer = [2] * N
    strides_per_layer[0] = 1

    blocks = []
    ch_in = C[0]
    for i in range(N):
        layer_strides = [strides_per_layer[i]] + [1] * (B[i] - 1)
        for s in layer_strides:
            ch_out, ks, skip_k = C[i], F[i], K[i]
            key, k1, k2, k3 = jax.random.split(key, 4)
            blk = {
                "stride": s,
                "conv1_w": _kaiming_uniform(k1, (ch_out, ch_in, ks, ks),
                                            ch_in * ks * ks),
                "bn1": _default_bn(ch_out),
                "conv2_w": _kaiming_uniform(k2, (ch_out, ch_out, ks, ks),
                                            ch_out * ks * ks),
                "bn2": _default_bn(ch_out),
                "shortcut": None,
            }
            if s != 1 or ch_in != ch_out:
                blk["shortcut"] = {
                    "w": _kaiming_uniform(k3, (ch_out, ch_in, skip_k, skip_k),
                                          ch_in * skip_k * skip_k),
                    "bn": _default_bn(ch_out),
                }
            blocks.append(blk)
            ch_in = ch_out
    params["blocks"] = blocks

    out_in = C[N - 1] * (32 // (P * 2 ** (N - 1))) ** 2
    key, kw, kb = jax.random.split(key, 3)
    lin_bound = 1.0 / math.sqrt(out_in)
    params["linear_w"] = jax.random.uniform(kw, (num_classes, out_in),
                                            jnp.float32, -lin_bound, lin_bound)
    params["linear_b"] = jax.random.uniform(kb, (num_classes,),
                                            jnp.float32, -lin_bound, lin_bound)
    return params


def prepare_params(params):
    """One-time prep: fold BN, reshape conv weights to (K, N) matmul form,
    and fold avg_pool2d(P) + NCHW flatten into the classifier weight."""
    prep = {"conv1": _prep_conv(params["conv1_w"], params["bn1"]), "blocks": []}
    for blk in params["blocks"]:
        p = {"stride": blk["stride"],
             "conv1": _prep_conv(blk["conv1_w"], blk["bn1"]),
             "conv2": _prep_conv(blk["conv2_w"], blk["bn2"]),
             "shortcut": None}
        if blk["shortcut"] is not None:
            p["shortcut"] = _prep_conv(blk["shortcut"]["w"], blk["shortcut"]["bn"])
        prep["blocks"].append(p)

    # avg_pool2d(out, P) -> view(n, -1) (NCHW order) -> Linear  ==  one matmul
    # against an expanded (H*W*C, num_classes) weight (pooling is linear).
    P = params["P"]
    ncls, out_in = params["linear_w"].shape
    c_last = prep["blocks"][-1]["conv2"]["cout"]
    hp = int(round(math.sqrt(out_in // c_last)))
    h = hp * P
    w_lin = params["linear_w"].reshape(ncls, c_last, hp, hp)
    w_lin = jnp.repeat(jnp.repeat(w_lin, P, axis=2), P, axis=3) / float(P * P)
    w_lin = jnp.transpose(w_lin, (2, 3, 1, 0)).reshape(h * h * c_last, ncls)
    prep["head_w"] = w_lin.astype(jnp.bfloat16)
    prep["head_b"] = params["linear_b"].astype(jnp.float32)
    return prep


# --------------------------------------------------------------------------
# Forward pass
# --------------------------------------------------------------------------
def basic_block_forward(x, blk):
    out = conv_bn_act(x, blk["conv1"], blk["stride"], 1, True)
    if blk["shortcut"] is not None:
        sc = conv_bn_act(x, blk["shortcut"], blk["stride"], 0, False)
    else:
        sc = x
    # out = RELU(bn2(conv2(out)) + shortcut) -- residual + ReLU fused in-kernel
    return conv_bn_act(out, blk["conv2"], 1, 1, True, residual=sc)


def resnet_forward(prep, x_nchw):
    x = jnp.transpose(x_nchw, (0, 2, 3, 1)).astype(jnp.bfloat16)  # NCHW -> NHWC

    out = conv_bn_act(x, prep["conv1"], 1, 1, True)
    for blk in prep["blocks"]:
        out = basic_block_forward(out, blk)

    # avg-pool + flatten + linear, folded into a single Pallas matmul.
    n, h, w, c = out.shape
    feat = out.reshape(n, h * w * c)
    logits = fused_matmul(feat, prep["head_w"], None, prep["head_b"],
                          apply_relu=False, out_dtype=jnp.float32)
    return logits


# --------------------------------------------------------------------------
if __name__ == "__main__":
    # Small ResNet config: N=2 layers, 1 block each, channels [4, 8],
    # 3x3 convs, 1x1 skip convs, avg-pool window P=4, 10 classes.
    N, B, C, F, K, P = 2, [1, 1], [4, 8], [3, 3], [1, 1], 4

    key = jax.random.PRNGKey(0)
    key_p, key_x = jax.random.split(key)
    params = init_resnet(key_p, N, B, C, F, K, P, num_classes=10)
    prepped = prepare_params(params)

    # Input spatial size must be 32 (the module hard-codes 32 in outLayerInSize).
    x = jax.random.normal(key_x, (2, 3, 32, 32), dtype=jnp.float32)

    logits = jax.jit(functools.partial(resnet_forward, prepped))(x)
    jax.block_until_ready(logits)
    assert logits.shape == (2, 10) and logits.dtype == jnp.float32
    print("KERNEL_OK")
</pallas_src>

<mosaic_0001>
module attributes {stable_mosaic.version = 11 : i64} {
  func.func @_fused_matmul_kernel(%arg0: i32, %arg1: i32, %arg2: i32, %arg3: memref<512x27xbf16, #tpu.memory_space<vmem>>, %arg4: memref<27x128xbf16, #tpu.memory_space<vmem>>, %arg5: memref<1x128xf32, #tpu.memory_space<vmem>>, %arg6: memref<1x128xf32, #tpu.memory_space<vmem>>, %arg7: memref<512x128xbf16, #tpu.memory_space<vmem>>, %arg8: memref<512x128xf32, #tpu.memory_space<vmem>>) attributes {dimension_semantics = [#tpu.dimension_semantics<parallel>, #tpu.dimension_semantics<parallel>, #tpu.dimension_semantics<arbitrary>], iteration_bounds = array<i64: 4, 1, 1>, scalar_prefetch = 0 : i64, scratch_operands = 1 : i64, tpu.core_type = #tpu.core_type<tc>, window_params = [{transform_indices = @transform_0, window_bounds = array<i64: 512, 27>}, {transform_indices = @transform_1, window_bounds = array<i64: 27, 128>}, {transform_indices = @transform_2, window_bounds = array<i64: 1, 128>}, {transform_indices = @transform_3, window_bounds = array<i64: 1, 128>}, {transform_indices = @transform_4, window_bounds = array<i64: 512, 128>}]} {
    %c0_i32 = arith.constant 0 : i32
    %0 = arith.cmpi eq, %arg2, %c0_i32 : i32
    %1 = arith.extui %0 : i1 to i32
    %c0_i32_0 = arith.constant 0 : i32
    %2 = arith.cmpi ne, %1, %c0_i32_0 : i32
    scf.if %2 {
      %cst_10 = arith.constant 0.000000e+00 : f32
      %12 = vector.broadcast %cst_10 : f32 to vector<512x128xf32>
      %c0_11 = arith.constant 0 : index
      %c0_12 = arith.constant 0 : index
      %13 = vector.load %arg8[%c0_11, %c0_12] : memref<512x128xf32, #tpu.memory_space<vmem>>, vector<512x128xf32>
      tpu.vector_store %arg8[%c0_11, %c0_12], %12 {strides = array<i32>} : memref<512x128xf32, #tpu.memory_space<vmem>>, vector<512x128xf32>,
    } else {
    }
    %c0 = arith.constant 0 : index
    %c0_1 = arith.constant 0 : index
    %3 = vector.load %arg8[%c0, %c0_1] : memref<512x128xf32, #tpu.memory_space<vmem>>, vector<512x128xf32>
    %c0_2 = arith.constant 0 : index
    %c0_3 = arith.constant 0 : index
    %4 = vector.load %arg3[%c0_2, %c0_3] : memref<512x27xbf16, #tpu.memory_space<vmem>>, vector<512x27xbf16>
    %c0_4 = arith.constant 0 : index
    %c0_5 = arith.constant 0 : index
    %5 = vector.load %arg4[%c0_4, %c0_5] : memref<27x128xbf16, #tpu.memory_space<vmem>>, vector<27x128xbf16>
    %cst = arith.constant dense<0.000000e+00> : vector<512x128xf32>
    %6 = tpu.matmul %4, %5, %cst {dimension_numbers = #tpu.dot_dimension_numbers<[1], [0], [0], [1], [0, 0, 1, 1], [], []>} : vector<512x27xbf16>, vector<27x128xbf16>, vector<512x128xf32> -> vector<512x128xf32>
    %7 = arith.addf %3, %6 : vector<512x128xf32>
    %c0_6 = arith.constant 0 : index
    %c0_7 = arith.constant 0 : index
    %8 = vector.load %arg8[%c0_6, %c0_7] : memref<512x128xf32, #tpu.memory_space<vmem>>, vector<512x128xf32>
    tpu.vector_store %arg8[%c0_6, %c0_7], %7 {strides = array<i32>} : memref<512x128xf32, #tpu.memory_space<vmem>>, vector<512x128xf32>,
    %c0_i32_8 = arith.constant 0 : i32
    %9 = arith.cmpi eq, %arg2, %c0_i32_8 : i32
    %10 = arith.extui %9 : i1 to i32
    %c0_i32_9 = arith.constant 0 : i32
    %11 = arith.cmpi ne, %10, %c0_i32_9 : i32
    scf.if %11 {
      %c0_10 = arith.constant 0 : index
      %c0_11 = arith.constant 0 : index
      %12 = vector.load %arg8[%c0_10, %c0_11] : memref<512x128xf32, #tpu.memory_space<vmem>>, vector<512x128xf32>
      %c0_12 = arith.constant 0 : index
      %c0_13 = arith.constant 0 : index
      %13 = vector.load %arg5[%c0_12, %c0_13] : memref<1x128xf32, #tpu.memory_space<vmem>>, vector<1x128xf32>
      %14 = vector.broadcast %13 : vector<1x128xf32> to vector<512x128xf32>
      %15 = arith.mulf %12, %14 : vector<512x128xf32>
      %c0_14 = arith.constant 0 : index
      %c0_15 = arith.constant 0 : index
      %16 = vector.load %arg6[%c0_14, %c0_15] : memref<1x128xf32, #tpu.memory_space<vmem>>, vector<1x128xf32>
      %17 = vector.broadcast %16 : vector<1x128xf32> to vector<512x128xf32>
      %18 = arith.addf %15, %17 : vector<512x128xf32>
      %cst_16 = arith.constant 0.000000e+00 : f32
      %19 = vector.broadcast %cst_16 : f32 to vector<512x128xf32>
      %20 = arith.maximumf %18, %19 : vector<512x128xf32>
      %21 = arith.truncf %20 : vector<512x128xf32> to vector<512x128xbf16>
      %c0_17 = arith.constant 0 : index
      %c0_18 = arith.constant 0 : index
      %22 = vector.load %arg7[%c0_17, %c0_18] : memref<512x128xbf16, #tpu.memory_space<vmem>>, vector<512x128xbf16>
      tpu.vector_store %arg7[%c0_17, %c0_18], %21 {strides = array<i32>} : memref<512x128xbf16, #tpu.memory_space<vmem>>, vector<512x128xbf16>,
    } else {
    }
    return
  }
  func.func @transform_0(%arg0: i32, %arg1: i32, %arg2: i32) -> (i32, i32) {
    %c0_i32 = arith.constant 0 : i32
    return %arg0, %arg2 : i32, i32
  }
  func.func @transform_1(%arg0: i32, %arg1: i32, %arg2: i32) -> (i32, i32) {
    %c0_i32 = arith.constant 0 : i32
    return %arg2, %arg1 : i32, i32
  }
  func.func @transform_2(%arg0: i32, %arg1: i32, %arg2: i32) -> (i32, i32) {
    %c0_i32 = arith.constant 0 : i32
    %c0_i32_0 = arith.constant 0 : i32
    return %c0_i32, %arg1 : i32, i32
  }
  func.func @transform_3(%arg0: i32, %arg1: i32, %arg2: i32) -> (i32, i32) {
    %c0_i32 = arith.constant 0 : i32
    %c0_i32_0 = arith.constant 0 : i32
    return %c0_i32, %arg1 : i32, i32
  }
  func.func @transform_4(%arg0: i32, %arg1: i32, %arg2: i32) -> (i32, i32) {
    %c0_i32 = arith.constant 0 : i32
    return %arg0, %arg1 : i32, i32
  }
}

module attributes {stable_mosaic.version = 11 : i64} {
  func.func @_fused_matmul_kernel(%arg0: i32, %arg1: i32, %arg2: i32, %arg3: memref<512x36xbf16, #tpu.memory_space<vmem>>, %arg4: memref<36x128xbf16, #tpu.memory_space<vmem>>, %arg5: memref<1x128xf32, #tpu.memory_space<vmem>>, %arg6: memref<1x128xf32, #tpu.memory_space<vmem>>, %arg7: memref<512x128xbf16, #tpu.memory_space<vmem>>, %arg8: memref<512x128xf32, #tpu.memory_space<vmem>>) attributes {dimension_semantics = [#tpu.dimension_semantics<parallel>, #tpu.dimension_semantics<parallel>, #tpu.dimension_semantics<arbitrary>], iteration_bounds = array<i64: 4, 1, 1>, scalar_prefetch = 0 : i64, scratch_operands = 1 : i64, tpu.core_type = #tpu.core_type<tc>, window_params = [{transform_indices = @transform_0, window_bounds = array<i64: 512, 36>}, {transform_indices = @transform_1, window_bounds = array<i64: 36, 128>}, {transform_indices = @transform_2, window_bounds = array<i64: 1, 128>}, {transform_indices = @transform_3, window_bounds = array<i64: 1, 128>}, {transform_indices = @transform_4, window_bounds = array<i64: 512, 128>}]} {
    %c0_i32 = arith.constant 0 : i32
    %0 = arith.cmpi eq, %arg2, %c0_i32 : i32
    %1 = arith.extui %0 : i1 to i32
    %c0_i32_0 = arith.constant 0 : i32
    %2 = arith.cmpi ne, %1, %c0_i32_0 : i32
    scf.if %2 {
      %cst_10 = arith.constant 0.000000e+00 : f32
      %12 = vector.broadcast %cst_10 : f32 to vector<512x128xf32>
      %c0_11 = arith.constant 0 : index
      %c0_12 = arith.constant 0 : index
      %13 = vector.load %arg8[%c0_11, %c0_12] : memref<512x128xf32, #tpu.memory_space<vmem>>, vector<512x128xf32>
      tpu.vector_store %arg8[%c0_11, %c0_12], %12 {strides = array<i32>} : memref<512x128xf32, #tpu.memory_space<vmem>>, vector<512x128xf32>,
    } else {
    }
    %c0 = arith.constant 0 : index
    %c0_1 = arith.constant 0 : index
    %3 = vector.load %arg8[%c0, %c0_1] : memref<512x128xf32, #tpu.memory_space<vmem>>, vector<512x128xf32>
    %c0_2 = arith.constant 0 : index
    %c0_3 = arith.constant 0 : index
    %4 = vector.load %arg3[%c0_2, %c0_3] : memref<512x36xbf16, #tpu.memory_space<vmem>>, vector<512x36xbf16>
    %c0_4 = arith.constant 0 : index
    %c0_5 = arith.constant 0 : index
    %5 = vector.load %arg4[%c0_4, %c0_5] : memref<36x128xbf16, #tpu.memory_space<vmem>>, vector<36x128xbf16>
    %cst = arith.constant dense<0.000000e+00> : vector<512x128xf32>
    %6 = tpu.matmul %4, %5, %cst {dimension_numbers = #tpu.dot_dimension_numbers<[1], [0], [0], [1], [0, 0, 1, 1], [], []>} : vector<512x36xbf16>, vector<36x128xbf16>, vector<512x128xf32> -> vector<512x128xf32>
    %7 = arith.addf %3, %6 : vector<512x128xf32>
    %c0_6 = arith.constant 0 : index
    %c0_7 = arith.constant 0 : index
    %8 = vector.load %arg8[%c0_6, %c0_7] : memref<512x128xf32, #tpu.memory_space<vmem>>, vector<512x128xf32>
    tpu.vector_store %arg8[%c0_6, %c0_7], %7 {strides = array<i32>} : memref<512x128xf32, #tpu.memory_space<vmem>>, vector<512x128xf32>,
    %c0_i32_8 = arith.constant 0 : i32
    %9 = arith.cmpi eq, %arg2, %c0_i32_8 : i32
    %10 = arith.extui %9 : i1 to i32
    %c0_i32_9 = arith.constant 0 : i32
    %11 = arith.cmpi ne, %10, %c0_i32_9 : i32
    scf.if %11 {
      %c0_10 = arith.constant 0 : index
      %c0_11 = arith.constant 0 : index
      %12 = vector.load %arg8[%c0_10, %c0_11] : memref<512x128xf32, #tpu.memory_space<vmem>>, vector<512x128xf32>
      %c0_12 = arith.constant 0 : index
      %c0_13 = arith.constant 0 : index
      %13 = vector.load %arg5[%c0_12, %c0_13] : memref<1x128xf32, #tpu.memory_space<vmem>>, vector<1x128xf32>
      %14 = vector.broadcast %13 : vector<1x128xf32> to vector<512x128xf32>
      %15 = arith.mulf %12, %14 : vector<512x128xf32>
      %c0_14 = arith.constant 0 : index
      %c0_15 = arith.constant 0 : index
      %16 = vector.load %arg6[%c0_14, %c0_15] : memref<1x128xf32, #tpu.memory_space<vmem>>, vector<1x128xf32>
      %17 = vector.broadcast %16 : vector<1x128xf32> to vector<512x128xf32>
      %18 = arith.addf %15, %17 : vector<512x128xf32>
      %cst_16 = arith.constant 0.000000e+00 : f32
      %19 = vector.broadcast %cst_16 : f32 to vector<512x128xf32>
      %20 = arith.maximumf %18, %19 : vector<512x128xf32>
      %21 = arith.truncf %20 : vector<512x128xf32> to vector<512x128xbf16>
      %c0_17 = arith.constant 0 : index
      %c0_18 = arith.constant 0 : index
      %22 = vector.load %arg7[%c0_17, %c0_18] : memref<512x128xbf16, #tpu.memory_space<vmem>>, vector<512x128xbf16>
      tpu.vector_store %arg7[%c0_17, %c0_18], %21 {strides = array<i32>} : memref<512x128xbf16, #tpu.memory_space<vmem>>, vector<512x128xbf16>,
    } else {
    }
    return
  }
  func.func @transform_0(%arg0: i32, %arg1: i32, %arg2: i32) -> (i32, i32) {
    %c0_i32 = arith.constant 0 : i32
    return %arg0, %arg2 : i32, i32
  }
  func.func @transform_1(%arg0: i32, %arg1: i32, %arg2: i32) -> (i32, i32) {
    %c0_i32 = arith.constant 0 : i32
    return %arg2, %arg1 : i32, i32
  }
  func.func @transform_2(%arg0: i32, %arg1: i32, %arg2: i32) -> (i32, i32) {
    %c0_i32 = arith.constant 0 : i32
    %c0_i32_0 = arith.constant 0 : i32
    return %c0_i32, %arg1 : i32, i32
  }
  func.func @transform_3(%arg0: i32, %arg1: i32, %arg2: i32) -> (i32, i32) {
    %c0_i32 = arith.constant 0 : i32
    %c0_i32_0 = arith.constant 0 : i32
    return %c0_i32, %arg1 : i32, i32
  }
  func.func @transform_4(%arg0: i32, %arg1: i32, %arg2: i32) -> (i32, i32) {
    %c0_i32 = arith.constant 0 : i32
    return %arg0, %arg1 : i32, i32
  }
}

module attributes {stable_mosaic.version = 11 : i64} {
  func.func @_fused_matmul_kernel(%arg0: i32, %arg1: i32, %arg2: i32, %arg3: memref<512x36xbf16, #tpu.memory_space<vmem>>, %arg4: memref<36x128xbf16, #tpu.memory_space<vmem>>, %arg5: memref<1x128xf32, #tpu.memory_space<vmem>>, %arg6: memref<1x128xf32, #tpu.memory_space<vmem>>, %arg7: memref<512x128xbf16, #tpu.memory_space<vmem>>, %arg8: memref<512x128xbf16, #tpu.memory_space<vmem>>, %arg9: memref<512x128xf32, #tpu.memory_space<vmem>>) attributes {dimension_semantics = [#tpu.dimension_semantics<parallel>, #tpu.dimension_semantics<parallel>, #tpu.dimension_semantics<arbitrary>], iteration_bounds = array<i64: 4, 1, 1>, scalar_prefetch = 0 : i64, scratch_operands = 1 : i64, tpu.core_type = #tpu.core_type<tc>, window_params = [{transform_indices = @transform_0, window_bounds = array<i64: 512, 36>}, {transform_indices = @transform_1, window_bounds = array<i64: 36, 128>}, {transform_indices = @transform_2, window_bounds = array<i64: 1, 128>}, {transform_indices = @transform_3, window_bounds = array<i64: 1, 128>}, {transform_indices = @transform_4, window_bounds = array<i64: 512, 128>}, {transform_indices = @transform_5, window_bounds = array<i64: 512, 128>}]} {
    %c0_i32 = arith.constant 0 : i32
    %0 = arith.cmpi eq, %arg2, %c0_i32 : i32
    %1 = arith.extui %0 : i1 to i32
    %c0_i32_0 = arith.constant 0 : i32
    %2 = arith.cmpi ne, %1, %c0_i32_0 : i32
    scf.if %2 {
      %cst_10 = arith.constant 0.000000e+00 : f32
      %12 = vector.broadcast %cst_10 : f32 to vector<512x128xf32>
      %c0_11 = arith.constant 0 : index
      %c0_12 = arith.constant 0 : index
      %13 = vector.load %arg9[%c0_11, %c0_12] : memref<512x128xf32, #tpu.memory_space<vmem>>, vector<512x128xf32>
      tpu.vector_store %arg9[%c0_11, %c0_12], %12 {strides = array<i32>} : memref<512x128xf32, #tpu.memory_space<vmem>>, vector<512x128xf32>,
    } else {
    }
    %c0 = arith.constant 0 : index
    %c0_1 = arith.constant 0 : index
    %3 = vector.load %arg9[%c0, %c0_1] : memref<512x128xf32, #tpu.memory_space<vmem>>, vector<512x128xf32>
    %c0_2 = arith.constant 0 : index
    %c0_3 = arith.constant 0 : index
    %4 = vector.load %arg3[%c0_2, %c0_3] : memref<512x36xbf16, #tpu.memory_space<vmem>>, vector<512x36xbf16>
    %c0_4 = arith.constant 0 : index
    %c0_5 = arith.constant 0 : index
    %5 = vector.load %arg4[%c0_4, %c0_5] : memref<36x128xbf16, #tpu.memory_space<vmem>>, vector<36x128xbf16>
    %cst = arith.constant dense<0.000000e+00> : vector<512x128xf32>
    %6 = tpu.matmul %4, %5, %cst {dimension_numbers = #tpu.dot_dimension_numbers<[1], [0], [0], [1], [0, 0, 1, 1], [], []>} : vector<512x36xbf16>, vector<36x128xbf16>, vector<512x128xf32> -> vector<512x128xf32>
    %7 = arith.addf %3, %6 : vector<512x128xf32>
    %c0_6 = arith.constant 0 : index
    %c0_7 = arith.constant 0 : index
    %8 = vector.load %arg9[%c0_6, %c0_7] : memref<512x128xf32, #tpu.memory_space<vmem>>, vector<512x128xf32>
    tpu.vector_store %arg9[%c0_6, %c0_7], %7 {strides = array<i32>} : memref<512x128xf32, #tpu.memory_space<vmem>>, vector<512x128xf32>,
    %c0_i32_8 = arith.constant 0 : i32
    %9 = arith.cmpi eq, %arg2, %c0_i32_8 : i32
    %10 = arith.extui %9 : i1 to i32
    %c0_i32_9 = arith.constant 0 : i32
    %11 = arith.cmpi ne, %10, %c0_i32_9 : i32
    scf.if %11 {
      %c0_10 = arith.constant 0 : index
      %c0_11 = arith.constant 0 : index
      %12 = vector.load %arg9[%c0_10, %c0_11] : memref<512x128xf32, #tpu.memory_space<vmem>>, vector<512x128xf32>
      %c0_12 = arith.constant 0 : index
      %c0_13 = arith.constant 0 : index
      %13 = vector.load %arg5[%c0_12, %c0_13] : memref<1x128xf32, #tpu.memory_space<vmem>>, vector<1x128xf32>
      %14 = vector.broadcast %13 : vector<1x128xf32> to vector<512x128xf32>
      %15 = arith.mulf %12, %14 : vector<512x128xf32>
      %c0_14 = arith.constant 0 : index
      %c0_15 = arith.constant 0 : index
      %16 = vector.load %arg6[%c0_14, %c0_15] : memref<1x128xf32, #tpu.memory_space<vmem>>, vector<1x128xf32>
      %17 = vector.broadcast %16 : vector<1x128xf32> to vector<512x128xf32>
      %18 = arith.addf %15, %17 : vector<512x128xf32>
      %c0_16 = arith.constant 0 : index
      %c0_17 = arith.constant 0 : index
      %19 = vector.load %arg7[%c0_16, %c0_17] : memref<512x128xbf16, #tpu.memory_space<vmem>>, vector<512x128xbf16>
      %20 = arith.extf %19 : vector<512x128xbf16> to vector<512x128xf32>
      %21 = arith.addf %18, %20 : vector<512x128xf32>
      %cst_18 = arith.constant 0.000000e+00 : f32
      %22 = vector.broadcast %cst_18 : f32 to vector<512x128xf32>
      %23 = arith.maximumf %21, %22 : vector<512x128xf32>
      %24 = arith.truncf %23 : vector<512x128xf32> to vector<512x128xbf16>
      %c0_19 = arith.constant 0 : index
      %c0_20 = arith.constant 0 : index
      %25 = vector.load %arg8[%c0_19, %c0_20] : memref<512x128xbf16, #tpu.memory_space<vmem>>, vector<512x128xbf16>
      tpu.vector_store %arg8[%c0_19, %c0_20], %24 {strides = array<i32>} : memref<512x128xbf16, #tpu.memory_space<vmem>>, vector<512x128xbf16>,
    } else {
    }
    return
  }
  func.func @transform_0(%arg0: i32, %arg1: i32, %arg2: i32) -> (i32, i32) {
    %c0_i32 = arith.constant 0 : i32
    return %arg0, %arg2 : i32, i32
  }
  func.func @transform_1(%arg0: i32, %arg1: i32, %arg2: i32) -> (i32, i32) {
    %c0_i32 = arith.constant 0 : i32
    return %arg2, %arg1 : i32, i32
  }
  func.func @transform_2(%arg0: i32, %arg1: i32, %arg2: i32) -> (i32, i32) {
    %c0_i32 = arith.constant 0 : i32
    %c0_i32_0 = arith.constant 0 : i32
    return %c0_i32, %arg1 : i32, i32
  }
  func.func @transform_3(%arg0: i32, %arg1: i32, %arg2: i32) -> (i32, i32) {
    %c0_i32 = arith.constant 0 : i32
    %c0_i32_0 = arith.constant 0 : i32
    return %c0_i32, %arg1 : i32, i32
  }
  func.func @transform_4(%arg0: i32, %arg1: i32, %arg2: i32) -> (i32, i32) {
    %c0_i32 = arith.constant 0 : i32
    return %arg0, %arg1 : i32, i32
  }
  func.func @transform_5(%arg0: i32, %arg1: i32, %arg2: i32) -> (i32, i32) {
    %c0_i32 = arith.constant 0 : i32
    return %arg0, %arg1 : i32, i32
  }
}

module attributes {stable_mosaic.version = 11 : i64} {
  func.func @_fused_matmul_kernel(%arg0: i32, %arg1: i32, %arg2: i32, %arg3: memref<256x4xbf16, #tpu.memory_space<vmem>>, %arg4: memref<4x128xbf16, #tpu.memory_space<vmem>>, %arg5: memref<1x128xf32, #tpu.memory_space<vmem>>, %arg6: memref<1x128xf32, #tpu.memory_space<vmem>>, %arg7: memref<256x128xbf16, #tpu.memory_space<vmem>>, %arg8: memref<256x128xf32, #tpu.memory_space<vmem>>) attributes {dimension_semantics = [#tpu.dimension_semantics<parallel>, #tpu.dimension_semantics<parallel>, #tpu.dimension_semantics<arbitrary>], iteration_bounds = array<i64: 2, 1, 1>, scalar_prefetch = 0 : i64, scratch_operands = 1 : i64, tpu.core_type = #tpu.core_type<tc>, window_params = [{transform_indices = @transform_0, window_bounds = array<i64: 256, 4>}, {transform_indices = @transform_1, window_bounds = array<i64: 4, 128>}, {transform_indices = @transform_2, window_bounds = array<i64: 1, 128>}, {transform_indices = @transform_3, window_bounds = array<i64: 1, 128>}, {transform_indices = @transform_4, window_bounds = array<i64: 256, 128>}]} {
    %c0_i32 = arith.constant 0 : i32
    %0 = arith.cmpi eq, %arg2, %c0_i32 : i32
    %1 = arith.extui %0 : i1 to i32
    %c0_i32_0 = arith.constant 0 : i32
    %2 = arith.cmpi ne, %1, %c0_i32_0 : i32
    scf.if %2 {
      %cst_10 = arith.constant 0.000000e+00 : f32
      %12 = vector.broadcast %cst_10 : f32 to vector<256x128xf32>
      %c0_11 = arith.constant 0 : index
      %c0_12 = arith.constant 0 : index
      %13 = vector.load %arg8[%c0_11, %c0_12] : memref<256x128xf32, #tpu.memory_space<vmem>>, vector<256x128xf32>
      tpu.vector_store %arg8[%c0_11, %c0_12], %12 {strides = array<i32>} : memref<256x128xf32, #tpu.memory_space<vmem>>, vector<256x128xf32>,
    } else {
    }
    %c0 = arith.constant 0 : index
    %c0_1 = arith.constant 0 : index
    %3 = vector.load %arg8[%c0, %c0_1] : memref<256x128xf32, #tpu.memory_space<vmem>>, vector<256x128xf32>
    %c0_2 = arith.constant 0 : index
    %c0_3 = arith.constant 0 : index
    %4 = vector.load %arg3[%c0_2, %c0_3] : memref<256x4xbf16, #tpu.memory_space<vmem>>, vector<256x4xbf16>
    %c0_4 = arith.constant 0 : index
    %c0_5 = arith.constant 0 : index
    %5 = vector.load %arg4[%c0_4, %c0_5] : memref<4x128xbf16, #tpu.memory_space<vmem>>, vector<4x128xbf16>
    %cst = arith.constant dense<0.000000e+00> : vector<256x128xf32>
    %6 = tpu.matmul %4, %5, %cst {dimension_numbers = #tpu.dot_dimension_numbers<[1], [0], [0], [1], [0, 0, 1, 1], [], []>} : vector<256x4xbf16>, vector<4x128xbf16>, vector<256x128xf32> -> vector<256x128xf32>
    %7 = arith.addf %3, %6 : vector<256x128xf32>
    %c0_6 = arith.constant 0 : index
    %c0_7 = arith.constant 0 : index
    %8 = vector.load %arg8[%c0_6, %c0_7] : memref<256x128xf32, #tpu.memory_space<vmem>>, vector<256x128xf32>
    tpu.vector_store %arg8[%c0_6, %c0_7], %7 {strides = array<i32>} : memref<256x128xf32, #tpu.memory_space<vmem>>, vector<256x128xf32>,
    %c0_i32_8 = arith.constant 0 : i32
    %9 = arith.cmpi eq, %arg2, %c0_i32_8 : i32
    %10 = arith.extui %9 : i1 to i32
    %c0_i32_9 = arith.constant 0 : i32
    %11 = arith.cmpi ne, %10, %c0_i32_9 : i32
    scf.if %11 {
      %c0_10 = arith.constant 0 : index
      %c0_11 = arith.constant 0 : index
      %12 = vector.load %arg8[%c0_10, %c0_11] : memref<256x128xf32, #tpu.memory_space<vmem>>, vector<256x128xf32>
      %c0_12 = arith.constant 0 : index
      %c0_13 = arith.constant 0 : index
      %13 = vector.load %arg5[%c0_12, %c0_13] : memref<1x128xf32, #tpu.memory_space<vmem>>, vector<1x128xf32>
      %14 = vector.broadcast %13 : vector<1x128xf32> to vector<256x128xf32>
      %15 = arith.mulf %12, %14 : vector<256x128xf32>
      %c0_14 = arith.constant 0 : index
      %c0_15 = arith.constant 0 : index
      %16 = vector.load %arg6[%c0_14, %c0_15] : memref<1x128xf32, #tpu.memory_space<vmem>>, vector<1x128xf32>
      %17 = vector.broadcast %16 : vector<1x128xf32> to vector<256x128xf32>
      %18 = arith.addf %15, %17 : vector<256x128xf32>
      %19 = arith.truncf %18 : vector<256x128xf32> to vector<256x128xbf16>
      %c0_16 = arith.constant 0 : index
      %c0_17 = arith.constant 0 : index
      %20 = vector.load %arg7[%c0_16, %c0_17] : memref<256x128xbf16, #tpu.memory_space<vmem>>, vector<256x128xbf16>
      tpu.vector_store %arg7[%c0_16, %c0_17], %19 {strides = array<i32>} : memref<256x128xbf16, #tpu.memory_space<vmem>>, vector<256x128xbf16>,
    } else {
    }
    return
  }
  func.func @transform_0(%arg0: i32, %arg1: i32, %arg2: i32) -> (i32, i32) {
    %c0_i32 = arith.constant 0 : i32
    return %arg0, %arg2 : i32, i32
  }
  func.func @transform_1(%arg0: i32, %arg1: i32, %arg2: i32) -> (i32, i32) {
    %c0_i32 = arith.constant 0 : i32
    return %arg2, %arg1 : i32, i32
  }
  func.func @transform_2(%arg0: i32, %arg1: i32, %arg2: i32) -> (i32, i32) {
    %c0_i32 = arith.constant 0 : i32
    %c0_i32_0 = arith.constant 0 : i32
    return %c0_i32, %arg1 : i32, i32
  }
  func.func @transform_3(%arg0: i32, %arg1: i32, %arg2: i32) -> (i32, i32) {
    %c0_i32 = arith.constant 0 : i32
    %c0_i32_0 = arith.constant 0 : i32
    return %c0_i32, %arg1 : i32, i32
  }
  func.func @transform_4(%arg0: i32, %arg1: i32, %arg2: i32) -> (i32, i32) {
    %c0_i32 = arith.constant 0 : i32
    return %arg0, %arg1 : i32, i32
  }
}

module attributes {stable_mosaic.version = 11 : i64} {
  func.func @_fused_matmul_kernel(%arg0: i32, %arg1: i32, %arg2: i32, %arg3: memref<256x36xbf16, #tpu.memory_space<vmem>>, %arg4: memref<36x128xbf16, #tpu.memory_space<vmem>>, %arg5: memref<1x128xf32, #tpu.memory_space<vmem>>, %arg6: memref<1x128xf32, #tpu.memory_space<vmem>>, %arg7: memref<256x128xbf16, #tpu.memory_space<vmem>>, %arg8: memref<256x128xf32, #tpu.memory_space<vmem>>) attributes {dimension_semantics = [#tpu.dimension_semantics<parallel>, #tpu.dimension_semantics<parallel>, #tpu.dimension_semantics<arbitrary>], iteration_bounds = array<i64: 2, 1, 1>, scalar_prefetch = 0 : i64, scratch_operands = 1 : i64, tpu.core_type = #tpu.core_type<tc>, window_params = [{transform_indices = @transform_0, window_bounds = array<i64: 256, 36>}, {transform_indices = @transform_1, window_bounds = array<i64: 36, 128>}, {transform_indices = @transform_2, window_bounds = array<i64: 1, 128>}, {transform_indices = @transform_3, window_bounds = array<i64: 1, 128>}, {transform_indices = @transform_4, window_bounds = array<i64: 256, 128>}]} {
    %c0_i32 = arith.constant 0 : i32
    %0 = arith.cmpi eq, %arg2, %c0_i32 : i32
    %1 = arith.extui %0 : i1 to i32
    %c0_i32_0 = arith.constant 0 : i32
    %2 = arith.cmpi ne, %1, %c0_i32_0 : i32
    scf.if %2 {
      %cst_10 = arith.constant 0.000000e+00 : f32
      %12 = vector.broadcast %cst_10 : f32 to vector<256x128xf32>
      %c0_11 = arith.constant 0 : index
      %c0_12 = arith.constant 0 : index
      %13 = vector.load %arg8[%c0_11, %c0_12] : memref<256x128xf32, #tpu.memory_space<vmem>>, vector<256x128xf32>
      tpu.vector_store %arg8[%c0_11, %c0_12], %12 {strides = array<i32>} : memref<256x128xf32, #tpu.memory_space<vmem>>, vector<256x128xf32>,
    } else {
    }
    %c0 = arith.constant 0 : index
    %c0_1 = arith.constant 0 : index
    %3 = vector.load %arg8[%c0, %c0_1] : memref<256x128xf32, #tpu.memory_space<vmem>>, vector<256x128xf32>
    %c0_2 = arith.constant 0 : index
    %c0_3 = arith.constant 0 : index
    %4 = vector.load %arg3[%c0_2, %c0_3] : memref<256x36xbf16, #tpu.memory_space<vmem>>, vector<256x36xbf16>
    %c0_4 = arith.constant 0 : index
    %c0_5 = arith.constant 0 : index
    %5 = vector.load %arg4[%c0_4, %c0_5] : memref<36x128xbf16, #tpu.memory_space<vmem>>, vector<36x128xbf16>
    %cst = arith.constant dense<0.000000e+00> : vector<256x128xf32>
    %6 = tpu.matmul %4, %5, %cst {dimension_numbers = #tpu.dot_dimension_numbers<[1], [0], [0], [1], [0, 0, 1, 1], [], []>} : vector<256x36xbf16>, vector<36x128xbf16>, vector<256x128xf32> -> vector<256x128xf32>
    %7 = arith.addf %3, %6 : vector<256x128xf32>
    %c0_6 = arith.constant 0 : index
    %c0_7 = arith.constant 0 : index
    %8 = vector.load %arg8[%c0_6, %c0_7] : memref<256x128xf32, #tpu.memory_space<vmem>>, vector<256x128xf32>
    tpu.vector_store %arg8[%c0_6, %c0_7], %7 {strides = array<i32>} : memref<256x128xf32, #tpu.memory_space<vmem>>, vector<256x128xf32>,
    %c0_i32_8 = arith.constant 0 : i32
    %9 = arith.cmpi eq, %arg2, %c0_i32_8 : i32
    %10 = arith.extui %9 : i1 to i32
    %c0_i32_9 = arith.constant 0 : i32
    %11 = arith.cmpi ne, %10, %c0_i32_9 : i32
    scf.if %11 {
      %c0_10 = arith.constant 0 : index
      %c0_11 = arith.constant 0 : index
      %12 = vector.load %arg8[%c0_10, %c0_11] : memref<256x128xf32, #tpu.memory_space<vmem>>, vector<256x128xf32>
      %c0_12 = arith.constant 0 : index
      %c0_13 = arith.constant 0 : index
      %13 = vector.load %arg5[%c0_12, %c0_13] : memref<1x128xf32, #tpu.memory_space<vmem>>, vector<1x128xf32>
      %14 = vector.broadcast %13 : vector<1x128xf32> to vector<256x128xf32>
      %15 = arith.mulf %12, %14 : vector<256x128xf32>
      %c0_14 = arith.constant 0 : index
      %c0_15 = arith.constant 0 : index
      %16 = vector.load %arg6[%c0_14, %c0_15] : memref<1x128xf32, #tpu.memory_space<vmem>>, vector<1x128xf32>
      %17 = vector.broadcast %16 : vector<1x128xf32> to vector<256x128xf32>
      %18 = arith.addf %15, %17 : vector<256x128xf32>
      %cst_16 = arith.constant 0.000000e+00 : f32
      %19 = vector.broadcast %cst_16 : f32 to vector<256x128xf32>
      %20 = arith.maximumf %18, %19 : vector<256x128xf32>
      %21 = arith.truncf %20 : vector<256x128xf32> to vector<256x128xbf16>
      %c0_17 = arith.constant 0 : index
      %c0_18 = arith.constant 0 : index
      %22 = vector.load %arg7[%c0_17, %c0_18] : memref<256x128xbf16, #tpu.memory_space<vmem>>, vector<256x128xbf16>
      tpu.vector_store %arg7[%c0_17, %c0_18], %21 {strides = array<i32>} : memref<256x128xbf16, #tpu.memory_space<vmem>>, vector<256x128xbf16>,
    } else {
    }
    return
  }
  func.func @transform_0(%arg0: i32, %arg1: i32, %arg2: i32) -> (i32, i32) {
    %c0_i32 = arith.constant 0 : i32
    return %arg0, %arg2 : i32, i32
  }
  func.func @transform_1(%arg0: i32, %arg1: i32, %arg2: i32) -> (i32, i32) {
    %c0_i32 = arith.constant 0 : i32
    return %arg2, %arg1 : i32, i32
  }
  func.func @transform_2(%arg0: i32, %arg1: i32, %arg2: i32) -> (i32, i32) {
    %c0_i32 = arith.constant 0 : i32
    %c0_i32_0 = arith.constant 0 : i32
    return %c0_i32, %arg1 : i32, i32
  }
  func.func @transform_3(%arg0: i32, %arg1: i32, %arg2: i32) -> (i32, i32) {
    %c0_i32 = arith.constant 0 : i32
    %c0_i32_0 = arith.constant 0 : i32
    return %c0_i32, %arg1 : i32, i32
  }
  func.func @transform_4(%arg0: i32, %arg1: i32, %arg2: i32) -> (i32, i32) {
    %c0_i32 = arith.constant 0 : i32
    return %arg0, %arg1 : i32, i32
  }
}

module attributes {stable_mosaic.version = 11 : i64} {
  func.func @_fused_matmul_kernel(%arg0: i32, %arg1: i32, %arg2: i32, %arg3: memref<256x72xbf16, #tpu.memory_space<vmem>>, %arg4: memref<72x128xbf16, #tpu.memory_space<vmem>>, %arg5: memref<1x128xf32, #tpu.memory_space<vmem>>, %arg6: memref<1x128xf32, #tpu.memory_space<vmem>>, %arg7: memref<256x128xbf16, #tpu.memory_space<vmem>>, %arg8: memref<256x128xbf16, #tpu.memory_space<vmem>>, %arg9: memref<256x128xf32, #tpu.memory_space<vmem>>) attributes {dimension_semantics = [#tpu.dimension_semantics<parallel>, #tpu.dimension_semantics<parallel>, #tpu.dimension_semantics<arbitrary>], iteration_bounds = array<i64: 2, 1, 1>, scalar_prefetch = 0 : i64, scratch_operands = 1 : i64, tpu.core_type = #tpu.core_type<tc>, window_params = [{transform_indices = @transform_0, window_bounds = array<i64: 256, 72>}, {transform_indices = @transform_1, window_bounds = array<i64: 72, 128>}, {transform_indices = @transform_2, window_bounds = array<i64: 1, 128>}, {transform_indices = @transform_3, window_bounds = array<i64: 1, 128>}, {transform_indices = @transform_4, window_bounds = array<i64: 256, 128>}, {transform_indices = @transform_5, window_bounds = array<i64: 256, 128>}]} {
    %c0_i32 = arith.constant 0 : i32
    %0 = arith.cmpi eq, %arg2, %c0_i32 : i32
    %1 = arith.extui %0 : i1 to i32
    %c0_i32_0 = arith.constant 0 : i32
    %2 = arith.cmpi ne, %1, %c0_i32_0 : i32
    scf.if %2 {
      %cst_10 = arith.constant 0.000000e+00 : f32
      %12 = vector.broadcast %cst_10 : f32 to vector<256x128xf32>
      %c0_11 = arith.constant 0 : index
      %c0_12 = arith.constant 0 : index
      %13 = vector.load %arg9[%c0_11, %c0_12] : memref<256x128xf32, #tpu.memory_space<vmem>>, vector<256x128xf32>
      tpu.vector_store %arg9[%c0_11, %c0_12], %12 {strides = array<i32>} : memref<256x128xf32, #tpu.memory_space<vmem>>, vector<256x128xf32>,
    } else {
    }
    %c0 = arith.constant 0 : index
    %c0_1 = arith.constant 0 : index
    %3 = vector.load %arg9[%c0, %c0_1] : memref<256x128xf32, #tpu.memory_space<vmem>>, vector<256x128xf32>
    %c0_2 = arith.constant 0 : index
    %c0_3 = arith.constant 0 : index
    %4 = vector.load %arg3[%c0_2, %c0_3] : memref<256x72xbf16, #tpu.memory_space<vmem>>, vector<256x72xbf16>
    %c0_4 = arith.constant 0 : index
    %c0_5 = arith.constant 0 : index
    %5 = vector.load %arg4[%c0_4, %c0_5] : memref<72x128xbf16, #tpu.memory_space<vmem>>, vector<72x128xbf16>
    %cst = arith.constant dense<0.000000e+00> : vector<256x128xf32>
    %6 = tpu.matmul %4, %5, %cst {dimension_numbers = #tpu.dot_dimension_numbers<[1], [0], [0], [1], [0, 0, 1, 1], [], []>} : vector<256x72xbf16>, vector<72x128xbf16>, vector<256x128xf32> -> vector<256x128xf32>
    %7 = arith.addf %3, %6 : vector<256x128xf32>
    %c0_6 = arith.constant 0 : index
    %c0_7 = arith.constant 0 : index
    %8 = vector.load %arg9[%c0_6, %c0_7] : memref<256x128xf32, #tpu.memory_space<vmem>>, vector<256x128xf32>
    tpu.vector_store %arg9[%c0_6, %c0_7], %7 {strides = array<i32>} : memref<256x128xf32, #tpu.memory_space<vmem>>, vector<256x128xf32>,
    %c0_i32_8 = arith.constant 0 : i32
    %9 = arith.cmpi eq, %arg2, %c0_i32_8 : i32
    %10 = arith.extui %9 : i1 to i32
    %c0_i32_9 = arith.constant 0 : i32
    %11 = arith.cmpi ne, %10, %c0_i32_9 : i32
    scf.if %11 {
      %c0_10 = arith.constant 0 : index
      %c0_11 = arith.constant 0 : index
      %12 = vector.load %arg9[%c0_10, %c0_11] : memref<256x128xf32, #tpu.memory_space<vmem>>, vector<256x128xf32>
      %c0_12 = arith.constant 0 : index
      %c0_13 = arith.constant 0 : index
      %13 = vector.load %arg5[%c0_12, %c0_13] : memref<1x128xf32, #tpu.memory_space<vmem>>, vector<1x128xf32>
      %14 = vector.broadcast %13 : vector<1x128xf32> to vector<256x128xf32>
      %15 = arith.mulf %12, %14 : vector<256x128xf32>
      %c0_14 = arith.constant 0 : index
      %c0_15 = arith.constant 0 : index
      %16 = vector.load %arg6[%c0_14, %c0_15] : memref<1x128xf32, #tpu.memory_space<vmem>>, vector<1x128xf32>
      %17 = vector.broadcast %16 : vector<1x128xf32> to vector<256x128xf32>
      %18 = arith.addf %15, %17 : vector<256x128xf32>
      %c0_16 = arith.constant 0 : index
      %c0_17 = arith.constant 0 : index
      %19 = vector.load %arg7[%c0_16, %c0_17] : memref<256x128xbf16, #tpu.memory_space<vmem>>, vector<256x128xbf16>
      %20 = arith.extf %19 : vector<256x128xbf16> to vector<256x128xf32>
      %21 = arith.addf %18, %20 : vector<256x128xf32>
      %cst_18 = arith.constant 0.000000e+00 : f32
      %22 = vector.broadcast %cst_18 : f32 to vector<256x128xf32>
      %23 = arith.maximumf %21, %22 : vector<256x128xf32>
      %24 = arith.truncf %23 : vector<256x128xf32> to vector<256x128xbf16>
      %c0_19 = arith.constant 0 : index
      %c0_20 = arith.constant 0 : index
      %25 = vector.load %arg8[%c0_19, %c0_20] : memref<256x128xbf16, #tpu.memory_space<vmem>>, vector<256x128xbf16>
      tpu.vector_store %arg8[%c0_19, %c0_20], %24 {strides = array<i32>} : memref<256x128xbf16, #tpu.memory_space<vmem>>, vector<256x128xbf16>,
    } else {
    }
    return
  }
  func.func @transform_0(%arg0: i32, %arg1: i32, %arg2: i32) -> (i32, i32) {
    %c0_i32 = arith.constant 0 : i32
    return %arg0, %arg2 : i32, i32
  }
  func.func @transform_1(%arg0: i32, %arg1: i32, %arg2: i32) -> (i32, i32) {
    %c0_i32 = arith.constant 0 : i32
    return %arg2, %arg1 : i32, i32
  }
  func.func @transform_2(%arg0: i32, %arg1: i32, %arg2: i32) -> (i32, i32) {
    %c0_i32 = arith.constant 0 : i32
    %c0_i32_0 = arith.constant 0 : i32
    return %c0_i32, %arg1 : i32, i32
  }
  func.func @transform_3(%arg0: i32, %arg1: i32, %arg2: i32) -> (i32, i32) {
    %c0_i32 = arith.constant 0 : i32
    %c0_i32_0 = arith.constant 0 : i32
    return %c0_i32, %arg1 : i32, i32
  }
  func.func @transform_4(%arg0: i32, %arg1: i32, %arg2: i32) -> (i32, i32) {
    %c0_i32 = arith.constant 0 : i32
    return %arg0, %arg1 : i32, i32
  }
  func.func @transform_5(%arg0: i32, %arg1: i32, %arg2: i32) -> (i32, i32) {
    %c0_i32 = arith.constant 0 : i32
    return %arg0, %arg1 : i32, i32
  }
}

module attributes {stable_mosaic.version = 11 : i64} {
  func.func @_fused_matmul_kernel(%arg0: i32, %arg1: i32, %arg2: i32, %arg3: memref<2x512xbf16, #tpu.memory_space<vmem>>, %arg4: memref<512x128xbf16, #tpu.memory_space<vmem>>, %arg5: memref<1x128xf32, #tpu.memory_space<vmem>>, %arg6: memref<2x128xf32, #tpu.memory_space<vmem>>, %arg7: memref<2x128xf32, #tpu.memory_space<vmem>>) attributes {dimension_semantics = [#tpu.dimension_semantics<parallel>, #tpu.dimension_semantics<parallel>, #tpu.dimension_semantics<arbitrary>], iteration_bounds = array<i64: 1, 1, 4>, scalar_prefetch = 0 : i64, scratch_operands = 1 : i64, tpu.core_type = #tpu.core_type<tc>, window_params = [{transform_indices = @transform_0, window_bounds = array<i64: 2, 512>}, {transform_indices = @transform_1, window_bounds = array<i64: 512, 128>}, {transform_indices = @transform_2, window_bounds = array<i64: 1, 128>}, {transform_indices = @transform_3, window_bounds = array<i64: 2, 128>}]} {
    %c0_i32 = arith.constant 0 : i32
    %0 = arith.cmpi eq, %arg2, %c0_i32 : i32
    %1 = arith.extui %0 : i1 to i32
    %c0_i32_0 = arith.constant 0 : i32
    %2 = arith.cmpi ne, %1, %c0_i32_0 : i32
    scf.if %2 {
      %cst_9 = arith.constant 0.000000e+00 : f32
      %12 = vector.broadcast %cst_9 : f32 to vector<2x128xf32>
      %c0_10 = arith.constant 0 : index
      %c0_11 = arith.constant 0 : index
      %13 = vector.load %arg7[%c0_10, %c0_11] : memref<2x128xf32, #tpu.memory_space<vmem>>, vector<2x128xf32>
      tpu.vector_store %arg7[%c0_10, %c0_11], %12 {strides = array<i32>} : memref<2x128xf32, #tpu.memory_space<vmem>>, vector<2x128xf32>,
    } else {
    }
    %c0 = arith.constant 0 : index
    %c0_1 = arith.constant 0 : index
    %3 = vector.load %arg7[%c0, %c0_1] : memref<2x128xf32, #tpu.memory_space<vmem>>, vector<2x128xf32>
    %c0_2 = arith.constant 0 : index
    %c0_3 = arith.constant 0 : index
    %4 = vector.load %arg3[%c0_2, %c0_3] : memref<2x512xbf16, #tpu.memory_space<vmem>>, vector<2x512xbf16>
    %c0_4 = arith.constant 0 : index
    %c0_5 = arith.constant 0 : index
    %5 = vector.load %arg4[%c0_4, %c0_5] : memref<512x128xbf16, #tpu.memory_space<vmem>>, vector<512x128xbf16>
    %cst = arith.constant dense<0.000000e+00> : vector<2x128xf32>
    %6 = tpu.matmul %4, %5, %cst {dimension_numbers = #tpu.dot_dimension_numbers<[1], [0], [0], [1], [0, 0, 1, 1], [], []>} : vector<2x512xbf16>, vector<512x128xbf16>, vector<2x128xf32> -> vector<2x128xf32>
    %7 = arith.addf %3, %6 : vector<2x128xf32>
    %c0_6 = arith.constant 0 : index
    %c0_7 = arith.constant 0 : index
    %8 = vector.load %arg7[%c0_6, %c0_7] : memref<2x128xf32, #tpu.memory_space<vmem>>, vector<2x128xf32>
    tpu.vector_store %arg7[%c0_6, %c0_7], %7 {strides = array<i32>} : memref<2x128xf32, #tpu.memory_space<vmem>>, vector<2x128xf32>,
    %c3_i32 = arith.constant 3 : i32
    %9 = arith.cmpi eq, %arg2, %c3_i32 : i32
    %10 = arith.extui %9 : i1 to i32
    %c0_i32_8 = arith.constant 0 : i32
    %11 = arith.cmpi ne, %10, %c0_i32_8 : i32
    scf.if %11 {
      %c0_9 = arith.constant 0 : index
      %c0_10 = arith.constant 0 : index
      %12 = vector.load %arg7[%c0_9, %c0_10] : memref<2x128xf32, #tpu.memory_space<vmem>>, vector<2x128xf32>
      %c0_11 = arith.constant 0 : index
      %c0_12 = arith.constant 0 : index
      %13 = vector.load %arg5[%c0_11, %c0_12] : memref<1x128xf32, #tpu.memory_space<vmem>>, vector<1x128xf32>
      %14 = vector.broadcast %13 : vector<1x128xf32> to vector<2x128xf32>
      %15 = arith.addf %12, %14 : vector<2x128xf32>
      %c0_13 = arith.constant 0 : index
      %c0_14 = arith.constant 0 : index
      %16 = vector.load %arg6[%c0_13, %c0_14] : memref<2x128xf32, #tpu.memory_space<vmem>>, vector<2x128xf32>
      tpu.vector_store %arg6[%c0_13, %c0_14], %15 {strides = array<i32>} : memref<2x128xf32, #tpu.memory_space<vmem>>, vector<2x128xf32>,
    } else {
    }
    return
  }
  func.func @transform_0(%arg0: i32, %arg1: i32, %arg2: i32) -> (i32, i32) {
    %c0_i32 = arith.constant 0 : i32
    return %arg0, %arg2 : i32, i32
  }
  func.func @transform_1(%arg0: i32, %arg1: i32, %arg2: i32) -> (i32, i32) {
    %c0_i32 = arith.constant 0 : i32
    return %arg2, %arg1 : i32, i32
  }
  func.func @transform_2(%arg0: i32, %arg1: i32, %arg2: i32) -> (i32, i32) {
    %c0_i32 = arith.constant 0 : i32
    %c0_i32_0 = arith.constant 0 : i32
    return %c0_i32, %arg1 : i32, i32
  }
  func.func @transform_3(%arg0: i32, %arg1: i32, %arg2: i32) -> (i32, i32) {
    %c0_i32 = arith.constant 0 : i32
    return %arg0, %arg1 : i32, i32
  }
}

</mosaic_0001>

<llo_original>
// kernel: resnet_forward.7
$region0: #{resnet_forward.7}
  #allocation0 [shape = 'u32[]', space=smem, size = 0x4, offset = 0x4, fixed_abs, tag = 'smem constant byte address 0x4 - core index']
  #allocation1 [shape = 'u32[72,128]{1,0:T(1,128)}', space=vmem, size = 0x9000, scoped, tag = 'internal scratch']
  #allocation2 [shape = 'f32[512,128]{1,0:T(8,128)}', space=vmem, size = 0x40000, scoped, tag = 'scratch operand']
  %s0 = inlined_call_operand.vmem [shape: bf16[2048,27], index: 0, kind: input, shape index: {}]
  %s1 = inlined_call_operand.vmem [shape: bf16[27,128], index: 1, kind: input, shape index: {}]
  %s2 = inlined_call_operand.vmem [shape: f32[1,128], index: 2, kind: input, shape index: {}]
  %s3 = inlined_call_operand.vmem [shape: f32[1,128], index: 3, kind: input, shape index: {}]
  %s4 = inlined_call_operand.vmem [shape: bf16[2048,128], index: 4, kind: output, shape index: {}]
  %s5 = sld [smem:[#allocation0]]
  $region57: #{resnet_forward.7} parent=0
    _
  %s7 = ssub.s32 1, %s5
  %s8 = scalar_select 0, %s7, %s5
  loop: start=0, step=1, limit=6
  $region2: #{resnet_forward.7} parent=0 // loop_pre_header
    _
  $region3: #{resnet_forward.7} parent=0 // loop_header
    %s10 = sphi 0, %s14
    %p11 = scmp.ge.s32.totalorder %s10, 6
    %s17 = sphi 0, %s36
    %s18 = sphi 0, %s32
    %s19 = sphi 0, %s28
    %s20 = sphi 0, %s17
    %s21 = sphi 0, %s18
    %s22 = sphi 0, %s19
    %s23 = sphi 0, %s20
    %s24 = sphi 0, %s21
    %s25 = sphi 0, %s22
    %s41 = sphi 0, %s43
    %s44 = sphi 0, %s41
    %s45 = sphi 0, %s44
    %s61 = sphi 0, %s45
    %s69 = sphi 0, %s71
    %s72 = sphi 0, %s69
    %s73 = sphi 0, %s72
    %s89 = sphi 0, %s73
    %s95 = sphi 0, %s97
    %s98 = sphi 0, %s95
    %s99 = sphi 0, %s98
    %s115 = sphi 0, %s99
    %s121 = sphi 0, %s123
    %s124 = sphi 0, %s121
    %s125 = sphi 0, %s124
    %s141 = sphi 0, %s125
    %s149 = sphi 0, %s151
    %s152 = sphi 0, %s149
    %s153 = sphi 0, %s152
    %s169 = sphi 0, %s153
  $region4: #{resnet_forward.7} parent=0 // loop_header_branch
    %13 = sbr.rel (%p11) target = $region8
  $region5: #{resnet_forward.7} parent=0 // loop_body
    %s15 = ssub.s32 %s10, 1
    %s16 = ssub.s32 %s10, 2
    %s26 = sadd.s32 1, %s19
    %p27 = scmp.ge.s32.totalorder %s26, 1
    %s28 = scalar_select %p27, 0, %s26
    %s29 = sadd.s32 1, %s18
    %s30 = scalar_select %p27, %s29, %s18
    %p31 = scmp.ge.s32.totalorder %s30, 1
    %s32 = scalar_select %p31, 0, %s30
    %s33 = sadd.s32 1, %s17
    %s34 = scalar_select %p31, %s33, %s17
    %p35 = scmp.ge.s32.totalorder %s34, 4
    %s36 = scalar_select %p35, 0, %s34
    %s37 = ssub.s32 %s17, %s36
    %s38 = ssub.s32 %s19, %s28
    %s39 = sor.u32 %s37, %s38
    %p40 = scmp.eq.s32.totalorder %s39, 0
    %s42 = sadd.s32 %s41, 1
    %s43 = scalar_select %p40, %s41, %s42
    %p46 = pneg %p40
    %p47 = scmp.eq.s32.totalorder %s10, 3
    %p48 = por %p46, %p47
    %p49 = scmp.ne.s32.totalorder %s41, %s44
    %p50 = scmp.eq.s32.totalorder %s10, 0
    %p51 = por %p49, %p50
    %p52 = scmp.ne.s32.totalorder %s41, %s44
    %p53 = scmp.eq.s32.totalorder %s15, 3
    %p54 = por %p52, %p53
    %p55 = scmp.ne.s32.totalorder %s44, %s45
    %p56 = scmp.eq.s32.totalorder %s15, 0
    %p57 = por %p55, %p56
    %p58 = scmp.ne.s32.totalorder %s44, %s45
    %p59 = scmp.eq.s32.totalorder %s16, 3
    %p60 = por %p58, %p59
    %p62 = scmp.ne.s32.totalorder %s45, %s61
    %p63 = scmp.eq.s32.totalorder %s16, 0
    %p64 = por %p62, %p63
    %s65 = ssub.s32 %s19, %s28
    %s66 = ssub.s32 %s18, %s32
    %s67 = sor.u32 %s65, %s66
    %p68 = scmp.eq.s32.totalorder %s67, 0
    %s70 = sadd.s32 %s69, 1
    %s71 = scalar_select %p68, %s69, %s70
    %p74 = pneg %p68
    %p75 = scmp.eq.s32.totalorder %s10, 3
    %p76 = por %p74, %p75
    %p77 = scmp.ne.s32.totalorder %s69, %s72
    %p78 = scmp.eq.s32.totalorder %s10, 0
    %p79 = por %p77, %p78
    %p80 = scmp.ne.s32.totalorder %s69, %s72
    %p81 = scmp.eq.s32.totalorder %s15, 3
    %p82 = por %p80, %p81
    %p83 = scmp.ne.s32.totalorder %s72, %s73
    %p84 = scmp.eq.s32.totalorder %s15, 0
    %p85 = por %p83, %p84
    %p86 = scmp.ne.s32.totalorder %s72, %s73
    %p87 = scmp.eq.s32.totalorder %s16, 3
    %p88 = por %p86, %p87
    %p90 = scmp.ne.s32.totalorder %s73, %s89
    %p91 = scmp.eq.s32.totalorder %s16, 0
    %p92 = por %p90, %p91
    %s93 = ssub.s32 %s18, %s32
    %p94 = scmp.eq.s32.totalorder %s93, 0
    %s96 = sadd.s32 %s95, 1
    %s97 = scalar_select %p94, %s95, %s96
    %p100 = pneg %p94
    %p101 = scmp.eq.s32.totalorder %s10, 3
    %p102 = por %p100, %p101
    %p103 = scmp.ne.s32.totalorder %s95, %s98
    %p104 = scmp.eq.s32.totalorder %s10, 0
    %p105 = por %p103, %p104
    %p106 = scmp.ne.s32.totalorder %s95, %s98
    %p107 = scmp.eq.s32.totalorder %s15, 3
    %p108 = por %p106, %p107
    %p109 = scmp.ne.s32.totalorder %s98, %s99
    %p110 = scmp.eq.s32.totalorder %s15, 0
    %p111 = por %p109, %p110
    %p112 = scmp.ne.s32.totalorder %s98, %s99
    %p113 = scmp.eq.s32.totalorder %s16, 3
    %p114 = por %p112, %p113
    %p116 = scmp.ne.s32.totalorder %s99, %s115
    %p117 = scmp.eq.s32.totalorder %s16, 0
    %p118 = por %p116, %p117
    %s119 = ssub.s32 %s18, %s32
    %p120 = scmp.eq.s32.totalorder %s119, 0
    %s122 = sadd.s32 %s121, 1
    %s123 = scalar_select %p120, %s121, %s122
    %p126 = pneg %p120
    %p127 = scmp.eq.s32.totalorder %s10, 3
    %p128 = por %p126, %p127
    %p129 = scmp.ne.s32.totalorder %s121, %s124
    %p130 = scmp.eq.s32.totalorder %s10, 0
    %p131 = por %p129, %p130
    %p132 = scmp.ne.s32.totalorder %s121, %s124
    %p133 = scmp.eq.s32.totalorder %s15, 3
    %p134 = por %p132, %p133
    %p135 = scmp.ne.s32.totalorder %s124, %s125
    %p136 = scmp.eq.s32.totalorder %s15, 0
    %p137 = por %p135, %p136
    %p138 = scmp.ne.s32.totalorder %s124, %s125
    %p139 = scmp.eq.s32.totalorder %s16, 3
    %p140 = por %p138, %p139
    %p142 = scmp.ne.s32.totalorder %s125, %s141
    %p143 = scmp.eq.s32.totalorder %s16, 0
    %p144 = por %p142, %p143
    %s145 = ssub.s32 %s17, %s36
    %s146 = ssub.s32 %s18, %s32
    %s147 = sor.u32 %s145, %s146
    %p148 = scmp.eq.s32.totalorder %s147, 0
    %s150 = sadd.s32 %s149, 1
    %s151 = scalar_select %p148, %s149, %s150
    %p154 = pneg %p148
    %p155 = scmp.eq.s32.totalorder %s10, 3
    %p156 = por %p154, %p155
    %p157 = scmp.ne.s32.totalorder %s149, %s152
    %p158 = scmp.eq.s32.totalorder %s10, 0
    %p159 = por %p157, %p158
    %p160 = scmp.ne.s32.totalorder %s149, %s152
    %p161 = scmp.eq.s32.totalorder %s15, 3
    %p162 = por %p160, %p161
    %p163 = scmp.ne.s32.totalorder %s152, %s153
    %p164 = scmp.eq.s32.totalorder %s15, 0
    %p165 = por %p163, %p164
    %p166 = scmp.ne.s32.totalorder %s152, %s153
    %p167 = scmp.eq.s32.totalorder %s16, 3
    %p168 = por %p166, %p167
    %p170 = scmp.ne.s32.totalorder %s153, %s169
    %p171 = scmp.eq.s32.totalorder %s16, 0
    %p172 = por %p170, %p171
    %p173 = scmp.le.s32.totalorder 1, %s10
    %p174 = scmp.lt.s32.totalorder %s10, 5
    %p175 = pnand %p173, %p174
    %p176 = pneg %p175
    // Predicated region
    $region9: #{resnet_forward.7} parent=5 // pred_check
      _
    $region10: #{resnet_forward.7} parent=5 // pred_check_branch
      %178 = sbr.rel (%p175) target = $region12
    $region11: #{resnet_forward.7} parent=5 // pred_region
      %s179 = ssub.s32 %s10, 1
      // Predicated region
      $region13: #{resnet_forward.7} parent=11 // pred_check
        %p180 = pneg %p85
      $region14: #{resnet_forward.7} parent=11 // pred_check_branch
        %182 = sbr.rel (%p180) target = $region16
      $region15: #{resnet_forward.7} parent=11 // pred_region
        %s183 = smul.u32 4, %s22
        %p184 = scmp.lt.s32.totalorder %s183, 3
        %s185 = scalar_select %p184, %s183, 3
        %p186 = scmp.lt.s32.totalorder %s21, 0
        %s187 = scalar_select %p186, %s21, 0
        %s188 = sadd.s32 %s187, %s185
        %s189 = smul.addr %s188, 4
        %s190 = scalar_lea.vmem %s1, %s189
        %s191 = smul.u32 4, %s22
      $region16: #{resnet_forward.7} parent=11 // pred_fallthru
        _
      // Predicated region
      $region17: #{resnet_forward.7} parent=11 // pred_check
        %p192 = pneg %p111
      $region18: #{resnet_forward.7} parent=11 // pred_check_branch
        %194 = sbr.rel (%p192) target = $region20
      $region19: #{resnet_forward.7} parent=11 // pred_region
        %p195 = scmp.lt.s32.totalorder %s21, 0
        %s196 = scalar_select %p195, %s21, 0
        %s197 = scalar_lea.vmem %s2, %s196
      $region20: #{resnet_forward.7} parent=11 // pred_fallthru
        _
      // Predicated region
      $region21: #{resnet_forward.7} parent=11 // pred_check
        %p198 = pneg %p137
      $region22: #{resnet_forward.7} parent=11 // pred_check_branch
        %200 = sbr.rel (%p198) target = $region24
      $region23: #{resnet_forward.7} parent=11 // pred_region
        %p201 = scmp.lt.s32.totalorder %s21, 0
        %s202 = scalar_select %p201, %s21, 0
        %s203 = scalar_lea.vmem %s3, %s202
      $region24: #{resnet_forward.7} parent=11 // pred_fallthru
        _
    $region12: #{resnet_forward.7} parent=5 // pred_fallthru
      _
    %p204 = scmp.lt.s32.totalorder %s10, 4
    // Predicated region
    $region25: #{resnet_forward.7} parent=5 // pred_check
      %p205 = pneg %p204
    $region26: #{resnet_forward.7} parent=5 // pred_check_branch
      %207 = sbr.rel (%p205) target = $region28
    $region27: #{resnet_forward.7} parent=5 // pred_region
      // Predicated region
      $region29: #{resnet_forward.7} parent=27 // pred_check
        %p208 = pneg %p51
      $region30: #{resnet_forward.7} parent=27 // pred_check_branch
        %210 = sbr.rel (%p208) target = $region32
      $region31: #{resnet_forward.7} parent=27 // pred_region
        %s211 = smul.u32 64, %s17
        %p212 = scmp.lt.s32.totalorder %s211, 255
        %s213 = scalar_select %p212, %s211, 255
        %p214 = scmp.lt.s32.totalorder %s19, 0
        %s215 = scalar_select %p214, %s19, 0
        %s216 = sadd.s32 %s215, %s213
        %s217 = smul.addr %s216, 4
        %s218 = scalar_lea.vmem %s0, %s217
        %s219 = smul.u32 64, %s17
      $region32: #{resnet_forward.7} parent=27 // pred_fallthru
        _
    $region28: #{resnet_forward.7} parent=5 // pred_fallthru
      _
    %p220 = scmp.le.s32.totalorder 1, %s10
    %p221 = scmp.lt.s32.totalorder %s10, 5
    %p222 = pnand %p220, %p221
    %p223 = pneg %p222
    // Predicated region
    $region33: #{resnet_forward.7} parent=5 // pred_check
      _
    $region34: #{resnet_forward.7} parent=5 // pred_check_branch
      %225 = sbr.rel (%p222) target = $region36
    $region35: #{resnet_forward.7} parent=5 // pred_region
      %s226 = ssub.s32 %s10, 1
      %s227 = smul.u32 64, %s20
      %p228 = scmp.lt.s32.totalorder %s227, 255
      %s229 = scalar_select %p228, %s227, 255
      %p230 = scmp.lt.s32.totalorder %s22, 0
      %s231 = scalar_select %p230, %s22, 0
      %s232 = sadd.s32 %s231, %s229
      %s233 = smul.addr %s232, 4
      %s234 = scalar_lea.vmem %s0, %s233
      %p235 = pneg %p57
      %p236 = pneg %p54
      %s237 = smul.u32 4, %s22
      %p238 = scmp.lt.s32.totalorder %s237, 3
      %s239 = scalar_select %p238, %s237, 3
      %p240 = scmp.lt.s32.totalorder %s21, 0
      %s241 = scalar_select %p240, %s21, 0
      %s242 = sadd.s32 %s241, %s239
      %s243 = smul.addr %s242, 4
      %s244 = scalar_lea.vmem %s1, %s243
      %p245 = pneg %p85
      %p246 = pneg %p82
      %p247 = scmp.lt.s32.totalorder %s21, 0
      %s248 = scalar_select %p247, %s21, 0
      %s249 = scalar_lea.vmem %s2, %s248
      %p250 = pneg %p111
      %p251 = pneg %p108
      %p252 = scmp.lt.s32.totalorder %s21, 0
      %s253 = scalar_select %p252, %s21, 0
      %s254 = scalar_lea.vmem %s3, %s253
      %p255 = pneg %p137
      %p256 = pneg %p134
      %p257 = pneg %p165
      %p258 = pneg %p162
      %s259 = smul.u32 64, %s20
      %p260 = scmp.lt.s32.totalorder %s259, 255
      %s261 = scalar_select %p260, %s259, 255
      %p262 = scmp.lt.s32.totalorder %s21, 0
      %s263 = scalar_select %p262, %s21, 0
      %s264 = sadd.s32 %s263, %s261
      %s265 = smul.addr %s264, 4
      %s266 = scalar_lea.vmem %s4, %s265
      %s267 = smul.u32 64, %s20
      %p268 = scmp.lt.s32.totalorder %s267, 255
      %s269 = scalar_select %p268, %s267, 255
      %p270 = scmp.lt.s32.totalorder %s22, 0
      %s271 = scalar_select %p270, %s22, 0
      %s272 = sadd.s32 %s271, %s269
      %s273 = smul.addr %s272, 4
      %s274 = scalar_lea.vmem %s0, %s273
      %s275 = smul.u32 64, %s20
      %s276 = smul.u32 4, %s22
      %p277 = scmp.lt.s32.totalorder %s276, 3
      %s278 = scalar_select %p277, %s276, 3
      %p279 = scmp.lt.s32.totalorder %s21, 0
      %s280 = scalar_select %p279, %s21, 0
      %s281 = sadd.s32 %s280, %s278
      %s282 = smul.addr %s281, 4
      %s283 = scalar_lea.vmem %s1, %s282
      %s284 = smul.u32 4, %s22
      %p285 = scmp.lt.s32.totalorder %s21, 0
      %s286 = scalar_select %p285, %s21, 0
      %s287 = scalar_lea.vmem %s2, %s286
      %p288 = scmp.lt.s32.totalorder %s21, 0
      %s289 = scalar_select %p288, %s21, 0
      %s290 = scalar_lea.vmem %s3, %s289
      %s291 = smul.u32 64, %s20
      %p292 = scmp.lt.s32.totalorder %s291, 255
      %s293 = scalar_select %p292, %s291, 255
      %p294 = scmp.lt.s32.totalorder %s21, 0
      %s295 = scalar_select %p294, %s21, 0
      %s296 = sadd.s32 %s295, %s293
      %s297 = smul.addr %s296, 4
      %s298 = scalar_lea.vmem %s4, %s297
      %s299 = smul.u32 64, %s20
      %p301 = scmp.eq.s32.totalorder %s22, 0
      // Predicated region
      $region37: #{resnet_forward.7} parent=35 // pred_check
        %p302 = pneg %p301
      $region38: #{resnet_forward.7} parent=35 // pred_check_branch
        %304 = sbr.rel (%p302) target = $region40
      $region39: #{resnet_forward.7} parent=35 // pred_region
        %305 = vst [vmem:[#allocation2] sm:$0xff] 0.0
        %306 = vst [vmem:[#allocation2 + $0x8] sm:$0xff] 0.0
        %307 = vst [vmem:[#allocation2 + $0x10] sm:$0xff] 0.0
        %308 = vst [vmem:[#allocation2 + $0x18] sm:$0xff] 0.0
        %309 = vst [vmem:[#allocation2 + $0x20] sm:$0xff] 0.0
        %310 = vst [vmem:[#allocation2 + $0x28] sm:$0xff] 0.0
        %311 = vst [vmem:[#allocation2 + $0x30] sm:$0xff] 0.0
        %312 = vst [vmem:[#allocation2 + $0x38] sm:$0xff] 0.0
        %313 = vst [vmem:[#allocation2 + $0x40] sm:$0xff] 0.0
        %314 = vst [vmem:[#allocation2 + $0x48] sm:$0xff] 0.0
        %315 = vst [vmem:[#allocation2 + $0x50] sm:$0xff] 0.0
        %316 = vst [vmem:[#allocation2 + $0x58] sm:$0xff] 0.0
        %317 = vst [vmem:[#allocation2 + $0x60] sm:$0xff] 0.0
        %318 = vst [vmem:[#allocation2 + $0x68] sm:$0xff] 0.0
        %319 = vst [vmem:[#allocation2 + $0x70] sm:$0xff] 0.0
        %320 = vst [vmem:[#allocation2 + $0x78] sm:$0xff] 0.0
        %321 = vst [vmem:[#allocation2 + $0x80] sm:$0xff] 0.0
        %322 = vst [vmem:[#allocation2 + $0x88] sm:$0xff] 0.0
        %323 = vst [vmem:[#allocation2 + $0x90] sm:$0xff] 0.0
        %324 = vst [vmem:[#allocation2 + $0x98] sm:$0xff] 0.0
        %325 = vst [vmem:[#allocation2 + $0xa0] sm:$0xff] 0.0
        %326 = vst [vmem:[#allocation2 + $0xa8] sm:$0xff] 0.0
        %327 = vst [vmem:[#allocation2 + $0xb0] sm:$0xff] 0.0
        %328 = vst [vmem:[#allocation2 + $0xb8] sm:$0xff] 0.0
        %329 = vst [vmem:[#allocation2 + $0xc0] sm:$0xff] 0.0
        %330 = vst [vmem:[#allocation2 + $0xc8] sm:$0xff] 0.0
        %331 = vst [vmem:[#allocation2 + $0xd0] sm:$0xff] 0.0
        %332 = vst [vmem:[#allocation2 + $0xd8] sm:$0xff] 0.0
        %333 = vst [vmem:[#allocation2 + $0xe0] sm:$0xff] 0.0
        %334 = vst [vmem:[#allocation2 + $0xe8] sm:$0xff] 0.0
        %335 = vst [vmem:[#allocation2 + $0xf0] sm:$0xff] 0.0
        %336 = vst [vmem:[#allocation2 + $0xf8] sm:$0xff] 0.0
        %337 = vst [vmem:[#allocation2 + $0x100] sm:$0xff] 0.0
        %338 = vst [vmem:[#allocation2 + $0x108] sm:$0xff] 0.0
        %339 = vst [vmem:[#allocation2 + $0x110] sm:$0xff] 0.0
        %340 = vst [vmem:[#allocation2 + $0x118] sm:$0xff] 0.0
        %341 = vst [vmem:[#allocation2 + $0x120] sm:$0xff] 0.0
        %342 = vst [vmem:[#allocation2 + $0x128] sm:$0xff] 0.0
        %343 = vst [vmem:[#allocation2 + $0x130] sm:$0xff] 0.0
        %344 = vst [vmem:[#allocation2 + $0x138] sm:$0xff] 0.0
        %345 = vst [vmem:[#allocation2 + $0x140] sm:$0xff] 0.0
        %346 = vst [vmem:[#allocation2 + $0x148] sm:$0xff] 0.0
        %347 = vst [vmem:[#allocation2 + $0x150] sm:$0xff] 0.0
        %348 = vst [vmem:[#allocation2 + $0x158] sm:$0xff] 0.0
        %349 = vst [vmem:[#allocation2 + $0x160] sm:$0xff] 0.0
        %350 = vst [vmem:[#allocation2 + $0x168] sm:$0xff] 0.0
        %351 = vst [vmem:[#allocation2 + $0x170] sm:$0xff] 0.0
        %352 = vst [vmem:[#allocation2 + $0x178] sm:$0xff] 0.0
        %353 = vst [vmem:[#allocation2 + $0x180] sm:$0xff] 0.0
        %354 = vst [vmem:[#allocation2 + $0x188] sm:$0xff] 0.0
        %355 = vst [vmem:[#allocation2 + $0x190] sm:$0xff] 0.0
        %356 = vst [vmem:[#allocation2 + $0x198] sm:$0xff] 0.0
        %357 = vst [vmem:[#allocation2 + $0x1a0] sm:$0xff] 0.0
        %358 = vst [vmem:[#allocation2 + $0x1a8] sm:$0xff] 0.0
        %359 = vst [vmem:[#allocation2 + $0x1b0] sm:$0xff] 0.0
        %360 = vst [vmem:[#allocation2 + $0x1b8] sm:$0xff] 0.0
        %361 = vst [vmem:[#allocation2 + $0x1c0] sm:$0xff] 0.0
        %362 = vst [vmem:[#allocation2 + $0x1c8] sm:$0xff] 0.0
        %363 = vst [vmem:[#allocation2 + $0x1d0] sm:$0xff] 0.0
        %364 = vst [vmem:[#allocation2 + $0x1d8] sm:$0xff] 0.0
        %365 = vst [vmem:[#allocation2 + $0x1e0] sm:$0xff] 0.0
        %366 = vst [vmem:[#allocation2 + $0x1e8] sm:$0xff] 0.0
        %367 = vst [vmem:[#allocation2 + $0x1f0] sm:$0xff] 0.0
        %368 = vst [vmem:[#allocation2 + $0x1f8] sm:$0xff] 0.0
      $region40: #{resnet_forward.7} parent=35 // pred_fallthru
        _
      %v369 = vld [vmem:[#allocation2] sm:$0xff]
      %v370 = vld [vmem:[#allocation2 + $0x8] sm:$0xff]
      %v371 = vld [vmem:[#allocation2 + $0x10] sm:$0xff]
      %v372 = vld [vmem:[#allocation2 + $0x18] sm:$0xff]
      %v373 = vld [vmem:[#allocation2 + $0x20] sm:$0xff]
      %v374 = vld [vmem:[#allocation2 + $0x28] sm:$0xff]
      %v375 = vld [vmem:[#allocation2 + $0x30] sm:$0xff]
      %v376 = vld [vmem:[#allocation2 + $0x38] sm:$0xff]
      %v377 = vld [vmem:[#allocation2 + $0x40] sm:$0xff]
      %v378 = vld [vmem:[#allocation2 + $0x48] sm:$0xff]
      %v379 = vld [vmem:[#allocation2 + $0x50] sm:$0xff]
      %v380 = vld [vmem:[#allocation2 + $0x58] sm:$0xff]
      %v381 = vld [vmem:[#allocation2 + $0x60] sm:$0xff]
      %v382 = vld [vmem:[#allocation2 + $0x68] sm:$0xff]
      %v383 = vld [vmem:[#allocation2 + $0x70] sm:$0xff]
      %v384 = vld [vmem:[#allocation2 + $0x78] sm:$0xff]
      %v385 = vld [vmem:[#allocation2 + $0x80] sm:$0xff]
      %v386 = vld [vmem:[#allocation2 + $0x88] sm:$0xff]
      %v387 = vld [vmem:[#allocation2 + $0x90] sm:$0xff]
      %v388 = vld [vmem:[#allocation2 + $0x98] sm:$0xff]
      %v389 = vld [vmem:[#allocation2 + $0xa0] sm:$0xff]
      %v390 = vld [vmem:[#allocation2 + $0xa8] sm:$0xff]
      %v391 = vld [vmem:[#allocation2 + $0xb0] sm:$0xff]
      %v392 = vld [vmem:[#allocation2 + $0xb8] sm:$0xff]
      %v393 = vld [vmem:[#allocation2 + $0xc0] sm:$0xff]
      %v394 = vld [vmem:[#allocation2 + $0xc8] sm:$0xff]
      %v395 = vld [vmem:[#allocation2 + $0xd0] sm:$0xff]
      %v396 = vld [vmem:[#allocation2 + $0xd8] sm:$0xff]
      %v397 = vld [vmem:[#allocation2 + $0xe0] sm:$0xff]
      %v398 = vld [vmem:[#allocation2 + $0xe8] sm:$0xff]
      %v399 = vld [vmem:[#allocation2 + $0xf0] sm:$0xff]
      %v400 = vld [vmem:[#allocation2 + $0xf8] sm:$0xff]
      %v401 = vld [vmem:[#allocation2 + $0x100] sm:$0xff]
      %v402 = vld [vmem:[#allocation2 + $0x108] sm:$0xff]
      %v403 = vld [vmem:[#allocation2 + $0x110] sm:$0xff]
      %v404 = vld [vmem:[#allocation2 + $0x118] sm:$0xff]
      %v405 = vld [vmem:[#allocation2 + $0x120] sm:$0xff]
      %v406 = vld [vmem:[#allocation2 + $0x128] sm:$0xff]
      %v407 = vld [vmem:[#allocation2 + $0x130] sm:$0xff]
      %v408 = vld [vmem:[#allocation2 + $0x138] sm:$0xff]
      %v409 = vld [vmem:[#allocation2 + $0x140] sm:$0xff]
      %v410 = vld [vmem:[#allocation2 + $0x148] sm:$0xff]
      %v411 = vld [vmem:[#allocation2 + $0x150] sm:$0xff]
      %v412 = vld [vmem:[#allocation2 + $0x158] sm:$0xff]
      %v413 = vld [vmem:[#allocation2 + $0x160] sm:$0xff]
      %v414 = vld [vmem:[#allocation2 + $0x168] sm:$0xff]
      %v415 = vld [vmem:[#allocation2 + $0x170] sm:$0xff]
      %v416 = vld [vmem:[#allocation2 + $0x178] sm:$0xff]
      %v417 = vld [vmem:[#allocation2 + $0x180] sm:$0xff]
      %v418 = vld [vmem:[#allocation2 + $0x188] sm:$0xff]
      %v419 = vld [vmem:[#allocation2 + $0x190] sm:$0xff]
      %v420 = vld [vmem:[#allocation2 + $0x198] sm:$0xff]
      %v421 = vld [vmem:[#allocation2 + $0x1a0] sm:$0xff]
      %v422 = vld [vmem:[#allocation2 + $0x1a8] sm:$0xff]
      %v423 = vld [vmem:[#allocation2 + $0x1b0] sm:$0xff]
      %v424 = vld [vmem:[#allocation2 + $0x1b8] sm:$0xff]
      %v425 = vld [vmem:[#allocation2 + $0x1c0] sm:$0xff]
      %v426 = vld [vmem:[#allocation2 + $0x1c8] sm:$0xff]
      %v427 = vld [vmem:[#allocation2 + $0x1d0] sm:$0xff]
      %v428 = vld [vmem:[#allocation2 + $0x1d8] sm:$0xff]
      %v429 = vld [vmem:[#allocation2 + $0x1e0] sm:$0xff]
      %v430 = vld [vmem:[#allocation2 + $0x1e8] sm:$0xff]
      %v431 = vld [vmem:[#allocation2 + $0x1f0] sm:$0xff]
      %v432 = vld [vmem:[#allocation2 + $0x1f8] sm:$0xff]
      %v433 = vld [vmem:[%s274] sm:$0xf]
      %v434 = vld [vmem:[%s274 + $0x4] sm:$0xf]
      %v435 = vld [vmem:[%s274 + $0x8] sm:$0xf]
      %v436 = vld [vmem:[%s274 + $0xc] sm:$0xf]
      %v437 = vld [vmem:[%s274 + $0x10] sm:$0xf]
      %v438 = vld [vmem:[%s274 + $0x14] sm:$0xf]
      %v439 = vld [vmem:[%s274 + $0x18] sm:$0xf]
      %v440 = vld [vmem:[%s274 + $0x1c] sm:$0xf]
      %v441 = vld [vmem:[%s274 + $0x20] sm:$0xf]
      %v442 = vld [vmem:[%s274 + $0x24] sm:$0xf]
      %v443 = vld [vmem:[%s274 + $0x28] sm:$0xf]
      %v444 = vld [vmem:[%s274 + $0x2c] sm:$0xf]
      %v445 = vld [vmem:[%s274 + $0x30] sm:$0xf]
      %v446 = vld [vmem:[%s274 + $0x34] sm:$0xf]
      %v447 = vld [vmem:[%s274 + $0x38] sm:$0xf]
      %v448 = vld [vmem:[%s274 + $0x3c] sm:$0xf]
      %v449 = vld [vmem:[%s274 + $0x40] sm:$0xf]
      %v450 = vld [vmem:[%s274 + $0x44] sm:$0xf]
      %v451 = vld [vmem:[%s274 + $0x48] sm:$0xf]
      %v452 = vld [vmem:[%s274 + $0x4c] sm:$0xf]
      %v453 = vld [vmem:[%s274 + $0x50] sm:$0xf]
      %v454 = vld [vmem:[%s274 + $0x54] sm:$0xf]
      %v455 = vld [vmem:[%s274 + $0x58] sm:$0xf]
      %v456 = vld [vmem:[%s274 + $0x5c] sm:$0xf]
      %v457 = vld [vmem:[%s274 + $0x60] sm:$0xf]
      %v458 = vld [vmem:[%s274 + $0x64] sm:$0xf]
      %v459 = vld [vmem:[%s274 + $0x68] sm:$0xf]
      %v460 = vld [vmem:[%s274 + $0x6c] sm:$0xf]
      %v461 = vld [vmem:[%s274 + $0x70] sm:$0xf]
      %v462 = vld [vmem:[%s274 + $0x74] sm:$0xf]
      %v463 = vld [vmem:[%s274 + $0x78] sm:$0xf]
      %v464 = vld [vmem:[%s274 + $0x7c] sm:$0xf]
      %v465 = vld [vmem:[%s274 + $0x80] sm:$0xf]
      %v466 = vld [vmem:[%s274 + $0x84] sm:$0xf]
      %v467 = vld [vmem:[%s274 + $0x88] sm:$0xf]
      %v468 = vld [vmem:[%s274 + $0x8c] sm:$0xf]
      %v469 = vld [vmem:[%s274 + $0x90] sm:$0xf]
      %v470 = vld [vmem:[%s274 + $0x94] sm:$0xf]
      %v471 = vld [vmem:[%s274 + $0x98] sm:$0xf]
      %v472 = vld [vmem:[%s274 + $0x9c] sm:$0xf]
      %v473 = vld [vmem:[%s274 + $0xa0] sm:$0xf]
      %v474 = vld [vmem:[%s274 + $0xa4] sm:$0xf]
      %v475 = vld [vmem:[%s274 + $0xa8] sm:$0xf]
      %v476 = vld [vmem:[%s274 + $0xac] sm:$0xf]
      %v477 = vld [vmem:[%s274 + $0xb0] sm:$0xf]
      %v478 = vld [vmem:[%s274 + $0xb4] sm:$0xf]
      %v479 = vld [vmem:[%s274 + $0xb8] sm:$0xf]
      %v480 = vld [vmem:[%s274 + $0xbc] sm:$0xf]
      %v481 = vld [vmem:[%s274 + $0xc0] sm:$0xf]
      %v482 = vld [vmem:[%s274 + $0xc4] sm:$0xf]
      %v483 = vld [vmem:[%s274 + $0xc8] sm:$0xf]
      %v484 = vld [vmem:[%s274 + $0xcc] sm:$0xf]
      %v485 = vld [vmem:[%s274 + $0xd0] sm:$0xf]
      %v486 = vld [vmem:[%s274 + $0xd4] sm:$0xf]
      %v487 = vld [vmem:[%s274 + $0xd8] sm:$0xf]
      %v488 = vld [vmem:[%s274 + $0xdc] sm:$0xf]
      %v489 = vld [vmem:[%s274 + $0xe0] sm:$0xf]
      %v490 = vld [vmem:[%s274 + $0xe4] sm:$0xf]
      %v491 = vld [vmem:[%s274 + $0xe8] sm:$0xf]
      %v492 = vld [vmem:[%s274 + $0xec] sm:$0xf]
      %v493 = vld [vmem:[%s274 + $0xf0] sm:$0xf]
      %v494 = vld [vmem:[%s274 + $0xf4] sm:$0xf]
      %v495 = vld [vmem:[%s274 + $0xf8] sm:$0xf]
      %v496 = vld [vmem:[%s274 + $0xfc] sm:$0xf]
      %v497 = vld [vmem:[%s283] sm:$0xf]
      %v498 = vld [vmem:[%s283 + $0x4] sm:$0xf]
      %v499 = vld [vmem:[%s283 + $0x8] sm:$0xf]
      %v500 = vld [vmem:[%s283 + $0xc] sm:$0x3]
      %v565 = vunpack.c.l.b16 %v433
      %v566 = vunpack.c.l.b16 %v434
      %v567 = vunpack.c.l.b16 %v435
      %v568 = vunpack.c.l.b16 %v436
      %v569 = vunpack.c.l.b16 %v437
      %v570 = vunpack.c.l.b16 %v438
      %v571 = vunpack.c.l.b16 %v439
      %v572 = vunpack.c.l.b16 %v440
      %v573 = vunpack.c.l.b16 %v441
      %v574 = vunpack.c.l.b16 %v442
      %v575 = vunpack.c.l.b16 %v443
      %v576 = vunpack.c.l.b16 %v444
      %v577 = vunpack.c.l.b16 %v445
      %v578 = vunpack.c.l.b16 %v446
      %v579 = vunpack.c.l.b16 %v447
      %v580 = vunpack.c.l.b16 %v448
      %v581 = vunpack.c.l.b16 %v449
      %v582 = vunpack.c.l.b16 %v450
      %v583 = vunpack.c.l.b16 %v451
      %v584 = vunpack.c.l.b16 %v452
      %v585 = vunpack.c.l.b16 %v453
      %v586 = vunpack.c.l.b16 %v454
      %v587 = vunpack.c.l.b16 %v455
      %v588 = vunpack.c.l.b16 %v456
      %v589 = vunpack.c.l.b16 %v457
      %v590 = vunpack.c.l.b16 %v458
      %v591 = vunpack.c.l.b16 %v459
      %v592 = vunpack.c.l.b16 %v460
      %v593 = vunpack.c.l.b16 %v461
      %v594 = vunpack.c.l.b16 %v462
      %v595 = vunpack.c.l.b16 %v463
      %v596 = vunpack.c.l.b16 %v464
      %v597 = vunpack.c.l.b16 %v465
      %v598 = vunpack.c.l.b16 %v466
      %v599 = vunpack.c.l.b16 %v467
      %v600 = vunpack.c.l.b16 %v468
      %v601 = vunpack.c.l.b16 %v469
      %v602 = vunpack.c.l.b16 %v470
      %v603 = vunpack.c.l.b16 %v471
      %v604 = vunpack.c.l.b16 %v472
      %v605 = vunpack.c.l.b16 %v473
      %v606 = vunpack.c.l.b16 %v474
      %v607 = vunpack.c.l.b16 %v475
      %v608 = vunpack.c.l.b16 %v476
      %v609 = vunpack.c.l.b16 %v477
      %v610 = vunpack.c.l.b16 %v478
      %v611 = vunpack.c.l.b16 %v479
      %v612 = vunpack.c.l.b16 %v480
      %v613 = vunpack.c.l.b16 %v481
      %v614 = vunpack.c.l.b16 %v482
      %v615 = vunpack.c.l.b16 %v483
      %v616 = vunpack.c.l.b16 %v484
      %v617 = vunpack.c.l.b16 %v485
      %v618 = vunpack.c.l.b16 %v486
      %v619 = vunpack.c.l.b16 %v487
      %v620 = vunpack.c.l.b16 %v488
      %v621 = vunpack.c.l.b16 %v489
      %v622 = vunpack.c.l.b16 %v490
      %v623 = vunpack.c.l.b16 %v491
      %v624 = vunpack.c.l.b16 %v492
      %v625 = vunpack.c.l.b16 %v493
      %v626 = vunpack.c.l.b16 %v494
      %v627 = vunpack.c.l.b16 %v495
      %v628 = vunpack.c.l.b16 %v496
      %v629 = vpack.c.b16 %v566, %v565
      %v630 = vpack.c.b16 %v568, %v567
      %v631 = vpack.c.b16 %v570, %v569
      %v632 = vpack.c.b16 %v572, %v571
      %v633 = vpack.c.b16 %v574, %v573
      %v634 = vpack.c.b16 %v576, %v575
      %v635 = vpack.c.b16 %v578, %v577
      %v636 = vpack.c.b16 %v580, %v579
      %v637 = vpack.c.b16 %v582, %v581
      %v638 = vpack.c.b16 %v584, %v583
      %v639 = vpack.c.b16 %v586, %v585
      %v640 = vpack.c.b16 %v588, %v587
      %v641 = vpack.c.b16 %v590, %v589
      %v642 = vpack.c.b16 %v592, %v591
      %v643 = vpack.c.b16 %v594, %v593
      %v644 = vpack.c.b16 %v596, %v595
      %v645 = vpack.c.b16 %v598, %v597
      %v646 = vpack.c.b16 %v600, %v599
      %v647 = vpack.c.b16 %v602, %v601
      %v648 = vpack.c.b16 %v604, %v603
      %v649 = vpack.c.b16 %v606, %v605
      %v650 = vpack.c.b16 %v608, %v607
      %v651 = vpack.c.b16 %v610, %v609
      %v652 = vpack.c.b16 %v612, %v611
      %v653 = vpack.c.b16 %v614, %v613
      %v654 = vpack.c.b16 %v616, %v615
      %v655 = vpack.c.b16 %v618, %v617
      %v656 = vpack.c.b16 %v620, %v619
      %v657 = vpack.c.b16 %v622, %v621
      %v658 = vpack.c.b16 %v624, %v623
      %v659 = vpack.c.b16 %v626, %v625
      %v660 = vpack.c.b16 %v628, %v627
      %v665 = vunpack.c.l.b16 %v497
      %v666 = vunpack.c.l.b16 %v498
      %v667 = vunpack.c.l.b16 %v499
      %v668 = vunpack.c.l.b16 %v500
      %v669 = vpack.c.b16 %v666, %v665
      %v670 = vpack.c.b16 %v668, %v667
      %vm672 = vcmask 220160
      %v674 = vsel %vm672, %v629, 0
      %v677 = vsel %vm672, %v630, 0
      %v680 = vsel %vm672, %v631, 0
      %v683 = vsel %vm672, %v632, 0
      %v686 = vsel %vm672, %v633, 0
      %v689 = vsel %vm672, %v634, 0
      %v692 = vsel %vm672, %v635, 0
      %v695 = vsel %vm672, %v636, 0
      %v698 = vsel %vm672, %v637, 0
      %v701 = vsel %vm672, %v638, 0
      %v704 = vsel %vm672, %v639, 0
      %v707 = vsel %vm672, %v640, 0
      %v710 = vsel %vm672, %v641, 0
      %v713 = vsel %vm672, %v642, 0
      %v716 = vsel %vm672, %v643, 0
      %v719 = vsel %vm672, %v644, 0
      %v722 = vsel %vm672, %v645, 0
      %v725 = vsel %vm672, %v646, 0
      %v728 = vsel %vm672, %v647, 0
      %v731 = vsel %vm672, %v648, 0
      %v734 = vsel %vm672, %v649, 0
      %v737 = vsel %vm672, %v650, 0
      %v740 = vsel %vm672, %v651, 0
      %v743 = vsel %vm672, %v652, 0
      %v746 = vsel %vm672, %v653, 0
      %v749 = vsel %vm672, %v654, 0
      %v752 = vsel %vm672, %v655, 0
      %v755 = vsel %vm672, %v656, 0
      %v758 = vsel %vm672, %v657, 0
      %v761 = vsel %vm672, %v658, 0
      %v764 = vsel %vm672, %v659, 0
      %v767 = vsel %vm672, %v660, 0
      %vm769 = vcmask 1044480
      %vm770 = vcmask 1045504
      %v771 = vsel %vm769, 4294967295, 65535
      %v772 = vsel %vm770, %v771, 0
      %v774 = vand.u32 %v670, %v772
      %776 = vmatpush.bf16.msra.mxu0 0
      %777 = vmatpush.bf16.msra.mxu0 0
      %778 = vmatpush.bf16.msra.mxu0 0
      %779 = vmatpush.bf16.msra.mxu0 0
      %780 = vmatpush.bf16.msra.mxu0 0
      %781 = vmatpush.bf16.msra.mxu0 0
      %782 = vmatpush.bf16.msra.mxu0 %v774
      %783 = vmatpush.bf16.msra.mxu0 %v669
      %784 = vmatmul.bf16.gmra.mxu0 %v674
      %v785 = vpop.f32.mrf.mxu0
      %v786 = vadd.f32 0.0, %v785
      %v787 = vpop.f32.mrf.mxu0
      %v788 = vadd.f32 0.0, %v787
      %789 = vmatmul.bf16.gmra.mxu0 %v677
      %v790 = vpop.f32.mrf.mxu0
      %v791 = vadd.f32 0.0, %v790
      %v792 = vpop.f32.mrf.mxu0
      %v793 = vadd.f32 0.0, %v792
      %794 = vmatmul.bf16.gmra.mxu0 %v680
      %v795 = vpop.f32.mrf.mxu0
      %v796 = vadd.f32 0.0, %v795
      %v797 = vpop.f32.mrf.mxu0
      %v798 = vadd.f32 0.0, %v797
      %799 = vmatmul.bf16.gmra.mxu0 %v683
      %v800 = vpop.f32.mrf.mxu0
      %v801 = vadd.f32 0.0, %v800
      %v802 = vpop.f32.mrf.mxu0
      %v803 = vadd.f32 0.0, %v802
      %804 = vmatmul.bf16.gmra.mxu0 %v686
      %v805 = vpop.f32.mrf.mxu0
      %v806 = vadd.f32 0.0, %v805
      %v807 = vpop.f32.mrf.mxu0
      %v808 = vadd.f32 0.0, %v807
      %809 = vmatmul.bf16.gmra.mxu0 %v689
      %v810 = vpop.f32.mrf.mxu0
      %v811 = vadd.f32 0.0, %v810
      %v812 = vpop.f32.mrf.mxu0
      %v813 = vadd.f32 0.0, %v812
      %814 = vmatmul.bf16.gmra.mxu0 %v692
      %v815 = vpop.f32.mrf.mxu0
      %v816 = vadd.f32 0.0, %v815
      %v817 = vpop.f32.mrf.mxu0
      %v818 = vadd.f32 0.0, %v817
      %819 = vmatmul.bf16.gmra.mxu0 %v695
      %v820 = vpop.f32.mrf.mxu0
      %v821 = vadd.f32 0.0, %v820
      %v822 = vpop.f32.mrf.mxu0
      %v823 = vadd.f32 0.0, %v822
      %824 = vmatmul.bf16.gmra.mxu0 %v698
      %v825 = vpop.f32.mrf.mxu0
      %v826 = vadd.f32 0.0, %v825
      %v827 = vpop.f32.mrf.mxu0
      %v828 = vadd.f32 0.0, %v827
      %829 = vmatmul.bf16.gmra.mxu0 %v701
      %v830 = vpop.f32.mrf.mxu0
      %v831 = vadd.f32 0.0, %v830
      %v832 = vpop.f32.mrf.mxu0
      %v833 = vadd.f32 0.0, %v832
      %834 = vmatmul.bf16.gmra.mxu0 %v704
      %v835 = vpop.f32.mrf.mxu0
      %v836 = vadd.f32 0.0, %v835
      %v837 = vpop.f32.mrf.mxu0
      %v838 = vadd.f32 0.0, %v837
      %839 = vmatmul.bf16.gmra.mxu0 %v707
      %v840 = vpop.f32.mrf.mxu0
      %v841 = vadd.f32 0.0, %v840
      %v842 = vpop.f32.mrf.mxu0
      %v843 = vadd.f32 0.0, %v842
      %844 = vmatmul.bf16.gmra.mxu0 %v710
      %v845 = vpop.f32.mrf.mxu0
      %v846 = vadd.f32 0.0, %v845
      %v847 = vpop.f32.mrf.mxu0
      %v848 = vadd.f32 0.0, %v847
      %849 = vmatmul.bf16.gmra.mxu0 %v713
      %v850 = vpop.f32.mrf.mxu0
      %v851 = vadd.f32 0.0, %v850
      %v852 = vpop.f32.mrf.mxu0
      %v853 = vadd.f32 0.0, %v852
      %854 = vmatmul.bf16.gmra.mxu0 %v716
      %v855 = vpop.f32.mrf.mxu0
      %v856 = vadd.f32 0.0, %v855
      %v857 = vpop.f32.mrf.mxu0
      %v858 = vadd.f32 0.0, %v857
      %859 = vmatmul.bf16.gmra.mxu0 %v719
      %v860 = vpop.f32.mrf.mxu0
      %v861 = vadd.f32 0.0, %v860
      %v862 = vpop.f32.mrf.mxu0
      %v863 = vadd.f32 0.0, %v862
      %864 = vmatmul.bf16.gmra.mxu0 %v722
      %v865 = vpop.f32.mrf.mxu0
      %v866 = vadd.f32 0.0, %v865
      %v867 = vpop.f32.mrf.mxu0
      %v868 = vadd.f32 0.0, %v867
      %869 = vmatmul.bf16.gmra.mxu0 %v725
      %v870 = vpop.f32.mrf.mxu0
      %v871 = vadd.f32 0.0, %v870
      %v872 = vpop.f32.mrf.mxu0
      %v873 = vadd.f32 0.0, %v872
      %874 = vmatmul.bf16.gmra.mxu0 %v728
      %v875 = vpop.f32.mrf.mxu0
      %v876 = vadd.f32 0.0, %v875
      %v877 = vpop.f32.mrf.mxu0
      %v878 = vadd.f32 0.0, %v877
      %879 = vmatmul.bf16.gmra.mxu0 %v731
      %v880 = vpop.f32.mrf.mxu0
      %v881 = vadd.f32 0.0, %v880
      %v882 = vpop.f32.mrf.mxu0
      %v883 = vadd.f32 0.0, %v882
      %884 = vmatmul.bf16.gmra.mxu0 %v734
      %v885 = vpop.f32.mrf.mxu0
      %v886 = vadd.f32 0.0, %v885
      %v887 = vpop.f32.mrf.mxu0
      %v888 = vadd.f32 0.0, %v887
      %889 = vmatmul.bf16.gmra.mxu0 %v737
      %v890 = vpop.f32.mrf.mxu0
      %v891 = vadd.f32 0.0, %v890
      %v892 = vpop.f32.mrf.mxu0
      %v893 = vadd.f32 0.0, %v892
      %894 = vmatmul.bf16.gmra.mxu0 %v740
      %v895 = vpop.f32.mrf.mxu0
      %v896 = vadd.f32 0.0, %v895
      %v897 = vpop.f32.mrf.mxu0
      %v898 = vadd.f32 0.0, %v897
      %899 = vmatmul.bf16.gmra.mxu0 %v743
      %v900 = vpop.f32.mrf.mxu0
      %v901 = vadd.f32 0.0, %v900
      %v902 = vpop.f32.mrf.mxu0
      %v903 = vadd.f32 0.0, %v902
      %904 = vmatmul.bf16.gmra.mxu0 %v746
      %v905 = vpop.f32.mrf.mxu0
      %v906 = vadd.f32 0.0, %v905
      %v907 = vpop.f32.mrf.mxu0
      %v908 = vadd.f32 0.0, %v907
      %909 = vmatmul.bf16.gmra.mxu0 %v749
      %v910 = vpop.f32.mrf.mxu0
      %v911 = vadd.f32 0.0, %v910
      %v912 = vpop.f32.mrf.mxu0
      %v913 = vadd.f32 0.0, %v912
      %914 = vmatmul.bf16.gmra.mxu0 %v752
      %v915 = vpop.f32.mrf.mxu0
      %v916 = vadd.f32 0.0, %v915
      %v917 = vpop.f32.mrf.mxu0
      %v918 = vadd.f32 0.0, %v917
      %919 = vmatmul.bf16.gmra.mxu0 %v755
      %v920 = vpop.f32.mrf.mxu0
      %v921 = vadd.f32 0.0, %v920
      %v922 = vpop.f32.mrf.mxu0
      %v923 = vadd.f32 0.0, %v922
      %924 = vmatmul.bf16.gmra.mxu0 %v758
      %v925 = vpop.f32.mrf.mxu0
      %v926 = vadd.f32 0.0, %v925
      %v927 = vpop.f32.mrf.mxu0
      %v928 = vadd.f32 0.0, %v927
      %929 = vmatmul.bf16.gmra.mxu0 %v761
      %v930 = vpop.f32.mrf.mxu0
      %v931 = vadd.f32 0.0, %v930
      %v932 = vpop.f32.mrf.mxu0
      %v933 = vadd.f32 0.0, %v932
      %934 = vmatmul.bf16.gmra.mxu0 %v764
      %v935 = vpop.f32.mrf.mxu0
      %v936 = vadd.f32 0.0, %v935
      %v937 = vpop.f32.mrf.mxu0
      %v938 = vadd.f32 0.0, %v937
      %939 = vmatmul.bf16.gmra.mxu0 %v767
      %v940 = vpop.f32.mrf.mxu0
      %v941 = vadd.f32 0.0, %v940
      %v942 = vpop.f32.mrf.mxu0
      %v943 = vadd.f32 0.0, %v942
      %944 = vdwg.mxu0
      %v945 = vadd.f32 %v369, %v786
      %v946 = vadd.f32 %v370, %v788
      %v947 = vadd.f32 %v371, %v791
      %v948 = vadd.f32 %v372, %v793
      %v949 = vadd.f32 %v373, %v796
      %v950 = vadd.f32 %v374, %v798
      %v951 = vadd.f32 %v375, %v801
      %v952 = vadd.f32 %v376, %v803
      %v953 = vadd.f32 %v377, %v806
      %v954 = vadd.f32 %v378, %v808
      %v955 = vadd.f32 %v379, %v811
      %v956 = vadd.f32 %v380, %v813
      %v957 = vadd.f32 %v381, %v816
      %v958 = vadd.f32 %v382, %v818
      %v959 = vadd.f32 %v383, %v821
      %v960 = vadd.f32 %v384, %v823
      %v961 = vadd.f32 %v385, %v826
      %v962 = vadd.f32 %v386, %v828
      %v963 = vadd.f32 %v387, %v831
      %v964 = vadd.f32 %v388, %v833
      %v965 = vadd.f32 %v389, %v836
      %v966 = vadd.f32 %v390, %v838
      %v967 = vadd.f32 %v391, %v841
      %v968 = vadd.f32 %v392, %v843
      %v969 = vadd.f32 %v393, %v846
      %v970 = vadd.f32 %v394, %v848
      %v971 = vadd.f32 %v395, %v851
      %v972 = vadd.f32 %v396, %v853
      %v973 = vadd.f32 %v397, %v856
      %v974 = vadd.f32 %v398, %v858
      %v975 = vadd.f32 %v399, %v861
      %v976 = vadd.f32 %v400, %v863
      %v977 = vadd.f32 %v401, %v866
      %v978 = vadd.f32 %v402, %v868
      %v979 = vadd.f32 %v403, %v871
      %v980 = vadd.f32 %v404, %v873
      %v981 = vadd.f32 %v405, %v876
      %v982 = vadd.f32 %v406, %v878
      %v983 = vadd.f32 %v407, %v881
      %v984 = vadd.f32 %v408, %v883
      %v985 = vadd.f32 %v409, %v886
      %v986 = vadd.f32 %v410, %v888
      %v987 = vadd.f32 %v411, %v891
      %v988 = vadd.f32 %v412, %v893
      %v989 = vadd.f32 %v413, %v896
      %v990 = vadd.f32 %v414, %v898
      %v991 = vadd.f32 %v415, %v901
      %v992 = vadd.f32 %v416, %v903
      %v993 = vadd.f32 %v417, %v906
      %v994 = vadd.f32 %v418, %v908
      %v995 = vadd.f32 %v419, %v911
      %v996 = vadd.f32 %v420, %v913
      %v997 = vadd.f32 %v421, %v916
      %v998 = vadd.f32 %v422, %v918
      %v999 = vadd.f32 %v423, %v921
      %v1000 = vadd.f32 %v424, %v923
      %v1001 = vadd.f32 %v425, %v926
      %v1002 = vadd.f32 %v426, %v928
      %v1003 = vadd.f32 %v427, %v931
      %v1004 = vadd.f32 %v428, %v933
      %v1005 = vadd.f32 %v429, %v936
      %v1006 = vadd.f32 %v430, %v938
      %v1007 = vadd.f32 %v431, %v941
      %v1008 = vadd.f32 %v432, %v943
      %1009 = vst [vmem:[#allocation2] sm:$0xff] %v945
      %1010 = vst [vmem:[#allocation2 + $0x8] sm:$0xff] %v946
      %1011 = vst [vmem:[#allocation2 + $0x10] sm:$0xff] %v947
      %1012 = vst [vmem:[#allocation2 + $0x18] sm:$0xff] %v948
      %1013 = vst [vmem:[#allocation2 + $0x20] sm:$0xff] %v949
      %1014 = vst [vmem:[#allocation2 + $0x28] sm:$0xff] %v950
      %1015 = vst [vmem:[#allocation2 + $0x30] sm:$0xff] %v951
      %1016 = vst [vmem:[#allocation2 + $0x38] sm:$0xff] %v952
      %1017 = vst [vmem:[#allocation2 + $0x40] sm:$0xff] %v953
      %1018 = vst [vmem:[#allocation2 + $0x48] sm:$0xff] %v954
      %1019 = vst [vmem:[#allocation2 + $0x50] sm:$0xff] %v955
      %1020 = vst [vmem:[#allocation2 + $0x58] sm:$0xff] %v956
      %1021 = vst [vmem:[#allocation2 + $0x60] sm:$0xff] %v957
      %1022 = vst [vmem:[#allocation2 + $0x68] sm:$0xff] %v958
      %1023 = vst [vmem:[#allocation2 + $0x70] sm:$0xff] %v959
      %1024 = vst [vmem:[#allocation2 + $0x78] sm:$0xff] %v960
      %1025 = vst [vmem:[#allocation2 + $0x80] sm:$0xff] %v961
      %1026 = vst [vmem:[#allocation2 + $0x88] sm:$0xff] %v962
      %1027 = vst [vmem:[#allocation2 + $0x90] sm:$0xff] %v963
      %1028 = vst [vmem:[#allocation2 + $0x98] sm:$0xff] %v964
      %1029 = vst [vmem:[#allocation2 + $0xa0] sm:$0xff] %v965
      %1030 = vst [vmem:[#allocation2 + $0xa8] sm:$0xff] %v966
      %1031 = vst [vmem:[#allocation2 + $0xb0] sm:$0xff] %v967
      %1032 = vst [vmem:[#allocation2 + $0xb8] sm:$0xff] %v968
      %1033 = vst [vmem:[#allocation2 + $0xc0] sm:$0xff] %v969
      %1034 = vst [vmem:[#allocation2 + $0xc8] sm:$0xff] %v970
      %1035 = vst [vmem:[#allocation2 + $0xd0] sm:$0xff] %v971
      %1036 = vst [vmem:[#allocation2 + $0xd8] sm:$0xff] %v972
      %1037 = vst [vmem:[#allocation2 + $0xe0] sm:$0xff] %v973
      %1038 = vst [vmem:[#allocation2 + $0xe8] sm:$0xff] %v974
      %1039 = vst [vmem:[#allocation2 + $0xf0] sm:$0xff] %v975
      %1040 = vst [vmem:[#allocation2 + $0xf8] sm:$0xff] %v976
      %1041 = vst [vmem:[#allocation2 + $0x100] sm:$0xff] %v977
      %1042 = vst [vmem:[#allocation2 + $0x108] sm:$0xff] %v978
      %1043 = vst [vmem:[#allocation2 + $0x110] sm:$0xff] %v979
      %1044 = vst [vmem:[#allocation2 + $0x118] sm:$0xff] %v980
      %1045 = vst [vmem:[#allocation2 + $0x120] sm:$0xff] %v981
      %1046 = vst [vmem:[#allocation2 + $0x128] sm:$0xff] %v982
      %1047 = vst [vmem:[#allocation2 + $0x130] sm:$0xff] %v983
      %1048 = vst [vmem:[#allocation2 + $0x138] sm:$0xff] %v984
      %1049 = vst [vmem:[#allocation2 + $0x140] sm:$0xff] %v985
      %1050 = vst [vmem:[#allocation2 + $0x148] sm:$0xff] %v986
      %1051 = vst [vmem:[#allocation2 + $0x150] sm:$0xff] %v987
      %1052 = vst [vmem:[#allocation2 + $0x158] sm:$0xff] %v988
      %1053 = vst [vmem:[#allocation2 + $0x160] sm:$0xff] %v989
      %1054 = vst [vmem:[#allocation2 + $0x168] sm:$0xff] %v990
      %1055 = vst [vmem:[#allocation2 + $0x170] sm:$0xff] %v991
      %1056 = vst [vmem:[#allocation2 + $0x178] sm:$0xff] %v992
      %1057 = vst [vmem:[#allocation2 + $0x180] sm:$0xff] %v993
      %1058 = vst [vmem:[#allocation2 + $0x188] sm:$0xff] %v994
      %1059 = vst [vmem:[#allocation2 + $0x190] sm:$0xff] %v995
      %1060 = vst [vmem:[#allocation2 + $0x198] sm:$0xff] %v996
      %1061 = vst [vmem:[#allocation2 + $0x1a0] sm:$0xff] %v997
      %1062 = vst [vmem:[#allocation2 + $0x1a8] sm:$0xff] %v998
      %1063 = vst [vmem:[#allocation2 + $0x1b0] sm:$0xff] %v999
      %1064 = vst [vmem:[#allocation2 + $0x1b8] sm:$0xff] %v1000
      %1065 = vst [vmem:[#allocation2 + $0x1c0] sm:$0xff] %v1001
      %1066 = vst [vmem:[#allocation2 + $0x1c8] sm:$0xff] %v1002
      %1067 = vst [vmem:[#allocation2 + $0x1d0] sm:$0xff] %v1003
      %1068 = vst [vmem:[#allocation2 + $0x1d8] sm:$0xff] %v1004
      %1069 = vst [vmem:[#allocation2 + $0x1e0] sm:$0xff] %v1005
      %1070 = vst [vmem:[#allocation2 + $0x1e8] sm:$0xff] %v1006
      %1071 = vst [vmem:[#allocation2 + $0x1f0] sm:$0xff] %v1007
      %1072 = vst [vmem:[#allocation2 + $0x1f8] sm:$0xff] %v1008
      // Predicated region
      $region41: #{resnet_forward.7} parent=35 // pred_check
        %p1073 = pneg %p301
      $region42: #{resnet_forward.7} parent=35 // pred_check_branch
        %1075 = sbr.rel (%p1073) target = $region44
      $region43: #{resnet_forward.7} parent=35 // pred_region
        %v1076 = vld [vmem:[#allocation2] sm:$0xff]
        %v1077 = vld [vmem:[#allocation2 + $0x8] sm:$0xff]
        %v1078 = vld [vmem:[#allocation2 + $0x10] sm:$0xff]
        %v1079 = vld [vmem:[#allocation2 + $0x18] sm:$0xff]
        %v1080 = vld [vmem:[#allocation2 + $0x20] sm:$0xff]
        %v1081 = vld [vmem:[#allocation2 + $0x28] sm:$0xff]
        %v1082 = vld [vmem:[#allocation2 + $0x30] sm:$0xff]
        %v1083 = vld [vmem:[#allocation2 + $0x38] sm:$0xff]
        %v1084 = vld [vmem:[#allocation2 + $0x40] sm:$0xff]
        %v1085 = vld [vmem:[#allocation2 + $0x48] sm:$0xff]
        %v1086 = vld [vmem:[#allocation2 + $0x50] sm:$0xff]
        %v1087 = vld [vmem:[#allocation2 + $0x58] sm:$0xff]
        %v1088 = vld [vmem:[#allocation2 + $0x60] sm:$0xff]
        %v1089 = vld [vmem:[#allocation2 + $0x68] sm:$0xff]
        %v1090 = vld [vmem:[#allocation2 + $0x70] sm:$0xff]
        %v1091 = vld [vmem:[#allocation2 + $0x78] sm:$0xff]
        %v1092 = vld [vmem:[#allocation2 + $0x80] sm:$0xff]
        %v1093 = vld [vmem:[#allocation2 + $0x88] sm:$0xff]
        %v1094 = vld [vmem:[#allocation2 + $0x90] sm:$0xff]
        %v1095 = vld [vmem:[#allocation2 + $0x98] sm:$0xff]
        %v1096 = vld [vmem:[#allocation2 + $0xa0] sm:$0xff]
        %v1097 = vld [vmem:[#allocation2 + $0xa8] sm:$0xff]
        %v1098 = vld [vmem:[#allocation2 + $0xb0] sm:$0xff]
        %v1099 = vld [vmem:[#allocation2 + $0xb8] sm:$0xff]
        %v1100 = vld [vmem:[#allocation2 + $0xc0] sm:$0xff]
        %v1101 = vld [vmem:[#allocation2 + $0xc8] sm:$0xff]
        %v1102 = vld [vmem:[#allocation2 + $0xd0] sm:$0xff]
        %v1103 = vld [vmem:[#allocation2 + $0xd8] sm:$0xff]
        %v1104 = vld [vmem:[#allocation2 + $0xe0] sm:$0xff]
        %v1105 = vld [vmem:[#allocation2 + $0xe8] sm:$0xff]
        %v1106 = vld [vmem:[#allocation2 + $0xf0] sm:$0xff]
        %v1107 = vld [vmem:[#allocation2 + $0xf8] sm:$0xff]
        %v1108 = vld [vmem:[#allocation2 + $0x100] sm:$0xff]
        %v1109 = vld [vmem:[#allocation2 + $0x108] sm:$0xff]
        %v1110 = vld [vmem:[#allocation2 + $0x110] sm:$0xff]
        %v1111 = vld [vmem:[#allocation2 + $0x118] sm:$0xff]
        %v1112 = vld [vmem:[#allocation2 + $0x120] sm:$0xff]
        %v1113 = vld [vmem:[#allocation2 + $0x128] sm:$0xff]
        %v1114 = vld [vmem:[#allocation2 + $0x130] sm:$0xff]
        %v1115 = vld [vmem:[#allocation2 + $0x138] sm:$0xff]
        %v1116 = vld [vmem:[#allocation2 + $0x140] sm:$0xff]
        %v1117 = vld [vmem:[#allocation2 + $0x148] sm:$0xff]
        %v1118 = vld [vmem:[#allocation2 + $0x150] sm:$0xff]
        %v1119 = vld [vmem:[#allocation2 + $0x158] sm:$0xff]
        %v1120 = vld [vmem:[#allocation2 + $0x160] sm:$0xff]
        %v1121 = vld [vmem:[#allocation2 + $0x168] sm:$0xff]
        %v1122 = vld [vmem:[#allocation2 + $0x170] sm:$0xff]
        %v1123 = vld [vmem:[#allocation2 + $0x178] sm:$0xff]
        %v1124 = vld [vmem:[#allocation2 + $0x180] sm:$0xff]
        %v1125 = vld [vmem:[#allocation2 + $0x188] sm:$0xff]
        %v1126 = vld [vmem:[#allocation2 + $0x190] sm:$0xff]
        %v1127 = vld [vmem:[#allocation2 + $0x198] sm:$0xff]
        %v1128 = vld [vmem:[#allocation2 + $0x1a0] sm:$0xff]
        %v1129 = vld [vmem:[#allocation2 + $0x1a8] sm:$0xff]
        %v1130 = vld [vmem:[#allocation2 + $0x1b0] sm:$0xff]
        %v1131 = vld [vmem:[#allocation2 + $0x1b8] sm:$0xff]
        %v1132 = vld [vmem:[#allocation2 + $0x1c0] sm:$0xff]
        %v1133 = vld [vmem:[#allocation2 + $0x1c8] sm:$0xff]
        %v1134 = vld [vmem:[#allocation2 + $0x1d0] sm:$0xff]
        %v1135 = vld [vmem:[#allocation2 + $0x1d8] sm:$0xff]
        %v1136 = vld [vmem:[#allocation2 + $0x1e0] sm:$0xff]
        %v1137 = vld [vmem:[#allocation2 + $0x1e8] sm:$0xff]
        %v1138 = vld [vmem:[#allocation2 + $0x1f0] sm:$0xff]
        %v1139 = vld [vmem:[#allocation2 + $0x1f8] sm:$0xff]
        %v1140 = vld [vmem:[%s287] sm:$0x1]
        %v1142 = vperm.slane %v1140, 0
        %v1144 = vmul.f32 %v1076, %v1142
        %v1145 = vmul.f32 %v1077, %v1142
        %v1146 = vmul.f32 %v1078, %v1142
        %v1147 = vmul.f32 %v1079, %v1142
        %v1148 = vmul.f32 %v1080, %v1142
        %v1149 = vmul.f32 %v1081, %v1142
        %v1150 = vmul.f32 %v1082, %v1142
        %v1151 = vmul.f32 %v1083, %v1142
        %v1152 = vmul.f32 %v1084, %v1142
        %v1153 = vmul.f32 %v1085, %v1142
        %v1154 = vmul.f32 %v1086, %v1142
        %v1155 = vmul.f32 %v1087, %v1142
        %v1156 = vmul.f32 %v1088, %v1142
        %v1157 = vmul.f32 %v1089, %v1142
        %v1158 = vmul.f32 %v1090, %v1142
        %v1159 = vmul.f32 %v1091, %v1142
        %v1160 = vmul.f32 %v1092, %v1142
        %v1161 = vmul.f32 %v1093, %v1142
        %v1162 = vmul.f32 %v1094, %v1142
        %v1163 = vmul.f32 %v1095, %v1142
        %v1164 = vmul.f32 %v1096, %v1142
        %v1165 = vmul.f32 %v1097, %v1142
        %v1166 = vmul.f32 %v1098, %v1142
        %v1167 = vmul.f32 %v1099, %v1142
        %v1168 = vmul.f32 %v1100, %v1142
        %v1169 = vmul.f32 %v1101, %v1142
        %v1170 = vmul.f32 %v1102, %v1142
        %v1171 = vmul.f32 %v1103, %v1142
        %v1172 = vmul.f32 %v1104, %v1142
        %v1173 = vmul.f32 %v1105, %v1142
        %v1174 = vmul.f32 %v1106, %v1142
        %v1175 = vmul.f32 %v1107, %v1142
        %v1176 = vmul.f32 %v1108, %v1142
        %v1177 = vmul.f32 %v1109, %v1142
        %v1178 = vmul.f32 %v1110, %v1142
        %v1179 = vmul.f32 %v1111, %v1142
        %v1180 = vmul.f32 %v1112, %v1142
        %v1181 = vmul.f32 %v1113, %v1142
        %v1182 = vmul.f32 %v1114, %v1142
        %v1183 = vmul.f32 %v1115, %v1142
        %v1184 = vmul.f32 %v1116, %v1142
        %v1185 = vmul.f32 %v1117, %v1142
        %v1186 = vmul.f32 %v1118, %v1142
        %v1187 = vmul.f32 %v1119, %v1142
        %v1188 = vmul.f32 %v1120, %v1142
        %v1189 = vmul.f32 %v1121, %v1142
        %v1190 = vmul.f32 %v1122, %v1142
        %v1191 = vmul.f32 %v1123, %v1142
        %v1192 = vmul.f32 %v1124, %v1142
        %v1193 = vmul.f32 %v1125, %v1142
        %v1194 = vmul.f32 %v1126, %v1142
        %v1195 = vmul.f32 %v1127, %v1142
        %v1196 = vmul.f32 %v1128, %v1142
        %v1197 = vmul.f32 %v1129, %v1142
        %v1198 = vmul.f32 %v1130, %v1142
        %v1199 = vmul.f32 %v1131, %v1142
        %v1200 = vmul.f32 %v1132, %v1142
        %v1201 = vmul.f32 %v1133, %v1142
        %v1202 = vmul.f32 %v1134, %v1142
        %v1203 = vmul.f32 %v1135, %v1142
        %v1204 = vmul.f32 %v1136, %v1142
        %v1205 = vmul.f32 %v1137, %v1142
        %v1206 = vmul.f32 %v1138, %v1142
        %v1207 = vmul.f32 %v1139, %v1142
        %v1208 = vld [vmem:[%s290] sm:$0x1]
        %v1210 = vperm.slane %v1208, 0
        %v1212 = vadd.f32 %v1144, %v1210
        %v1213 = vadd.f32 %v1145, %v1210
        %v1214 = vadd.f32 %v1146, %v1210
        %v1215 = vadd.f32 %v1147, %v1210
        %v1216 = vadd.f32 %v1148, %v1210
        %v1217 = vadd.f32 %v1149, %v1210
        %v1218 = vadd.f32 %v1150, %v1210
        %v1219 = vadd.f32 %v1151, %v1210
        %v1220 = vadd.f32 %v1152, %v1210
        %v1221 = vadd.f32 %v1153, %v1210
        %v1222 = vadd.f32 %v1154, %v1210
        %v1223 = vadd.f32 %v1155, %v1210
        %v1224 = vadd.f32 %v1156, %v1210
        %v1225 = vadd.f32 %v1157, %v1210
        %v1226 = vadd.f32 %v1158, %v1210
        %v1227 = vadd.f32 %v1159, %v1210
        %v1228 = vadd.f32 %v1160, %v1210
        %v1229 = vadd.f32 %v1161, %v1210
        %v1230 = vadd.f32 %v1162, %v1210
        %v1231 = vadd.f32 %v1163, %v1210
        %v1232 = vadd.f32 %v1164, %v1210
        %v1233 = vadd.f32 %v1165, %v1210
        %v1234 = vadd.f32 %v1166, %v1210
        %v1235 = vadd.f32 %v1167, %v1210
        %v1236 = vadd.f32 %v1168, %v1210
        %v1237 = vadd.f32 %v1169, %v1210
        %v1238 = vadd.f32 %v1170, %v1210
        %v1239 = vadd.f32 %v1171, %v1210
        %v1240 = vadd.f32 %v1172, %v1210
        %v1241 = vadd.f32 %v1173, %v1210
        %v1242 = vadd.f32 %v1174, %v1210
        %v1243 = vadd.f32 %v1175, %v1210
        %v1244 = vadd.f32 %v1176, %v1210
        %v1245 = vadd.f32 %v1177, %v1210
        %v1246 = vadd.f32 %v1178, %v1210
        %v1247 = vadd.f32 %v1179, %v1210
        %v1248 = vadd.f32 %v1180, %v1210
        %v1249 = vadd.f32 %v1181, %v1210
        %v1250 = vadd.f32 %v1182, %v1210
        %v1251 = vadd.f32 %v1183, %v1210
        %v1252 = vadd.f32 %v1184, %v1210
        %v1253 = vadd.f32 %v1185, %v1210
        %v1254 = vadd.f32 %v1186, %v1210
        %v1255 = vadd.f32 %v1187, %v1210
        %v1256 = vadd.f32 %v1188, %v1210
        %v1257 = vadd.f32 %v1189, %v1210
        %v1258 = vadd.f32 %v1190, %v1210
        %v1259 = vadd.f32 %v1191, %v1210
        %v1260 = vadd.f32 %v1192, %v1210
        %v1261 = vadd.f32 %v1193, %v1210
        %v1262 = vadd.f32 %v1194, %v1210
        %v1263 = vadd.f32 %v1195, %v1210
        %v1264 = vadd.f32 %v1196, %v1210
        %v1265 = vadd.f32 %v1197, %v1210
        %v1266 = vadd.f32 %v1198, %v1210
        %v1267 = vadd.f32 %v1199, %v1210
        %v1268 = vadd.f32 %v1200, %v1210
        %v1269 = vadd.f32 %v1201, %v1210
        %v1270 = vadd.f32 %v1202, %v1210
        %v1271 = vadd.f32 %v1203, %v1210
        %v1272 = vadd.f32 %v1204, %v1210
        %v1273 = vadd.f32 %v1205, %v1210
        %v1274 = vadd.f32 %v1206, %v1210
        %v1275 = vadd.f32 %v1207, %v1210
        %v1276 = vmax.f32 %v1212, 0.0
        %v1277 = vmax.f32 %v1213, 0.0
        %v1278 = vmax.f32 %v1214, 0.0
        %v1279 = vmax.f32 %v1215, 0.0
        %v1280 = vmax.f32 %v1216, 0.0
        %v1281 = vmax.f32 %v1217, 0.0
        %v1282 = vmax.f32 %v1218, 0.0
        %v1283 = vmax.f32 %v1219, 0.0
        %v1284 = vmax.f32 %v1220, 0.0
        %v1285 = vmax.f32 %v1221, 0.0
        %v1286 = vmax.f32 %v1222, 0.0
        %v1287 = vmax.f32 %v1223, 0.0
        %v1288 = vmax.f32 %v1224, 0.0
        %v1289 = vmax.f32 %v1225, 0.0
        %v1290 = vmax.f32 %v1226, 0.0
        %v1291 = vmax.f32 %v1227, 0.0
        %v1292 = vmax.f32 %v1228, 0.0
        %v1293 = vmax.f32 %v1229, 0.0
        %v1294 = vmax.f32 %v1230, 0.0
        %v1295 = vmax.f32 %v1231, 0.0
        %v1296 = vmax.f32 %v1232, 0.0
        %v1297 = vmax.f32 %v1233, 0.0
        %v1298 = vmax.f32 %v1234, 0.0
        %v1299 = vmax.f32 %v1235, 0.0
        %v1300 = vmax.f32 %v1236, 0.0
        %v1301 = vmax.f32 %v1237, 0.0
        %v1302 = vmax.f32 %v1238, 0.0
        %v1303 = vmax.f32 %v1239, 0.0
        %v1304 = vmax.f32 %v1240, 0.0
        %v1305 = vmax.f32 %v1241, 0.0
        %v1306 = vmax.f32 %v1242, 0.0
        %v1307 = vmax.f32 %v1243, 0.0
        %v1308 = vmax.f32 %v1244, 0.0
        %v1309 = vmax.f32 %v1245, 0.0
        %v1310 = vmax.f32 %v1246, 0.0
        %v1311 = vmax.f32 %v1247, 0.0
        %v1312 = vmax.f32 %v1248, 0.0
        %v1313 = vmax.f32 %v1249, 0.0
        %v1314 = vmax.f32 %v1250, 0.0
        %v1315 = vmax.f32 %v1251, 0.0
        %v1316 = vmax.f32 %v1252, 0.0
        %v1317 = vmax.f32 %v1253, 0.0
        %v1318 = vmax.f32 %v1254, 0.0
        %v1319 = vmax.f32 %v1255, 0.0
        %v1320 = vmax.f32 %v1256, 0.0
        %v1321 = vmax.f32 %v1257, 0.0
        %v1322 = vmax.f32 %v1258, 0.0
        %v1323 = vmax.f32 %v1259, 0.0
        %v1324 = vmax.f32 %v1260, 0.0
        %v1325 = vmax.f32 %v1261, 0.0
        %v1326 = vmax.f32 %v1262, 0.0
        %v1327 = vmax.f32 %v1263, 0.0
        %v1328 = vmax.f32 %v1264, 0.0
        %v1329 = vmax.f32 %v1265, 0.0
        %v1330 = vmax.f32 %v1266, 0.0
        %v1331 = vmax.f32 %v1267, 0.0
        %v1332 = vmax.f32 %v1268, 0.0
        %v1333 = vmax.f32 %v1269, 0.0
        %v1334 = vmax.f32 %v1270, 0.0
        %v1335 = vmax.f32 %v1271, 0.0
        %v1336 = vmax.f32 %v1272, 0.0
        %v1337 = vmax.f32 %v1273, 0.0
        %v1338 = vmax.f32 %v1274, 0.0
        %v1339 = vmax.f32 %v1275, 0.0
        %v1340 = vpack.c.bf16 %v1276, %v1276
        %v1341 = vpack.c.bf16 %v1277, %v1277
        %v1342 = vpack.c.bf16 %v1278, %v1278
        %v1343 = vpack.c.bf16 %v1279, %v1279
        %v1344 = vpack.c.bf16 %v1280, %v1280
        %v1345 = vpack.c.bf16 %v1281, %v1281
        %v1346 = vpack.c.bf16 %v1282, %v1282
        %v1347 = vpack.c.bf16 %v1283, %v1283
        %v1348 = vpack.c.bf16 %v1284, %v1284
        %v1349 = vpack.c.bf16 %v1285, %v1285
        %v1350 = vpack.c.bf16 %v1286, %v1286
        %v1351 = vpack.c.bf16 %v1287, %v1287
        %v1352 = vpack.c.bf16 %v1288, %v1288
        %v1353 = vpack.c.bf16 %v1289, %v1289
        %v1354 = vpack.c.bf16 %v1290, %v1290
        %v1355 = vpack.c.bf16 %v1291, %v1291
        %v1356 = vpack.c.bf16 %v1292, %v1292
        %v1357 = vpack.c.bf16 %v1293, %v1293
        %v1358 = vpack.c.bf16 %v1294, %v1294
        %v1359 = vpack.c.bf16 %v1295, %v1295
        %v1360 = vpack.c.bf16 %v1296, %v1296
        %v1361 = vpack.c.bf16 %v1297, %v1297
        %v1362 = vpack.c.bf16 %v1298, %v1298
        %v1363 = vpack.c.bf16 %v1299, %v1299
        %v1364 = vpack.c.bf16 %v1300, %v1300
        %v1365 = vpack.c.bf16 %v1301, %v1301
        %v1366 = vpack.c.bf16 %v1302, %v1302
        %v1367 = vpack.c.bf16 %v1303, %v1303
        %v1368 = vpack.c.bf16 %v1304, %v1304
        %v1369 = vpack.c.bf16 %v1305, %v1305
        %v1370 = vpack.c.bf16 %v1306, %v1306
        %v1371 = vpack.c.bf16 %v1307, %v1307
        %v1372 = vpack.c.bf16 %v1308, %v1308
        %v1373 = vpack.c.bf16 %v1309, %v1309
        %v1374 = vpack.c.bf16 %v1310, %v1310
        %v1375 = vpack.c.bf16 %v1311, %v1311
        %v1376 = vpack.c.bf16 %v1312, %v1312
        %v1377 = vpack.c.bf16 %v1313, %v1313
        %v1378 = vpack.c.bf16 %v1314, %v1314
        %v1379 = vpack.c.bf16 %v1315, %v1315
        %v1380 = vpack.c.bf16 %v1316, %v1316
        %v1381 = vpack.c.bf16 %v1317, %v1317
        %v1382 = vpack.c.bf16 %v1318, %v1318
        %v1383 = vpack.c.bf16 %v1319, %v1319
        %v1384 = vpack.c.bf16 %v1320, %v1320
        %v1385 = vpack.c.bf16 %v1321, %v1321
        %v1386 = vpack.c.bf16 %v1322, %v1322
        %v1387 = vpack.c.bf16 %v1323, %v1323
        %v1388 = vpack.c.bf16 %v1324, %v1324
        %v1389 = vpack.c.bf16 %v1325, %v1325
        %v1390 = vpack.c.bf16 %v1326, %v1326
        %v1391 = vpack.c.bf16 %v1327, %v1327
        %v1392 = vpack.c.bf16 %v1328, %v1328
        %v1393 = vpack.c.bf16 %v1329, %v1329
        %v1394 = vpack.c.bf16 %v1330, %v1330
        %v1395 = vpack.c.bf16 %v1331, %v1331
        %v1396 = vpack.c.bf16 %v1332, %v1332
        %v1397 = vpack.c.bf16 %v1333, %v1333
        %v1398 = vpack.c.bf16 %v1334, %v1334
        %v1399 = vpack.c.bf16 %v1335, %v1335
        %v1400 = vpack.c.bf16 %v1336, %v1336
        %v1401 = vpack.c.bf16 %v1337, %v1337
        %v1402 = vpack.c.bf16 %v1338, %v1338
        %v1403 = vpack.c.bf16 %v1339, %v1339
        %1404 = vst [vmem:[%s298] sm:$0xf] %v1340
        %1405 = vst [vmem:[%s298 + $0x4] sm:$0xf] %v1341
        %1406 = vst [vmem:[%s298 + $0x8] sm:$0xf] %v1342
        %1407 = vst [vmem:[%s298 + $0xc] sm:$0xf] %v1343
        %1408 = vst [vmem:[%s298 + $0x10] sm:$0xf] %v1344
        %1409 = vst [vmem:[%s298 + $0x14] sm:$0xf] %v1345
        %1410 = vst [vmem:[%s298 + $0x18] sm:$0xf] %v1346
        %1411 = vst [vmem:[%s298 + $0x1c] sm:$0xf] %v1347
        %1412 = vst [vmem:[%s298 + $0x20] sm:$0xf] %v1348
        %1413 = vst [vmem:[%s298 + $0x24] sm:$0xf] %v1349
        %1414 = vst [vmem:[%s298 + $0x28] sm:$0xf] %v1350
        %1415 = vst [vmem:[%s298 + $0x2c] sm:$0xf] %v1351
        %1416 = vst [vmem:[%s298 + $0x30] sm:$0xf] %v1352
        %1417 = vst [vmem:[%s298 + $0x34] sm:$0xf] %v1353
        %1418 = vst [vmem:[%s298 + $0x38] sm:$0xf] %v1354
        %1419 = vst [vmem:[%s298 + $0x3c] sm:$0xf] %v1355
        %1420 = vst [vmem:[%s298 + $0x40] sm:$0xf] %v1356
        %1421 = vst [vmem:[%s298 + $0x44] sm:$0xf] %v1357
        %1422 = vst [vmem:[%s298 + $0x48] sm:$0xf] %v1358
        %1423 = vst [vmem:[%s298 + $0x4c] sm:$0xf] %v1359
        %1424 = vst [vmem:[%s298 + $0x50] sm:$0xf] %v1360
        %1425 = vst [vmem:[%s298 + $0x54] sm:$0xf] %v1361
        %1426 = vst [vmem:[%s298 + $0x58] sm:$0xf] %v1362
        %1427 = vst [vmem:[%s298 + $0x5c] sm:$0xf] %v1363
        %1428 = vst [vmem:[%s298 + $0x60] sm:$0xf] %v1364
        %1429 = vst [vmem:[%s298 + $0x64] sm:$0xf] %v1365
        %1430 = vst [vmem:[%s298 + $0x68] sm:$0xf] %v1366
        %1431 = vst [vmem:[%s298 + $0x6c] sm:$0xf] %v1367
        %1432 = vst [vmem:[%s298 + $0x70] sm:$0xf] %v1368
        %1433 = vst [vmem:[%s298 + $0x74] sm:$0xf] %v1369
        %1434 = vst [vmem:[%s298 + $0x78] sm:$0xf] %v1370
        %1435 = vst [vmem:[%s298 + $0x7c] sm:$0xf] %v1371
        %1436 = vst [vmem:[%s298 + $0x80] sm:$0xf] %v1372
        %1437 = vst [vmem:[%s298 + $0x84] sm:$0xf] %v1373
        %1438 = vst [vmem:[%s298 + $0x88] sm:$0xf] %v1374
        %1439 = vst [vmem:[%s298 + $0x8c] sm:$0xf] %v1375
        %1440 = vst [vmem:[%s298 + $0x90] sm:$0xf] %v1376
        %1441 = vst [vmem:[%s298 + $0x94] sm:$0xf] %v1377
        %1442 = vst [vmem:[%s298 + $0x98] sm:$0xf] %v1378
        %1443 = vst [vmem:[%s298 + $0x9c] sm:$0xf] %v1379
        %1444 = vst [vmem:[%s298 + $0xa0] sm:$0xf] %v1380
        %1445 = vst [vmem:[%s298 + $0xa4] sm:$0xf] %v1381
        %1446 = vst [vmem:[%s298 + $0xa8] sm:$0xf] %v1382
        %1447 = vst [vmem:[%s298 + $0xac] sm:$0xf] %v1383
        %1448 = vst [vmem:[%s298 + $0xb0] sm:$0xf] %v1384
        %1449 = vst [vmem:[%s298 + $0xb4] sm:$0xf] %v1385
        %1450 = vst [vmem:[%s298 + $0xb8] sm:$0xf] %v1386
        %1451 = vst [vmem:[%s298 + $0xbc] sm:$0xf] %v1387
        %1452 = vst [vmem:[%s298 + $0xc0] sm:$0xf] %v1388
        %1453 = vst [vmem:[%s298 + $0xc4] sm:$0xf] %v1389
        %1454 = vst [vmem:[%s298 + $0xc8] sm:$0xf] %v1390
        %1455 = vst [vmem:[%s298 + $0xcc] sm:$0xf] %v1391
        %1456 = vst [vmem:[%s298 + $0xd0] sm:$0xf] %v1392
        %1457 = vst [vmem:[%s298 + $0xd4] sm:$0xf] %v1393
        %1458 = vst [vmem:[%s298 + $0xd8] sm:$0xf] %v1394
        %1459 = vst [vmem:[%s298 + $0xdc] sm:$0xf] %v1395
        %1460 = vst [vmem:[%s298 + $0xe0] sm:$0xf] %v1396
        %1461 = vst [vmem:[%s298 + $0xe4] sm:$0xf] %v1397
        %1462 = vst [vmem:[%s298 + $0xe8] sm:$0xf] %v1398
        %1463 = vst [vmem:[%s298 + $0xec] sm:$0xf] %v1399
        %1464 = vst [vmem:[%s298 + $0xf0] sm:$0xf] %v1400
        %1465 = vst [vmem:[%s298 + $0xf4] sm:$0xf] %v1401
        %1466 = vst [vmem:[%s298 + $0xf8] sm:$0xf] %v1402
        %1467 = vst [vmem:[%s298 + $0xfc] sm:$0xf] %v1403
      $region44: #{resnet_forward.7} parent=35 // pred_fallthru
        _
      %s1468 = smul.u32 64, %s20
      %p1469 = scmp.lt.s32.totalorder %s1468, 255
      %s1470 = scalar_select %p1469, %s1468, 255
      %p1471 = scmp.lt.s32.totalorder %s21, 0
      %s1472 = scalar_select %p1471, %s21, 0
      %s1473 = sadd.s32 %s1472, %s1470
      %s1474 = smul.addr %s1473, 4
      %s1475 = scalar_lea.vmem %s4, %s1474
      // Predicated region
      $region45: #{resnet_forward.7} parent=35 // pred_check
        %p1476 = pneg %p162
      $region46: #{resnet_forward.7} parent=35 // pred_check_branch
        %1478 = sbr.rel (%p1476) target = $region48
      $region47: #{resnet_forward.7} parent=35 // pred_region
        %s1479 = smul.u32 64, %s20
      $region48: #{resnet_forward.7} parent=35 // pred_fallthru
        _
    $region36: #{resnet_forward.7} parent=5 // pred_fallthru
      _
    %p1480 = scmp.le.s32.totalorder 2, %s10
    // Predicated region
    $region49: #{resnet_forward.7} parent=5 // pred_check
      %p1481 = pneg %p1480
    $region50: #{resnet_forward.7} parent=5 // pred_check_branch
      %1483 = sbr.rel (%p1481) target = $region52
    $region51: #{resnet_forward.7} parent=5 // pred_region
      %s1484 = ssub.s32 %s10, 2
      // Predicated region
      $region53: #{resnet_forward.7} parent=51 // pred_check
        %p1485 = pneg %p168
      $region54: #{resnet_forward.7} parent=51 // pred_check_branch
        %1487 = sbr.rel (%p1485) target = $region56
      $region55: #{resnet_forward.7} parent=51 // pred_region
        %s1488 = smul.u32 64, %s23
        %p1489 = scmp.lt.s32.totalorder %s1488, 255
        %s1490 = scalar_select %p1489, %s1488, 255
        %p1491 = scmp.lt.s32.totalorder %s24, 0
        %s1492 = scalar_select %p1491, %s24, 0
        %s1493 = sadd.s32 %s1492, %s1490
        %s1494 = smul.addr %s1493, 4
        %s1495 = scalar_lea.vmem %s4, %s1494
      $region56: #{resnet_forward.7} parent=51 // pred_fallthru
        _
    $region52: #{resnet_forward.7} parent=5 // pred_fallthru
      _
  $region6: #{resnet_forward.7} parent=0 // loop_footer
    %s14 = sadd.s32 1, %s10
  $region7: #{resnet_forward.7} parent=0 // loop_footer_branch
    %9 = sbr.rel target = $region3
  $region8: #{resnet_forward.7} parent=0 // loop_exit
    _

// kernel: resnet_forward.8
$region0: #{resnet_forward.8}
  #allocation0 [shape = 'u32[]', space=smem, size = 0x4, offset = 0x4, fixed_abs, tag = 'smem constant byte address 0x4 - core index']
  #allocation1 [shape = 'u32[72,128]{1,0:T(1,128)}', space=vmem, size = 0x9000, scoped, tag = 'internal scratch']
  #allocation2 [shape = 'f32[512,128]{1,0:T(8,128)}', space=vmem, size = 0x40000, scoped, tag = 'scratch operand']
  %s0 = inlined_call_operand.vmem [shape: bf16[2048,36], index: 0, kind: input, shape index: {}]
  %s1 = inlined_call_operand.vmem [shape: bf16[36,128], index: 1, kind: input, shape index: {}]
  %s2 = inlined_call_operand.vmem [shape: f32[1,128], index: 2, kind: input, shape index: {}]
  %s3 = inlined_call_operand.vmem [shape: f32[1,128], index: 3, kind: input, shape index: {}]
  %s4 = inlined_call_operand.vmem [shape: bf16[2048,128], index: 4, kind: output, shape index: {}]
  %s5 = sld [smem:[#allocation0]]
  $region57: #{resnet_forward.8} parent=0
    _
  %s7 = ssub.s32 1, %s5
  %s8 = scalar_select 0, %s7, %s5
  loop: start=0, step=1, limit=6
  $region2: #{resnet_forward.8} parent=0 // loop_pre_header
    _
  $region3: #{resnet_forward.8} parent=0 // loop_header
    %s10 = sphi 0, %s14
    %p11 = scmp.ge.s32.totalorder %s10, 6
    %s17 = sphi 0, %s36
    %s18 = sphi 0, %s32
    %s19 = sphi 0, %s28
    %s20 = sphi 0, %s17
    %s21 = sphi 0, %s18
    %s22 = sphi 0, %s19
    %s23 = sphi 0, %s20
    %s24 = sphi 0, %s21
    %s25 = sphi 0, %s22
    %s41 = sphi 0, %s43
    %s44 = sphi 0, %s41
    %s45 = sphi 0, %s44
    %s61 = sphi 0, %s45
    %s69 = sphi 0, %s71
    %s72 = sphi 0, %s69
    %s73 = sphi 0, %s72
    %s89 = sphi 0, %s73
    %s95 = sphi 0, %s97
    %s98 = sphi 0, %s95
    %s99 = sphi 0, %s98
    %s115 = sphi 0, %s99
    %s121 = sphi 0, %s123
    %s124 = sphi 0, %s121
    %s125 = sphi 0, %s124
    %s141 = sphi 0, %s125
    %s149 = sphi 0, %s151
    %s152 = sphi 0, %s149
    %s153 = sphi 0, %s152
    %s169 = sphi 0, %s153
  $region4: #{resnet_forward.8} parent=0 // loop_header_branch
    %13 = sbr.rel (%p11) target = $region8
  $region5: #{resnet_forward.8} parent=0 // loop_body
    %s15 = ssub.s32 %s10, 1
    %s16 = ssub.s32 %s10, 2
    %s26 = sadd.s32 1, %s19
    %p27 = scmp.ge.s32.totalorder %s26, 1
    %s28 = scalar_select %p27, 0, %s26
    %s29 = sadd.s32 1, %s18
    %s30 = scalar_select %p27, %s29, %s18
    %p31 = scmp.ge.s32.totalorder %s30, 1
    %s32 = scalar_select %p31, 0, %s30
    %s33 = sadd.s32 1, %s17
    %s34 = scalar_select %p31, %s33, %s17
    %p35 = scmp.ge.s32.totalorder %s34, 4
    %s36 = scalar_select %p35, 0, %s34
    %s37 = ssub.s32 %s17, %s36
    %s38 = ssub.s32 %s19, %s28
    %s39 = sor.u32 %s37, %s38
    %p40 = scmp.eq.s32.totalorder %s39, 0
    %s42 = sadd.s32 %s41, 1
    %s43 = scalar_select %p40, %s41, %s42
    %p46 = pneg %p40
    %p47 = scmp.eq.s32.totalorder %s10, 3
    %p48 = por %p46, %p47
    %p49 = scmp.ne.s32.totalorder %s41, %s44
    %p50 = scmp.eq.s32.totalorder %s10, 0
    %p51 = por %p49, %p50
    %p52 = scmp.ne.s32.totalorder %s41, %s44
    %p53 = scmp.eq.s32.totalorder %s15, 3
    %p54 = por %p52, %p53
    %p55 = scmp.ne.s32.totalorder %s44, %s45
    %p56 = scmp.eq.s32.totalorder %s15, 0
    %p57 = por %p55, %p56
    %p58 = scmp.ne.s32.totalorder %s44, %s45
    %p59 = scmp.eq.s32.totalorder %s16, 3
    %p60 = por %p58, %p59
    %p62 = scmp.ne.s32.totalorder %s45, %s61
    %p63 = scmp.eq.s32.totalorder %s16, 0
    %p64 = por %p62, %p63
    %s65 = ssub.s32 %s19, %s28
    %s66 = ssub.s32 %s18, %s32
    %s67 = sor.u32 %s65, %s66
    %p68 = scmp.eq.s32.totalorder %s67, 0
    %s70 = sadd.s32 %s69, 1
    %s71 = scalar_select %p68, %s69, %s70
    %p74 = pneg %p68
    %p75 = scmp.eq.s32.totalorder %s10, 3
    %p76 = por %p74, %p75
    %p77 = scmp.ne.s32.totalorder %s69, %s72
    %p78 = scmp.eq.s32.totalorder %s10, 0
    %p79 = por %p77, %p78
    %p80 = scmp.ne.s32.totalorder %s69, %s72
    %p81 = scmp.eq.s32.totalorder %s15, 3
    %p82 = por %p80, %p81
    %p83 = scmp.ne.s32.totalorder %s72, %s73
    %p84 = scmp.eq.s32.totalorder %s15, 0
    %p85 = por %p83, %p84
    %p86 = scmp.ne.s32.totalorder %s72, %s73
    %p87 = scmp.eq.s32.totalorder %s16, 3
    %p88 = por %p86, %p87
    %p90 = scmp.ne.s32.totalorder %s73, %s89
    %p91 = scmp.eq.s32.totalorder %s16, 0
    %p92 = por %p90, %p91
    %s93 = ssub.s32 %s18, %s32
    %p94 = scmp.eq.s32.totalorder %s93, 0
    %s96 = sadd.s32 %s95, 1
    %s97 = scalar_select %p94, %s95, %s96
    %p100 = pneg %p94
    %p101 = scmp.eq.s32.totalorder %s10, 3
    %p102 = por %p100, %p101
    %p103 = scmp.ne.s32.totalorder %s95, %s98
    %p104 = scmp.eq.s32.totalorder %s10, 0
    %p105 = por %p103, %p104
    %p106 = scmp.ne.s32.totalorder %s95, %s98
    %p107 = scmp.eq.s32.totalorder %s15, 3
    %p108 = por %p106, %p107
    %p109 = scmp.ne.s32.totalorder %s98, %s99
    %p110 = scmp.eq.s32.totalorder %s15, 0
    %p111 = por %p109, %p110
    %p112 = scmp.ne.s32.totalorder %s98, %s99
    %p113 = scmp.eq.s32.totalorder %s16, 3
    %p114 = por %p112, %p113
    %p116 = scmp.ne.s32.totalorder %s99, %s115
    %p117 = scmp.eq.s32.totalorder %s16, 0
    %p118 = por %p116, %p117
    %s119 = ssub.s32 %s18, %s32
    %p120 = scmp.eq.s32.totalorder %s119, 0
    %s122 = sadd.s32 %s121, 1
    %s123 = scalar_select %p120, %s121, %s122
    %p126 = pneg %p120
    %p127 = scmp.eq.s32.totalorder %s10, 3
    %p128 = por %p126, %p127
    %p129 = scmp.ne.s32.totalorder %s121, %s124
    %p130 = scmp.eq.s32.totalorder %s10, 0
    %p131 = por %p129, %p130
    %p132 = scmp.ne.s32.totalorder %s121, %s124
    %p133 = scmp.eq.s32.totalorder %s15, 3
    %p134 = por %p132, %p133
    %p135 = scmp.ne.s32.totalorder %s124, %s125
    %p136 = scmp.eq.s32.totalorder %s15, 0
    %p137 = por %p135, %p136
    %p138 = scmp.ne.s32.totalorder %s124, %s125
    %p139 = scmp.eq.s32.totalorder %s16, 3
    %p140 = por %p138, %p139
    %p142 = scmp.ne.s32.totalorder %s125, %s141
    %p143 = scmp.eq.s32.totalorder %s16, 0
    %p144 = por %p142, %p143
    %s145 = ssub.s32 %s17, %s36
    %s146 = ssub.s32 %s18, %s32
    %s147 = sor.u32 %s145, %s146
    %p148 = scmp.eq.s32.totalorder %s147, 0
    %s150 = sadd.s32 %s149, 1
    %s151 = scalar_select %p148, %s149, %s150
    %p154 = pneg %p148
    %p155 = scmp.eq.s32.totalorder %s10, 3
    %p156 = por %p154, %p155
    %p157 = scmp.ne.s32.totalorder %s149, %s152
    %p158 = scmp.eq.s32.totalorder %s10, 0
    %p159 = por %p157, %p158
    %p160 = scmp.ne.s32.totalorder %s149, %s152
    %p161 = scmp.eq.s32.totalorder %s15, 3
    %p162 = por %p160, %p161
    %p163 = scmp.ne.s32.totalorder %s152, %s153
    %p164 = scmp.eq.s32.totalorder %s15, 0
    %p165 = por %p163, %p164
    %p166 = scmp.ne.s32.totalorder %s152, %s153
    %p167 = scmp.eq.s32.totalorder %s16, 3
    %p168 = por %p166, %p167
    %p170 = scmp.ne.s32.totalorder %s153, %s169
    %p171 = scmp.eq.s32.totalorder %s16, 0
    %p172 = por %p170, %p171
    %p173 = scmp.le.s32.totalorder 1, %s10
    %p174 = scmp.lt.s32.totalorder %s10, 5
    %p175 = pnand %p173, %p174
    %p176 = pneg %p175
    // Predicated region
    $region9: #{resnet_forward.8} parent=5 // pred_check
      _
    $region10: #{resnet_forward.8} parent=5 // pred_check_branch
      %178 = sbr.rel (%p175) target = $region12
    $region11: #{resnet_forward.8} parent=5 // pred_region
      %s179 = ssub.s32 %s10, 1
      // Predicated region
      $region13: #{resnet_forward.8} parent=11 // pred_check
        %p180 = pneg %p85
      $region14: #{resnet_forward.8} parent=11 // pred_check_branch
        %182 = sbr.rel (%p180) target = $region16
      $region15: #{resnet_forward.8} parent=11 // pred_region
        %s183 = smul.u32 5, %s22
        %p184 = scmp.lt.s32.totalorder %s183, 4
        %s185 = scalar_select %p184, %s183, 4
        %p186 = scmp.lt.s32.totalorder %s21, 0
        %s187 = scalar_select %p186, %s21, 0
        %s188 = sadd.s32 %s187, %s185
        %s189 = smul.addr %s188, 4
        %s190 = scalar_lea.vmem %s1, %s189
        %s191 = smul.u32 5, %s22
      $region16: #{resnet_forward.8} parent=11 // pred_fallthru
        _
      // Predicated region
      $region17: #{resnet_forward.8} parent=11 // pred_check
        %p192 = pneg %p111
      $region18: #{resnet_forward.8} parent=11 // pred_check_branch
        %194 = sbr.rel (%p192) target = $region20
      $region19: #{resnet_forward.8} parent=11 // pred_region
        %p195 = scmp.lt.s32.totalorder %s21, 0
        %s196 = scalar_select %p195, %s21, 0
        %s197 = scalar_lea.vmem %s2, %s196
      $region20: #{resnet_forward.8} parent=11 // pred_fallthru
        _
      // Predicated region
      $region21: #{resnet_forward.8} parent=11 // pred_check
        %p198 = pneg %p137
      $region22: #{resnet_forward.8} parent=11 // pred_check_branch
        %200 = sbr.rel (%p198) target = $region24
      $region23: #{resnet_forward.8} parent=11 // pred_region
        %p201 = scmp.lt.s32.totalorder %s21, 0
        %s202 = scalar_select %p201, %s21, 0
        %s203 = scalar_lea.vmem %s3, %s202
      $region24: #{resnet_forward.8} parent=11 // pred_fallthru
        _
    $region12: #{resnet_forward.8} parent=5 // pred_fallthru
      _
    %p204 = scmp.lt.s32.totalorder %s10, 4
    // Predicated region
    $region25: #{resnet_forward.8} parent=5 // pred_check
      %p205 = pneg %p204
    $region26: #{resnet_forward.8} parent=5 // pred_check_branch
      %207 = sbr.rel (%p205) target = $region28
    $region27: #{resnet_forward.8} parent=5 // pred_region
      // Predicated region
      $region29: #{resnet_forward.8} parent=27 // pred_check
        %p208 = pneg %p51
      $region30: #{resnet_forward.8} parent=27 // pred_check_branch
        %210 = sbr.rel (%p208) target = $region32
      $region31: #{resnet_forward.8} parent=27 // pred_region
        %s211 = smul.u32 64, %s17
        %p212 = scmp.lt.s32.totalorder %s211, 255
        %s213 = scalar_select %p212, %s211, 255
        %p214 = scmp.lt.s32.totalorder %s19, 0
        %s215 = scalar_select %p214, %s19, 0
        %s216 = sadd.s32 %s215, %s213
        %s217 = smul.addr %s216, 4
        %s218 = scalar_lea.vmem %s0, %s217
        %s219 = smul.u32 64, %s17
      $region32: #{resnet_forward.8} parent=27 // pred_fallthru
        _
    $region28: #{resnet_forward.8} parent=5 // pred_fallthru
      _
    %p220 = scmp.le.s32.totalorder 1, %s10
    %p221 = scmp.lt.s32.totalorder %s10, 5
    %p222 = pnand %p220, %p221
    %p223 = pneg %p222
    // Predicated region
    $region33: #{resnet_forward.8} parent=5 // pred_check
      _
    $region34: #{resnet_forward.8} parent=5 // pred_check_branch
      %225 = sbr.rel (%p222) target = $region36
    $region35: #{resnet_forward.8} parent=5 // pred_region
      %s226 = ssub.s32 %s10, 1
      %s227 = smul.u32 64, %s20
      %p228 = scmp.lt.s32.totalorder %s227, 255
      %s229 = scalar_select %p228, %s227, 255
      %p230 = scmp.lt.s32.totalorder %s22, 0
      %s231 = scalar_select %p230, %s22, 0
      %s232 = sadd.s32 %s231, %s229
      %s233 = smul.addr %s232, 4
      %s234 = scalar_lea.vmem %s0, %s233
      %p235 = pneg %p57
      %p236 = pneg %p54
      %s237 = smul.u32 5, %s22
      %p238 = scmp.lt.s32.totalorder %s237, 4
      %s239 = scalar_select %p238, %s237, 4
      %p240 = scmp.lt.s32.totalorder %s21, 0
      %s241 = scalar_select %p240, %s21, 0
      %s242 = sadd.s32 %s241, %s239
      %s243 = smul.addr %s242, 4
      %s244 = scalar_lea.vmem %s1, %s243
      %p245 = pneg %p85
      %p246 = pneg %p82
      %p247 = scmp.lt.s32.totalorder %s21, 0
      %s248 = scalar_select %p247, %s21, 0
      %s249 = scalar_lea.vmem %s2, %s248
      %p250 = pneg %p111
      %p251 = pneg %p108
      %p252 = scmp.lt.s32.totalorder %s21, 0
      %s253 = scalar_select %p252, %s21, 0
      %s254 = scalar_lea.vmem %s3, %s253
      %p255 = pneg %p137
      %p256 = pneg %p134
      %p257 = pneg %p165
      %p258 = pneg %p162
      %s259 = smul.u32 64, %s20
      %p260 = scmp.lt.s32.totalorder %s259, 255
      %s261 = scalar_select %p260, %s259, 255
      %p262 = scmp.lt.s32.totalorder %s21, 0
      %s263 = scalar_select %p262, %s21, 0
      %s264 = sadd.s32 %s263, %s261
      %s265 = smul.addr %s264, 4
      %s266 = scalar_lea.vmem %s4, %s265
      %s267 = smul.u32 64, %s20
      %p268 = scmp.lt.s32.totalorder %s267, 255
      %s269 = scalar_select %p268, %s267, 255
      %p270 = scmp.lt.s32.totalorder %s22, 0
      %s271 = scalar_select %p270, %s22, 0
      %s272 = sadd.s32 %s271, %s269
      %s273 = smul.addr %s272, 4
      %s274 = scalar_lea.vmem %s0, %s273
      %s275 = smul.u32 64, %s20
      %s276 = smul.u32 5, %s22
      %p277 = scmp.lt.s32.totalorder %s276, 4
      %s278 = scalar_select %p277, %s276, 4
      %p279 = scmp.lt.s32.totalorder %s21, 0
      %s280 = scalar_select %p279, %s21, 0
      %s281 = sadd.s32 %s280, %s278
      %s282 = smul.addr %s281, 4
      %s283 = scalar_lea.vmem %s1, %s282
      %s284 = smul.u32 5, %s22
      %p285 = scmp.lt.s32.totalorder %s21, 0
      %s286 = scalar_select %p285, %s21, 0
      %s287 = scalar_lea.vmem %s2, %s286
      %p288 = scmp.lt.s32.totalorder %s21, 0
      %s289 = scalar_select %p288, %s21, 0
      %s290 = scalar_lea.vmem %s3, %s289
      %s291 = smul.u32 64, %s20
      %p292 = scmp.lt.s32.totalorder %s291, 255
      %s293 = scalar_select %p292, %s291, 255
      %p294 = scmp.lt.s32.totalorder %s21, 0
      %s295 = scalar_select %p294, %s21, 0
      %s296 = sadd.s32 %s295, %s293
      %s297 = smul.addr %s296, 4
      %s298 = scalar_lea.vmem %s4, %s297
      %s299 = smul.u32 64, %s20
      %p301 = scmp.eq.s32.totalorder %s22, 0
      // Predicated region
      $region37: #{resnet_forward.8} parent=35 // pred_check
        %p302 = pneg %p301
      $region38: #{resnet_forward.8} parent=35 // pred_check_branch
        %304 = sbr.rel (%p302) target = $region40
      $region39: #{resnet_forward.8} parent=35 // pred_region
        %305 = vst [vmem:[#allocation2] sm:$0xff] 0.0
        %306 = vst [vmem:[#allocation2 + $0x8] sm:$0xff] 0.0
        %307 = vst [vmem:[#allocation2 + $0x10] sm:$0xff] 0.0
        %308 = vst [vmem:[#allocation2 + $0x18] sm:$0xff] 0.0
        %309 = vst [vmem:[#allocation2 + $0x20] sm:$0xff] 0.0
        %310 = vst [vmem:[#allocation2 + $0x28] sm:$0xff] 0.0
        %311 = vst [vmem:[#allocation2 + $0x30] sm:$0xff] 0.0
        %312 = vst [vmem:[#allocation2 + $0x38] sm:$0xff] 0.0
        %313 = vst [vmem:[#allocation2 + $0x40] sm:$0xff] 0.0
        %314 = vst [vmem:[#allocation2 + $0x48] sm:$0xff] 0.0
        %315 = vst [vmem:[#allocation2 + $0x50] sm:$0xff] 0.0
        %316 = vst [vmem:[#allocation2 + $0x58] sm:$0xff] 0.0
        %317 = vst [vmem:[#allocation2 + $0x60] sm:$0xff] 0.0
        %318 = vst [vmem:[#allocation2 + $0x68] sm:$0xff] 0.0
        %319 = vst [vmem:[#allocation2 + $0x70] sm:$0xff] 0.0
        %320 = vst [vmem:[#allocation2 + $0x78] sm:$0xff] 0.0
        %321 = vst [vmem:[#allocation2 + $0x80] sm:$0xff] 0.0
        %322 = vst [vmem:[#allocation2 + $0x88] sm:$0xff] 0.0
        %323 = vst [vmem:[#allocation2 + $0x90] sm:$0xff] 0.0
        %324 = vst [vmem:[#allocation2 + $0x98] sm:$0xff] 0.0
        %325 = vst [vmem:[#allocation2 + $0xa0] sm:$0xff] 0.0
        %326 = vst [vmem:[#allocation2 + $0xa8] sm:$0xff] 0.0
        %327 = vst [vmem:[#allocation2 + $0xb0] sm:$0xff] 0.0
        %328 = vst [vmem:[#allocation2 + $0xb8] sm:$0xff] 0.0
        %329 = vst [vmem:[#allocation2 + $0xc0] sm:$0xff] 0.0
        %330 = vst [vmem:[#allocation2 + $0xc8] sm:$0xff] 0.0
        %331 = vst [vmem:[#allocation2 + $0xd0] sm:$0xff] 0.0
        %332 = vst [vmem:[#allocation2 + $0xd8] sm:$0xff] 0.0
        %333 = vst [vmem:[#allocation2 + $0xe0] sm:$0xff] 0.0
        %334 = vst [vmem:[#allocation2 + $0xe8] sm:$0xff] 0.0
        %335 = vst [vmem:[#allocation2 + $0xf0] sm:$0xff] 0.0
        %336 = vst [vmem:[#allocation2 + $0xf8] sm:$0xff] 0.0
        %337 = vst [vmem:[#allocation2 + $0x100] sm:$0xff] 0.0
        %338 = vst [vmem:[#allocation2 + $0x108] sm:$0xff] 0.0
        %339 = vst [vmem:[#allocation2 + $0x110] sm:$0xff] 0.0
        %340 = vst [vmem:[#allocation2 + $0x118] sm:$0xff] 0.0
        %341 = vst [vmem:[#allocation2 + $0x120] sm:$0xff] 0.0
        %342 = vst [vmem:[#allocation2 + $0x128] sm:$0xff] 0.0
        %343 = vst [vmem:[#allocation2 + $0x130] sm:$0xff] 0.0
        %344 = vst [vmem:[#allocation2 + $0x138] sm:$0xff] 0.0
        %345 = vst [vmem:[#allocation2 + $0x140] sm:$0xff] 0.0
        %346 = vst [vmem:[#allocation2 + $0x148] sm:$0xff] 0.0
        %347 = vst [vmem:[#allocation2 + $0x150] sm:$0xff] 0.0
        %348 = vst [vmem:[#allocation2 + $0x158] sm:$0xff] 0.0
        %349 = vst [vmem:[#allocation2 + $0x160] sm:$0xff] 0.0
        %350 = vst [vmem:[#allocation2 + $0x168] sm:$0xff] 0.0
        %351 = vst [vmem:[#allocation2 + $0x170] sm:$0xff] 0.0
        %352 = vst [vmem:[#allocation2 + $0x178] sm:$0xff] 0.0
        %353 = vst [vmem:[#allocation2 + $0x180] sm:$0xff] 0.0
        %354 = vst [vmem:[#allocation2 + $0x188] sm:$0xff] 0.0
        %355 = vst [vmem:[#allocation2 + $0x190] sm:$0xff] 0.0
        %356 = vst [vmem:[#allocation2 + $0x198] sm:$0xff] 0.0
        %357 = vst [vmem:[#allocation2 + $0x1a0] sm:$0xff] 0.0
        %358 = vst [vmem:[#allocation2 + $0x1a8] sm:$0xff] 0.0
        %359 = vst [vmem:[#allocation2 + $0x1b0] sm:$0xff] 0.0
        %360 = vst [vmem:[#allocation2 + $0x1b8] sm:$0xff] 0.0
        %361 = vst [vmem:[#allocation2 + $0x1c0] sm:$0xff] 0.0
        %362 = vst [vmem:[#allocation2 + $0x1c8] sm:$0xff] 0.0
        %363 = vst [vmem:[#allocation2 + $0x1d0] sm:$0xff] 0.0
        %364 = vst [vmem:[#allocation2 + $0x1d8] sm:$0xff] 0.0
        %365 = vst [vmem:[#allocation2 + $0x1e0] sm:$0xff] 0.0
        %366 = vst [vmem:[#allocation2 + $0x1e8] sm:$0xff] 0.0
        %367 = vst [vmem:[#allocation2 + $0x1f0] sm:$0xff] 0.0
        %368 = vst [vmem:[#allocation2 + $0x1f8] sm:$0xff] 0.0
      $region40: #{resnet_forward.8} parent=35 // pred_fallthru
        _
      %v369 = vld [vmem:[#allocation2] sm:$0xff]
      %v370 = vld [vmem:[#allocation2 + $0x8] sm:$0xff]
      %v371 = vld [vmem:[#allocation2 + $0x10] sm:$0xff]
      %v372 = vld [vmem:[#allocation2 + $0x18] sm:$0xff]
      %v373 = vld [vmem:[#allocation2 + $0x20] sm:$0xff]
      %v374 = vld [vmem:[#allocation2 + $0x28] sm:$0xff]
      %v375 = vld [vmem:[#allocation2 + $0x30] sm:$0xff]
      %v376 = vld [vmem:[#allocation2 + $0x38] sm:$0xff]
      %v377 = vld [vmem:[#allocation2 + $0x40] sm:$0xff]
      %v378 = vld [vmem:[#allocation2 + $0x48] sm:$0xff]
      %v379 = vld [vmem:[#allocation2 + $0x50] sm:$0xff]
      %v380 = vld [vmem:[#allocation2 + $0x58] sm:$0xff]
      %v381 = vld [vmem:[#allocation2 + $0x60] sm:$0xff]
      %v382 = vld [vmem:[#allocation2 + $0x68] sm:$0xff]
      %v383 = vld [vmem:[#allocation2 + $0x70] sm:$0xff]
      %v384 = vld [vmem:[#allocation2 + $0x78] sm:$0xff]
      %v385 = vld [vmem:[#allocation2 + $0x80] sm:$0xff]
      %v386 = vld [vmem:[#allocation2 + $0x88] sm:$0xff]
      %v387 = vld [vmem:[#allocation2 + $0x90] sm:$0xff]
      %v388 = vld [vmem:[#allocation2 + $0x98] sm:$0xff]
      %v389 = vld [vmem:[#allocation2 + $0xa0] sm:$0xff]
      %v390 = vld [vmem:[#allocation2 + $0xa8] sm:$0xff]
      %v391 = vld [vmem:[#allocation2 + $0xb0] sm:$0xff]
      %v392 = vld [vmem:[#allocation2 + $0xb8] sm:$0xff]
      %v393 = vld [vmem:[#allocation2 + $0xc0] sm:$0xff]
      %v394 = vld [vmem:[#allocation2 + $0xc8] sm:$0xff]
      %v395 = vld [vmem:[#allocation2 + $0xd0] sm:$0xff]
      %v396 = vld [vmem:[#allocation2 + $0xd8] sm:$0xff]
      %v397 = vld [vmem:[#allocation2 + $0xe0] sm:$0xff]
      %v398 = vld [vmem:[#allocation2 + $0xe8] sm:$0xff]
      %v399 = vld [vmem:[#allocation2 + $0xf0] sm:$0xff]
      %v400 = vld [vmem:[#allocation2 + $0xf8] sm:$0xff]
      %v401 = vld [vmem:[#allocation2 + $0x100] sm:$0xff]
      %v402 = vld [vmem:[#allocation2 + $0x108] sm:$0xff]
      %v403 = vld [vmem:[#allocation2 + $0x110] sm:$0xff]
      %v404 = vld [vmem:[#allocation2 + $0x118] sm:$0xff]
      %v405 = vld [vmem:[#allocation2 + $0x120] sm:$0xff]
      %v406 = vld [vmem:[#allocation2 + $0x128] sm:$0xff]
      %v407 = vld [vmem:[#allocation2 + $0x130] sm:$0xff]
      %v408 = vld [vmem:[#allocation2 + $0x138] sm:$0xff]
      %v409 = vld [vmem:[#allocation2 + $0x140] sm:$0xff]
      %v410 = vld [vmem:[#allocation2 + $0x148] sm:$0xff]
      %v411 = vld [vmem:[#allocation2 + $0x150] sm:$0xff]
      %v412 = vld [vmem:[#allocation2 + $0x158] sm:$0xff]
      %v413 = vld [vmem:[#allocation2 + $0x160] sm:$0xff]
      %v414 = vld [vmem:[#allocation2 + $0x168] sm:$0xff]
      %v415 = vld [vmem:[#allocation2 + $0x170] sm:$0xff]
      %v416 = vld [vmem:[#allocation2 + $0x178] sm:$0xff]
      %v417 = vld [vmem:[#allocation2 + $0x180] sm:$0xff]
      %v418 = vld [vmem:[#allocation2 + $0x188] sm:$0xff]
      %v419 = vld [vmem:[#allocation2 + $0x190] sm:$0xff]
      %v420 = vld [vmem:[#allocation2 + $0x198] sm:$0xff]
      %v421 = vld [vmem:[#allocation2 + $0x1a0] sm:$0xff]
      %v422 = vld [vmem:[#allocation2 + $0x1a8] sm:$0xff]
      %v423 = vld [vmem:[#allocation2 + $0x1b0] sm:$0xff]
      %v424 = vld [vmem:[#allocation2 + $0x1b8] sm:$0xff]
      %v425 = vld [vmem:[#allocation2 + $0x1c0] sm:$0xff]
      %v426 = vld [vmem:[#allocation2 + $0x1c8] sm:$0xff]
      %v427 = vld [vmem:[#allocation2 + $0x1d0] sm:$0xff]
      %v428 = vld [vmem:[#allocation2 + $0x1d8] sm:$0xff]
      %v429 = vld [vmem:[#allocation2 + $0x1e0] sm:$0xff]
      %v430 = vld [vmem:[#allocation2 + $0x1e8] sm:$0xff]
      %v431 = vld [vmem:[#allocation2 + $0x1f0] sm:$0xff]
      %v432 = vld [vmem:[#allocation2 + $0x1f8] sm:$0xff]
      %v433 = vld [vmem:[%s274] sm:$0xf]
      %v434 = vld [vmem:[%s274 + $0x4] sm:$0xf]
      %v435 = vld [vmem:[%s274 + $0x8] sm:$0xf]
      %v436 = vld [vmem:[%s274 + $0xc] sm:$0xf]
      %v437 = vld [vmem:[%s274 + $0x10] sm:$0xf]
      %v438 = vld [vmem:[%s274 + $0x14] sm:$0xf]
      %v439 = vld [vmem:[%s274 + $0x18] sm:$0xf]
      %v440 = vld [vmem:[%s274 + $0x1c] sm:$0xf]
      %v441 = vld [vmem:[%s274 + $0x20] sm:$0xf]
      %v442 = vld [vmem:[%s274 + $0x24] sm:$0xf]
      %v443 = vld [vmem:[%s274 + $0x28] sm:$0xf]
      %v444 = vld [vmem:[%s274 + $0x2c] sm:$0xf]
      %v445 = vld [vmem:[%s274 + $0x30] sm:$0xf]
      %v446 = vld [vmem:[%s274 + $0x34] sm:$0xf]
      %v447 = vld [vmem:[%s274 + $0x38] sm:$0xf]
      %v448 = vld [vmem:[%s274 + $0x3c] sm:$0xf]
      %v449 = vld [vmem:[%s274 + $0x40] sm:$0xf]
      %v450 = vld [vmem:[%s274 + $0x44] sm:$0xf]
      %v451 = vld [vmem:[%s274 + $0x48] sm:$0xf]
      %v452 = vld [vmem:[%s274 + $0x4c] sm:$0xf]
      %v453 = vld [vmem:[%s274 + $0x50] sm:$0xf]
      %v454 = vld [vmem:[%s274 + $0x54] sm:$0xf]
      %v455 = vld [vmem:[%s274 + $0x58] sm:$0xf]
      %v456 = vld [vmem:[%s274 + $0x5c] sm:$0xf]
      %v457 = vld [vmem:[%s274 + $0x60] sm:$0xf]
      %v458 = vld [vmem:[%s274 + $0x64] sm:$0xf]
      %v459 = vld [vmem:[%s274 + $0x68] sm:$0xf]
      %v460 = vld [vmem:[%s274 + $0x6c] sm:$0xf]
      %v461 = vld [vmem:[%s274 + $0x70] sm:$0xf]
      %v462 = vld [vmem:[%s274 + $0x74] sm:$0xf]
      %v463 = vld [vmem:[%s274 + $0x78] sm:$0xf]
      %v464 = vld [vmem:[%s274 + $0x7c] sm:$0xf]
      %v465 = vld [vmem:[%s274 + $0x80] sm:$0xf]
      %v466 = vld [vmem:[%s274 + $0x84] sm:$0xf]
      %v467 = vld [vmem:[%s274 + $0x88] sm:$0xf]
      %v468 = vld [vmem:[%s274 + $0x8c] sm:$0xf]
      %v469 = vld [vmem:[%s274 + $0x90] sm:$0xf]
      %v470 = vld [vmem:[%s274 + $0x94] sm:$0xf]
      %v471 = vld [vmem:[%s274 + $0x98] sm:$0xf]
      %v472 = vld [vmem:[%s274 + $0x9c] sm:$0xf]
      %v473 = vld [vmem:[%s274 + $0xa0] sm:$0xf]
      %v474 = vld [vmem:[%s274 + $0xa4] sm:$0xf]
      %v475 = vld [vmem:[%s274 + $0xa8] sm:$0xf]
      %v476 = vld [vmem:[%s274 + $0xac] sm:$0xf]
      %v477 = vld [vmem:[%s274 + $0xb0] sm:$0xf]
      %v478 = vld [vmem:[%s274 + $0xb4] sm:$0xf]
      %v479 = vld [vmem:[%s274 + $0xb8] sm:$0xf]
      %v480 = vld [vmem:[%s274 + $0xbc] sm:$0xf]
      %v481 = vld [vmem:[%s274 + $0xc0] sm:$0xf]
      %v482 = vld [vmem:[%s274 + $0xc4] sm:$0xf]
      %v483 = vld [vmem:[%s274 + $0xc8] sm:$0xf]
      %v484 = vld [vmem:[%s274 + $0xcc] sm:$0xf]
      %v485 = vld [vmem:[%s274 + $0xd0] sm:$0xf]
      %v486 = vld [vmem:[%s274 + $0xd4] sm:$0xf]
      %v487 = vld [vmem:[%s274 + $0xd8] sm:$0xf]
      %v488 = vld [vmem:[%s274 + $0xdc] sm:$0xf]
      %v489 = vld [vmem:[%s274 + $0xe0] sm:$0xf]
      %v490 = vld [vmem:[%s274 + $0xe4] sm:$0xf]
      %v491 = vld [vmem:[%s274 + $0xe8] sm:$0xf]
      %v492 = vld [vmem:[%s274 + $0xec] sm:$0xf]
      %v493 = vld [vmem:[%s274 + $0xf0] sm:$0xf]
      %v494 = vld [vmem:[%s274 + $0xf4] sm:$0xf]
      %v495 = vld [vmem:[%s274 + $0xf8] sm:$0xf]
      %v496 = vld [vmem:[%s274 + $0xfc] sm:$0xf]
      %v497 = vld [vmem:[%s283] sm:$0xf]
      %v498 = vld [vmem:[%s283 + $0x4] sm:$0xf]
      %v499 = vld [vmem:[%s283 + $0x8] sm:$0xf]
      %v500 = vld [vmem:[%s283 + $0xc] sm:$0xf]
      %v501 = vld [vmem:[%s283 + $0x10] sm:$0x3]
      %v566 = vunpack.c.l.b16 %v433
      %v567 = vunpack.c.l.b16 %v434
      %v568 = vunpack.c.l.b16 %v435
      %v569 = vunpack.c.l.b16 %v436
      %v570 = vunpack.c.l.b16 %v437
      %v571 = vunpack.c.l.b16 %v438
      %v572 = vunpack.c.l.b16 %v439
      %v573 = vunpack.c.l.b16 %v440
      %v574 = vunpack.c.l.b16 %v441
      %v575 = vunpack.c.l.b16 %v442
      %v576 = vunpack.c.l.b16 %v443
      %v577 = vunpack.c.l.b16 %v444
      %v578 = vunpack.c.l.b16 %v445
      %v579 = vunpack.c.l.b16 %v446
      %v580 = vunpack.c.l.b16 %v447
      %v581 = vunpack.c.l.b16 %v448
      %v582 = vunpack.c.l.b16 %v449
      %v583 = vunpack.c.l.b16 %v450
      %v584 = vunpack.c.l.b16 %v451
      %v585 = vunpack.c.l.b16 %v452
      %v586 = vunpack.c.l.b16 %v453
      %v587 = vunpack.c.l.b16 %v454
      %v588 = vunpack.c.l.b16 %v455
      %v589 = vunpack.c.l.b16 %v456
      %v590 = vunpack.c.l.b16 %v457
      %v591 = vunpack.c.l.b16 %v458
      %v592 = vunpack.c.l.b16 %v459
      %v593 = vunpack.c.l.b16 %v460
      %v594 = vunpack.c.l.b16 %v461
      %v595 = vunpack.c.l.b16 %v462
      %v596 = vunpack.c.l.b16 %v463
      %v597 = vunpack.c.l.b16 %v464
      %v598 = vunpack.c.l.b16 %v465
      %v599 = vunpack.c.l.b16 %v466
      %v600 = vunpack.c.l.b16 %v467
      %v601 = vunpack.c.l.b16 %v468
      %v602 = vunpack.c.l.b16 %v469
      %v603 = vunpack.c.l.b16 %v470
      %v604 = vunpack.c.l.b16 %v471
      %v605 = vunpack.c.l.b16 %v472
      %v606 = vunpack.c.l.b16 %v473
      %v607 = vunpack.c.l.b16 %v474
      %v608 = vunpack.c.l.b16 %v475
      %v609 = vunpack.c.l.b16 %v476
      %v610 = vunpack.c.l.b16 %v477
      %v611 = vunpack.c.l.b16 %v478
      %v612 = vunpack.c.l.b16 %v479
      %v613 = vunpack.c.l.b16 %v480
      %v614 = vunpack.c.l.b16 %v481
      %v615 = vunpack.c.l.b16 %v482
      %v616 = vunpack.c.l.b16 %v483
      %v617 = vunpack.c.l.b16 %v484
      %v618 = vunpack.c.l.b16 %v485
      %v619 = vunpack.c.l.b16 %v486
      %v620 = vunpack.c.l.b16 %v487
      %v621 = vunpack.c.l.b16 %v488
      %v622 = vunpack.c.l.b16 %v489
      %v623 = vunpack.c.l.b16 %v490
      %v624 = vunpack.c.l.b16 %v491
      %v625 = vunpack.c.l.b16 %v492
      %v626 = vunpack.c.l.b16 %v493
      %v627 = vunpack.c.l.b16 %v494
      %v628 = vunpack.c.l.b16 %v495
      %v629 = vunpack.c.l.b16 %v496
      %v630 = vpack.c.b16 %v567, %v566
      %v631 = vpack.c.b16 %v569, %v568
      %v632 = vpack.c.b16 %v571, %v570
      %v633 = vpack.c.b16 %v573, %v572
      %v634 = vpack.c.b16 %v575, %v574
      %v635 = vpack.c.b16 %v577, %v576
      %v636 = vpack.c.b16 %v579, %v578
      %v637 = vpack.c.b16 %v581, %v580
      %v638 = vpack.c.b16 %v583, %v582
      %v639 = vpack.c.b16 %v585, %v584
      %v640 = vpack.c.b16 %v587, %v586
      %v641 = vpack.c.b16 %v589, %v588
      %v642 = vpack.c.b16 %v591, %v590
      %v643 = vpack.c.b16 %v593, %v592
      %v644 = vpack.c.b16 %v595, %v594
      %v645 = vpack.c.b16 %v597, %v596
      %v646 = vpack.c.b16 %v599, %v598
      %v647 = vpack.c.b16 %v601, %v600
      %v648 = vpack.c.b16 %v603, %v602
      %v649 = vpack.c.b16 %v605, %v604
      %v650 = vpack.c.b16 %v607, %v606
      %v651 = vpack.c.b16 %v609, %v608
      %v652 = vpack.c.b16 %v611, %v610
      %v653 = vpack.c.b16 %v613, %v612
      %v654 = vpack.c.b16 %v615, %v614
      %v655 = vpack.c.b16 %v617, %v616
      %v656 = vpack.c.b16 %v619, %v618
      %v657 = vpack.c.b16 %v621, %v620
      %v658 = vpack.c.b16 %v623, %v622
      %v659 = vpack.c.b16 %v625, %v624
      %v660 = vpack.c.b16 %v627, %v626
      %v661 = vpack.c.b16 %v629, %v628
      %v667 = vunpack.c.l.b16 %v497
      %v668 = vunpack.c.l.b16 %v498
      %v669 = vunpack.c.l.b16 %v499
      %v670 = vunpack.c.l.b16 %v500
      %v671 = vunpack.c.l.b16 %v501
      %v672 = vpack.c.b16 %v668, %v667
      %v673 = vpack.c.b16 %v670, %v669
      %v674 = vpack.c.b16 %v671, %v671
      %vm677 = vcmask 293888
      %v679 = vsel %vm677, %v630, 0
      %v682 = vsel %vm677, %v631, 0
      %v685 = vsel %vm677, %v632, 0
      %v688 = vsel %vm677, %v633, 0
      %v691 = vsel %vm677, %v634, 0
      %v694 = vsel %vm677, %v635, 0
      %v697 = vsel %vm677, %v636, 0
      %v700 = vsel %vm677, %v637, 0
      %v703 = vsel %vm677, %v638, 0
      %v706 = vsel %vm677, %v639, 0
      %v709 = vsel %vm677, %v640, 0
      %v712 = vsel %vm677, %v641, 0
      %v715 = vsel %vm677, %v642, 0
      %v718 = vsel %vm677, %v643, 0
      %v721 = vsel %vm677, %v644, 0
      %v724 = vsel %vm677, %v645, 0
      %v727 = vsel %vm677, %v646, 0
      %v730 = vsel %vm677, %v647, 0
      %v733 = vsel %vm677, %v648, 0
      %v736 = vsel %vm677, %v649, 0
      %v739 = vsel %vm677, %v650, 0
      %v742 = vsel %vm677, %v651, 0
      %v745 = vsel %vm677, %v652, 0
      %v748 = vsel %vm677, %v653, 0
      %v751 = vsel %vm677, %v654, 0
      %v754 = vsel %vm677, %v655, 0
      %v757 = vsel %vm677, %v656, 0
      %v760 = vsel %vm677, %v657, 0
      %v763 = vsel %vm677, %v658, 0
      %v766 = vsel %vm677, %v659, 0
      %v769 = vsel %vm677, %v660, 0
      %v772 = vsel %vm677, %v661, 0
      %vm774 = vcmask 1041408
      %v776 = vsel %vm774, %v674, 0
      %778 = vmatpush.bf16.msra.mxu0 0
      %779 = vmatpush.bf16.msra.mxu0 0
      %780 = vmatpush.bf16.msra.mxu0 0
      %781 = vmatpush.bf16.msra.mxu0 0
      %782 = vmatpush.bf16.msra.mxu0 0
      %783 = vmatpush.bf16.msra.mxu0 %v776
      %784 = vmatpush.bf16.msra.mxu0 %v673
      %785 = vmatpush.bf16.msra.mxu0 %v672
      %786 = vmatmul.bf16.gmra.mxu0 %v679
      %v787 = vpop.f32.mrf.mxu0
      %v788 = vadd.f32 0.0, %v787
      %v789 = vpop.f32.mrf.mxu0
      %v790 = vadd.f32 0.0, %v789
      %791 = vmatmul.bf16.gmra.mxu0 %v682
      %v792 = vpop.f32.mrf.mxu0
      %v793 = vadd.f32 0.0, %v792
      %v794 = vpop.f32.mrf.mxu0
      %v795 = vadd.f32 0.0, %v794
      %796 = vmatmul.bf16.gmra.mxu0 %v685
      %v797 = vpop.f32.mrf.mxu0
      %v798 = vadd.f32 0.0, %v797
      %v799 = vpop.f32.mrf.mxu0
      %v800 = vadd.f32 0.0, %v799
      %801 = vmatmul.bf16.gmra.mxu0 %v688
      %v802 = vpop.f32.mrf.mxu0
      %v803 = vadd.f32 0.0, %v802
      %v804 = vpop.f32.mrf.mxu0
      %v805 = vadd.f32 0.0, %v804
      %806 = vmatmul.bf16.gmra.mxu0 %v691
      %v807 = vpop.f32.mrf.mxu0
      %v808 = vadd.f32 0.0, %v807
      %v809 = vpop.f32.mrf.mxu0
      %v810 = vadd.f32 0.0, %v809
      %811 = vmatmul.bf16.gmra.mxu0 %v694
      %v812 = vpop.f32.mrf.mxu0
      %v813 = vadd.f32 0.0, %v812
      %v814 = vpop.f32.mrf.mxu0
      %v815 = vadd.f32 0.0, %v814
      %816 = vmatmul.bf16.gmra.mxu0 %v697
      %v817 = vpop.f32.mrf.mxu0
      %v818 = vadd.f32 0.0, %v817
      %v819 = vpop.f32.mrf.mxu0
      %v820 = vadd.f32 0.0, %v819
      %821 = vmatmul.bf16.gmra.mxu0 %v700
      %v822 = vpop.f32.mrf.mxu0
      %v823 = vadd.f32 0.0, %v822
      %v824 = vpop.f32.mrf.mxu0
      %v825 = vadd.f32 0.0, %v824
      %826 = vmatmul.bf16.gmra.mxu0 %v703
      %v827 = vpop.f32.mrf.mxu0
      %v828 = vadd.f32 0.0, %v827
      %v829 = vpop.f32.mrf.mxu0
      %v830 = vadd.f32 0.0, %v829
      %831 = vmatmul.bf16.gmra.mxu0 %v706
      %v832 = vpop.f32.mrf.mxu0
      %v833 = vadd.f32 0.0, %v832
      %v834 = vpop.f32.mrf.mxu0
      %v835 = vadd.f32 0.0, %v834
      %836 = vmatmul.bf16.gmra.mxu0 %v709
      %v837 = vpop.f32.mrf.mxu0
      %v838 = vadd.f32 0.0, %v837
      %v839 = vpop.f32.mrf.mxu0
      %v840 = vadd.f32 0.0, %v839
      %841 = vmatmul.bf16.gmra.mxu0 %v712
      %v842 = vpop.f32.mrf.mxu0
      %v843 = vadd.f32 0.0, %v842
      %v844 = vpop.f32.mrf.mxu0
      %v845 = vadd.f32 0.0, %v844
      %846 = vmatmul.bf16.gmra.mxu0 %v715
      %v847 = vpop.f32.mrf.mxu0
      %v848 = vadd.f32 0.0, %v847
      %v849 = vpop.f32.mrf.mxu0
      %v850 = vadd.f32 0.0, %v849
      %851 = vmatmul.bf16.gmra.mxu0 %v718
      %v852 = vpop.f32.mrf.mxu0
      %v853 = vadd.f32 0.0, %v852
      %v854 = vpop.f32.mrf.mxu0
      %v855 = vadd.f32 0.0, %v854
      %856 = vmatmul.bf16.gmra.mxu0 %v721
      %v857 = vpop.f32.mrf.mxu0
      %v858 = vadd.f32 0.0, %v857
      %v859 = vpop.f32.mrf.mxu0
      %v860 = vadd.f32 0.0, %v859
      %861 = vmatmul.bf16.gmra.mxu0 %v724
      %v862 = vpop.f32.mrf.mxu0
      %v863 = vadd.f32 0.0, %v862
      %v864 = vpop.f32.mrf.mxu0
      %v865 = vadd.f32 0.0, %v864
      %866 = vmatmul.bf16.gmra.mxu0 %v727
      %v867 = vpop.f32.mrf.mxu0
      %v868 = vadd.f32 0.0, %v867
      %v869 = vpop.f32.mrf.mxu0
      %v870 = vadd.f32 0.0, %v869
      %871 = vmatmul.bf16.gmra.mxu0 %v730
      %v872 = vpop.f32.mrf.mxu0
      %v873 = vadd.f32 0.0, %v872
      %v874 = vpop.f32.mrf.mxu0
      %v875 = vadd.f32 0.0, %v874
      %876 = vmatmul.bf16.gmra.mxu0 %v733
      %v877 = vpop.f32.mrf.mxu0
      %v878 = vadd.f32 0.0, %v877
      %v879 = vpop.f32.mrf.mxu0
      %v880 = vadd.f32 0.0, %v879
      %881 = vmatmul.bf16.gmra.mxu0 %v736
      %v882 = vpop.f32.mrf.mxu0
      %v883 = vadd.f32 0.0, %v882
      %v884 = vpop.f32.mrf.mxu0
      %v885 = vadd.f32 0.0, %v884
      %886 = vmatmul.bf16.gmra.mxu0 %v739
      %v887 = vpop.f32.mrf.mxu0
      %v888 = vadd.f32 0.0, %v887
      %v889 = vpop.f32.mrf.mxu0
      %v890 = vadd.f32 0.0, %v889
      %891 = vmatmul.bf16.gmra.mxu0 %v742
      %v892 = vpop.f32.mrf.mxu0
      %v893 = vadd.f32 0.0, %v892
      %v894 = vpop.f32.mrf.mxu0
      %v895 = vadd.f32 0.0, %v894
      %896 = vmatmul.bf16.gmra.mxu0 %v745
      %v897 = vpop.f32.mrf.mxu0
      %v898 = vadd.f32 0.0, %v897
      %v899 = vpop.f32.mrf.mxu0
      %v900 = vadd.f32 0.0, %v899
      %901 = vmatmul.bf16.gmra.mxu0 %v748
      %v902 = vpop.f32.mrf.mxu0
      %v903 = vadd.f32 0.0, %v902
      %v904 = vpop.f32.mrf.mxu0
      %v905 = vadd.f32 0.0, %v904
      %906 = vmatmul.bf16.gmra.mxu0 %v751
      %v907 = vpop.f32.mrf.mxu0
      %v908 = vadd.f32 0.0, %v907
      %v909 = vpop.f32.mrf.mxu0
      %v910 = vadd.f32 0.0, %v909
      %911 = vmatmul.bf16.gmra.mxu0 %v754
      %v912 = vpop.f32.mrf.mxu0
      %v913 = vadd.f32 0.0, %v912
      %v914 = vpop.f32.mrf.mxu0
      %v915 = vadd.f32 0.0, %v914
      %916 = vmatmul.bf16.gmra.mxu0 %v757
      %v917 = vpop.f32.mrf.mxu0
      %v918 = vadd.f32 0.0, %v917
      %v919 = vpop.f32.mrf.mxu0
      %v920 = vadd.f32 0.0, %v919
      %921 = vmatmul.bf16.gmra.mxu0 %v760
      %v922 = vpop.f32.mrf.mxu0
      %v923 = vadd.f32 0.0, %v922
      %v924 = vpop.f32.mrf.mxu0
      %v925 = vadd.f32 0.0, %v924
      %926 = vmatmul.bf16.gmra.mxu0 %v763
      %v927 = vpop.f32.mrf.mxu0
      %v928 = vadd.f32 0.0, %v927
      %v929 = vpop.f32.mrf.mxu0
      %v930 = vadd.f32 0.0, %v929
      %931 = vmatmul.bf16.gmra.mxu0 %v766
      %v932 = vpop.f32.mrf.mxu0
      %v933 = vadd.f32 0.0, %v932
      %v934 = vpop.f32.mrf.mxu0
      %v935 = vadd.f32 0.0, %v934
      %936 = vmatmul.bf16.gmra.mxu0 %v769
      %v937 = vpop.f32.mrf.mxu0
      %v938 = vadd.f32 0.0, %v937
      %v939 = vpop.f32.mrf.mxu0
      %v940 = vadd.f32 0.0, %v939
      %941 = vmatmul.bf16.gmra.mxu0 %v772
      %v942 = vpop.f32.mrf.mxu0
      %v943 = vadd.f32 0.0, %v942
      %v944 = vpop.f32.mrf.mxu0
      %v945 = vadd.f32 0.0, %v944
      %946 = vdwg.mxu0
      %v947 = vadd.f32 %v369, %v788
      %v948 = vadd.f32 %v370, %v790
      %v949 = vadd.f32 %v371, %v793
      %v950 = vadd.f32 %v372, %v795
      %v951 = vadd.f32 %v373, %v798
      %v952 = vadd.f32 %v374, %v800
      %v953 = vadd.f32 %v375, %v803
      %v954 = vadd.f32 %v376, %v805
      %v955 = vadd.f32 %v377, %v808
      %v956 = vadd.f32 %v378, %v810
      %v957 = vadd.f32 %v379, %v813
      %v958 = vadd.f32 %v380, %v815
      %v959 = vadd.f32 %v381, %v818
      %v960 = vadd.f32 %v382, %v820
      %v961 = vadd.f32 %v383, %v823
      %v962 = vadd.f32 %v384, %v825
      %v963 = vadd.f32 %v385, %v828
      %v964 = vadd.f32 %v386, %v830
      %v965 = vadd.f32 %v387, %v833
      %v966 = vadd.f32 %v388, %v835
      %v967 = vadd.f32 %v389, %v838
      %v968 = vadd.f32 %v390, %v840
      %v969 = vadd.f32 %v391, %v843
      %v970 = vadd.f32 %v392, %v845
      %v971 = vadd.f32 %v393, %v848
      %v972 = vadd.f32 %v394, %v850
      %v973 = vadd.f32 %v395, %v853
      %v974 = vadd.f32 %v396, %v855
      %v975 = vadd.f32 %v397, %v858
      %v976 = vadd.f32 %v398, %v860
      %v977 = vadd.f32 %v399, %v863
      %v978 = vadd.f32 %v400, %v865
      %v979 = vadd.f32 %v401, %v868
      %v980 = vadd.f32 %v402, %v870
      %v981 = vadd.f32 %v403, %v873
      %v982 = vadd.f32 %v404, %v875
      %v983 = vadd.f32 %v405, %v878
      %v984 = vadd.f32 %v406, %v880
      %v985 = vadd.f32 %v407, %v883
      %v986 = vadd.f32 %v408, %v885
      %v987 = vadd.f32 %v409, %v888
      %v988 = vadd.f32 %v410, %v890
      %v989 = vadd.f32 %v411, %v893
      %v990 = vadd.f32 %v412, %v895
      %v991 = vadd.f32 %v413, %v898
      %v992 = vadd.f32 %v414, %v900
      %v993 = vadd.f32 %v415, %v903
      %v994 = vadd.f32 %v416, %v905
      %v995 = vadd.f32 %v417, %v908
      %v996 = vadd.f32 %v418, %v910
      %v997 = vadd.f32 %v419, %v913
      %v998 = vadd.f32 %v420, %v915
      %v999 = vadd.f32 %v421, %v918
      %v1000 = vadd.f32 %v422, %v920
      %v1001 = vadd.f32 %v423, %v923
      %v1002 = vadd.f32 %v424, %v925
      %v1003 = vadd.f32 %v425, %v928
      %v1004 = vadd.f32 %v426, %v930
      %v1005 = vadd.f32 %v427, %v933
      %v1006 = vadd.f32 %v428, %v935
      %v1007 = vadd.f32 %v429, %v938
      %v1008 = vadd.f32 %v430, %v940
      %v1009 = vadd.f32 %v431, %v943
      %v1010 = vadd.f32 %v432, %v945
      %1011 = vst [vmem:[#allocation2] sm:$0xff] %v947
      %1012 = vst [vmem:[#allocation2 + $0x8] sm:$0xff] %v948
      %1013 = vst [vmem:[#allocation2 + $0x10] sm:$0xff] %v949
      %1014 = vst [vmem:[#allocation2 + $0x18] sm:$0xff] %v950
      %1015 = vst [vmem:[#allocation2 + $0x20] sm:$0xff] %v951
      %1016 = vst [vmem:[#allocation2 + $0x28] sm:$0xff] %v952
      %1017 = vst [vmem:[#allocation2 + $0x30] sm:$0xff] %v953
      %1018 = vst [vmem:[#allocation2 + $0x38] sm:$0xff] %v954
      %1019 = vst [vmem:[#allocation2 + $0x40] sm:$0xff] %v955
      %1020 = vst [vmem:[#allocation2 + $0x48] sm:$0xff] %v956
      %1021 = vst [vmem:[#allocation2 + $0x50] sm:$0xff] %v957
      %1022 = vst [vmem:[#allocation2 + $0x58] sm:$0xff] %v958
      %1023 = vst [vmem:[#allocation2 + $0x60] sm:$0xff] %v959
      %1024 = vst [vmem:[#allocation2 + $0x68] sm:$0xff] %v960
      %1025 = vst [vmem:[#allocation2 + $0x70] sm:$0xff] %v961
      %1026 = vst [vmem:[#allocation2 + $0x78] sm:$0xff] %v962
      %1027 = vst [vmem:[#allocation2 + $0x80] sm:$0xff] %v963
      %1028 = vst [vmem:[#allocation2 + $0x88] sm:$0xff] %v964
      %1029 = vst [vmem:[#allocation2 + $0x90] sm:$0xff] %v965
      %1030 = vst [vmem:[#allocation2 + $0x98] sm:$0xff] %v966
      %1031 = vst [vmem:[#allocation2 + $0xa0] sm:$0xff] %v967
      %1032 = vst [vmem:[#allocation2 + $0xa8] sm:$0xff] %v968
      %1033 = vst [vmem:[#allocation2 + $0xb0] sm:$0xff] %v969
      %1034 = vst [vmem:[#allocation2 + $0xb8] sm:$0xff] %v970
      %1035 = vst [vmem:[#allocation2 + $0xc0] sm:$0xff] %v971
      %1036 = vst [vmem:[#allocation2 + $0xc8] sm:$0xff] %v972
      %1037 = vst [vmem:[#allocation2 + $0xd0] sm:$0xff] %v973
      %1038 = vst [vmem:[#allocation2 + $0xd8] sm:$0xff] %v974
      %1039 = vst [vmem:[#allocation2 + $0xe0] sm:$0xff] %v975
      %1040 = vst [vmem:[#allocation2 + $0xe8] sm:$0xff] %v976
      %1041 = vst [vmem:[#allocation2 + $0xf0] sm:$0xff] %v977
      %1042 = vst [vmem:[#allocation2 + $0xf8] sm:$0xff] %v978
      %1043 = vst [vmem:[#allocation2 + $0x100] sm:$0xff] %v979
      %1044 = vst [vmem:[#allocation2 + $0x108] sm:$0xff] %v980
      %1045 = vst [vmem:[#allocation2 + $0x110] sm:$0xff] %v981
      %1046 = vst [vmem:[#allocation2 + $0x118] sm:$0xff] %v982
      %1047 = vst [vmem:[#allocation2 + $0x120] sm:$0xff] %v983
      %1048 = vst [vmem:[#allocation2 + $0x128] sm:$0xff] %v984
      %1049 = vst [vmem:[#allocation2 + $0x130] sm:$0xff] %v985
      %1050 = vst [vmem:[#allocation2 + $0x138] sm:$0xff] %v986
      %1051 = vst [vmem:[#allocation2 + $0x140] sm:$0xff] %v987
      %1052 = vst [vmem:[#allocation2 + $0x148] sm:$0xff] %v988
      %1053 = vst [vmem:[#allocation2 + $0x150] sm:$0xff] %v989
      %1054 = vst [vmem:[#allocation2 + $0x158] sm:$0xff] %v990
      %1055 = vst [vmem:[#allocation2 + $0x160] sm:$0xff] %v991
      %1056 = vst [vmem:[#allocation2 + $0x168] sm:$0xff] %v992
      %1057 = vst [vmem:[#allocation2 + $0x170] sm:$0xff] %v993
      %1058 = vst [vmem:[#allocation2 + $0x178] sm:$0xff] %v994
      %1059 = vst [vmem:[#allocation2 + $0x180] sm:$0xff] %v995
      %1060 = vst [vmem:[#allocation2 + $0x188] sm:$0xff] %v996
      %1061 = vst [vmem:[#allocation2 + $0x190] sm:$0xff] %v997
      %1062 = vst [vmem:[#allocation2 + $0x198] sm:$0xff] %v998
      %1063 = vst [vmem:[#allocation2 + $0x1a0] sm:$0xff] %v999
      %1064 = vst [vmem:[#allocation2 + $0x1a8] sm:$0xff] %v1000
      %1065 = vst [vmem:[#allocation2 + $0x1b0] sm:$0xff] %v1001
      %1066 = vst [vmem:[#allocation2 + $0x1b8] sm:$0xff] %v1002
      %1067 = vst [vmem:[#allocation2 + $0x1c0] sm:$0xff] %v1003
      %1068 = vst [vmem:[#allocation2 + $0x1c8] sm:$0xff] %v1004
      %1069 = vst [vmem:[#allocation2 + $0x1d0] sm:$0xff] %v1005
      %1070 = vst [vmem:[#allocation2 + $0x1d8] sm:$0xff] %v1006
      %1071 = vst [vmem:[#allocation2 + $0x1e0] sm:$0xff] %v1007
      %1072 = vst [vmem:[#allocation2 + $0x1e8] sm:$0xff] %v1008
      %1073 = vst [vmem:[#allocation2 + $0x1f0] sm:$0xff] %v1009
      %1074 = vst [vmem:[#allocation2 + $0x1f8] sm:$0xff] %v1010
      // Predicated region
      $region41: #{resnet_forward.8} parent=35 // pred_check
        %p1075 = pneg %p301
      $region42: #{resnet_forward.8} parent=35 // pred_check_branch
        %1077 = sbr.rel (%p1075) target = $region44
      $region43: #{resnet_forward.8} parent=35 // pred_region
        %v1078 = vld [vmem:[#allocation2] sm:$0xff]
        %v1079 = vld [vmem:[#allocation2 + $0x8] sm:$0xff]
        %v1080 = vld [vmem:[#allocation2 + $0x10] sm:$0xff]
        %v1081 = vld [vmem:[#allocation2 + $0x18] sm:$0xff]
        %v1082 = vld [vmem:[#allocation2 + $0x20] sm:$0xff]
        %v1083 = vld [vmem:[#allocation2 + $0x28] sm:$0xff]
        %v1084 = vld [vmem:[#allocation2 + $0x30] sm:$0xff]
        %v1085 = vld [vmem:[#allocation2 + $0x38] sm:$0xff]
        %v1086 = vld [vmem:[#allocation2 + $0x40] sm:$0xff]
        %v1087 = vld [vmem:[#allocation2 + $0x48] sm:$0xff]
        %v1088 = vld [vmem:[#allocation2 + $0x50] sm:$0xff]
        %v1089 = vld [vmem:[#allocation2 + $0x58] sm:$0xff]
        %v1090 = vld [vmem:[#allocation2 + $0x60] sm:$0xff]
        %v1091 = vld [vmem:[#allocation2 + $0x68] sm:$0xff]
        %v1092 = vld [vmem:[#allocation2 + $0x70] sm:$0xff]
        %v1093 = vld [vmem:[#allocation2 + $0x78] sm:$0xff]
        %v1094 = vld [vmem:[#allocation2 + $0x80] sm:$0xff]
        %v1095 = vld [vmem:[#allocation2 + $0x88] sm:$0xff]
        %v1096 = vld [vmem:[#allocation2 + $0x90] sm:$0xff]
        %v1097 = vld [vmem:[#allocation2 + $0x98] sm:$0xff]
        %v1098 = vld [vmem:[#allocation2 + $0xa0] sm:$0xff]
        %v1099 = vld [vmem:[#allocation2 + $0xa8] sm:$0xff]
        %v1100 = vld [vmem:[#allocation2 + $0xb0] sm:$0xff]
        %v1101 = vld [vmem:[#allocation2 + $0xb8] sm:$0xff]
        %v1102 = vld [vmem:[#allocation2 + $0xc0] sm:$0xff]
        %v1103 = vld [vmem:[#allocation2 + $0xc8] sm:$0xff]
        %v1104 = vld [vmem:[#allocation2 + $0xd0] sm:$0xff]
        %v1105 = vld [vmem:[#allocation2 + $0xd8] sm:$0xff]
        %v1106 = vld [vmem:[#allocation2 + $0xe0] sm:$0xff]
        %v1107 = vld [vmem:[#allocation2 + $0xe8] sm:$0xff]
        %v1108 = vld [vmem:[#allocation2 + $0xf0] sm:$0xff]
        %v1109 = vld [vmem:[#allocation2 + $0xf8] sm:$0xff]
        %v1110 = vld [vmem:[#allocation2 + $0x100] sm:$0xff]
        %v1111 = vld [vmem:[#allocation2 + $0x108] sm:$0xff]
        %v1112 = vld [vmem:[#allocation2 + $0x110] sm:$0xff]
        %v1113 = vld [vmem:[#allocation2 + $0x118] sm:$0xff]
        %v1114 = vld [vmem:[#allocation2 + $0x120] sm:$0xff]
        %v1115 = vld [vmem:[#allocation2 + $0x128] sm:$0xff]
        %v1116 = vld [vmem:[#allocation2 + $0x130] sm:$0xff]
        %v1117 = vld [vmem:[#allocation2 + $0x138] sm:$0xff]
        %v1118 = vld [vmem:[#allocation2 + $0x140] sm:$0xff]
        %v1119 = vld [vmem:[#allocation2 + $0x148] sm:$0xff]
        %v1120 = vld [vmem:[#allocation2 + $0x150] sm:$0xff]
        %v1121 = vld [vmem:[#allocation2 + $0x158] sm:$0xff]
        %v1122 = vld [vmem:[#allocation2 + $0x160] sm:$0xff]
        %v1123 = vld [vmem:[#allocation2 + $0x168] sm:$0xff]
        %v1124 = vld [vmem:[#allocation2 + $0x170] sm:$0xff]
        %v1125 = vld [vmem:[#allocation2 + $0x178] sm:$0xff]
        %v1126 = vld [vmem:[#allocation2 + $0x180] sm:$0xff]
        %v1127 = vld [vmem:[#allocation2 + $0x188] sm:$0xff]
        %v1128 = vld [vmem:[#allocation2 + $0x190] sm:$0xff]
        %v1129 = vld [vmem:[#allocation2 + $0x198] sm:$0xff]
        %v1130 = vld [vmem:[#allocation2 + $0x1a0] sm:$0xff]
        %v1131 = vld [vmem:[#allocation2 + $0x1a8] sm:$0xff]
        %v1132 = vld [vmem:[#allocation2 + $0x1b0] sm:$0xff]
        %v1133 = vld [vmem:[#allocation2 + $0x1b8] sm:$0xff]
        %v1134 = vld [vmem:[#allocation2 + $0x1c0] sm:$0xff]
        %v1135 = vld [vmem:[#allocation2 + $0x1c8] sm:$0xff]
        %v1136 = vld [vmem:[#allocation2 + $0x1d0] sm:$0xff]
        %v1137 = vld [vmem:[#allocation2 + $0x1d8] sm:$0xff]
        %v1138 = vld [vmem:[#allocation2 + $0x1e0] sm:$0xff]
        %v1139 = vld [vmem:[#allocation2 + $0x1e8] sm:$0xff]
        %v1140 = vld [vmem:[#allocation2 + $0x1f0] sm:$0xff]
        %v1141 = vld [vmem:[#allocation2 + $0x1f8] sm:$0xff]
        %v1142 = vld [vmem:[%s287] sm:$0x1]
        %v1144 = vperm.slane %v1142, 0
        %v1146 = vmul.f32 %v1078, %v1144
        %v1147 = vmul.f32 %v1079, %v1144
        %v1148 = vmul.f32 %v1080, %v1144
        %v1149 = vmul.f32 %v1081, %v1144
        %v1150 = vmul.f32 %v1082, %v1144
        %v1151 = vmul.f32 %v1083, %v1144
        %v1152 = vmul.f32 %v1084, %v1144
        %v1153 = vmul.f32 %v1085, %v1144
        %v1154 = vmul.f32 %v1086, %v1144
        %v1155 = vmul.f32 %v1087, %v1144
        %v1156 = vmul.f32 %v1088, %v1144
        %v1157 = vmul.f32 %v1089, %v1144
        %v1158 = vmul.f32 %v1090, %v1144
        %v1159 = vmul.f32 %v1091, %v1144
        %v1160 = vmul.f32 %v1092, %v1144
        %v1161 = vmul.f32 %v1093, %v1144
        %v1162 = vmul.f32 %v1094, %v1144
        %v1163 = vmul.f32 %v1095, %v1144
        %v1164 = vmul.f32 %v1096, %v1144
        %v1165 = vmul.f32 %v1097, %v1144
        %v1166 = vmul.f32 %v1098, %v1144
        %v1167 = vmul.f32 %v1099, %v1144
        %v1168 = vmul.f32 %v1100, %v1144
        %v1169 = vmul.f32 %v1101, %v1144
        %v1170 = vmul.f32 %v1102, %v1144
        %v1171 = vmul.f32 %v1103, %v1144
        %v1172 = vmul.f32 %v1104, %v1144
        %v1173 = vmul.f32 %v1105, %v1144
        %v1174 = vmul.f32 %v1106, %v1144
        %v1175 = vmul.f32 %v1107, %v1144
        %v1176 = vmul.f32 %v1108, %v1144
        %v1177 = vmul.f32 %v1109, %v1144
        %v1178 = vmul.f32 %v1110, %v1144
        %v1179 = vmul.f32 %v1111, %v1144
        %v1180 = vmul.f32 %v1112, %v1144
        %v1181 = vmul.f32 %v1113, %v1144
        %v1182 = vmul.f32 %v1114, %v1144
        %v1183 = vmul.f32 %v1115, %v1144
        %v1184 = vmul.f32 %v1116, %v1144
        %v1185 = vmul.f32 %v1117, %v1144
        %v1186 = vmul.f32 %v1118, %v1144
        %v1187 = vmul.f32 %v1119, %v1144
        %v1188 = vmul.f32 %v1120, %v1144
        %v1189 = vmul.f32 %v1121, %v1144
        %v1190 = vmul.f32 %v1122, %v1144
        %v1191 = vmul.f32 %v1123, %v1144
        %v1192 = vmul.f32 %v1124, %v1144
        %v1193 = vmul.f32 %v1125, %v1144
        %v1194 = vmul.f32 %v1126, %v1144
        %v1195 = vmul.f32 %v1127, %v1144
        %v1196 = vmul.f32 %v1128, %v1144
        %v1197 = vmul.f32 %v1129, %v1144
        %v1198 = vmul.f32 %v1130, %v1144
        %v1199 = vmul.f32 %v1131, %v1144
        %v1200 = vmul.f32 %v1132, %v1144
        %v1201 = vmul.f32 %v1133, %v1144
        %v1202 = vmul.f32 %v1134, %v1144
        %v1203 = vmul.f32 %v1135, %v1144
        %v1204 = vmul.f32 %v1136, %v1144
        %v1205 = vmul.f32 %v1137, %v1144
        %v1206 = vmul.f32 %v1138, %v1144
        %v1207 = vmul.f32 %v1139, %v1144
        %v1208 = vmul.f32 %v1140, %v1144
        %v1209 = vmul.f32 %v1141, %v1144
        %v1210 = vld [vmem:[%s290] sm:$0x1]
        %v1212 = vperm.slane %v1210, 0
        %v1214 = vadd.f32 %v1146, %v1212
        %v1215 = vadd.f32 %v1147, %v1212
        %v1216 = vadd.f32 %v1148, %v1212
        %v1217 = vadd.f32 %v1149, %v1212
        %v1218 = vadd.f32 %v1150, %v1212
        %v1219 = vadd.f32 %v1151, %v1212
        %v1220 = vadd.f32 %v1152, %v1212
        %v1221 = vadd.f32 %v1153, %v1212
        %v1222 = vadd.f32 %v1154, %v1212
        %v1223 = vadd.f32 %v1155, %v1212
        %v1224 = vadd.f32 %v1156, %v1212
        %v1225 = vadd.f32 %v1157, %v1212
        %v1226 = vadd.f32 %v1158, %v1212
        %v1227 = vadd.f32 %v1159, %v1212
        %v1228 = vadd.f32 %v1160, %v1212
        %v1229 = vadd.f32 %v1161, %v1212
        %v1230 = vadd.f32 %v1162, %v1212
        %v1231 = vadd.f32 %v1163, %v1212
        %v1232 = vadd.f32 %v1164, %v1212
        %v1233 = vadd.f32 %v1165, %v1212
        %v1234 = vadd.f32 %v1166, %v1212
        %v1235 = vadd.f32 %v1167, %v1212
        %v1236 = vadd.f32 %v1168, %v1212
        %v1237 = vadd.f32 %v1169, %v1212
        %v1238 = vadd.f32 %v1170, %v1212
        %v1239 = vadd.f32 %v1171, %v1212
        %v1240 = vadd.f32 %v1172, %v1212
        %v1241 = vadd.f32 %v1173, %v1212
        %v1242 = vadd.f32 %v1174, %v1212
        %v1243 = vadd.f32 %v1175, %v1212
        %v1244 = vadd.f32 %v1176, %v1212
        %v1245 = vadd.f32 %v1177, %v1212
        %v1246 = vadd.f32 %v1178, %v1212
        %v1247 = vadd.f32 %v1179, %v1212
        %v1248 = vadd.f32 %v1180, %v1212
        %v1249 = vadd.f32 %v1181, %v1212
        %v1250 = vadd.f32 %v1182, %v1212
        %v1251 = vadd.f32 %v1183, %v1212
        %v1252 = vadd.f32 %v1184, %v1212
        %v1253 = vadd.f32 %v1185, %v1212
        %v1254 = vadd.f32 %v1186, %v1212
        %v1255 = vadd.f32 %v1187, %v1212
        %v1256 = vadd.f32 %v1188, %v1212
        %v1257 = vadd.f32 %v1189, %v1212
        %v1258 = vadd.f32 %v1190, %v1212
        %v1259 = vadd.f32 %v1191, %v1212
        %v1260 = vadd.f32 %v1192, %v1212
        %v1261 = vadd.f32 %v1193, %v1212
        %v1262 = vadd.f32 %v1194, %v1212
        %v1263 = vadd.f32 %v1195, %v1212
        %v1264 = vadd.f32 %v1196, %v1212
        %v1265 = vadd.f32 %v1197, %v1212
        %v1266 = vadd.f32 %v1198, %v1212
        %v1267 = vadd.f32 %v1199, %v1212
        %v1268 = vadd.f32 %v1200, %v1212
        %v1269 = vadd.f32 %v1201, %v1212
        %v1270 = vadd.f32 %v1202, %v1212
        %v1271 = vadd.f32 %v1203, %v1212
        %v1272 = vadd.f32 %v1204, %v1212
        %v1273 = vadd.f32 %v1205, %v1212
        %v1274 = vadd.f32 %v1206, %v1212
        %v1275 = vadd.f32 %v1207, %v1212
        %v1276 = vadd.f32 %v1208, %v1212
        %v1277 = vadd.f32 %v1209, %v1212
        %v1278 = vmax.f32 %v1214, 0.0
        %v1279 = vmax.f32 %v1215, 0.0
        %v1280 = vmax.f32 %v1216, 0.0
        %v1281 = vmax.f32 %v1217, 0.0
        %v1282 = vmax.f32 %v1218, 0.0
        %v1283 = vmax.f32 %v1219, 0.0
        %v1284 = vmax.f32 %v1220, 0.0
        %v1285 = vmax.f32 %v1221, 0.0
        %v1286 = vmax.f32 %v1222, 0.0
        %v1287 = vmax.f32 %v1223, 0.0
        %v1288 = vmax.f32 %v1224, 0.0
        %v1289 = vmax.f32 %v1225, 0.0
        %v1290 = vmax.f32 %v1226, 0.0
        %v1291 = vmax.f32 %v1227, 0.0
        %v1292 = vmax.f32 %v1228, 0.0
        %v1293 = vmax.f32 %v1229, 0.0
        %v1294 = vmax.f32 %v1230, 0.0
        %v1295 = vmax.f32 %v1231, 0.0
        %v1296 = vmax.f32 %v1232, 0.0
        %v1297 = vmax.f32 %v1233, 0.0
        %v1298 = vmax.f32 %v1234, 0.0
        %v1299 = vmax.f32 %v1235, 0.0
        %v1300 = vmax.f32 %v1236, 0.0
        %v1301 = vmax.f32 %v1237, 0.0
        %v1302 = vmax.f32 %v1238, 0.0
        %v1303 = vmax.f32 %v1239, 0.0
        %v1304 = vmax.f32 %v1240, 0.0
        %v1305 = vmax.f32 %v1241, 0.0
        %v1306 = vmax.f32 %v1242, 0.0
        %v1307 = vmax.f32 %v1243, 0.0
        %v1308 = vmax.f32 %v1244, 0.0
        %v1309 = vmax.f32 %v1245, 0.0
        %v1310 = vmax.f32 %v1246, 0.0
        %v1311 = vmax.f32 %v1247, 0.0
        %v1312 = vmax.f32 %v1248, 0.0
        %v1313 = vmax.f32 %v1249, 0.0
        %v1314 = vmax.f32 %v1250, 0.0
        %v1315 = vmax.f32 %v1251, 0.0
        %v1316 = vmax.f32 %v1252, 0.0
        %v1317 = vmax.f32 %v1253, 0.0
        %v1318 = vmax.f32 %v1254, 0.0
        %v1319 = vmax.f32 %v1255, 0.0
        %v1320 = vmax.f32 %v1256, 0.0
        %v1321 = vmax.f32 %v1257, 0.0
        %v1322 = vmax.f32 %v1258, 0.0
        %v1323 = vmax.f32 %v1259, 0.0
        %v1324 = vmax.f32 %v1260, 0.0
        %v1325 = vmax.f32 %v1261, 0.0
        %v1326 = vmax.f32 %v1262, 0.0
        %v1327 = vmax.f32 %v1263, 0.0
        %v1328 = vmax.f32 %v1264, 0.0
        %v1329 = vmax.f32 %v1265, 0.0
        %v1330 = vmax.f32 %v1266, 0.0
        %v1331 = vmax.f32 %v1267, 0.0
        %v1332 = vmax.f32 %v1268, 0.0
        %v1333 = vmax.f32 %v1269, 0.0
        %v1334 = vmax.f32 %v1270, 0.0
        %v1335 = vmax.f32 %v1271, 0.0
        %v1336 = vmax.f32 %v1272, 0.0
        %v1337 = vmax.f32 %v1273, 0.0
        %v1338 = vmax.f32 %v1274, 0.0
        %v1339 = vmax.f32 %v1275, 0.0
        %v1340 = vmax.f32 %v1276, 0.0
        %v1341 = vmax.f32 %v1277, 0.0
        %v1342 = vpack.c.bf16 %v1278, %v1278
        %v1343 = vpack.c.bf16 %v1279, %v1279
        %v1344 = vpack.c.bf16 %v1280, %v1280
        %v1345 = vpack.c.bf16 %v1281, %v1281
        %v1346 = vpack.c.bf16 %v1282, %v1282
        %v1347 = vpack.c.bf16 %v1283, %v1283
        %v1348 = vpack.c.bf16 %v1284, %v1284
        %v1349 = vpack.c.bf16 %v1285, %v1285
        %v1350 = vpack.c.bf16 %v1286, %v1286
        %v1351 = vpack.c.bf16 %v1287, %v1287
        %v1352 = vpack.c.bf16 %v1288, %v1288
        %v1353 = vpack.c.bf16 %v1289, %v1289
        %v1354 = vpack.c.bf16 %v1290, %v1290
        %v1355 = vpack.c.bf16 %v1291, %v1291
        %v1356 = vpack.c.bf16 %v1292, %v1292
        %v1357 = vpack.c.bf16 %v1293, %v1293
        %v1358 = vpack.c.bf16 %v1294, %v1294
        %v1359 = vpack.c.bf16 %v1295, %v1295
        %v1360 = vpack.c.bf16 %v1296, %v1296
        %v1361 = vpack.c.bf16 %v1297, %v1297
        %v1362 = vpack.c.bf16 %v1298, %v1298
        %v1363 = vpack.c.bf16 %v1299, %v1299
        %v1364 = vpack.c.bf16 %v1300, %v1300
        %v1365 = vpack.c.bf16 %v1301, %v1301
        %v1366 = vpack.c.bf16 %v1302, %v1302
        %v1367 = vpack.c.bf16 %v1303, %v1303
        %v1368 = vpack.c.bf16 %v1304, %v1304
        %v1369 = vpack.c.bf16 %v1305, %v1305
        %v1370 = vpack.c.bf16 %v1306, %v1306
        %v1371 = vpack.c.bf16 %v1307, %v1307
        %v1372 = vpack.c.bf16 %v1308, %v1308
        %v1373 = vpack.c.bf16 %v1309, %v1309
        %v1374 = vpack.c.bf16 %v1310, %v1310
        %v1375 = vpack.c.bf16 %v1311, %v1311
        %v1376 = vpack.c.bf16 %v1312, %v1312
        %v1377 = vpack.c.bf16 %v1313, %v1313
        %v1378 = vpack.c.bf16 %v1314, %v1314
        %v1379 = vpack.c.bf16 %v1315, %v1315
        %v1380 = vpack.c.bf16 %v1316, %v1316
        %v1381 = vpack.c.bf16 %v1317, %v1317
        %v1382 = vpack.c.bf16 %v1318, %v1318
        %v1383 = vpack.c.bf16 %v1319, %v1319
        %v1384 = vpack.c.bf16 %v1320, %v1320
        %v1385 = vpack.c.bf16 %v1321, %v1321
        %v1386 = vpack.c.bf16 %v1322, %v1322
        %v1387 = vpack.c.bf16 %v1323, %v1323
        %v1388 = vpack.c.bf16 %v1324, %v1324
        %v1389 = vpack.c.bf16 %v1325, %v1325
        %v1390 = vpack.c.bf16 %v1326, %v1326
        %v1391 = vpack.c.bf16 %v1327, %v1327
        %v1392 = vpack.c.bf16 %v1328, %v1328
        %v1393 = vpack.c.bf16 %v1329, %v1329
        %v1394 = vpack.c.bf16 %v1330, %v1330
        %v1395 = vpack.c.bf16 %v1331, %v1331
        %v1396 = vpack.c.bf16 %v1332, %v1332
        %v1397 = vpack.c.bf16 %v1333, %v1333
        %v1398 = vpack.c.bf16 %v1334, %v1334
        %v1399 = vpack.c.bf16 %v1335, %v1335
        %v1400 = vpack.c.bf16 %v1336, %v1336
        %v1401 = vpack.c.bf16 %v1337, %v1337
        %v1402 = vpack.c.bf16 %v1338, %v1338
        %v1403 = vpack.c.bf16 %v1339, %v1339
        %v1404 = vpack.c.bf16 %v1340, %v1340
        %v1405 = vpack.c.bf16 %v1341, %v1341
        %1406 = vst [vmem:[%s298] sm:$0xf] %v1342
        %1407 = vst [vmem:[%s298 + $0x4] sm:$0xf] %v1343
        %1408 = vst [vmem:[%s298 + $0x8] sm:$0xf] %v1344
        %1409 = vst [vmem:[%s298 + $0xc] sm:$0xf] %v1345
        %1410 = vst [vmem:[%s298 + $0x10] sm:$0xf] %v1346
        %1411 = vst [vmem:[%s298 + $0x14] sm:$0xf] %v1347
        %1412 = vst [vmem:[%s298 + $0x18] sm:$0xf] %v1348
        %1413 = vst [vmem:[%s298 + $0x1c] sm:$0xf] %v1349
        %1414 = vst [vmem:[%s298 + $0x20] sm:$0xf] %v1350
        %1415 = vst [vmem:[%s298 + $0x24] sm:$0xf] %v1351
        %1416 = vst [vmem:[%s298 + $0x28] sm:$0xf] %v1352
        %1417 = vst [vmem:[%s298 + $0x2c] sm:$0xf] %v1353
        %1418 = vst [vmem:[%s298 + $0x30] sm:$0xf] %v1354
        %1419 = vst [vmem:[%s298 + $0x34] sm:$0xf] %v1355
        %1420 = vst [vmem:[%s298 + $0x38] sm:$0xf] %v1356
        %1421 = vst [vmem:[%s298 + $0x3c] sm:$0xf] %v1357
        %1422 = vst [vmem:[%s298 + $0x40] sm:$0xf] %v1358
        %1423 = vst [vmem:[%s298 + $0x44] sm:$0xf] %v1359
        %1424 = vst [vmem:[%s298 + $0x48] sm:$0xf] %v1360
        %1425 = vst [vmem:[%s298 + $0x4c] sm:$0xf] %v1361
        %1426 = vst [vmem:[%s298 + $0x50] sm:$0xf] %v1362
        %1427 = vst [vmem:[%s298 + $0x54] sm:$0xf] %v1363
        %1428 = vst [vmem:[%s298 + $0x58] sm:$0xf] %v1364
        %1429 = vst [vmem:[%s298 + $0x5c] sm:$0xf] %v1365
        %1430 = vst [vmem:[%s298 + $0x60] sm:$0xf] %v1366
        %1431 = vst [vmem:[%s298 + $0x64] sm:$0xf] %v1367
        %1432 = vst [vmem:[%s298 + $0x68] sm:$0xf] %v1368
        %1433 = vst [vmem:[%s298 + $0x6c] sm:$0xf] %v1369
        %1434 = vst [vmem:[%s298 + $0x70] sm:$0xf] %v1370
        %1435 = vst [vmem:[%s298 + $0x74] sm:$0xf] %v1371
        %1436 = vst [vmem:[%s298 + $0x78] sm:$0xf] %v1372
        %1437 = vst [vmem:[%s298 + $0x7c] sm:$0xf] %v1373
        %1438 = vst [vmem:[%s298 + $0x80] sm:$0xf] %v1374
        %1439 = vst [vmem:[%s298 + $0x84] sm:$0xf] %v1375
        %1440 = vst [vmem:[%s298 + $0x88] sm:$0xf] %v1376
        %1441 = vst [vmem:[%s298 + $0x8c] sm:$0xf] %v1377
        %1442 = vst [vmem:[%s298 + $0x90] sm:$0xf] %v1378
        %1443 = vst [vmem:[%s298 + $0x94] sm:$0xf] %v1379
        %1444 = vst [vmem:[%s298 + $0x98] sm:$0xf] %v1380
        %1445 = vst [vmem:[%s298 + $0x9c] sm:$0xf] %v1381
        %1446 = vst [vmem:[%s298 + $0xa0] sm:$0xf] %v1382
        %1447 = vst [vmem:[%s298 + $0xa4] sm:$0xf] %v1383
        %1448 = vst [vmem:[%s298 + $0xa8] sm:$0xf] %v1384
        %1449 = vst [vmem:[%s298 + $0xac] sm:$0xf] %v1385
        %1450 = vst [vmem:[%s298 + $0xb0] sm:$0xf] %v1386
        %1451 = vst [vmem:[%s298 + $0xb4] sm:$0xf] %v1387
        %1452 = vst [vmem:[%s298 + $0xb8] sm:$0xf] %v1388
        %1453 = vst [vmem:[%s298 + $0xbc] sm:$0xf] %v1389
        %1454 = vst [vmem:[%s298 + $0xc0] sm:$0xf] %v1390
        %1455 = vst [vmem:[%s298 + $0xc4] sm:$0xf] %v1391
        %1456 = vst [vmem:[%s298 + $0xc8] sm:$0xf] %v1392
        %1457 = vst [vmem:[%s298 + $0xcc] sm:$0xf] %v1393
        %1458 = vst [vmem:[%s298 + $0xd0] sm:$0xf] %v1394
        %1459 = vst [vmem:[%s298 + $0xd4] sm:$0xf] %v1395
        %1460 = vst [vmem:[%s298 + $0xd8] sm:$0xf] %v1396
        %1461 = vst [vmem:[%s298 + $0xdc] sm:$0xf] %v1397
        %1462 = vst [vmem:[%s298 + $0xe0] sm:$0xf] %v1398
        %1463 = vst [vmem:[%s298 + $0xe4] sm:$0xf] %v1399
        %1464 = vst [vmem:[%s298 + $0xe8] sm:$0xf] %v1400
        %1465 = vst [vmem:[%s298 + $0xec] sm:$0xf] %v1401
        %1466 = vst [vmem:[%s298 + $0xf0] sm:$0xf] %v1402
        %1467 = vst [vmem:[%s298 + $0xf4] sm:$0xf] %v1403
        %1468 = vst [vmem:[%s298 + $0xf8] sm:$0xf] %v1404
        %1469 = vst [vmem:[%s298 + $0xfc] sm:$0xf] %v1405
      $region44: #{resnet_forward.8} parent=35 // pred_fallthru
        _
      %s1470 = smul.u32 64, %s20
      %p1471 = scmp.lt.s32.totalorder %s1470, 255
      %s1472 = scalar_select %p1471, %s1470, 255
      %p1473 = scmp.lt.s32.totalorder %s21, 0
      %s1474 = scalar_select %p1473, %s21, 0
      %s1475 = sadd.s32 %s1474, %s1472
      %s1476 = smul.addr %s1475, 4
      %s1477 = scalar_lea.vmem %s4, %s1476
      // Predicated region
      $region45: #{resnet_forward.8} parent=35 // pred_check
        %p1478 = pneg %p162
      $region46: #{resnet_forward.8} parent=35 // pred_check_branch
        %1480 = sbr.rel (%p1478) target = $region48
      $region47: #{resnet_forward.8} parent=35 // pred_region
        %s1481 = smul.u32 64, %s20
      $region48: #{resnet_forward.8} parent=35 // pred_fallthru
        _
    $region36: #{resnet_forward.8} parent=5 // pred_fallthru
      _
    %p1482 = scmp.le.s32.totalorder 2, %s10
    // Predicated region
    $region49: #{resnet_forward.8} parent=5 // pred_check
      %p1483 = pneg %p1482
    $region50: #{resnet_forward.8} parent=5 // pred_check_branch
      %1485 = sbr.rel (%p1483) target = $region52
    $region51: #{resnet_forward.8} parent=5 // pred_region
      %s1486 = ssub.s32 %s10, 2
      // Predicated region
      $region53: #{resnet_forward.8} parent=51 // pred_check
        %p1487 = pneg %p168
      $region54: #{resnet_forward.8} parent=51 // pred_check_branch
        %1489 = sbr.rel (%p1487) target = $region56
      $region55: #{resnet_forward.8} parent=51 // pred_region
        %s1490 = smul.u32 64, %s23
        %p1491 = scmp.lt.s32.totalorder %s1490, 255
        %s1492 = scalar_select %p1491, %s1490, 255
        %p1493 = scmp.lt.s32.totalorder %s24, 0
        %s1494 = scalar_select %p1493, %s24, 0
        %s1495 = sadd.s32 %s1494, %s1492
        %s1496 = smul.addr %s1495, 4
        %s1497 = scalar_lea.vmem %s4, %s1496
      $region56: #{resnet_forward.8} parent=51 // pred_fallthru
        _
    $region52: #{resnet_forward.8} parent=5 // pred_fallthru
      _
  $region6: #{resnet_forward.8} parent=0 // loop_footer
    %s14 = sadd.s32 1, %s10
  $region7: #{resnet_forward.8} parent=0 // loop_footer_branch
    %9 = sbr.rel target = $region3
  $region8: #{resnet_forward.8} parent=0 // loop_exit
    _

// kernel: resnet_forward.9
$region0: #{resnet_forward.9}
  #allocation0 [shape = 'u32[]', space=smem, size = 0x4, offset = 0x4, fixed_abs, tag = 'smem constant byte address 0x4 - core index']
  #allocation1 [shape = 'u32[72,128]{1,0:T(1,128)}', space=vmem, size = 0x9000, scoped, tag = 'internal scratch']
  #allocation2 [shape = 'f32[512,128]{1,0:T(8,128)}', space=vmem, size = 0x40000, scoped, tag = 'scratch operand']
  %s0 = inlined_call_operand.vmem [shape: bf16[2048,36], index: 0, kind: input, shape index: {}]
  %s1 = inlined_call_operand.vmem [shape: bf16[36,128], index: 1, kind: input, shape index: {}]
  %s2 = inlined_call_operand.vmem [shape: f32[1,128], index: 2, kind: input, shape index: {}]
  %s3 = inlined_call_operand.vmem [shape: f32[1,128], index: 3, kind: input, shape index: {}]
  %s4 = inlined_call_operand.vmem [shape: bf16[2048,128], index: 4, kind: input, shape index: {}]
  %s5 = inlined_call_operand.vmem [shape: bf16[2048,128], index: 5, kind: output, shape index: {}]
  %s6 = sld [smem:[#allocation0]]
  $region61: #{resnet_forward.9} parent=0
    _
  %s8 = ssub.s32 1, %s6
  %s9 = scalar_select 0, %s8, %s6
  loop: start=0, step=1, limit=6
  $region2: #{resnet_forward.9} parent=0 // loop_pre_header
    _
  $region3: #{resnet_forward.9} parent=0 // loop_header
    %s11 = sphi 0, %s15
    %p12 = scmp.ge.s32.totalorder %s11, 6
    %s18 = sphi 0, %s37
    %s19 = sphi 0, %s33
    %s20 = sphi 0, %s29
    %s21 = sphi 0, %s18
    %s22 = sphi 0, %s19
    %s23 = sphi 0, %s20
    %s24 = sphi 0, %s21
    %s25 = sphi 0, %s22
    %s26 = sphi 0, %s23
    %s42 = sphi 0, %s44
    %s45 = sphi 0, %s42
    %s46 = sphi 0, %s45
    %s62 = sphi 0, %s46
    %s70 = sphi 0, %s72
    %s73 = sphi 0, %s70
    %s74 = sphi 0, %s73
    %s90 = sphi 0, %s74
    %s96 = sphi 0, %s98
    %s99 = sphi 0, %s96
    %s100 = sphi 0, %s99
    %s116 = sphi 0, %s100
    %s122 = sphi 0, %s124
    %s125 = sphi 0, %s122
    %s126 = sphi 0, %s125
    %s142 = sphi 0, %s126
    %s150 = sphi 0, %s152
    %s153 = sphi 0, %s150
    %s154 = sphi 0, %s153
    %s170 = sphi 0, %s154
    %s178 = sphi 0, %s180
    %s181 = sphi 0, %s178
    %s182 = sphi 0, %s181
    %s198 = sphi 0, %s182
  $region4: #{resnet_forward.9} parent=0 // loop_header_branch
    %14 = sbr.rel (%p12) target = $region8
  $region5: #{resnet_forward.9} parent=0 // loop_body
    %s16 = ssub.s32 %s11, 1
    %s17 = ssub.s32 %s11, 2
    %s27 = sadd.s32 1, %s20
    %p28 = scmp.ge.s32.totalorder %s27, 1
    %s29 = scalar_select %p28, 0, %s27
    %s30 = sadd.s32 1, %s19
    %s31 = scalar_select %p28, %s30, %s19
    %p32 = scmp.ge.s32.totalorder %s31, 1
    %s33 = scalar_select %p32, 0, %s31
    %s34 = sadd.s32 1, %s18
    %s35 = scalar_select %p32, %s34, %s18
    %p36 = scmp.ge.s32.totalorder %s35, 4
    %s37 = scalar_select %p36, 0, %s35
    %s38 = ssub.s32 %s18, %s37
    %s39 = ssub.s32 %s20, %s29
    %s40 = sor.u32 %s38, %s39
    %p41 = scmp.eq.s32.totalorder %s40, 0
    %s43 = sadd.s32 %s42, 1
    %s44 = scalar_select %p41, %s42, %s43
    %p47 = pneg %p41
    %p48 = scmp.eq.s32.totalorder %s11, 3
    %p49 = por %p47, %p48
    %p50 = scmp.ne.s32.totalorder %s42, %s45
    %p51 = scmp.eq.s32.totalorder %s11, 0
    %p52 = por %p50, %p51
    %p53 = scmp.ne.s32.totalorder %s42, %s45
    %p54 = scmp.eq.s32.totalorder %s16, 3
    %p55 = por %p53, %p54
    %p56 = scmp.ne.s32.totalorder %s45, %s46
    %p57 = scmp.eq.s32.totalorder %s16, 0
    %p58 = por %p56, %p57
    %p59 = scmp.ne.s32.totalorder %s45, %s46
    %p60 = scmp.eq.s32.totalorder %s17, 3
    %p61 = por %p59, %p60
    %p63 = scmp.ne.s32.totalorder %s46, %s62
    %p64 = scmp.eq.s32.totalorder %s17, 0
    %p65 = por %p63, %p64
    %s66 = ssub.s32 %s20, %s29
    %s67 = ssub.s32 %s19, %s33
    %s68 = sor.u32 %s66, %s67
    %p69 = scmp.eq.s32.totalorder %s68, 0
    %s71 = sadd.s32 %s70, 1
    %s72 = scalar_select %p69, %s70, %s71
    %p75 = pneg %p69
    %p76 = scmp.eq.s32.totalorder %s11, 3
    %p77 = por %p75, %p76
    %p78 = scmp.ne.s32.totalorder %s70, %s73
    %p79 = scmp.eq.s32.totalorder %s11, 0
    %p80 = por %p78, %p79
    %p81 = scmp.ne.s32.totalorder %s70, %s73
    %p82 = scmp.eq.s32.totalorder %s16, 3
    %p83 = por %p81, %p82
    %p84 = scmp.ne.s32.totalorder %s73, %s74
    %p85 = scmp.eq.s32.totalorder %s16, 0
    %p86 = por %p84, %p85
    %p87 = scmp.ne.s32.totalorder %s73, %s74
    %p88 = scmp.eq.s32.totalorder %s17, 3
    %p89 = por %p87, %p88
    %p91 = scmp.ne.s32.totalorder %s74, %s90
    %p92 = scmp.eq.s32.totalorder %s17, 0
    %p93 = por %p91, %p92
    %s94 = ssub.s32 %s19, %s33
    %p95 = scmp.eq.s32.totalorder %s94, 0
    %s97 = sadd.s32 %s96, 1
    %s98 = scalar_select %p95, %s96, %s97
    %p101 = pneg %p95
    %p102 = scmp.eq.s32.totalorder %s11, 3
    %p103 = por %p101, %p102
    %p104 = scmp.ne.s32.totalorder %s96, %s99
    %p105 = scmp.eq.s32.totalorder %s11, 0
    %p106 = por %p104, %p105
    %p107 = scmp.ne.s32.totalorder %s96, %s99
    %p108 = scmp.eq.s32.totalorder %s16, 3
    %p109 = por %p107, %p108
    %p110 = scmp.ne.s32.totalorder %s99, %s100
    %p111 = scmp.eq.s32.totalorder %s16, 0
    %p112 = por %p110, %p111
    %p113 = scmp.ne.s32.totalorder %s99, %s100
    %p114 = scmp.eq.s32.totalorder %s17, 3
    %p115 = por %p113, %p114
    %p117 = scmp.ne.s32.totalorder %s100, %s116
    %p118 = scmp.eq.s32.totalorder %s17, 0
    %p119 = por %p117, %p118
    %s120 = ssub.s32 %s19, %s33
    %p121 = scmp.eq.s32.totalorder %s120, 0
    %s123 = sadd.s32 %s122, 1
    %s124 = scalar_select %p121, %s122, %s123
    %p127 = pneg %p121
    %p128 = scmp.eq.s32.totalorder %s11, 3
    %p129 = por %p127, %p128
    %p130 = scmp.ne.s32.totalorder %s122, %s125
    %p131 = scmp.eq.s32.totalorder %s11, 0
    %p132 = por %p130, %p131
    %p133 = scmp.ne.s32.totalorder %s122, %s125
    %p134 = scmp.eq.s32.totalorder %s16, 3
    %p135 = por %p133, %p134
    %p136 = scmp.ne.s32.totalorder %s125, %s126
    %p137 = scmp.eq.s32.totalorder %s16, 0
    %p138 = por %p136, %p137
    %p139 = scmp.ne.s32.totalorder %s125, %s126
    %p140 = scmp.eq.s32.totalorder %s17, 3
    %p141 = por %p139, %p140
    %p143 = scmp.ne.s32.totalorder %s126, %s142
    %p144 = scmp.eq.s32.totalorder %s17, 0
    %p145 = por %p143, %p144
    %s146 = ssub.s32 %s18, %s37
    %s147 = ssub.s32 %s19, %s33
    %s148 = sor.u32 %s146, %s147
    %p149 = scmp.eq.s32.totalorder %s148, 0
    %s151 = sadd.s32 %s150, 1
    %s152 = scalar_select %p149, %s150, %s151
    %p155 = pneg %p149
    %p156 = scmp.eq.s32.totalorder %s11, 3
    %p157 = por %p155, %p156
    %p158 = scmp.ne.s32.totalorder %s150, %s153
    %p159 = scmp.eq.s32.totalorder %s11, 0
    %p160 = por %p158, %p159
    %p161 = scmp.ne.s32.totalorder %s150, %s153
    %p162 = scmp.eq.s32.totalorder %s16, 3
    %p163 = por %p161, %p162
    %p164 = scmp.ne.s32.totalorder %s153, %s154
    %p165 = scmp.eq.s32.totalorder %s16, 0
    %p166 = por %p164, %p165
    %p167 = scmp.ne.s32.totalorder %s153, %s154
    %p168 = scmp.eq.s32.totalorder %s17, 3
    %p169 = por %p167, %p168
    %p171 = scmp.ne.s32.totalorder %s154, %s170
    %p172 = scmp.eq.s32.totalorder %s17, 0
    %p173 = por %p171, %p172
    %s174 = ssub.s32 %s18, %s37
    %s175 = ssub.s32 %s19, %s33
    %s176 = sor.u32 %s174, %s175
    %p177 = scmp.eq.s32.totalorder %s176, 0
    %s179 = sadd.s32 %s178, 1
    %s180 = scalar_select %p177, %s178, %s179
    %p183 = pneg %p177
    %p184 = scmp.eq.s32.totalorder %s11, 3
    %p185 = por %p183, %p184
    %p186 = scmp.ne.s32.totalorder %s178, %s181
    %p187 = scmp.eq.s32.totalorder %s11, 0
    %p188 = por %p186, %p187
    %p189 = scmp.ne.s32.totalorder %s178, %s181
    %p190 = scmp.eq.s32.totalorder %s16, 3
    %p191 = por %p189, %p190
    %p192 = scmp.ne.s32.totalorder %s181, %s182
    %p193 = scmp.eq.s32.totalorder %s16, 0
    %p194 = por %p192, %p193
    %p195 = scmp.ne.s32.totalorder %s181, %s182
    %p196 = scmp.eq.s32.totalorder %s17, 3
    %p197 = por %p195, %p196
    %p199 = scmp.ne.s32.totalorder %s182, %s198
    %p200 = scmp.eq.s32.totalorder %s17, 0
    %p201 = por %p199, %p200
    %p202 = scmp.le.s32.totalorder 1, %s11
    %p203 = scmp.lt.s32.totalorder %s11, 5
    %p204 = pnand %p202, %p203
    %p205 = pneg %p204
    // Predicated region
    $region9: #{resnet_forward.9} parent=5 // pred_check
      _
    $region10: #{resnet_forward.9} parent=5 // pred_check_branch
      %207 = sbr.rel (%p204) target = $region12
    $region11: #{resnet_forward.9} parent=5 // pred_region
      %s208 = ssub.s32 %s11, 1
      // Predicated region
      $region13: #{resnet_forward.9} parent=11 // pred_check
        %p209 = pneg %p86
      $region14: #{resnet_forward.9} parent=11 // pred_check_branch
        %211 = sbr.rel (%p209) target = $region16
      $region15: #{resnet_forward.9} parent=11 // pred_region
        %s212 = smul.u32 5, %s23
        %p213 = scmp.lt.s32.totalorder %s212, 4
        %s214 = scalar_select %p213, %s212, 4
        %p215 = scmp.lt.s32.totalorder %s22, 0
        %s216 = scalar_select %p215, %s22, 0
        %s217 = sadd.s32 %s216, %s214
        %s218 = smul.addr %s217, 4
        %s219 = scalar_lea.vmem %s1, %s218
        %s220 = smul.u32 5, %s23
      $region16: #{resnet_forward.9} parent=11 // pred_fallthru
        _
      // Predicated region
      $region17: #{resnet_forward.9} parent=11 // pred_check
        %p221 = pneg %p112
      $region18: #{resnet_forward.9} parent=11 // pred_check_branch
        %223 = sbr.rel (%p221) target = $region20
      $region19: #{resnet_forward.9} parent=11 // pred_region
        %p224 = scmp.lt.s32.totalorder %s22, 0
        %s225 = scalar_select %p224, %s22, 0
        %s226 = scalar_lea.vmem %s2, %s225
      $region20: #{resnet_forward.9} parent=11 // pred_fallthru
        _
      // Predicated region
      $region21: #{resnet_forward.9} parent=11 // pred_check
        %p227 = pneg %p138
      $region22: #{resnet_forward.9} parent=11 // pred_check_branch
        %229 = sbr.rel (%p227) target = $region24
      $region23: #{resnet_forward.9} parent=11 // pred_region
        %p230 = scmp.lt.s32.totalorder %s22, 0
        %s231 = scalar_select %p230, %s22, 0
        %s232 = scalar_lea.vmem %s3, %s231
      $region24: #{resnet_forward.9} parent=11 // pred_fallthru
        _
    $region12: #{resnet_forward.9} parent=5 // pred_fallthru
      _
    %p233 = scmp.lt.s32.totalorder %s11, 4
    // Predicated region
    $region25: #{resnet_forward.9} parent=5 // pred_check
      %p234 = pneg %p233
    $region26: #{resnet_forward.9} parent=5 // pred_check_branch
      %236 = sbr.rel (%p234) target = $region28
    $region27: #{resnet_forward.9} parent=5 // pred_region
      // Predicated region
      $region29: #{resnet_forward.9} parent=27 // pred_check
        %p237 = pneg %p52
      $region30: #{resnet_forward.9} parent=27 // pred_check_branch
        %239 = sbr.rel (%p237) target = $region32
      $region31: #{resnet_forward.9} parent=27 // pred_region
        %s240 = smul.u32 64, %s18
        %p241 = scmp.lt.s32.totalorder %s240, 255
        %s242 = scalar_select %p241, %s240, 255
        %p243 = scmp.lt.s32.totalorder %s20, 0
        %s244 = scalar_select %p243, %s20, 0
        %s245 = sadd.s32 %s244, %s242
        %s246 = smul.addr %s245, 4
        %s247 = scalar_lea.vmem %s0, %s246
        %s248 = smul.u32 64, %s18
      $region32: #{resnet_forward.9} parent=27 // pred_fallthru
        _
      // Predicated region
      $region33: #{resnet_forward.9} parent=27 // pred_check
        %p249 = pneg %p160
      $region34: #{resnet_forward.9} parent=27 // pred_check_branch
        %251 = sbr.rel (%p249) target = $region36
      $region35: #{resnet_forward.9} parent=27 // pred_region
        %s252 = smul.u32 64, %s18
        %p253 = scmp.lt.s32.totalorder %s252, 255
        %s254 = scalar_select %p253, %s252, 255
        %p255 = scmp.lt.s32.totalorder %s19, 0
        %s256 = scalar_select %p255, %s19, 0
        %s257 = sadd.s32 %s256, %s254
        %s258 = smul.addr %s257, 4
        %s259 = scalar_lea.vmem %s4, %s258
        %s260 = smul.u32 64, %s18
      $region36: #{resnet_forward.9} parent=27 // pred_fallthru
        _
    $region28: #{resnet_forward.9} parent=5 // pred_fallthru
      _
    %p261 = scmp.le.s32.totalorder 1, %s11
    %p262 = scmp.lt.s32.totalorder %s11, 5
    %p263 = pnand %p261, %p262
    %p264 = pneg %p263
    // Predicated region
    $region37: #{resnet_forward.9} parent=5 // pred_check
      _
    $region38: #{resnet_forward.9} parent=5 // pred_check_branch
      %266 = sbr.rel (%p263) target = $region40
    $region39: #{resnet_forward.9} parent=5 // pred_region
      %s267 = ssub.s32 %s11, 1
      %s268 = smul.u32 64, %s21
      %p269 = scmp.lt.s32.totalorder %s268, 255
      %s270 = scalar_select %p269, %s268, 255
      %p271 = scmp.lt.s32.totalorder %s23, 0
      %s272 = scalar_select %p271, %s23, 0
      %s273 = sadd.s32 %s272, %s270
      %s274 = smul.addr %s273, 4
      %s275 = scalar_lea.vmem %s0, %s274
      %p276 = pneg %p58
      %p277 = pneg %p55
      %s278 = smul.u32 5, %s23
      %p279 = scmp.lt.s32.totalorder %s278, 4
      %s280 = scalar_select %p279, %s278, 4
      %p281 = scmp.lt.s32.totalorder %s22, 0
      %s282 = scalar_select %p281, %s22, 0
      %s283 = sadd.s32 %s282, %s280
      %s284 = smul.addr %s283, 4
      %s285 = scalar_lea.vmem %s1, %s284
      %p286 = pneg %p86
      %p287 = pneg %p83
      %p288 = scmp.lt.s32.totalorder %s22, 0
      %s289 = scalar_select %p288, %s22, 0
      %s290 = scalar_lea.vmem %s2, %s289
      %p291 = pneg %p112
      %p292 = pneg %p109
      %p293 = scmp.lt.s32.totalorder %s22, 0
      %s294 = scalar_select %p293, %s22, 0
      %s295 = scalar_lea.vmem %s3, %s294
      %p296 = pneg %p138
      %p297 = pneg %p135
      %s298 = smul.u32 64, %s21
      %p299 = scmp.lt.s32.totalorder %s298, 255
      %s300 = scalar_select %p299, %s298, 255
      %p301 = scmp.lt.s32.totalorder %s22, 0
      %s302 = scalar_select %p301, %s22, 0
      %s303 = sadd.s32 %s302, %s300
      %s304 = smul.addr %s303, 4
      %s305 = scalar_lea.vmem %s4, %s304
      %p306 = pneg %p166
      %p307 = pneg %p163
      %p308 = pneg %p194
      %p309 = pneg %p191
      %s310 = smul.u32 64, %s21
      %p311 = scmp.lt.s32.totalorder %s310, 255
      %s312 = scalar_select %p311, %s310, 255
      %p313 = scmp.lt.s32.totalorder %s22, 0
      %s314 = scalar_select %p313, %s22, 0
      %s315 = sadd.s32 %s314, %s312
      %s316 = smul.addr %s315, 4
      %s317 = scalar_lea.vmem %s5, %s316
      %s318 = smul.u32 64, %s21
      %p319 = scmp.lt.s32.totalorder %s318, 255
      %s320 = scalar_select %p319, %s318, 255
      %p321 = scmp.lt.s32.totalorder %s23, 0
      %s322 = scalar_select %p321, %s23, 0
      %s323 = sadd.s32 %s322, %s320
      %s324 = smul.addr %s323, 4
      %s325 = scalar_lea.vmem %s0, %s324
      %s326 = smul.u32 64, %s21
      %s327 = smul.u32 5, %s23
      %p328 = scmp.lt.s32.totalorder %s327, 4
      %s329 = scalar_select %p328, %s327, 4
      %p330 = scmp.lt.s32.totalorder %s22, 0
      %s331 = scalar_select %p330, %s22, 0
      %s332 = sadd.s32 %s331, %s329
      %s333 = smul.addr %s332, 4
      %s334 = scalar_lea.vmem %s1, %s333
      %s335 = smul.u32 5, %s23
      %p336 = scmp.lt.s32.totalorder %s22, 0
      %s337 = scalar_select %p336, %s22, 0
      %s338 = scalar_lea.vmem %s2, %s337
      %p339 = scmp.lt.s32.totalorder %s22, 0
      %s340 = scalar_select %p339, %s22, 0
      %s341 = scalar_lea.vmem %s3, %s340
      %s342 = smul.u32 64, %s21
      %p343 = scmp.lt.s32.totalorder %s342, 255
      %s344 = scalar_select %p343, %s342, 255
      %p345 = scmp.lt.s32.totalorder %s22, 0
      %s346 = scalar_select %p345, %s22, 0
      %s347 = sadd.s32 %s346, %s344
      %s348 = smul.addr %s347, 4
      %s349 = scalar_lea.vmem %s4, %s348
      %s350 = smul.u32 64, %s21
      %s351 = smul.u32 64, %s21
      %p352 = scmp.lt.s32.totalorder %s351, 255
      %s353 = scalar_select %p352, %s351, 255
      %p354 = scmp.lt.s32.totalorder %s22, 0
      %s355 = scalar_select %p354, %s22, 0
      %s356 = sadd.s32 %s355, %s353
      %s357 = smul.addr %s356, 4
      %s358 = scalar_lea.vmem %s5, %s357
      %s359 = smul.u32 64, %s21
      %p361 = scmp.eq.s32.totalorder %s23, 0
      // Predicated region
      $region41: #{resnet_forward.9} parent=39 // pred_check
        %p362 = pneg %p361
      $region42: #{resnet_forward.9} parent=39 // pred_check_branch
        %364 = sbr.rel (%p362) target = $region44
      $region43: #{resnet_forward.9} parent=39 // pred_region
        %365 = vst [vmem:[#allocation2] sm:$0xff] 0.0
        %366 = vst [vmem:[#allocation2 + $0x8] sm:$0xff] 0.0
        %367 = vst [vmem:[#allocation2 + $0x10] sm:$0xff] 0.0
        %368 = vst [vmem:[#allocation2 + $0x18] sm:$0xff] 0.0
        %369 = vst [vmem:[#allocation2 + $0x20] sm:$0xff] 0.0
        %370 = vst [vmem:[#allocation2 + $0x28] sm:$0xff] 0.0
        %371 = vst [vmem:[#allocation2 + $0x30] sm:$0xff] 0.0
        %372 = vst [vmem:[#allocation2 + $0x38] sm:$0xff] 0.0
        %373 = vst [vmem:[#allocation2 + $0x40] sm:$0xff] 0.0
        %374 = vst [vmem:[#allocation2 + $0x48] sm:$0xff] 0.0
        %375 = vst [vmem:[#allocation2 + $0x50] sm:$0xff] 0.0
        %376 = vst [vmem:[#allocation2 + $0x58] sm:$0xff] 0.0
        %377 = vst [vmem:[#allocation2 + $0x60] sm:$0xff] 0.0
        %378 = vst [vmem:[#allocation2 + $0x68] sm:$0xff] 0.0
        %379 = vst [vmem:[#allocation2 + $0x70] sm:$0xff] 0.0
        %380 = vst [vmem:[#allocation2 + $0x78] sm:$0xff] 0.0
        %381 = vst [vmem:[#allocation2 + $0x80] sm:$0xff] 0.0
        %382 = vst [vmem:[#allocation2 + $0x88] sm:$0xff] 0.0
        %383 = vst [vmem:[#allocation2 + $0x90] sm:$0xff] 0.0
        %384 = vst [vmem:[#allocation2 + $0x98] sm:$0xff] 0.0
        %385 = vst [vmem:[#allocation2 + $0xa0] sm:$0xff] 0.0
        %386 = vst [vmem:[#allocation2 + $0xa8] sm:$0xff] 0.0
        %387 = vst [vmem:[#allocation2 + $0xb0] sm:$0xff] 0.0
        %388 = vst [vmem:[#allocation2 + $0xb8] sm:$0xff] 0.0
        %389 = vst [vmem:[#allocation2 + $0xc0] sm:$0xff] 0.0
        %390 = vst [vmem:[#allocation2 + $0xc8] sm:$0xff] 0.0
        %391 = vst [vmem:[#allocation2 + $0xd0] sm:$0xff] 0.0
        %392 = vst [vmem:[#allocation2 + $0xd8] sm:$0xff] 0.0
        %393 = vst [vmem:[#allocation2 + $0xe0] sm:$0xff] 0.0
        %394 = vst [vmem:[#allocation2 + $0xe8] sm:$0xff] 0.0
        %395 = vst [vmem:[#allocation2 + $0xf0] sm:$0xff] 0.0
        %396 = vst [vmem:[#allocation2 + $0xf8] sm:$0xff] 0.0
        %397 = vst [vmem:[#allocation2 + $0x100] sm:$0xff] 0.0
        %398 = vst [vmem:[#allocation2 + $0x108] sm:$0xff] 0.0
        %399 = vst [vmem:[#allocation2 + $0x110] sm:$0xff] 0.0
        %400 = vst [vmem:[#allocation2 + $0x118] sm:$0xff] 0.0
        %401 = vst [vmem:[#allocation2 + $0x120] sm:$0xff] 0.0
        %402 = vst [vmem:[#allocation2 + $0x128] sm:$0xff] 0.0
        %403 = vst [vmem:[#allocation2 + $0x130] sm:$0xff] 0.0
        %404 = vst [vmem:[#allocation2 + $0x138] sm:$0xff] 0.0
        %405 = vst [vmem:[#allocation2 + $0x140] sm:$0xff] 0.0
        %406 = vst [vmem:[#allocation2 + $0x148] sm:$0xff] 0.0
        %407 = vst [vmem:[#allocation2 + $0x150] sm:$0xff] 0.0
        %408 = vst [vmem:[#allocation2 + $0x158] sm:$0xff] 0.0
        %409 = vst [vmem:[#allocation2 + $0x160] sm:$0xff] 0.0
        %410 = vst [vmem:[#allocation2 + $0x168] sm:$0xff] 0.0
        %411 = vst [vmem:[#allocation2 + $0x170] sm:$0xff] 0.0
        %412 = vst [vmem:[#allocation2 + $0x178] sm:$0xff] 0.0
        %413 = vst [vmem:[#allocation2 + $0x180] sm:$0xff] 0.0
        %414 = vst [vmem:[#allocation2 + $0x188] sm:$0xff] 0.0
        %415 = vst [vmem:[#allocation2 + $0x190] sm:$0xff] 0.0
        %416 = vst [vmem:[#allocation2 + $0x198] sm:$0xff] 0.0
        %417 = vst [vmem:[#allocation2 + $0x1a0] sm:$0xff] 0.0
        %418 = vst [vmem:[#allocation2 + $0x1a8] sm:$0xff] 0.0
        %419 = vst [vmem:[#allocation2 + $0x1b0] sm:$0xff] 0.0
        %420 = vst [vmem:[#allocation2 + $0x1b8] sm:$0xff] 0.0
        %421 = vst [vmem:[#allocation2 + $0x1c0] sm:$0xff] 0.0
        %422 = vst [vmem:[#allocation2 + $0x1c8] sm:$0xff] 0.0
        %423 = vst [vmem:[#allocation2 + $0x1d0] sm:$0xff] 0.0
        %424 = vst [vmem:[#allocation2 + $0x1d8] sm:$0xff] 0.0
        %425 = vst [vmem:[#allocation2 + $0x1e0] sm:$0xff] 0.0
        %426 = vst [vmem:[#allocation2 + $0x1e8] sm:$0xff] 0.0
        %427 = vst [vmem:[#allocation2 + $0x1f0] sm:$0xff] 0.0
        %428 = vst [vmem:[#allocation2 + $0x1f8] sm:$0xff] 0.0
      $region44: #{resnet_forward.9} parent=39 // pred_fallthru
        _
      %v429 = vld [vmem:[#allocation2] sm:$0xff]
      %v430 = vld [vmem:[#allocation2 + $0x8] sm:$0xff]
      %v431 = vld [vmem:[#allocation2 + $0x10] sm:$0xff]
      %v432 = vld [vmem:[#allocation2 + $0x18] sm:$0xff]
      %v433 = vld [vmem:[#allocation2 + $0x20] sm:$0xff]
      %v434 = vld [vmem:[#allocation2 + $0x28] sm:$0xff]
      %v435 = vld [vmem:[#allocation2 + $0x30] sm:$0xff]
      %v436 = vld [vmem:[#allocation2 + $0x38] sm:$0xff]
      %v437 = vld [vmem:[#allocation2 + $0x40] sm:$0xff]
      %v438 = vld [vmem:[#allocation2 + $0x48] sm:$0xff]
      %v439 = vld [vmem:[#allocation2 + $0x50] sm:$0xff]
      %v440 = vld [vmem:[#allocation2 + $0x58] sm:$0xff]
      %v441 = vld [vmem:[#allocation2 + $0x60] sm:$0xff]
      %v442 = vld [vmem:[#allocation2 + $0x68] sm:$0xff]
      %v443 = vld [vmem:[#allocation2 + $0x70] sm:$0xff]
      %v444 = vld [vmem:[#allocation2 + $0x78] sm:$0xff]
      %v445 = vld [vmem:[#allocation2 + $0x80] sm:$0xff]
      %v446 = vld [vmem:[#allocation2 + $0x88] sm:$0xff]
      %v447 = vld [vmem:[#allocation2 + $0x90] sm:$0xff]
      %v448 = vld [vmem:[#allocation2 + $0x98] sm:$0xff]
      %v449 = vld [vmem:[#allocation2 + $0xa0] sm:$0xff]
      %v450 = vld [vmem:[#allocation2 + $0xa8] sm:$0xff]
      %v451 = vld [vmem:[#allocation2 + $0xb0] sm:$0xff]
      %v452 = vld [vmem:[#allocation2 + $0xb8] sm:$0xff]
      %v453 = vld [vmem:[#allocation2 + $0xc0] sm:$0xff]
      %v454 = vld [vmem:[#allocation2 + $0xc8] sm:$0xff]
      %v455 = vld [vmem:[#allocation2 + $0xd0] sm:$0xff]
      %v456 = vld [vmem:[#allocation2 + $0xd8] sm:$0xff]
      %v457 = vld [vmem:[#allocation2 + $0xe0] sm:$0xff]
      %v458 = vld [vmem:[#allocation2 + $0xe8] sm:$0xff]
      %v459 = vld [vmem:[#allocation2 + $0xf0] sm:$0xff]
      %v460 = vld [vmem:[#allocation2 + $0xf8] sm:$0xff]
      %v461 = vld [vmem:[#allocation2 + $0x100] sm:$0xff]
      %v462 = vld [vmem:[#allocation2 + $0x108] sm:$0xff]
      %v463 = vld [vmem:[#allocation2 + $0x110] sm:$0xff]
      %v464 = vld [vmem:[#allocation2 + $0x118] sm:$0xff]
      %v465 = vld [vmem:[#allocation2 + $0x120] sm:$0xff]
      %v466 = vld [vmem:[#allocation2 + $0x128] sm:$0xff]
      %v467 = vld [vmem:[#allocation2 + $0x130] sm:$0xff]
      %v468 = vld [vmem:[#allocation2 + $0x138] sm:$0xff]
      %v469 = vld [vmem:[#allocation2 + $0x140] sm:$0xff]
      %v470 = vld [vmem:[#allocation2 + $0x148] sm:$0xff]
      %v471 = vld [vmem:[#allocation2 + $0x150] sm:$0xff]
      %v472 = vld [vmem:[#allocation2 + $0x158] sm:$0xff]
      %v473 = vld [vmem:[#allocation2 + $0x160] sm:$0xff]
      %v474 = vld [vmem:[#allocation2 + $0x168] sm:$0xff]
      %v475 = vld [vmem:[#allocation2 + $0x170] sm:$0xff]
      %v476 = vld [vmem:[#allocation2 + $0x178] sm:$0xff]
      %v477 = vld [vmem:[#allocation2 + $0x180] sm:$0xff]
      %v478 = vld [vmem:[#allocation2 + $0x188] sm:$0xff]
      %v479 = vld [vmem:[#allocation2 + $0x190] sm:$0xff]
      %v480 = vld [vmem:[#allocation2 + $0x198] sm:$0xff]
      %v481 = vld [vmem:[#allocation2 + $0x1a0] sm:$0xff]
      %v482 = vld [vmem:[#allocation2 + $0x1a8] sm:$0xff]
      %v483 = vld [vmem:[#allocation2 + $0x1b0] sm:$0xff]
      %v484 = vld [vmem:[#allocation2 + $0x1b8] sm:$0xff]
      %v485 = vld [vmem:[#allocation2 + $0x1c0] sm:$0xff]
      %v486 = vld [vmem:[#allocation2 + $0x1c8] sm:$0xff]
      %v487 = vld [vmem:[#allocation2 + $0x1d0] sm:$0xff]
      %v488 = vld [vmem:[#allocation2 + $0x1d8] sm:$0xff]
      %v489 = vld [vmem:[#allocation2 + $0x1e0] sm:$0xff]
      %v490 = vld [vmem:[#allocation2 + $0x1e8] sm:$0xff]
      %v491 = vld [vmem:[#allocation2 + $0x1f0] sm:$0xff]
      %v492 = vld [vmem:[#allocation2 + $0x1f8] sm:$0xff]
      %v493 = vld [vmem:[%s325] sm:$0xf]
      %v494 = vld [vmem:[%s325 + $0x4] sm:$0xf]
      %v495 = vld [vmem:[%s325 + $0x8] sm:$0xf]
      %v496 = vld [vmem:[%s325 + $0xc] sm:$0xf]
      %v497 = vld [vmem:[%s325 + $0x10] sm:$0xf]
      %v498 = vld [vmem:[%s325 + $0x14] sm:$0xf]
      %v499 = vld [vmem:[%s325 + $0x18] sm:$0xf]
      %v500 = vld [vmem:[%s325 + $0x1c] sm:$0xf]
      %v501 = vld [vmem:[%s325 + $0x20] sm:$0xf]
      %v502 = vld [vmem:[%s325 + $0x24] sm:$0xf]
      %v503 = vld [vmem:[%s325 + $0x28] sm:$0xf]
      %v504 = vld [vmem:[%s325 + $0x2c] sm:$0xf]
      %v505 = vld [vmem:[%s325 + $0x30] sm:$0xf]
      %v506 = vld [vmem:[%s325 + $0x34] sm:$0xf]
      %v507 = vld [vmem:[%s325 + $0x38] sm:$0xf]
      %v508 = vld [vmem:[%s325 + $0x3c] sm:$0xf]
      %v509 = vld [vmem:[%s325 + $0x40] sm:$0xf]
      %v510 = vld [vmem:[%s325 + $0x44] sm:$0xf]
      %v511 = vld [vmem:[%s325 + $0x48] sm:$0xf]
      %v512 = vld [vmem:[%s325 + $0x4c] sm:$0xf]
      %v513 = vld [vmem:[%s325 + $0x50] sm:$0xf]
      %v514 = vld [vmem:[%s325 + $0x54] sm:$0xf]
      %v515 = vld [vmem:[%s325 + $0x58] sm:$0xf]
      %v516 = vld [vmem:[%s325 + $0x5c] sm:$0xf]
      %v517 = vld [vmem:[%s325 + $0x60] sm:$0xf]
      %v518 = vld [vmem:[%s325 + $0x64] sm:$0xf]
      %v519 = vld [vmem:[%s325 + $0x68] sm:$0xf]
      %v520 = vld [vmem:[%s325 + $0x6c] sm:$0xf]
      %v521 = vld [vmem:[%s325 + $0x70] sm:$0xf]
      %v522 = vld [vmem:[%s325 + $0x74] sm:$0xf]
      %v523 = vld [vmem:[%s325 + $0x78] sm:$0xf]
      %v524 = vld [vmem:[%s325 + $0x7c] sm:$0xf]
      %v525 = vld [vmem:[%s325 + $0x80] sm:$0xf]
      %v526 = vld [vmem:[%s325 + $0x84] sm:$0xf]
      %v527 = vld [vmem:[%s325 + $0x88] sm:$0xf]
      %v528 = vld [vmem:[%s325 + $0x8c] sm:$0xf]
      %v529 = vld [vmem:[%s325 + $0x90] sm:$0xf]
      %v530 = vld [vmem:[%s325 + $0x94] sm:$0xf]
      %v531 = vld [vmem:[%s325 + $0x98] sm:$0xf]
      %v532 = vld [vmem:[%s325 + $0x9c] sm:$0xf]
      %v533 = vld [vmem:[%s325 + $0xa0] sm:$0xf]
      %v534 = vld [vmem:[%s325 + $0xa4] sm:$0xf]
      %v535 = vld [vmem:[%s325 + $0xa8] sm:$0xf]
      %v536 = vld [vmem:[%s325 + $0xac] sm:$0xf]
      %v537 = vld [vmem:[%s325 + $0xb0] sm:$0xf]
      %v538 = vld [vmem:[%s325 + $0xb4] sm:$0xf]
      %v539 = vld [vmem:[%s325 + $0xb8] sm:$0xf]
      %v540 = vld [vmem:[%s325 + $0xbc] sm:$0xf]
      %v541 = vld [vmem:[%s325 + $0xc0] sm:$0xf]
      %v542 = vld [vmem:[%s325 + $0xc4] sm:$0xf]
      %v543 = vld [vmem:[%s325 + $0xc8] sm:$0xf]
      %v544 = vld [vmem:[%s325 + $0xcc] sm:$0xf]
      %v545 = vld [vmem:[%s325 + $0xd0] sm:$0xf]
      %v546 = vld [vmem:[%s325 + $0xd4] sm:$0xf]
      %v547 = vld [vmem:[%s325 + $0xd8] sm:$0xf]
      %v548 = vld [vmem:[%s325 + $0xdc] sm:$0xf]
      %v549 = vld [vmem:[%s325 + $0xe0] sm:$0xf]
      %v550 = vld [vmem:[%s325 + $0xe4] sm:$0xf]
      %v551 = vld [vmem:[%s325 + $0xe8] sm:$0xf]
      %v552 = vld [vmem:[%s325 + $0xec] sm:$0xf]
      %v553 = vld [vmem:[%s325 + $0xf0] sm:$0xf]
      %v554 = vld [vmem:[%s325 + $0xf4] sm:$0xf]
      %v555 = vld [vmem:[%s325 + $0xf8] sm:$0xf]
      %v556 = vld [vmem:[%s325 + $0xfc] sm:$0xf]
      %v557 = vld [vmem:[%s334] sm:$0xf]
      %v558 = vld [vmem:[%s334 + $0x4] sm:$0xf]
      %v559 = vld [vmem:[%s334 + $0x8] sm:$0xf]
      %v560 = vld [vmem:[%s334 + $0xc] sm:$0xf]
      %v561 = vld [vmem:[%s334 + $0x10] sm:$0x3]
      %v626 = vunpack.c.l.b16 %v493
      %v627 = vunpack.c.l.b16 %v494
      %v628 = vunpack.c.l.b16 %v495
      %v629 = vunpack.c.l.b16 %v496
      %v630 = vunpack.c.l.b16 %v497
      %v631 = vunpack.c.l.b16 %v498
      %v632 = vunpack.c.l.b16 %v499
      %v633 = vunpack.c.l.b16 %v500
      %v634 = vunpack.c.l.b16 %v501
      %v635 = vunpack.c.l.b16 %v502
      %v636 = vunpack.c.l.b16 %v503
      %v637 = vunpack.c.l.b16 %v504
      %v638 = vunpack.c.l.b16 %v505
      %v639 = vunpack.c.l.b16 %v506
      %v640 = vunpack.c.l.b16 %v507
      %v641 = vunpack.c.l.b16 %v508
      %v642 = vunpack.c.l.b16 %v509
      %v643 = vunpack.c.l.b16 %v510
      %v644 = vunpack.c.l.b16 %v511
      %v645 = vunpack.c.l.b16 %v512
      %v646 = vunpack.c.l.b16 %v513
      %v647 = vunpack.c.l.b16 %v514
      %v648 = vunpack.c.l.b16 %v515
      %v649 = vunpack.c.l.b16 %v516
      %v650 = vunpack.c.l.b16 %v517
      %v651 = vunpack.c.l.b16 %v518
      %v652 = vunpack.c.l.b16 %v519
      %v653 = vunpack.c.l.b16 %v520
      %v654 = vunpack.c.l.b16 %v521
      %v655 = vunpack.c.l.b16 %v522
      %v656 = vunpack.c.l.b16 %v523
      %v657 = vunpack.c.l.b16 %v524
      %v658 = vunpack.c.l.b16 %v525
      %v659 = vunpack.c.l.b16 %v526
      %v660 = vunpack.c.l.b16 %v527
      %v661 = vunpack.c.l.b16 %v528
      %v662 = vunpack.c.l.b16 %v529
      %v663 = vunpack.c.l.b16 %v530
      %v664 = vunpack.c.l.b16 %v531
      %v665 = vunpack.c.l.b16 %v532
      %v666 = vunpack.c.l.b16 %v533
      %v667 = vunpack.c.l.b16 %v534
      %v668 = vunpack.c.l.b16 %v535
      %v669 = vunpack.c.l.b16 %v536
      %v670 = vunpack.c.l.b16 %v537
      %v671 = vunpack.c.l.b16 %v538
      %v672 = vunpack.c.l.b16 %v539
      %v673 = vunpack.c.l.b16 %v540
      %v674 = vunpack.c.l.b16 %v541
      %v675 = vunpack.c.l.b16 %v542
      %v676 = vunpack.c.l.b16 %v543
      %v677 = vunpack.c.l.b16 %v544
      %v678 = vunpack.c.l.b16 %v545
      %v679 = vunpack.c.l.b16 %v546
      %v680 = vunpack.c.l.b16 %v547
      %v681 = vunpack.c.l.b16 %v548
      %v682 = vunpack.c.l.b16 %v549
      %v683 = vunpack.c.l.b16 %v550
      %v684 = vunpack.c.l.b16 %v551
      %v685 = vunpack.c.l.b16 %v552
      %v686 = vunpack.c.l.b16 %v553
      %v687 = vunpack.c.l.b16 %v554
      %v688 = vunpack.c.l.b16 %v555
      %v689 = vunpack.c.l.b16 %v556
      %v690 = vpack.c.b16 %v627, %v626
      %v691 = vpack.c.b16 %v629, %v628
      %v692 = vpack.c.b16 %v631, %v630
      %v693 = vpack.c.b16 %v633, %v632
      %v694 = vpack.c.b16 %v635, %v634
      %v695 = vpack.c.b16 %v637, %v636
      %v696 = vpack.c.b16 %v639, %v638
      %v697 = vpack.c.b16 %v641, %v640
      %v698 = vpack.c.b16 %v643, %v642
      %v699 = vpack.c.b16 %v645, %v644
      %v700 = vpack.c.b16 %v647, %v646
      %v701 = vpack.c.b16 %v649, %v648
      %v702 = vpack.c.b16 %v651, %v650
      %v703 = vpack.c.b16 %v653, %v652
      %v704 = vpack.c.b16 %v655, %v654
      %v705 = vpack.c.b16 %v657, %v656
      %v706 = vpack.c.b16 %v659, %v658
      %v707 = vpack.c.b16 %v661, %v660
      %v708 = vpack.c.b16 %v663, %v662
      %v709 = vpack.c.b16 %v665, %v664
      %v710 = vpack.c.b16 %v667, %v666
      %v711 = vpack.c.b16 %v669, %v668
      %v712 = vpack.c.b16 %v671, %v670
      %v713 = vpack.c.b16 %v673, %v672
      %v714 = vpack.c.b16 %v675, %v674
      %v715 = vpack.c.b16 %v677, %v676
      %v716 = vpack.c.b16 %v679, %v678
      %v717 = vpack.c.b16 %v681, %v680
      %v718 = vpack.c.b16 %v683, %v682
      %v719 = vpack.c.b16 %v685, %v684
      %v720 = vpack.c.b16 %v687, %v686
      %v721 = vpack.c.b16 %v689, %v688
      %v727 = vunpack.c.l.b16 %v557
      %v728 = vunpack.c.l.b16 %v558
      %v729 = vunpack.c.l.b16 %v559
      %v730 = vunpack.c.l.b16 %v560
      %v731 = vunpack.c.l.b16 %v561
      %v732 = vpack.c.b16 %v728, %v727
      %v733 = vpack.c.b16 %v730, %v729
      %v734 = vpack.c.b16 %v731, %v731
      %vm737 = vcmask 293888
      %v739 = vsel %vm737, %v690, 0
      %v742 = vsel %vm737, %v691, 0
      %v745 = vsel %vm737, %v692, 0
      %v748 = vsel %vm737, %v693, 0
      %v751 = vsel %vm737, %v694, 0
      %v754 = vsel %vm737, %v695, 0
      %v757 = vsel %vm737, %v696, 0
      %v760 = vsel %vm737, %v697, 0
      %v763 = vsel %vm737, %v698, 0
      %v766 = vsel %vm737, %v699, 0
      %v769 = vsel %vm737, %v700, 0
      %v772 = vsel %vm737, %v701, 0
      %v775 = vsel %vm737, %v702, 0
      %v778 = vsel %vm737, %v703, 0
      %v781 = vsel %vm737, %v704, 0
      %v784 = vsel %vm737, %v705, 0
      %v787 = vsel %vm737, %v706, 0
      %v790 = vsel %vm737, %v707, 0
      %v793 = vsel %vm737, %v708, 0
      %v796 = vsel %vm737, %v709, 0
      %v799 = vsel %vm737, %v710, 0
      %v802 = vsel %vm737, %v711, 0
      %v805 = vsel %vm737, %v712, 0
      %v808 = vsel %vm737, %v713, 0
      %v811 = vsel %vm737, %v714, 0
      %v814 = vsel %vm737, %v715, 0
      %v817 = vsel %vm737, %v716, 0
      %v820 = vsel %vm737, %v717, 0
      %v823 = vsel %vm737, %v718, 0
      %v826 = vsel %vm737, %v719, 0
      %v829 = vsel %vm737, %v720, 0
      %v832 = vsel %vm737, %v721, 0
      %vm834 = vcmask 1041408
      %v836 = vsel %vm834, %v734, 0
      %838 = vmatpush.bf16.msra.mxu0 0
      %839 = vmatpush.bf16.msra.mxu0 0
      %840 = vmatpush.bf16.msra.mxu0 0
      %841 = vmatpush.bf16.msra.mxu0 0
      %842 = vmatpush.bf16.msra.mxu0 0
      %843 = vmatpush.bf16.msra.mxu0 %v836
      %844 = vmatpush.bf16.msra.mxu0 %v733
      %845 = vmatpush.bf16.msra.mxu0 %v732
      %846 = vmatmul.bf16.gmra.mxu0 %v739
      %v847 = vpop.f32.mrf.mxu0
      %v848 = vadd.f32 0.0, %v847
      %v849 = vpop.f32.mrf.mxu0
      %v850 = vadd.f32 0.0, %v849
      %851 = vmatmul.bf16.gmra.mxu0 %v742
      %v852 = vpop.f32.mrf.mxu0
      %v853 = vadd.f32 0.0, %v852
      %v854 = vpop.f32.mrf.mxu0
      %v855 = vadd.f32 0.0, %v854
      %856 = vmatmul.bf16.gmra.mxu0 %v745
      %v857 = vpop.f32.mrf.mxu0
      %v858 = vadd.f32 0.0, %v857
      %v859 = vpop.f32.mrf.mxu0
      %v860 = vadd.f32 0.0, %v859
      %861 = vmatmul.bf16.gmra.mxu0 %v748
      %v862 = vpop.f32.mrf.mxu0
      %v863 = vadd.f32 0.0, %v862
      %v864 = vpop.f32.mrf.mxu0
      %v865 = vadd.f32 0.0, %v864
      %866 = vmatmul.bf16.gmra.mxu0 %v751
      %v867 = vpop.f32.mrf.mxu0
      %v868 = vadd.f32 0.0, %v867
      %v869 = vpop.f32.mrf.mxu0
      %v870 = vadd.f32 0.0, %v869
      %871 = vmatmul.bf16.gmra.mxu0 %v754
      %v872 = vpop.f32.mrf.mxu0
      %v873 = vadd.f32 0.0, %v872
      %v874 = vpop.f32.mrf.mxu0
      %v875 = vadd.f32 0.0, %v874
      %876 = vmatmul.bf16.gmra.mxu0 %v757
      %v877 = vpop.f32.mrf.mxu0
      %v878 = vadd.f32 0.0, %v877
      %v879 = vpop.f32.mrf.mxu0
      %v880 = vadd.f32 0.0, %v879
      %881 = vmatmul.bf16.gmra.mxu0 %v760
      %v882 = vpop.f32.mrf.mxu0
      %v883 = vadd.f32 0.0, %v882
      %v884 = vpop.f32.mrf.mxu0
      %v885 = vadd.f32 0.0, %v884
      %886 = vmatmul.bf16.gmra.mxu0 %v763
      %v887 = vpop.f32.mrf.mxu0
      %v888 = vadd.f32 0.0, %v887
      %v889 = vpop.f32.mrf.mxu0
      %v890 = vadd.f32 0.0, %v889
      %891 = vmatmul.bf16.gmra.mxu0 %v766
      %v892 = vpop.f32.mrf.mxu0
      %v893 = vadd.f32 0.0, %v892
      %v894 = vpop.f32.mrf.mxu0
      %v895 = vadd.f32 0.0, %v894
      %896 = vmatmul.bf16.gmra.mxu0 %v769
      %v897 = vpop.f32.mrf.mxu0
      %v898 = vadd.f32 0.0, %v897
      %v899 = vpop.f32.mrf.mxu0
      %v900 = vadd.f32 0.0, %v899
      %901 = vmatmul.bf16.gmra.mxu0 %v772
      %v902 = vpop.f32.mrf.mxu0
      %v903 = vadd.f32 0.0, %v902
      %v904 = vpop.f32.mrf.mxu0
      %v905 = vadd.f32 0.0, %v904
      %906 = vmatmul.bf16.gmra.mxu0 %v775
      %v907 = vpop.f32.mrf.mxu0
      %v908 = vadd.f32 0.0, %v907
      %v909 = vpop.f32.mrf.mxu0
      %v910 = vadd.f32 0.0, %v909
      %911 = vmatmul.bf16.gmra.mxu0 %v778
      %v912 = vpop.f32.mrf.mxu0
      %v913 = vadd.f32 0.0, %v912
      %v914 = vpop.f32.mrf.mxu0
      %v915 = vadd.f32 0.0, %v914
      %916 = vmatmul.bf16.gmra.mxu0 %v781
      %v917 = vpop.f32.mrf.mxu0
      %v918 = vadd.f32 0.0, %v917
      %v919 = vpop.f32.mrf.mxu0
      %v920 = vadd.f32 0.0, %v919
      %921 = vmatmul.bf16.gmra.mxu0 %v784
      %v922 = vpop.f32.mrf.mxu0
      %v923 = vadd.f32 0.0, %v922
      %v924 = vpop.f32.mrf.mxu0
      %v925 = vadd.f32 0.0, %v924
      %926 = vmatmul.bf16.gmra.mxu0 %v787
      %v927 = vpop.f32.mrf.mxu0
      %v928 = vadd.f32 0.0, %v927
      %v929 = vpop.f32.mrf.mxu0
      %v930 = vadd.f32 0.0, %v929
      %931 = vmatmul.bf16.gmra.mxu0 %v790
      %v932 = vpop.f32.mrf.mxu0
      %v933 = vadd.f32 0.0, %v932
      %v934 = vpop.f32.mrf.mxu0
      %v935 = vadd.f32 0.0, %v934
      %936 = vmatmul.bf16.gmra.mxu0 %v793
      %v937 = vpop.f32.mrf.mxu0
      %v938 = vadd.f32 0.0, %v937
      %v939 = vpop.f32.mrf.mxu0
      %v940 = vadd.f32 0.0, %v939
      %941 = vmatmul.bf16.gmra.mxu0 %v796
      %v942 = vpop.f32.mrf.mxu0
      %v943 = vadd.f32 0.0, %v942
      %v944 = vpop.f32.mrf.mxu0
      %v945 = vadd.f32 0.0, %v944
      %946 = vmatmul.bf16.gmra.mxu0 %v799
      %v947 = vpop.f32.mrf.mxu0
      %v948 = vadd.f32 0.0, %v947
      %v949 = vpop.f32.mrf.mxu0
      %v950 = vadd.f32 0.0, %v949
      %951 = vmatmul.bf16.gmra.mxu0 %v802
      %v952 = vpop.f32.mrf.mxu0
      %v953 = vadd.f32 0.0, %v952
      %v954 = vpop.f32.mrf.mxu0
      %v955 = vadd.f32 0.0, %v954
      %956 = vmatmul.bf16.gmra.mxu0 %v805
      %v957 = vpop.f32.mrf.mxu0
      %v958 = vadd.f32 0.0, %v957
      %v959 = vpop.f32.mrf.mxu0
      %v960 = vadd.f32 0.0, %v959
      %961 = vmatmul.bf16.gmra.mxu0 %v808
      %v962 = vpop.f32.mrf.mxu0
      %v963 = vadd.f32 0.0, %v962
      %v964 = vpop.f32.mrf.mxu0
      %v965 = vadd.f32 0.0, %v964
      %966 = vmatmul.bf16.gmra.mxu0 %v811
      %v967 = vpop.f32.mrf.mxu0
      %v968 = vadd.f32 0.0, %v967
      %v969 = vpop.f32.mrf.mxu0
      %v970 = vadd.f32 0.0, %v969
      %971 = vmatmul.bf16.gmra.mxu0 %v814
      %v972 = vpop.f32.mrf.mxu0
      %v973 = vadd.f32 0.0, %v972
      %v974 = vpop.f32.mrf.mxu0
      %v975 = vadd.f32 0.0, %v974
      %976 = vmatmul.bf16.gmra.mxu0 %v817
      %v977 = vpop.f32.mrf.mxu0
      %v978 = vadd.f32 0.0, %v977
      %v979 = vpop.f32.mrf.mxu0
      %v980 = vadd.f32 0.0, %v979
      %981 = vmatmul.bf16.gmra.mxu0 %v820
      %v982 = vpop.f32.mrf.mxu0
      %v983 = vadd.f32 0.0, %v982
      %v984 = vpop.f32.mrf.mxu0
      %v985 = vadd.f32 0.0, %v984
      %986 = vmatmul.bf16.gmra.mxu0 %v823
      %v987 = vpop.f32.mrf.mxu0
      %v988 = vadd.f32 0.0, %v987
      %v989 = vpop.f32.mrf.mxu0
      %v990 = vadd.f32 0.0, %v989
      %991 = vmatmul.bf16.gmra.mxu0 %v826
      %v992 = vpop.f32.mrf.mxu0
      %v993 = vadd.f32 0.0, %v992
      %v994 = vpop.f32.mrf.mxu0
      %v995 = vadd.f32 0.0, %v994
      %996 = vmatmul.bf16.gmra.mxu0 %v829
      %v997 = vpop.f32.mrf.mxu0
      %v998 = vadd.f32 0.0, %v997
      %v999 = vpop.f32.mrf.mxu0
      %v1000 = vadd.f32 0.0, %v999
      %1001 = vmatmul.bf16.gmra.mxu0 %v832
      %v1002 = vpop.f32.mrf.mxu0
      %v1003 = vadd.f32 0.0, %v1002
      %v1004 = vpop.f32.mrf.mxu0
      %v1005 = vadd.f32 0.0, %v1004
      %1006 = vdwg.mxu0
      %v1007 = vadd.f32 %v429, %v848
      %v1008 = vadd.f32 %v430, %v850
      %v1009 = vadd.f32 %v431, %v853
      %v1010 = vadd.f32 %v432, %v855
      %v1011 = vadd.f32 %v433, %v858
      %v1012 = vadd.f32 %v434, %v860
      %v1013 = vadd.f32 %v435, %v863
      %v1014 = vadd.f32 %v436, %v865
      %v1015 = vadd.f32 %v437, %v868
      %v1016 = vadd.f32 %v438, %v870
      %v1017 = vadd.f32 %v439, %v873
      %v1018 = vadd.f32 %v440, %v875
      %v1019 = vadd.f32 %v441, %v878
      %v1020 = vadd.f32 %v442, %v880
      %v1021 = vadd.f32 %v443, %v883
      %v1022 = vadd.f32 %v444, %v885
      %v1023 = vadd.f32 %v445, %v888
      %v1024 = vadd.f32 %v446, %v890
      %v1025 = vadd.f32 %v447, %v893
      %v1026 = vadd.f32 %v448, %v895
      %v1027 = vadd.f32 %v449, %v898
      %v1028 = vadd.f32 %v450, %v900
      %v1029 = vadd.f32 %v451, %v903
      %v1030 = vadd.f32 %v452, %v905
      %v1031 = vadd.f32 %v453, %v908
      %v1032 = vadd.f32 %v454, %v910
      %v1033 = vadd.f32 %v455, %v913
      %v1034 = vadd.f32 %v456, %v915
      %v1035 = vadd.f32 %v457, %v918
      %v1036 = vadd.f32 %v458, %v920
      %v1037 = vadd.f32 %v459, %v923
      %v1038 = vadd.f32 %v460, %v925
      %v1039 = vadd.f32 %v461, %v928
      %v1040 = vadd.f32 %v462, %v930
      %v1041 = vadd.f32 %v463, %v933
      %v1042 = vadd.f32 %v464, %v935
      %v1043 = vadd.f32 %v465, %v938
      %v1044 = vadd.f32 %v466, %v940
      %v1045 = vadd.f32 %v467, %v943
      %v1046 = vadd.f32 %v468, %v945
      %v1047 = vadd.f32 %v469, %v948
      %v1048 = vadd.f32 %v470, %v950
      %v1049 = vadd.f32 %v471, %v953
      %v1050 = vadd.f32 %v472, %v955
      %v1051 = vadd.f32 %v473, %v958
      %v1052 = vadd.f32 %v474, %v960
      %v1053 = vadd.f32 %v475, %v963
      %v1054 = vadd.f32 %v476, %v965
      %v1055 = vadd.f32 %v477, %v968
      %v1056 = vadd.f32 %v478, %v970
      %v1057 = vadd.f32 %v479, %v973
      %v1058 = vadd.f32 %v480, %v975
      %v1059 = vadd.f32 %v481, %v978
      %v1060 = vadd.f32 %v482, %v980
      %v1061 = vadd.f32 %v483, %v983
      %v1062 = vadd.f32 %v484, %v985
      %v1063 = vadd.f32 %v485, %v988
      %v1064 = vadd.f32 %v486, %v990
      %v1065 = vadd.f32 %v487, %v993
      %v1066 = vadd.f32 %v488, %v995
      %v1067 = vadd.f32 %v489, %v998
      %v1068 = vadd.f32 %v490, %v1000
      %v1069 = vadd.f32 %v491, %v1003
      %v1070 = vadd.f32 %v492, %v1005
      %1071 = vst [vmem:[#allocation2] sm:$0xff] %v1007
      %1072 = vst [vmem:[#allocation2 + $0x8] sm:$0xff] %v1008
      %1073 = vst [vmem:[#allocation2 + $0x10] sm:$0xff] %v1009
      %1074 = vst [vmem:[#allocation2 + $0x18] sm:$0xff] %v1010
      %1075 = vst [vmem:[#allocation2 + $0x20] sm:$0xff] %v1011
      %1076 = vst [vmem:[#allocation2 + $0x28] sm:$0xff] %v1012
      %1077 = vst [vmem:[#allocation2 + $0x30] sm:$0xff] %v1013
      %1078 = vst [vmem:[#allocation2 + $0x38] sm:$0xff] %v1014
      %1079 = vst [vmem:[#allocation2 + $0x40] sm:$0xff] %v1015
      %1080 = vst [vmem:[#allocation2 + $0x48] sm:$0xff] %v1016
      %1081 = vst [vmem:[#allocation2 + $0x50] sm:$0xff] %v1017
      %1082 = vst [vmem:[#allocation2 + $0x58] sm:$0xff] %v1018
      %1083 = vst [vmem:[#allocation2 + $0x60] sm:$0xff] %v1019
      %1084 = vst [vmem:[#allocation2 + $0x68] sm:$0xff] %v1020
      %1085 = vst [vmem:[#allocation2 + $0x70] sm:$0xff] %v1021
      %1086 = vst [vmem:[#allocation2 + $0x78] sm:$0xff] %v1022
      %1087 = vst [vmem:[#allocation2 + $0x80] sm:$0xff] %v1023
      %1088 = vst [vmem:[#allocation2 + $0x88] sm:$0xff] %v1024
      %1089 = vst [vmem:[#allocation2 + $0x90] sm:$0xff] %v1025
      %1090 = vst [vmem:[#allocation2 + $0x98] sm:$0xff] %v1026
      %1091 = vst [vmem:[#allocation2 + $0xa0] sm:$0xff] %v1027
      %1092 = vst [vmem:[#allocation2 + $0xa8] sm:$0xff] %v1028
      %1093 = vst [vmem:[#allocation2 + $0xb0] sm:$0xff] %v1029
      %1094 = vst [vmem:[#allocation2 + $0xb8] sm:$0xff] %v1030
      %1095 = vst [vmem:[#allocation2 + $0xc0] sm:$0xff] %v1031
      %1096 = vst [vmem:[#allocation2 + $0xc8] sm:$0xff] %v1032
      %1097 = vst [vmem:[#allocation2 + $0xd0] sm:$0xff] %v1033
      %1098 = vst [vmem:[#allocation2 + $0xd8] sm:$0xff] %v1034
      %1099 = vst [vmem:[#allocation2 + $0xe0] sm:$0xff] %v1035
      %1100 = vst [vmem:[#allocation2 + $0xe8] sm:$0xff] %v1036
      %1101 = vst [vmem:[#allocation2 + $0xf0] sm:$0xff] %v1037
      %1102 = vst [vmem:[#allocation2 + $0xf8] sm:$0xff] %v1038
      %1103 = vst [vmem:[#allocation2 + $0x100] sm:$0xff] %v1039
      %1104 = vst [vmem:[#allocation2 + $0x108] sm:$0xff] %v1040
      %1105 = vst [vmem:[#allocation2 + $0x110] sm:$0xff] %v1041
      %1106 = vst [vmem:[#allocation2 + $0x118] sm:$0xff] %v1042
      %1107 = vst [vmem:[#allocation2 + $0x120] sm:$0xff] %v1043
      %1108 = vst [vmem:[#allocation2 + $0x128] sm:$0xff] %v1044
      %1109 = vst [vmem:[#allocation2 + $0x130] sm:$0xff] %v1045
      %1110 = vst [vmem:[#allocation2 + $0x138] sm:$0xff] %v1046
      %1111 = vst [vmem:[#allocation2 + $0x140] sm:$0xff] %v1047
      %1112 = vst [vmem:[#allocation2 + $0x148] sm:$0xff] %v1048
      %1113 = vst [vmem:[#allocation2 + $0x150] sm:$0xff] %v1049
      %1114 = vst [vmem:[#allocation2 + $0x158] sm:$0xff] %v1050
      %1115 = vst [vmem:[#allocation2 + $0x160] sm:$0xff] %v1051
      %1116 = vst [vmem:[#allocation2 + $0x168] sm:$0xff] %v1052
      %1117 = vst [vmem:[#allocation2 + $0x170] sm:$0xff] %v1053
      %1118 = vst [vmem:[#allocation2 + $0x178] sm:$0xff] %v1054
      %1119 = vst [vmem:[#allocation2 + $0x180] sm:$0xff] %v1055
      %1120 = vst [vmem:[#allocation2 + $0x188] sm:$0xff] %v1056
      %1121 = vst [vmem:[#allocation2 + $0x190] sm:$0xff] %v1057
      %1122 = vst [vmem:[#allocation2 + $0x198] sm:$0xff] %v1058
      %1123 = vst [vmem:[#allocation2 + $0x1a0] sm:$0xff] %v1059
      %1124 = vst [vmem:[#allocation2 + $0x1a8] sm:$0xff] %v1060
      %1125 = vst [vmem:[#allocation2 + $0x1b0] sm:$0xff] %v1061
      %1126 = vst [vmem:[#allocation2 + $0x1b8] sm:$0xff] %v1062
      %1127 = vst [vmem:[#allocation2 + $0x1c0] sm:$0xff] %v1063
      %1128 = vst [vmem:[#allocation2 + $0x1c8] sm:$0xff] %v1064
      %1129 = vst [vmem:[#allocation2 + $0x1d0] sm:$0xff] %v1065
      %1130 = vst [vmem:[#allocation2 + $0x1d8] sm:$0xff] %v1066
      %1131 = vst [vmem:[#allocation2 + $0x1e0] sm:$0xff] %v1067
      %1132 = vst [vmem:[#allocation2 + $0x1e8] sm:$0xff] %v1068
      %1133 = vst [vmem:[#allocation2 + $0x1f0] sm:$0xff] %v1069
      %1134 = vst [vmem:[#allocation2 + $0x1f8] sm:$0xff] %v1070
      // Predicated region
      $region45: #{resnet_forward.9} parent=39 // pred_check
        %p1135 = pneg %p361
      $region46: #{resnet_forward.9} parent=39 // pred_check_branch
        %1137 = sbr.rel (%p1135) target = $region48
      $region47: #{resnet_forward.9} parent=39 // pred_region
        %v1138 = vld [vmem:[#allocation2] sm:$0xff]
        %v1139 = vld [vmem:[#allocation2 + $0x8] sm:$0xff]
        %v1140 = vld [vmem:[#allocation2 + $0x10] sm:$0xff]
        %v1141 = vld [vmem:[#allocation2 + $0x18] sm:$0xff]
        %v1142 = vld [vmem:[#allocation2 + $0x20] sm:$0xff]
        %v1143 = vld [vmem:[#allocation2 + $0x28] sm:$0xff]
        %v1144 = vld [vmem:[#allocation2 + $0x30] sm:$0xff]
        %v1145 = vld [vmem:[#allocation2 + $0x38] sm:$0xff]
        %v1146 = vld [vmem:[#allocation2 + $0x40] sm:$0xff]
        %v1147 = vld [vmem:[#allocation2 + $0x48] sm:$0xff]
        %v1148 = vld [vmem:[#allocation2 + $0x50] sm:$0xff]
        %v1149 = vld [vmem:[#allocation2 + $0x58] sm:$0xff]
        %v1150 = vld [vmem:[#allocation2 + $0x60] sm:$0xff]
        %v1151 = vld [vmem:[#allocation2 + $0x68] sm:$0xff]
        %v1152 = vld [vmem:[#allocation2 + $0x70] sm:$0xff]
        %v1153 = vld [vmem:[#allocation2 + $0x78] sm:$0xff]
        %v1154 = vld [vmem:[#allocation2 + $0x80] sm:$0xff]
        %v1155 = vld [vmem:[#allocation2 + $0x88] sm:$0xff]
        %v1156 = vld [vmem:[#allocation2 + $0x90] sm:$0xff]
        %v1157 = vld [vmem:[#allocation2 + $0x98] sm:$0xff]
        %v1158 = vld [vmem:[#allocation2 + $0xa0] sm:$0xff]
        %v1159 = vld [vmem:[#allocation2 + $0xa8] sm:$0xff]
        %v1160 = vld [vmem:[#allocation2 + $0xb0] sm:$0xff]
        %v1161 = vld [vmem:[#allocation2 + $0xb8] sm:$0xff]
        %v1162 = vld [vmem:[#allocation2 + $0xc0] sm:$0xff]
        %v1163 = vld [vmem:[#allocation2 + $0xc8] sm:$0xff]
        %v1164 = vld [vmem:[#allocation2 + $0xd0] sm:$0xff]
        %v1165 = vld [vmem:[#allocation2 + $0xd8] sm:$0xff]
        %v1166 = vld [vmem:[#allocation2 + $0xe0] sm:$0xff]
        %v1167 = vld [vmem:[#allocation2 + $0xe8] sm:$0xff]
        %v1168 = vld [vmem:[#allocation2 + $0xf0] sm:$0xff]
        %v1169 = vld [vmem:[#allocation2 + $0xf8] sm:$0xff]
        %v1170 = vld [vmem:[#allocation2 + $0x100] sm:$0xff]
        %v1171 = vld [vmem:[#allocation2 + $0x108] sm:$0xff]
        %v1172 = vld [vmem:[#allocation2 + $0x110] sm:$0xff]
        %v1173 = vld [vmem:[#allocation2 + $0x118] sm:$0xff]
        %v1174 = vld [vmem:[#allocation2 + $0x120] sm:$0xff]
        %v1175 = vld [vmem:[#allocation2 + $0x128] sm:$0xff]
        %v1176 = vld [vmem:[#allocation2 + $0x130] sm:$0xff]
        %v1177 = vld [vmem:[#allocation2 + $0x138] sm:$0xff]
        %v1178 = vld [vmem:[#allocation2 + $0x140] sm:$0xff]
        %v1179 = vld [vmem:[#allocation2 + $0x148] sm:$0xff]
        %v1180 = vld [vmem:[#allocation2 + $0x150] sm:$0xff]
        %v1181 = vld [vmem:[#allocation2 + $0x158] sm:$0xff]
        %v1182 = vld [vmem:[#allocation2 + $0x160] sm:$0xff]
        %v1183 = vld [vmem:[#allocation2 + $0x168] sm:$0xff]
        %v1184 = vld [vmem:[#allocation2 + $0x170] sm:$0xff]
        %v1185 = vld [vmem:[#allocation2 + $0x178] sm:$0xff]
        %v1186 = vld [vmem:[#allocation2 + $0x180] sm:$0xff]
        %v1187 = vld [vmem:[#allocation2 + $0x188] sm:$0xff]
        %v1188 = vld [vmem:[#allocation2 + $0x190] sm:$0xff]
        %v1189 = vld [vmem:[#allocation2 + $0x198] sm:$0xff]
        %v1190 = vld [vmem:[#allocation2 + $0x1a0] sm:$0xff]
        %v1191 = vld [vmem:[#allocation2 + $0x1a8] sm:$0xff]
        %v1192 = vld [vmem:[#allocation2 + $0x1b0] sm:$0xff]
        %v1193 = vld [vmem:[#allocation2 + $0x1b8] sm:$0xff]
        %v1194 = vld [vmem:[#allocation2 + $0x1c0] sm:$0xff]
        %v1195 = vld [vmem:[#allocation2 + $0x1c8] sm:$0xff]
        %v1196 = vld [vmem:[#allocation2 + $0x1d0] sm:$0xff]
        %v1197 = vld [vmem:[#allocation2 + $0x1d8] sm:$0xff]
        %v1198 = vld [vmem:[#allocation2 + $0x1e0] sm:$0xff]
        %v1199 = vld [vmem:[#allocation2 + $0x1e8] sm:$0xff]
        %v1200 = vld [vmem:[#allocation2 + $0x1f0] sm:$0xff]
        %v1201 = vld [vmem:[#allocation2 + $0x1f8] sm:$0xff]
        %v1202 = vld [vmem:[%s338] sm:$0x1]
        %v1204 = vperm.slane %v1202, 0
        %v1206 = vmul.f32 %v1138, %v1204
        %v1207 = vmul.f32 %v1139, %v1204
        %v1208 = vmul.f32 %v1140, %v1204
        %v1209 = vmul.f32 %v1141, %v1204
        %v1210 = vmul.f32 %v1142, %v1204
        %v1211 = vmul.f32 %v1143, %v1204
        %v1212 = vmul.f32 %v1144, %v1204
        %v1213 = vmul.f32 %v1145, %v1204
        %v1214 = vmul.f32 %v1146, %v1204
        %v1215 = vmul.f32 %v1147, %v1204
        %v1216 = vmul.f32 %v1148, %v1204
        %v1217 = vmul.f32 %v1149, %v1204
        %v1218 = vmul.f32 %v1150, %v1204
        %v1219 = vmul.f32 %v1151, %v1204
        %v1220 = vmul.f32 %v1152, %v1204
        %v1221 = vmul.f32 %v1153, %v1204
        %v1222 = vmul.f32 %v1154, %v1204
        %v1223 = vmul.f32 %v1155, %v1204
        %v1224 = vmul.f32 %v1156, %v1204
        %v1225 = vmul.f32 %v1157, %v1204
        %v1226 = vmul.f32 %v1158, %v1204
        %v1227 = vmul.f32 %v1159, %v1204
        %v1228 = vmul.f32 %v1160, %v1204
        %v1229 = vmul.f32 %v1161, %v1204
        %v1230 = vmul.f32 %v1162, %v1204
        %v1231 = vmul.f32 %v1163, %v1204
        %v1232 = vmul.f32 %v1164, %v1204
        %v1233 = vmul.f32 %v1165, %v1204
        %v1234 = vmul.f32 %v1166, %v1204
        %v1235 = vmul.f32 %v1167, %v1204
        %v1236 = vmul.f32 %v1168, %v1204
        %v1237 = vmul.f32 %v1169, %v1204
        %v1238 = vmul.f32 %v1170, %v1204
        %v1239 = vmul.f32 %v1171, %v1204
        %v1240 = vmul.f32 %v1172, %v1204
        %v1241 = vmul.f32 %v1173, %v1204
        %v1242 = vmul.f32 %v1174, %v1204
        %v1243 = vmul.f32 %v1175, %v1204
        %v1244 = vmul.f32 %v1176, %v1204
        %v1245 = vmul.f32 %v1177, %v1204
        %v1246 = vmul.f32 %v1178, %v1204
        %v1247 = vmul.f32 %v1179, %v1204
        %v1248 = vmul.f32 %v1180, %v1204
        %v1249 = vmul.f32 %v1181, %v1204
        %v1250 = vmul.f32 %v1182, %v1204
        %v1251 = vmul.f32 %v1183, %v1204
        %v1252 = vmul.f32 %v1184, %v1204
        %v1253 = vmul.f32 %v1185, %v1204
        %v1254 = vmul.f32 %v1186, %v1204
        %v1255 = vmul.f32 %v1187, %v1204
        %v1256 = vmul.f32 %v1188, %v1204
        %v1257 = vmul.f32 %v1189, %v1204
        %v1258 = vmul.f32 %v1190, %v1204
        %v1259 = vmul.f32 %v1191, %v1204
        %v1260 = vmul.f32 %v1192, %v1204
        %v1261 = vmul.f32 %v1193, %v1204
        %v1262 = vmul.f32 %v1194, %v1204
        %v1263 = vmul.f32 %v1195, %v1204
        %v1264 = vmul.f32 %v1196, %v1204
        %v1265 = vmul.f32 %v1197, %v1204
        %v1266 = vmul.f32 %v1198, %v1204
        %v1267 = vmul.f32 %v1199, %v1204
        %v1268 = vmul.f32 %v1200, %v1204
        %v1269 = vmul.f32 %v1201, %v1204
        %v1270 = vld [vmem:[%s341] sm:$0x1]
        %v1272 = vperm.slane %v1270, 0
        %v1274 = vadd.f32 %v1206, %v1272
        %v1275 = vadd.f32 %v1207, %v1272
        %v1276 = vadd.f32 %v1208, %v1272
        %v1277 = vadd.f32 %v1209, %v1272
        %v1278 = vadd.f32 %v1210, %v1272
        %v1279 = vadd.f32 %v1211, %v1272
        %v1280 = vadd.f32 %v1212, %v1272
        %v1281 = vadd.f32 %v1213, %v1272
        %v1282 = vadd.f32 %v1214, %v1272
        %v1283 = vadd.f32 %v1215, %v1272
        %v1284 = vadd.f32 %v1216, %v1272
        %v1285 = vadd.f32 %v1217, %v1272
        %v1286 = vadd.f32 %v1218, %v1272
        %v1287 = vadd.f32 %v1219, %v1272
        %v1288 = vadd.f32 %v1220, %v1272
        %v1289 = vadd.f32 %v1221, %v1272
        %v1290 = vadd.f32 %v1222, %v1272
        %v1291 = vadd.f32 %v1223, %v1272
        %v1292 = vadd.f32 %v1224, %v1272
        %v1293 = vadd.f32 %v1225, %v1272
        %v1294 = vadd.f32 %v1226, %v1272
        %v1295 = vadd.f32 %v1227, %v1272
        %v1296 = vadd.f32 %v1228, %v1272
        %v1297 = vadd.f32 %v1229, %v1272
        %v1298 = vadd.f32 %v1230, %v1272
        %v1299 = vadd.f32 %v1231, %v1272
        %v1300 = vadd.f32 %v1232, %v1272
        %v1301 = vadd.f32 %v1233, %v1272
        %v1302 = vadd.f32 %v1234, %v1272
        %v1303 = vadd.f32 %v1235, %v1272
        %v1304 = vadd.f32 %v1236, %v1272
        %v1305 = vadd.f32 %v1237, %v1272
        %v1306 = vadd.f32 %v1238, %v1272
        %v1307 = vadd.f32 %v1239, %v1272
        %v1308 = vadd.f32 %v1240, %v1272
        %v1309 = vadd.f32 %v1241, %v1272
        %v1310 = vadd.f32 %v1242, %v1272
        %v1311 = vadd.f32 %v1243, %v1272
        %v1312 = vadd.f32 %v1244, %v1272
        %v1313 = vadd.f32 %v1245, %v1272
        %v1314 = vadd.f32 %v1246, %v1272
        %v1315 = vadd.f32 %v1247, %v1272
        %v1316 = vadd.f32 %v1248, %v1272
        %v1317 = vadd.f32 %v1249, %v1272
        %v1318 = vadd.f32 %v1250, %v1272
        %v1319 = vadd.f32 %v1251, %v1272
        %v1320 = vadd.f32 %v1252, %v1272
        %v1321 = vadd.f32 %v1253, %v1272
        %v1322 = vadd.f32 %v1254, %v1272
        %v1323 = vadd.f32 %v1255, %v1272
        %v1324 = vadd.f32 %v1256, %v1272
        %v1325 = vadd.f32 %v1257, %v1272
        %v1326 = vadd.f32 %v1258, %v1272
        %v1327 = vadd.f32 %v1259, %v1272
        %v1328 = vadd.f32 %v1260, %v1272
        %v1329 = vadd.f32 %v1261, %v1272
        %v1330 = vadd.f32 %v1262, %v1272
        %v1331 = vadd.f32 %v1263, %v1272
        %v1332 = vadd.f32 %v1264, %v1272
        %v1333 = vadd.f32 %v1265, %v1272
        %v1334 = vadd.f32 %v1266, %v1272
        %v1335 = vadd.f32 %v1267, %v1272
        %v1336 = vadd.f32 %v1268, %v1272
        %v1337 = vadd.f32 %v1269, %v1272
        %v1338 = vld [vmem:[%s349] sm:$0xf]
        %v1339 = vld [vmem:[%s349 + $0x4] sm:$0xf]
        %v1340 = vld [vmem:[%s349 + $0x8] sm:$0xf]
        %v1341 = vld [vmem:[%s349 + $0xc] sm:$0xf]
        %v1342 = vld [vmem:[%s349 + $0x10] sm:$0xf]
        %v1343 = vld [vmem:[%s349 + $0x14] sm:$0xf]
        %v1344 = vld [vmem:[%s349 + $0x18] sm:$0xf]
        %v1345 = vld [vmem:[%s349 + $0x1c] sm:$0xf]
        %v1346 = vld [vmem:[%s349 + $0x20] sm:$0xf]
        %v1347 = vld [vmem:[%s349 + $0x24] sm:$0xf]
        %v1348 = vld [vmem:[%s349 + $0x28] sm:$0xf]
        %v1349 = vld [vmem:[%s349 + $0x2c] sm:$0xf]
        %v1350 = vld [vmem:[%s349 + $0x30] sm:$0xf]
        %v1351 = vld [vmem:[%s349 + $0x34] sm:$0xf]
        %v1352 = vld [vmem:[%s349 + $0x38] sm:$0xf]
        %v1353 = vld [vmem:[%s349 + $0x3c] sm:$0xf]
        %v1354 = vld [vmem:[%s349 + $0x40] sm:$0xf]
        %v1355 = vld [vmem:[%s349 + $0x44] sm:$0xf]
        %v1356 = vld [vmem:[%s349 + $0x48] sm:$0xf]
        %v1357 = vld [vmem:[%s349 + $0x4c] sm:$0xf]
        %v1358 = vld [vmem:[%s349 + $0x50] sm:$0xf]
        %v1359 = vld [vmem:[%s349 + $0x54] sm:$0xf]
        %v1360 = vld [vmem:[%s349 + $0x58] sm:$0xf]
        %v1361 = vld [vmem:[%s349 + $0x5c] sm:$0xf]
        %v1362 = vld [vmem:[%s349 + $0x60] sm:$0xf]
        %v1363 = vld [vmem:[%s349 + $0x64] sm:$0xf]
        %v1364 = vld [vmem:[%s349 + $0x68] sm:$0xf]
        %v1365 = vld [vmem:[%s349 + $0x6c] sm:$0xf]
        %v1366 = vld [vmem:[%s349 + $0x70] sm:$0xf]
        %v1367 = vld [vmem:[%s349 + $0x74] sm:$0xf]
        %v1368 = vld [vmem:[%s349 + $0x78] sm:$0xf]
        %v1369 = vld [vmem:[%s349 + $0x7c] sm:$0xf]
        %v1370 = vld [vmem:[%s349 + $0x80] sm:$0xf]
        %v1371 = vld [vmem:[%s349 + $0x84] sm:$0xf]
        %v1372 = vld [vmem:[%s349 + $0x88] sm:$0xf]
        %v1373 = vld [vmem:[%s349 + $0x8c] sm:$0xf]
        %v1374 = vld [vmem:[%s349 + $0x90] sm:$0xf]
        %v1375 = vld [vmem:[%s349 + $0x94] sm:$0xf]
        %v1376 = vld [vmem:[%s349 + $0x98] sm:$0xf]
        %v1377 = vld [vmem:[%s349 + $0x9c] sm:$0xf]
        %v1378 = vld [vmem:[%s349 + $0xa0] sm:$0xf]
        %v1379 = vld [vmem:[%s349 + $0xa4] sm:$0xf]
        %v1380 = vld [vmem:[%s349 + $0xa8] sm:$0xf]
        %v1381 = vld [vmem:[%s349 + $0xac] sm:$0xf]
        %v1382 = vld [vmem:[%s349 + $0xb0] sm:$0xf]
        %v1383 = vld [vmem:[%s349 + $0xb4] sm:$0xf]
        %v1384 = vld [vmem:[%s349 + $0xb8] sm:$0xf]
        %v1385 = vld [vmem:[%s349 + $0xbc] sm:$0xf]
        %v1386 = vld [vmem:[%s349 + $0xc0] sm:$0xf]
        %v1387 = vld [vmem:[%s349 + $0xc4] sm:$0xf]
        %v1388 = vld [vmem:[%s349 + $0xc8] sm:$0xf]
        %v1389 = vld [vmem:[%s349 + $0xcc] sm:$0xf]
        %v1390 = vld [vmem:[%s349 + $0xd0] sm:$0xf]
        %v1391 = vld [vmem:[%s349 + $0xd4] sm:$0xf]
        %v1392 = vld [vmem:[%s349 + $0xd8] sm:$0xf]
        %v1393 = vld [vmem:[%s349 + $0xdc] sm:$0xf]
        %v1394 = vld [vmem:[%s349 + $0xe0] sm:$0xf]
        %v1395 = vld [vmem:[%s349 + $0xe4] sm:$0xf]
        %v1396 = vld [vmem:[%s349 + $0xe8] sm:$0xf]
        %v1397 = vld [vmem:[%s349 + $0xec] sm:$0xf]
        %v1398 = vld [vmem:[%s349 + $0xf0] sm:$0xf]
        %v1399 = vld [vmem:[%s349 + $0xf4] sm:$0xf]
        %v1400 = vld [vmem:[%s349 + $0xf8] sm:$0xf]
        %v1401 = vld [vmem:[%s349 + $0xfc] sm:$0xf]
        %v1402 = vunpack.c.l.bf16 %v1338
        %v1403 = vunpack.c.l.bf16 %v1339
        %v1404 = vunpack.c.l.bf16 %v1340
        %v1405 = vunpack.c.l.bf16 %v1341
        %v1406 = vunpack.c.l.bf16 %v1342
        %v1407 = vunpack.c.l.bf16 %v1343
        %v1408 = vunpack.c.l.bf16 %v1344
        %v1409 = vunpack.c.l.bf16 %v1345
        %v1410 = vunpack.c.l.bf16 %v1346
        %v1411 = vunpack.c.l.bf16 %v1347
        %v1412 = vunpack.c.l.bf16 %v1348
        %v1413 = vunpack.c.l.bf16 %v1349
        %v1414 = vunpack.c.l.bf16 %v1350
        %v1415 = vunpack.c.l.bf16 %v1351
        %v1416 = vunpack.c.l.bf16 %v1352
        %v1417 = vunpack.c.l.bf16 %v1353
        %v1418 = vunpack.c.l.bf16 %v1354
        %v1419 = vunpack.c.l.bf16 %v1355
        %v1420 = vunpack.c.l.bf16 %v1356
        %v1421 = vunpack.c.l.bf16 %v1357
        %v1422 = vunpack.c.l.bf16 %v1358
        %v1423 = vunpack.c.l.bf16 %v1359
        %v1424 = vunpack.c.l.bf16 %v1360
        %v1425 = vunpack.c.l.bf16 %v1361
        %v1426 = vunpack.c.l.bf16 %v1362
        %v1427 = vunpack.c.l.bf16 %v1363
        %v1428 = vunpack.c.l.bf16 %v1364
        %v1429 = vunpack.c.l.bf16 %v1365
        %v1430 = vunpack.c.l.bf16 %v1366
        %v1431 = vunpack.c.l.bf16 %v1367
        %v1432 = vunpack.c.l.bf16 %v1368
        %v1433 = vunpack.c.l.bf16 %v1369
        %v1434 = vunpack.c.l.bf16 %v1370
        %v1435 = vunpack.c.l.bf16 %v1371
        %v1436 = vunpack.c.l.bf16 %v1372
        %v1437 = vunpack.c.l.bf16 %v1373
        %v1438 = vunpack.c.l.bf16 %v1374
        %v1439 = vunpack.c.l.bf16 %v1375
        %v1440 = vunpack.c.l.bf16 %v1376
        %v1441 = vunpack.c.l.bf16 %v1377
        %v1442 = vunpack.c.l.bf16 %v1378
        %v1443 = vunpack.c.l.bf16 %v1379
        %v1444 = vunpack.c.l.bf16 %v1380
        %v1445 = vunpack.c.l.bf16 %v1381
        %v1446 = vunpack.c.l.bf16 %v1382
        %v1447 = vunpack.c.l.bf16 %v1383
        %v1448 = vunpack.c.l.bf16 %v1384
        %v1449 = vunpack.c.l.bf16 %v1385
        %v1450 = vunpack.c.l.bf16 %v1386
        %v1451 = vunpack.c.l.bf16 %v1387
        %v1452 = vunpack.c.l.bf16 %v1388
        %v1453 = vunpack.c.l.bf16 %v1389
        %v1454 = vunpack.c.l.bf16 %v1390
        %v1455 = vunpack.c.l.bf16 %v1391
        %v1456 = vunpack.c.l.bf16 %v1392
        %v1457 = vunpack.c.l.bf16 %v1393
        %v1458 = vunpack.c.l.bf16 %v1394
        %v1459 = vunpack.c.l.bf16 %v1395
        %v1460 = vunpack.c.l.bf16 %v1396
        %v1461 = vunpack.c.l.bf16 %v1397
        %v1462 = vunpack.c.l.bf16 %v1398
        %v1463 = vunpack.c.l.bf16 %v1399
        %v1464 = vunpack.c.l.bf16 %v1400
        %v1465 = vunpack.c.l.bf16 %v1401
        %v1466 = vadd.f32 %v1274, %v1402
        %v1467 = vadd.f32 %v1275, %v1403
        %v1468 = vadd.f32 %v1276, %v1404
        %v1469 = vadd.f32 %v1277, %v1405
        %v1470 = vadd.f32 %v1278, %v1406
        %v1471 = vadd.f32 %v1279, %v1407
        %v1472 = vadd.f32 %v1280, %v1408
        %v1473 = vadd.f32 %v1281, %v1409
        %v1474 = vadd.f32 %v1282, %v1410
        %v1475 = vadd.f32 %v1283, %v1411
        %v1476 = vadd.f32 %v1284, %v1412
        %v1477 = vadd.f32 %v1285, %v1413
        %v1478 = vadd.f32 %v1286, %v1414
        %v1479 = vadd.f32 %v1287, %v1415
        %v1480 = vadd.f32 %v1288, %v1416
        %v1481 = vadd.f32 %v1289, %v1417
        %v1482 = vadd.f32 %v1290, %v1418
        %v1483 = vadd.f32 %v1291, %v1419
        %v1484 = vadd.f32 %v1292, %v1420
        %v1485 = vadd.f32 %v1293, %v1421
        %v1486 = vadd.f32 %v1294, %v1422
        %v1487 = vadd.f32 %v1295, %v1423
        %v1488 = vadd.f32 %v1296, %v1424
        %v1489 = vadd.f32 %v1297, %v1425
        %v1490 = vadd.f32 %v1298, %v1426
        %v1491 = vadd.f32 %v1299, %v1427
        %v1492 = vadd.f32 %v1300, %v1428
        %v1493 = vadd.f32 %v1301, %v1429
        %v1494 = vadd.f32 %v1302, %v1430
        %v1495 = vadd.f32 %v1303, %v1431
        %v1496 = vadd.f32 %v1304, %v1432
        %v1497 = vadd.f32 %v1305, %v1433
        %v1498 = vadd.f32 %v1306, %v1434
        %v1499 = vadd.f32 %v1307, %v1435
        %v1500 = vadd.f32 %v1308, %v1436
        %v1501 = vadd.f32 %v1309, %v1437
        %v1502 = vadd.f32 %v1310, %v1438
        %v1503 = vadd.f32 %v1311, %v1439
        %v1504 = vadd.f32 %v1312, %v1440
        %v1505 = vadd.f32 %v1313, %v1441
        %v1506 = vadd.f32 %v1314, %v1442
        %v1507 = vadd.f32 %v1315, %v1443
        %v1508 = vadd.f32 %v1316, %v1444
        %v1509 = vadd.f32 %v1317, %v1445
        %v1510 = vadd.f32 %v1318, %v1446
        %v1511 = vadd.f32 %v1319, %v1447
        %v1512 = vadd.f32 %v1320, %v1448
        %v1513 = vadd.f32 %v1321, %v1449
        %v1514 = vadd.f32 %v1322, %v1450
        %v1515 = vadd.f32 %v1323, %v1451
        %v1516 = vadd.f32 %v1324, %v1452
        %v1517 = vadd.f32 %v1325, %v1453
        %v1518 = vadd.f32 %v1326, %v1454
        %v1519 = vadd.f32 %v1327, %v1455
        %v1520 = vadd.f32 %v1328, %v1456
        %v1521 = vadd.f32 %v1329, %v1457
        %v1522 = vadd.f32 %v1330, %v1458
        %v1523 = vadd.f32 %v1331, %v1459
        %v1524 = vadd.f32 %v1332, %v1460
        %v1525 = vadd.f32 %v1333, %v1461
        %v1526 = vadd.f32 %v1334, %v1462
        %v1527 = vadd.f32 %v1335, %v1463
        %v1528 = vadd.f32 %v1336, %v1464
        %v1529 = vadd.f32 %v1337, %v1465
        %v1530 = vmax.f32 %v1466, 0.0
        %v1531 = vmax.f32 %v1467, 0.0
        %v1532 = vmax.f32 %v1468, 0.0
        %v1533 = vmax.f32 %v1469, 0.0
        %v1534 = vmax.f32 %v1470, 0.0
        %v1535 = vmax.f32 %v1471, 0.0
        %v1536 = vmax.f32 %v1472, 0.0
        %v1537 = vmax.f32 %v1473, 0.0
        %v1538 = vmax.f32 %v1474, 0.0
        %v1539 = vmax.f32 %v1475, 0.0
        %v1540 = vmax.f32 %v1476, 0.0
        %v1541 = vmax.f32 %v1477, 0.0
        %v1542 = vmax.f32 %v1478, 0.0
        %v1543 = vmax.f32 %v1479, 0.0
        %v1544 = vmax.f32 %v1480, 0.0
        %v1545 = vmax.f32 %v1481, 0.0
        %v1546 = vmax.f32 %v1482, 0.0
        %v1547 = vmax.f32 %v1483, 0.0
        %v1548 = vmax.f32 %v1484, 0.0
        %v1549 = vmax.f32 %v1485, 0.0
        %v1550 = vmax.f32 %v1486, 0.0
        %v1551 = vmax.f32 %v1487, 0.0
        %v1552 = vmax.f32 %v1488, 0.0
        %v1553 = vmax.f32 %v1489, 0.0
        %v1554 = vmax.f32 %v1490, 0.0
        %v1555 = vmax.f32 %v1491, 0.0
        %v1556 = vmax.f32 %v1492, 0.0
        %v1557 = vmax.f32 %v1493, 0.0
        %v1558 = vmax.f32 %v1494, 0.0
        %v1559 = vmax.f32 %v1495, 0.0
        %v1560 = vmax.f32 %v1496, 0.0
        %v1561 = vmax.f32 %v1497, 0.0
        %v1562 = vmax.f32 %v1498, 0.0
        %v1563 = vmax.f32 %v1499, 0.0
        %v1564 = vmax.f32 %v1500, 0.0
        %v1565 = vmax.f32 %v1501, 0.0
        %v1566 = vmax.f32 %v1502, 0.0
        %v1567 = vmax.f32 %v1503, 0.0
        %v1568 = vmax.f32 %v1504, 0.0
        %v1569 = vmax.f32 %v1505, 0.0
        %v1570 = vmax.f32 %v1506, 0.0
        %v1571 = vmax.f32 %v1507, 0.0
        %v1572 = vmax.f32 %v1508, 0.0
        %v1573 = vmax.f32 %v1509, 0.0
        %v1574 = vmax.f32 %v1510, 0.0
        %v1575 = vmax.f32 %v1511, 0.0
        %v1576 = vmax.f32 %v1512, 0.0
        %v1577 = vmax.f32 %v1513, 0.0
        %v1578 = vmax.f32 %v1514, 0.0
        %v1579 = vmax.f32 %v1515, 0.0
        %v1580 = vmax.f32 %v1516, 0.0
        %v1581 = vmax.f32 %v1517, 0.0
        %v1582 = vmax.f32 %v1518, 0.0
        %v1583 = vmax.f32 %v1519, 0.0
        %v1584 = vmax.f32 %v1520, 0.0
        %v1585 = vmax.f32 %v1521, 0.0
        %v1586 = vmax.f32 %v1522, 0.0
        %v1587 = vmax.f32 %v1523, 0.0
        %v1588 = vmax.f32 %v1524, 0.0
        %v1589 = vmax.f32 %v1525, 0.0
        %v1590 = vmax.f32 %v1526, 0.0
        %v1591 = vmax.f32 %v1527, 0.0
        %v1592 = vmax.f32 %v1528, 0.0
        %v1593 = vmax.f32 %v1529, 0.0
        %v1594 = vpack.c.bf16 %v1530, %v1530
        %v1595 = vpack.c.bf16 %v1531, %v1531
        %v1596 = vpack.c.bf16 %v1532, %v1532
        %v1597 = vpack.c.bf16 %v1533, %v1533
        %v1598 = vpack.c.bf16 %v1534, %v1534
        %v1599 = vpack.c.bf16 %v1535, %v1535
        %v1600 = vpack.c.bf16 %v1536, %v1536
        %v1601 = vpack.c.bf16 %v1537, %v1537
        %v1602 = vpack.c.bf16 %v1538, %v1538
        %v1603 = vpack.c.bf16 %v1539, %v1539
        %v1604 = vpack.c.bf16 %v1540, %v1540
        %v1605 = vpack.c.bf16 %v1541, %v1541
        %v1606 = vpack.c.bf16 %v1542, %v1542
        %v1607 = vpack.c.bf16 %v1543, %v1543
        %v1608 = vpack.c.bf16 %v1544, %v1544
        %v1609 = vpack.c.bf16 %v1545, %v1545
        %v1610 = vpack.c.bf16 %v1546, %v1546
        %v1611 = vpack.c.bf16 %v1547, %v1547
        %v1612 = vpack.c.bf16 %v1548, %v1548
        %v1613 = vpack.c.bf16 %v1549, %v1549
        %v1614 = vpack.c.bf16 %v1550, %v1550
        %v1615 = vpack.c.bf16 %v1551, %v1551
        %v1616 = vpack.c.bf16 %v1552, %v1552
        %v1617 = vpack.c.bf16 %v1553, %v1553
        %v1618 = vpack.c.bf16 %v1554, %v1554
        %v1619 = vpack.c.bf16 %v1555, %v1555
        %v1620 = vpack.c.bf16 %v1556, %v1556
        %v1621 = vpack.c.bf16 %v1557, %v1557
        %v1622 = vpack.c.bf16 %v1558, %v1558
        %v1623 = vpack.c.bf16 %v1559, %v1559
        %v1624 = vpack.c.bf16 %v1560, %v1560
        %v1625 = vpack.c.bf16 %v1561, %v1561
        %v1626 = vpack.c.bf16 %v1562, %v1562
        %v1627 = vpack.c.bf16 %v1563, %v1563
        %v1628 = vpack.c.bf16 %v1564, %v1564
        %v1629 = vpack.c.bf16 %v1565, %v1565
        %v1630 = vpack.c.bf16 %v1566, %v1566
        %v1631 = vpack.c.bf16 %v1567, %v1567
        %v1632 = vpack.c.bf16 %v1568, %v1568
        %v1633 = vpack.c.bf16 %v1569, %v1569
        %v1634 = vpack.c.bf16 %v1570, %v1570
        %v1635 = vpack.c.bf16 %v1571, %v1571
        %v1636 = vpack.c.bf16 %v1572, %v1572
        %v1637 = vpack.c.bf16 %v1573, %v1573
        %v1638 = vpack.c.bf16 %v1574, %v1574
        %v1639 = vpack.c.bf16 %v1575, %v1575
        %v1640 = vpack.c.bf16 %v1576, %v1576
        %v1641 = vpack.c.bf16 %v1577, %v1577
        %v1642 = vpack.c.bf16 %v1578, %v1578
        %v1643 = vpack.c.bf16 %v1579, %v1579
        %v1644 = vpack.c.bf16 %v1580, %v1580
        %v1645 = vpack.c.bf16 %v1581, %v1581
        %v1646 = vpack.c.bf16 %v1582, %v1582
        %v1647 = vpack.c.bf16 %v1583, %v1583
        %v1648 = vpack.c.bf16 %v1584, %v1584
        %v1649 = vpack.c.bf16 %v1585, %v1585
        %v1650 = vpack.c.bf16 %v1586, %v1586
        %v1651 = vpack.c.bf16 %v1587, %v1587
        %v1652 = vpack.c.bf16 %v1588, %v1588
        %v1653 = vpack.c.bf16 %v1589, %v1589
        %v1654 = vpack.c.bf16 %v1590, %v1590
        %v1655 = vpack.c.bf16 %v1591, %v1591
        %v1656 = vpack.c.bf16 %v1592, %v1592
        %v1657 = vpack.c.bf16 %v1593, %v1593
        %1658 = vst [vmem:[%s358] sm:$0xf] %v1594
        %1659 = vst [vmem:[%s358 + $0x4] sm:$0xf] %v1595
        %1660 = vst [vmem:[%s358 + $0x8] sm:$0xf] %v1596
        %1661 = vst [vmem:[%s358 + $0xc] sm:$0xf] %v1597
        %1662 = vst [vmem:[%s358 + $0x10] sm:$0xf] %v1598
        %1663 = vst [vmem:[%s358 + $0x14] sm:$0xf] %v1599
        %1664 = vst [vmem:[%s358 + $0x18] sm:$0xf] %v1600
        %1665 = vst [vmem:[%s358 + $0x1c] sm:$0xf] %v1601
        %1666 = vst [vmem:[%s358 + $0x20] sm:$0xf] %v1602
        %1667 = vst [vmem:[%s358 + $0x24] sm:$0xf] %v1603
        %1668 = vst [vmem:[%s358 + $0x28] sm:$0xf] %v1604
        %1669 = vst [vmem:[%s358 + $0x2c] sm:$0xf] %v1605
        %1670 = vst [vmem:[%s358 + $0x30] sm:$0xf] %v1606
        %1671 = vst [vmem:[%s358 + $0x34] sm:$0xf] %v1607
        %1672 = vst [vmem:[%s358 + $0x38] sm:$0xf] %v1608
        %1673 = vst [vmem:[%s358 + $0x3c] sm:$0xf] %v1609
        %1674 = vst [vmem:[%s358 + $0x40] sm:$0xf] %v1610
        %1675 = vst [vmem:[%s358 + $0x44] sm:$0xf] %v1611
        %1676 = vst [vmem:[%s358 + $0x48] sm:$0xf] %v1612
        %1677 = vst [vmem:[%s358 + $0x4c] sm:$0xf] %v1613
        %1678 = vst [vmem:[%s358 + $0x50] sm:$0xf] %v1614
        %1679 = vst [vmem:[%s358 + $0x54] sm:$0xf] %v1615
        %1680 = vst [vmem:[%s358 + $0x58] sm:$0xf] %v1616
        %1681 = vst [vmem:[%s358 + $0x5c] sm:$0xf] %v1617
        %1682 = vst [vmem:[%s358 + $0x60] sm:$0xf] %v1618
        %1683 = vst [vmem:[%s358 + $0x64] sm:$0xf] %v1619
        %1684 = vst [vmem:[%s358 + $0x68] sm:$0xf] %v1620
        %1685 = vst [vmem:[%s358 + $0x6c] sm:$0xf] %v1621
        %1686 = vst [vmem:[%s358 + $0x70] sm:$0xf] %v1622
        %1687 = vst [vmem:[%s358 + $0x74] sm:$0xf] %v1623
        %1688 = vst [vmem:[%s358 + $0x78] sm:$0xf] %v1624
        %1689 = vst [vmem:[%s358 + $0x7c] sm:$0xf] %v1625
        %1690 = vst [vmem:[%s358 + $0x80] sm:$0xf] %v1626
        %1691 = vst [vmem:[%s358 + $0x84] sm:$0xf] %v1627
        %1692 = vst [vmem:[%s358 + $0x88] sm:$0xf] %v1628
        %1693 = vst [vmem:[%s358 + $0x8c] sm:$0xf] %v1629
        %1694 = vst [vmem:[%s358 + $0x90] sm:$0xf] %v1630
        %1695 = vst [vmem:[%s358 + $0x94] sm:$0xf] %v1631
        %1696 = vst [vmem:[%s358 + $0x98] sm:$0xf] %v1632
        %1697 = vst [vmem:[%s358 + $0x9c] sm:$0xf] %v1633
        %1698 = vst [vmem:[%s358 + $0xa0] sm:$0xf] %v1634
        %1699 = vst [vmem:[%s358 + $0xa4] sm:$0xf] %v1635
        %1700 = vst [vmem:[%s358 + $0xa8] sm:$0xf] %v1636
        %1701 = vst [vmem:[%s358 + $0xac] sm:$0xf] %v1637
        %1702 = vst [vmem:[%s358 + $0xb0] sm:$0xf] %v1638
        %1703 = vst [vmem:[%s358 + $0xb4] sm:$0xf] %v1639
        %1704 = vst [vmem:[%s358 + $0xb8] sm:$0xf] %v1640
        %1705 = vst [vmem:[%s358 + $0xbc] sm:$0xf] %v1641
        %1706 = vst [vmem:[%s358 + $0xc0] sm:$0xf] %v1642
        %1707 = vst [vmem:[%s358 + $0xc4] sm:$0xf] %v1643
        %1708 = vst [vmem:[%s358 + $0xc8] sm:$0xf] %v1644
        %1709 = vst [vmem:[%s358 + $0xcc] sm:$0xf] %v1645
        %1710 = vst [vmem:[%s358 + $0xd0] sm:$0xf] %v1646
        %1711 = vst [vmem:[%s358 + $0xd4] sm:$0xf] %v1647
        %1712 = vst [vmem:[%s358 + $0xd8] sm:$0xf] %v1648
        %1713 = vst [vmem:[%s358 + $0xdc] sm:$0xf] %v1649
        %1714 = vst [vmem:[%s358 + $0xe0] sm:$0xf] %v1650
        %1715 = vst [vmem:[%s358 + $0xe4] sm:$0xf] %v1651
        %1716 = vst [vmem:[%s358 + $0xe8] sm:$0xf] %v1652
        %1717 = vst [vmem:[%s358 + $0xec] sm:$0xf] %v1653
        %1718 = vst [vmem:[%s358 + $0xf0] sm:$0xf] %v1654
        %1719 = vst [vmem:[%s358 + $0xf4] sm:$0xf] %v1655
        %1720 = vst [vmem:[%s358 + $0xf8] sm:$0xf] %v1656
        %1721 = vst [vmem:[%s358 + $0xfc] sm:$0xf] %v1657
      $region48: #{resnet_forward.9} parent=39 // pred_fallthru
        _
      %s1722 = smul.u32 64, %s21
      %p1723 = scmp.lt.s32.totalorder %s1722, 255
      %s1724 = scalar_select %p1723, %s1722, 255
      %p1725 = scmp.lt.s32.totalorder %s22, 0
      %s1726 = scalar_select %p1725, %s22, 0
      %s1727 = sadd.s32 %s1726, %s1724
      %s1728 = smul.addr %s1727, 4
      %s1729 = scalar_lea.vmem %s5, %s1728
      // Predicated region
      $region49: #{resnet_forward.9} parent=39 // pred_check
        %p1730 = pneg %p191
      $region50: #{resnet_forward.9} parent=39 // pred_check_branch
        %1732 = sbr.rel (%p1730) target = $region52
      $region51: #{resnet_forward.9} parent=39 // pred_region
        %s1733 = smul.u32 64, %s21
      $region52: #{resnet_forward.9} parent=39 // pred_fallthru
        _
    $region40: #{resnet_forward.9} parent=5 // pred_fallthru
      _
    %p1734 = scmp.le.s32.totalorder 2, %s11
    // Predicated region
    $region53: #{resnet_forward.9} parent=5 // pred_check
      %p1735 = pneg %p1734
    $region54: #{resnet_forward.9} parent=5 // pred_check_branch
      %1737 = sbr.rel (%p1735) target = $region56
    $region55: #{resnet_forward.9} parent=5 // pred_region
      %s1738 = ssub.s32 %s11, 2
      // Predicated region
      $region57: #{resnet_forward.9} parent=55 // pred_check
        %p1739 = pneg %p197
      $region58: #{resnet_forward.9} parent=55 // pred_check_branch
        %1741 = sbr.rel (%p1739) target = $region60
      $region59: #{resnet_forward.9} parent=55 // pred_region
        %s1742 = smul.u32 64, %s24
        %p1743 = scmp.lt.s32.totalorder %s1742, 255
        %s1744 = scalar_select %p1743, %s1742, 255
        %p1745 = scmp.lt.s32.totalorder %s25, 0
        %s1746 = scalar_select %p1745, %s25, 0
        %s1747 = sadd.s32 %s1746, %s1744
        %s1748 = smul.addr %s1747, 4
        %s1749 = scalar_lea.vmem %s5, %s1748
      $region60: #{resnet_forward.9} parent=55 // pred_fallthru
        _
    $region56: #{resnet_forward.9} parent=5 // pred_fallthru
      _
  $region6: #{resnet_forward.9} parent=0 // loop_footer
    %s15 = sadd.s32 1, %s11
  $region7: #{resnet_forward.9} parent=0 // loop_footer_branch
    %10 = sbr.rel target = $region3
  $region8: #{resnet_forward.9} parent=0 // loop_exit
    _

// kernel: resnet_forward.11
$region0: #{resnet_forward.11}
  #allocation0 [shape = 'u32[]', space=smem, size = 0x4, offset = 0x4, fixed_abs, tag = 'smem constant byte address 0x4 - core index']
  #allocation1 [shape = 'u32[72,128]{1,0:T(1,128)}', space=vmem, size = 0x9000, scoped, tag = 'internal scratch']
  #allocation2 [shape = 'f32[256,128]{1,0:T(8,128)}', space=vmem, size = 0x20000, scoped, tag = 'scratch operand']
  %s0 = inlined_call_operand.vmem [shape: bf16[512,4], index: 0, kind: input, shape index: {}]
  %s1 = inlined_call_operand.vmem [shape: bf16[4,128], index: 1, kind: input, shape index: {}]
  %s2 = inlined_call_operand.vmem [shape: f32[1,128], index: 2, kind: input, shape index: {}]
  %s3 = inlined_call_operand.vmem [shape: f32[1,128], index: 3, kind: input, shape index: {}]
  %s4 = inlined_call_operand.vmem [shape: bf16[512,128], index: 4, kind: output, shape index: {}]
  %s5 = sld [smem:[#allocation0]]
  $region57: #{resnet_forward.11} parent=0
    _
  %s7 = ssub.s32 1, %s5
  %s8 = scalar_select 0, %s7, %s5
  loop: start=0, step=1, limit=4
  $region2: #{resnet_forward.11} parent=0 // loop_pre_header
    _
  $region3: #{resnet_forward.11} parent=0 // loop_header
    %s10 = sphi 0, %s14
    %p11 = scmp.ge.s32.totalorder %s10, 4
    %s17 = sphi 0, %s36
    %s18 = sphi 0, %s32
    %s19 = sphi 0, %s28
    %s20 = sphi 0, %s17
    %s21 = sphi 0, %s18
    %s22 = sphi 0, %s19
    %s23 = sphi 0, %s20
    %s24 = sphi 0, %s21
    %s25 = sphi 0, %s22
    %s41 = sphi 0, %s43
    %s44 = sphi 0, %s41
    %s45 = sphi 0, %s44
    %s61 = sphi 0, %s45
    %s69 = sphi 0, %s71
    %s72 = sphi 0, %s69
    %s73 = sphi 0, %s72
    %s89 = sphi 0, %s73
    %s95 = sphi 0, %s97
    %s98 = sphi 0, %s95
    %s99 = sphi 0, %s98
    %s115 = sphi 0, %s99
    %s121 = sphi 0, %s123
    %s124 = sphi 0, %s121
    %s125 = sphi 0, %s124
    %s141 = sphi 0, %s125
    %s149 = sphi 0, %s151
    %s152 = sphi 0, %s149
    %s153 = sphi 0, %s152
    %s169 = sphi 0, %s153
  $region4: #{resnet_forward.11} parent=0 // loop_header_branch
    %13 = sbr.rel (%p11) target = $region8
  $region5: #{resnet_forward.11} parent=0 // loop_body
    %s15 = ssub.s32 %s10, 1
    %s16 = ssub.s32 %s10, 2
    %s26 = sadd.s32 1, %s19
    %p27 = scmp.ge.s32.totalorder %s26, 1
    %s28 = scalar_select %p27, 0, %s26
    %s29 = sadd.s32 1, %s18
    %s30 = scalar_select %p27, %s29, %s18
    %p31 = scmp.ge.s32.totalorder %s30, 1
    %s32 = scalar_select %p31, 0, %s30
    %s33 = sadd.s32 1, %s17
    %s34 = scalar_select %p31, %s33, %s17
    %p35 = scmp.ge.s32.totalorder %s34, 2
    %s36 = scalar_select %p35, 0, %s34
    %s37 = ssub.s32 %s17, %s36
    %s38 = ssub.s32 %s19, %s28
    %s39 = sor.u32 %s37, %s38
    %p40 = scmp.eq.s32.totalorder %s39, 0
    %s42 = sadd.s32 %s41, 1
    %s43 = scalar_select %p40, %s41, %s42
    %p46 = pneg %p40
    %p47 = scmp.eq.s32.totalorder %s10, 1
    %p48 = por %p46, %p47
    %p49 = scmp.ne.s32.totalorder %s41, %s44
    %p50 = scmp.eq.s32.totalorder %s10, 0
    %p51 = por %p49, %p50
    %p52 = scmp.ne.s32.totalorder %s41, %s44
    %p53 = scmp.eq.s32.totalorder %s15, 1
    %p54 = por %p52, %p53
    %p55 = scmp.ne.s32.totalorder %s44, %s45
    %p56 = scmp.eq.s32.totalorder %s15, 0
    %p57 = por %p55, %p56
    %p58 = scmp.ne.s32.totalorder %s44, %s45
    %p59 = scmp.eq.s32.totalorder %s16, 1
    %p60 = por %p58, %p59
    %p62 = scmp.ne.s32.totalorder %s45, %s61
    %p63 = scmp.eq.s32.totalorder %s16, 0
    %p64 = por %p62, %p63
    %s65 = ssub.s32 %s19, %s28
    %s66 = ssub.s32 %s18, %s32
    %s67 = sor.u32 %s65, %s66
    %p68 = scmp.eq.s32.totalorder %s67, 0
    %s70 = sadd.s32 %s69, 1
    %s71 = scalar_select %p68, %s69, %s70
    %p74 = pneg %p68
    %p75 = scmp.eq.s32.totalorder %s10, 1
    %p76 = por %p74, %p75
    %p77 = scmp.ne.s32.totalorder %s69, %s72
    %p78 = scmp.eq.s32.totalorder %s10, 0
    %p79 = por %p77, %p78
    %p80 = scmp.ne.s32.totalorder %s69, %s72
    %p81 = scmp.eq.s32.totalorder %s15, 1
    %p82 = por %p80, %p81
    %p83 = scmp.ne.s32.totalorder %s72, %s73
    %p84 = scmp.eq.s32.totalorder %s15, 0
    %p85 = por %p83, %p84
    %p86 = scmp.ne.s32.totalorder %s72, %s73
    %p87 = scmp.eq.s32.totalorder %s16, 1
    %p88 = por %p86, %p87
    %p90 = scmp.ne.s32.totalorder %s73, %s89
    %p91 = scmp.eq.s32.totalorder %s16, 0
    %p92 = por %p90, %p91
    %s93 = ssub.s32 %s18, %s32
    %p94 = scmp.eq.s32.totalorder %s93, 0
    %s96 = sadd.s32 %s95, 1
    %s97 = scalar_select %p94, %s95, %s96
    %p100 = pneg %p94
    %p101 = scmp.eq.s32.totalorder %s10, 1
    %p102 = por %p100, %p101
    %p103 = scmp.ne.s32.totalorder %s95, %s98
    %p104 = scmp.eq.s32.totalorder %s10, 0
    %p105 = por %p103, %p104
    %p106 = scmp.ne.s32.totalorder %s95, %s98
    %p107 = scmp.eq.s32.totalorder %s15, 1
    %p108 = por %p106, %p107
    %p109 = scmp.ne.s32.totalorder %s98, %s99
    %p110 = scmp.eq.s32.totalorder %s15, 0
    %p111 = por %p109, %p110
    %p112 = scmp.ne.s32.totalorder %s98, %s99
    %p113 = scmp.eq.s32.totalorder %s16, 1
    %p114 = por %p112, %p113
    %p116 = scmp.ne.s32.totalorder %s99, %s115
    %p117 = scmp.eq.s32.totalorder %s16, 0
    %p118 = por %p116, %p117
    %s119 = ssub.s32 %s18, %s32
    %p120 = scmp.eq.s32.totalorder %s119, 0
    %s122 = sadd.s32 %s121, 1
    %s123 = scalar_select %p120, %s121, %s122
    %p126 = pneg %p120
    %p127 = scmp.eq.s32.totalorder %s10, 1
    %p128 = por %p126, %p127
    %p129 = scmp.ne.s32.totalorder %s121, %s124
    %p130 = scmp.eq.s32.totalorder %s10, 0
    %p131 = por %p129, %p130
    %p132 = scmp.ne.s32.totalorder %s121, %s124
    %p133 = scmp.eq.s32.totalorder %s15, 1
    %p134 = por %p132, %p133
    %p135 = scmp.ne.s32.totalorder %s124, %s125
    %p136 = scmp.eq.s32.totalorder %s15, 0
    %p137 = por %p135, %p136
    %p138 = scmp.ne.s32.totalorder %s124, %s125
    %p139 = scmp.eq.s32.totalorder %s16, 1
    %p140 = por %p138, %p139
    %p142 = scmp.ne.s32.totalorder %s125, %s141
    %p143 = scmp.eq.s32.totalorder %s16, 0
    %p144 = por %p142, %p143
    %s145 = ssub.s32 %s17, %s36
    %s146 = ssub.s32 %s18, %s32
    %s147 = sor.u32 %s145, %s146
    %p148 = scmp.eq.s32.totalorder %s147, 0
    %s150 = sadd.s32 %s149, 1
    %s151 = scalar_select %p148, %s149, %s150
    %p154 = pneg %p148
    %p155 = scmp.eq.s32.totalorder %s10, 1
    %p156 = por %p154, %p155
    %p157 = scmp.ne.s32.totalorder %s149, %s152
    %p158 = scmp.eq.s32.totalorder %s10, 0
    %p159 = por %p157, %p158
    %p160 = scmp.ne.s32.totalorder %s149, %s152
    %p161 = scmp.eq.s32.totalorder %s15, 1
    %p162 = por %p160, %p161
    %p163 = scmp.ne.s32.totalorder %s152, %s153
    %p164 = scmp.eq.s32.totalorder %s15, 0
    %p165 = por %p163, %p164
    %p166 = scmp.ne.s32.totalorder %s152, %s153
    %p167 = scmp.eq.s32.totalorder %s16, 1
    %p168 = por %p166, %p167
    %p170 = scmp.ne.s32.totalorder %s153, %s169
    %p171 = scmp.eq.s32.totalorder %s16, 0
    %p172 = por %p170, %p171
    %p173 = scmp.le.s32.totalorder 1, %s10
    %p174 = scmp.lt.s32.totalorder %s10, 3
    %p175 = pnand %p173, %p174
    %p176 = pneg %p175
    // Predicated region
    $region9: #{resnet_forward.11} parent=5 // pred_check
      _
    $region10: #{resnet_forward.11} parent=5 // pred_check_branch
      %178 = sbr.rel (%p175) target = $region12
    $region11: #{resnet_forward.11} parent=5 // pred_region
      %s179 = ssub.s32 %s10, 1
      // Predicated region
      $region13: #{resnet_forward.11} parent=11 // pred_check
        %p180 = pneg %p85
      $region14: #{resnet_forward.11} parent=11 // pred_check_branch
        %182 = sbr.rel (%p180) target = $region16
      $region15: #{resnet_forward.11} parent=11 // pred_region
        %p183 = scmp.lt.s32.totalorder %s22, 0
        %s184 = scalar_select %p183, %s22, 0
        %p185 = scmp.lt.s32.totalorder %s21, 0
        %s186 = scalar_select %p185, %s21, 0
        %s187 = sadd.s32 %s186, %s184
        %s188 = smul.addr %s187, 2
        %s189 = scalar_lea.vmem %s1, %s188
      $region16: #{resnet_forward.11} parent=11 // pred_fallthru
        _
      // Predicated region
      $region17: #{resnet_forward.11} parent=11 // pred_check
        %p190 = pneg %p111
      $region18: #{resnet_forward.11} parent=11 // pred_check_branch
        %192 = sbr.rel (%p190) target = $region20
      $region19: #{resnet_forward.11} parent=11 // pred_region
        %p193 = scmp.lt.s32.totalorder %s21, 0
        %s194 = scalar_select %p193, %s21, 0
        %s195 = scalar_lea.vmem %s2, %s194
      $region20: #{resnet_forward.11} parent=11 // pred_fallthru
        _
      // Predicated region
      $region21: #{resnet_forward.11} parent=11 // pred_check
        %p196 = pneg %p137
      $region22: #{resnet_forward.11} parent=11 // pred_check_branch
        %198 = sbr.rel (%p196) target = $region24
      $region23: #{resnet_forward.11} parent=11 // pred_region
        %p199 = scmp.lt.s32.totalorder %s21, 0
        %s200 = scalar_select %p199, %s21, 0
        %s201 = scalar_lea.vmem %s3, %s200
      $region24: #{resnet_forward.11} parent=11 // pred_fallthru
        _
    $region12: #{resnet_forward.11} parent=5 // pred_fallthru
      _
    %p202 = scmp.lt.s32.totalorder %s10, 2
    // Predicated region
    $region25: #{resnet_forward.11} parent=5 // pred_check
      %p203 = pneg %p202
    $region26: #{resnet_forward.11} parent=5 // pred_check_branch
      %205 = sbr.rel (%p203) target = $region28
    $region27: #{resnet_forward.11} parent=5 // pred_region
      // Predicated region
      $region29: #{resnet_forward.11} parent=27 // pred_check
        %p206 = pneg %p51
      $region30: #{resnet_forward.11} parent=27 // pred_check_branch
        %208 = sbr.rel (%p206) target = $region32
      $region31: #{resnet_forward.11} parent=27 // pred_region
        %s209 = smul.u32 32, %s17
        %p210 = scmp.lt.s32.totalorder %s209, 63
        %s211 = scalar_select %p210, %s209, 63
        %p212 = scmp.lt.s32.totalorder %s19, 0
        %s213 = scalar_select %p212, %s19, 0
        %s214 = sadd.s32 %s213, %s211
        %s215 = smul.addr %s214, 4
        %s216 = scalar_lea.vmem %s0, %s215
        %s217 = smul.u32 32, %s17
      $region32: #{resnet_forward.11} parent=27 // pred_fallthru
        _
    $region28: #{resnet_forward.11} parent=5 // pred_fallthru
      _
    %p218 = scmp.le.s32.totalorder 1, %s10
    %p219 = scmp.lt.s32.totalorder %s10, 3
    %p220 = pnand %p218, %p219
    %p221 = pneg %p220
    // Predicated region
    $region33: #{resnet_forward.11} parent=5 // pred_check
      _
    $region34: #{resnet_forward.11} parent=5 // pred_check_branch
      %223 = sbr.rel (%p220) target = $region36
    $region35: #{resnet_forward.11} parent=5 // pred_region
      %s224 = ssub.s32 %s10, 1
      %s225 = smul.u32 32, %s20
      %p226 = scmp.lt.s32.totalorder %s225, 63
      %s227 = scalar_select %p226, %s225, 63
      %p228 = scmp.lt.s32.totalorder %s22, 0
      %s229 = scalar_select %p228, %s22, 0
      %s230 = sadd.s32 %s229, %s227
      %s231 = smul.addr %s230, 4
      %s232 = scalar_lea.vmem %s0, %s231
      %p233 = pneg %p57
      %p234 = pneg %p54
      %p235 = scmp.lt.s32.totalorder %s22, 0
      %s236 = scalar_select %p235, %s22, 0
      %p237 = scmp.lt.s32.totalorder %s21, 0
      %s238 = scalar_select %p237, %s21, 0
      %s239 = sadd.s32 %s238, %s236
      %s240 = smul.addr %s239, 2
      %s241 = scalar_lea.vmem %s1, %s240
      %p242 = pneg %p85
      %p243 = pneg %p82
      %p244 = scmp.lt.s32.totalorder %s21, 0
      %s245 = scalar_select %p244, %s21, 0
      %s246 = scalar_lea.vmem %s2, %s245
      %p247 = pneg %p111
      %p248 = pneg %p108
      %p249 = scmp.lt.s32.totalorder %s21, 0
      %s250 = scalar_select %p249, %s21, 0
      %s251 = scalar_lea.vmem %s3, %s250
      %p252 = pneg %p137
      %p253 = pneg %p134
      %p254 = pneg %p165
      %p255 = pneg %p162
      %s256 = smul.u32 32, %s20
      %p257 = scmp.lt.s32.totalorder %s256, 63
      %s258 = scalar_select %p257, %s256, 63
      %p259 = scmp.lt.s32.totalorder %s21, 0
      %s260 = scalar_select %p259, %s21, 0
      %s261 = sadd.s32 %s260, %s258
      %s262 = smul.addr %s261, 4
      %s263 = scalar_lea.vmem %s4, %s262
      %s264 = smul.u32 32, %s20
      %p265 = scmp.lt.s32.totalorder %s264, 63
      %s266 = scalar_select %p265, %s264, 63
      %p267 = scmp.lt.s32.totalorder %s22, 0
      %s268 = scalar_select %p267, %s22, 0
      %s269 = sadd.s32 %s268, %s266
      %s270 = smul.addr %s269, 4
      %s271 = scalar_lea.vmem %s0, %s270
      %s272 = smul.u32 32, %s20
      %p273 = scmp.lt.s32.totalorder %s22, 0
      %s274 = scalar_select %p273, %s22, 0
      %p275 = scmp.lt.s32.totalorder %s21, 0
      %s276 = scalar_select %p275, %s21, 0
      %s277 = sadd.s32 %s276, %s274
      %s278 = smul.addr %s277, 2
      %s279 = scalar_lea.vmem %s1, %s278
      %p280 = scmp.lt.s32.totalorder %s21, 0
      %s281 = scalar_select %p280, %s21, 0
      %s282 = scalar_lea.vmem %s2, %s281
      %p283 = scmp.lt.s32.totalorder %s21, 0
      %s284 = scalar_select %p283, %s21, 0
      %s285 = scalar_lea.vmem %s3, %s284
      %s286 = smul.u32 32, %s20
      %p287 = scmp.lt.s32.totalorder %s286, 63
      %s288 = scalar_select %p287, %s286, 63
      %p289 = scmp.lt.s32.totalorder %s21, 0
      %s290 = scalar_select %p289, %s21, 0
      %s291 = sadd.s32 %s290, %s288
      %s292 = smul.addr %s291, 4
      %s293 = scalar_lea.vmem %s4, %s292
      %s294 = smul.u32 32, %s20
      %p296 = scmp.eq.s32.totalorder %s22, 0
      // Predicated region
      $region37: #{resnet_forward.11} parent=35 // pred_check
        %p297 = pneg %p296
      $region38: #{resnet_forward.11} parent=35 // pred_check_branch
        %299 = sbr.rel (%p297) target = $region40
      $region39: #{resnet_forward.11} parent=35 // pred_region
        %300 = vst [vmem:[#allocation2] sm:$0xff] 0.0
        %301 = vst [vmem:[#allocation2 + $0x8] sm:$0xff] 0.0
        %302 = vst [vmem:[#allocation2 + $0x10] sm:$0xff] 0.0
        %303 = vst [vmem:[#allocation2 + $0x18] sm:$0xff] 0.0
        %304 = vst [vmem:[#allocation2 + $0x20] sm:$0xff] 0.0
        %305 = vst [vmem:[#allocation2 + $0x28] sm:$0xff] 0.0
        %306 = vst [vmem:[#allocation2 + $0x30] sm:$0xff] 0.0
        %307 = vst [vmem:[#allocation2 + $0x38] sm:$0xff] 0.0
        %308 = vst [vmem:[#allocation2 + $0x40] sm:$0xff] 0.0
        %309 = vst [vmem:[#allocation2 + $0x48] sm:$0xff] 0.0
        %310 = vst [vmem:[#allocation2 + $0x50] sm:$0xff] 0.0
        %311 = vst [vmem:[#allocation2 + $0x58] sm:$0xff] 0.0
        %312 = vst [vmem:[#allocation2 + $0x60] sm:$0xff] 0.0
        %313 = vst [vmem:[#allocation2 + $0x68] sm:$0xff] 0.0
        %314 = vst [vmem:[#allocation2 + $0x70] sm:$0xff] 0.0
        %315 = vst [vmem:[#allocation2 + $0x78] sm:$0xff] 0.0
        %316 = vst [vmem:[#allocation2 + $0x80] sm:$0xff] 0.0
        %317 = vst [vmem:[#allocation2 + $0x88] sm:$0xff] 0.0
        %318 = vst [vmem:[#allocation2 + $0x90] sm:$0xff] 0.0
        %319 = vst [vmem:[#allocation2 + $0x98] sm:$0xff] 0.0
        %320 = vst [vmem:[#allocation2 + $0xa0] sm:$0xff] 0.0
        %321 = vst [vmem:[#allocation2 + $0xa8] sm:$0xff] 0.0
        %322 = vst [vmem:[#allocation2 + $0xb0] sm:$0xff] 0.0
        %323 = vst [vmem:[#allocation2 + $0xb8] sm:$0xff] 0.0
        %324 = vst [vmem:[#allocation2 + $0xc0] sm:$0xff] 0.0
        %325 = vst [vmem:[#allocation2 + $0xc8] sm:$0xff] 0.0
        %326 = vst [vmem:[#allocation2 + $0xd0] sm:$0xff] 0.0
        %327 = vst [vmem:[#allocation2 + $0xd8] sm:$0xff] 0.0
        %328 = vst [vmem:[#allocation2 + $0xe0] sm:$0xff] 0.0
        %329 = vst [vmem:[#allocation2 + $0xe8] sm:$0xff] 0.0
        %330 = vst [vmem:[#allocation2 + $0xf0] sm:$0xff] 0.0
        %331 = vst [vmem:[#allocation2 + $0xf8] sm:$0xff] 0.0
      $region40: #{resnet_forward.11} parent=35 // pred_fallthru
        _
      %v332 = vld [vmem:[#allocation2] sm:$0xff]
      %v333 = vld [vmem:[#allocation2 + $0x8] sm:$0xff]
      %v334 = vld [vmem:[#allocation2 + $0x10] sm:$0xff]
      %v335 = vld [vmem:[#allocation2 + $0x18] sm:$0xff]
      %v336 = vld [vmem:[#allocation2 + $0x20] sm:$0xff]
      %v337 = vld [vmem:[#allocation2 + $0x28] sm:$0xff]
      %v338 = vld [vmem:[#allocation2 + $0x30] sm:$0xff]
      %v339 = vld [vmem:[#allocation2 + $0x38] sm:$0xff]
      %v340 = vld [vmem:[#allocation2 + $0x40] sm:$0xff]
      %v341 = vld [vmem:[#allocation2 + $0x48] sm:$0xff]
      %v342 = vld [vmem:[#allocation2 + $0x50] sm:$0xff]
      %v343 = vld [vmem:[#allocation2 + $0x58] sm:$0xff]
      %v344 = vld [vmem:[#allocation2 + $0x60] sm:$0xff]
      %v345 = vld [vmem:[#allocation2 + $0x68] sm:$0xff]
      %v346 = vld [vmem:[#allocation2 + $0x70] sm:$0xff]
      %v347 = vld [vmem:[#allocation2 + $0x78] sm:$0xff]
      %v348 = vld [vmem:[#allocation2 + $0x80] sm:$0xff]
      %v349 = vld [vmem:[#allocation2 + $0x88] sm:$0xff]
      %v350 = vld [vmem:[#allocation2 + $0x90] sm:$0xff]
      %v351 = vld [vmem:[#allocation2 + $0x98] sm:$0xff]
      %v352 = vld [vmem:[#allocation2 + $0xa0] sm:$0xff]
      %v353 = vld [vmem:[#allocation2 + $0xa8] sm:$0xff]
      %v354 = vld [vmem:[#allocation2 + $0xb0] sm:$0xff]
      %v355 = vld [vmem:[#allocation2 + $0xb8] sm:$0xff]
      %v356 = vld [vmem:[#allocation2 + $0xc0] sm:$0xff]
      %v357 = vld [vmem:[#allocation2 + $0xc8] sm:$0xff]
      %v358 = vld [vmem:[#allocation2 + $0xd0] sm:$0xff]
      %v359 = vld [vmem:[#allocation2 + $0xd8] sm:$0xff]
      %v360 = vld [vmem:[#allocation2 + $0xe0] sm:$0xff]
      %v361 = vld [vmem:[#allocation2 + $0xe8] sm:$0xff]
      %v362 = vld [vmem:[#allocation2 + $0xf0] sm:$0xff]
      %v363 = vld [vmem:[#allocation2 + $0xf8] sm:$0xff]
      %v364 = vld [vmem:[%s271] sm:$0xf]
      %v365 = vld [vmem:[%s271 + $0x4] sm:$0xf]
      %v366 = vld [vmem:[%s271 + $0x8] sm:$0xf]
      %v367 = vld [vmem:[%s271 + $0xc] sm:$0xf]
      %v368 = vld [vmem:[%s271 + $0x10] sm:$0xf]
      %v369 = vld [vmem:[%s271 + $0x14] sm:$0xf]
      %v370 = vld [vmem:[%s271 + $0x18] sm:$0xf]
      %v371 = vld [vmem:[%s271 + $0x1c] sm:$0xf]
      %v372 = vld [vmem:[%s271 + $0x20] sm:$0xf]
      %v373 = vld [vmem:[%s271 + $0x24] sm:$0xf]
      %v374 = vld [vmem:[%s271 + $0x28] sm:$0xf]
      %v375 = vld [vmem:[%s271 + $0x2c] sm:$0xf]
      %v376 = vld [vmem:[%s271 + $0x30] sm:$0xf]
      %v377 = vld [vmem:[%s271 + $0x34] sm:$0xf]
      %v378 = vld [vmem:[%s271 + $0x38] sm:$0xf]
      %v379 = vld [vmem:[%s271 + $0x3c] sm:$0xf]
      %v380 = vld [vmem:[%s271 + $0x40] sm:$0xf]
      %v381 = vld [vmem:[%s271 + $0x44] sm:$0xf]
      %v382 = vld [vmem:[%s271 + $0x48] sm:$0xf]
      %v383 = vld [vmem:[%s271 + $0x4c] sm:$0xf]
      %v384 = vld [vmem:[%s271 + $0x50] sm:$0xf]
      %v385 = vld [vmem:[%s271 + $0x54] sm:$0xf]
      %v386 = vld [vmem:[%s271 + $0x58] sm:$0xf]
      %v387 = vld [vmem:[%s271 + $0x5c] sm:$0xf]
      %v388 = vld [vmem:[%s271 + $0x60] sm:$0xf]
      %v389 = vld [vmem:[%s271 + $0x64] sm:$0xf]
      %v390 = vld [vmem:[%s271 + $0x68] sm:$0xf]
      %v391 = vld [vmem:[%s271 + $0x6c] sm:$0xf]
      %v392 = vld [vmem:[%s271 + $0x70] sm:$0xf]
      %v393 = vld [vmem:[%s271 + $0x74] sm:$0xf]
      %v394 = vld [vmem:[%s271 + $0x78] sm:$0xf]
      %v395 = vld [vmem:[%s271 + $0x7c] sm:$0xf]
      %v396 = vld [vmem:[%s279] sm:$0x3]
      %v429 = vunpack.c.l.b16 %v364
      %v430 = vunpack.c.l.b16 %v365
      %v431 = vunpack.c.l.b16 %v366
      %v432 = vunpack.c.l.b16 %v367
      %v433 = vunpack.c.l.b16 %v368
      %v434 = vunpack.c.l.b16 %v369
      %v435 = vunpack.c.l.b16 %v370
      %v436 = vunpack.c.l.b16 %v371
      %v437 = vunpack.c.l.b16 %v372
      %v438 = vunpack.c.l.b16 %v373
      %v439 = vunpack.c.l.b16 %v374
      %v440 = vunpack.c.l.b16 %v375
      %v441 = vunpack.c.l.b16 %v376
      %v442 = vunpack.c.l.b16 %v377
      %v443 = vunpack.c.l.b16 %v378
      %v444 = vunpack.c.l.b16 %v379
      %v445 = vunpack.c.l.b16 %v380
      %v446 = vunpack.c.l.b16 %v381
      %v447 = vunpack.c.l.b16 %v382
      %v448 = vunpack.c.l.b16 %v383
      %v449 = vunpack.c.l.b16 %v384
      %v450 = vunpack.c.l.b16 %v385
      %v451 = vunpack.c.l.b16 %v386
      %v452 = vunpack.c.l.b16 %v387
      %v453 = vunpack.c.l.b16 %v388
      %v454 = vunpack.c.l.b16 %v389
      %v455 = vunpack.c.l.b16 %v390
      %v456 = vunpack.c.l.b16 %v391
      %v457 = vunpack.c.l.b16 %v392
      %v458 = vunpack.c.l.b16 %v393
      %v459 = vunpack.c.l.b16 %v394
      %v460 = vunpack.c.l.b16 %v395
      %v461 = vpack.c.b16 %v430, %v429
      %v462 = vpack.c.b16 %v432, %v431
      %v463 = vpack.c.b16 %v434, %v433
      %v464 = vpack.c.b16 %v436, %v435
      %v465 = vpack.c.b16 %v438, %v437
      %v466 = vpack.c.b16 %v440, %v439
      %v467 = vpack.c.b16 %v442, %v441
      %v468 = vpack.c.b16 %v444, %v443
      %v469 = vpack.c.b16 %v446, %v445
      %v470 = vpack.c.b16 %v448, %v447
      %v471 = vpack.c.b16 %v450, %v449
      %v472 = vpack.c.b16 %v452, %v451
      %v473 = vpack.c.b16 %v454, %v453
      %v474 = vpack.c.b16 %v456, %v455
      %v475 = vpack.c.b16 %v458, %v457
      %v476 = vpack.c.b16 %v460, %v459
      %vm477 = vcmask 31744
      %v479 = vsel %vm477, %v461, 0
      %v482 = vsel %vm477, %v462, 0
      %v485 = vsel %vm477, %v463, 0
      %v488 = vsel %vm477, %v464, 0
      %v491 = vsel %vm477, %v465, 0
      %v494 = vsel %vm477, %v466, 0
      %v497 = vsel %vm477, %v467, 0
      %v500 = vsel %vm477, %v468, 0
      %v503 = vsel %vm477, %v469, 0
      %v506 = vsel %vm477, %v470, 0
      %v509 = vsel %vm477, %v471, 0
      %v512 = vsel %vm477, %v472, 0
      %v515 = vsel %vm477, %v473, 0
      %v518 = vsel %vm477, %v474, 0
      %v521 = vsel %vm477, %v475, 0
      %v524 = vsel %vm477, %v476, 0
      %vm526 = vcmask 1041408
      %v528 = vsel %vm526, %v396, 0
      %530 = vmatpush.bf16.msra.mxu0 0
      %531 = vmatpush.bf16.msra.mxu0 0
      %532 = vmatpush.bf16.msra.mxu0 0
      %533 = vmatpush.bf16.msra.mxu0 0
      %534 = vmatpush.bf16.msra.mxu0 0
      %535 = vmatpush.bf16.msra.mxu0 0
      %536 = vmatpush.bf16.msra.mxu0 0
      %537 = vmatpush.bf16.msra.mxu0 %v528
      %538 = vmatmul.bf16.gmra.mxu0 %v479
      %v539 = vpop.f32.mrf.mxu0
      %v540 = vadd.f32 0.0, %v539
      %v541 = vpop.f32.mrf.mxu0
      %v542 = vadd.f32 0.0, %v541
      %543 = vmatmul.bf16.gmra.mxu0 %v482
      %v544 = vpop.f32.mrf.mxu0
      %v545 = vadd.f32 0.0, %v544
      %v546 = vpop.f32.mrf.mxu0
      %v547 = vadd.f32 0.0, %v546
      %548 = vmatmul.bf16.gmra.mxu0 %v485
      %v549 = vpop.f32.mrf.mxu0
      %v550 = vadd.f32 0.0, %v549
      %v551 = vpop.f32.mrf.mxu0
      %v552 = vadd.f32 0.0, %v551
      %553 = vmatmul.bf16.gmra.mxu0 %v488
      %v554 = vpop.f32.mrf.mxu0
      %v555 = vadd.f32 0.0, %v554
      %v556 = vpop.f32.mrf.mxu0
      %v557 = vadd.f32 0.0, %v556
      %558 = vmatmul.bf16.gmra.mxu0 %v491
      %v559 = vpop.f32.mrf.mxu0
      %v560 = vadd.f32 0.0, %v559
      %v561 = vpop.f32.mrf.mxu0
      %v562 = vadd.f32 0.0, %v561
      %563 = vmatmul.bf16.gmra.mxu0 %v494
      %v564 = vpop.f32.mrf.mxu0
      %v565 = vadd.f32 0.0, %v564
      %v566 = vpop.f32.mrf.mxu0
      %v567 = vadd.f32 0.0, %v566
      %568 = vmatmul.bf16.gmra.mxu0 %v497
      %v569 = vpop.f32.mrf.mxu0
      %v570 = vadd.f32 0.0, %v569
      %v571 = vpop.f32.mrf.mxu0
      %v572 = vadd.f32 0.0, %v571
      %573 = vmatmul.bf16.gmra.mxu0 %v500
      %v574 = vpop.f32.mrf.mxu0
      %v575 = vadd.f32 0.0, %v574
      %v576 = vpop.f32.mrf.mxu0
      %v577 = vadd.f32 0.0, %v576
      %578 = vmatmul.bf16.gmra.mxu0 %v503
      %v579 = vpop.f32.mrf.mxu0
      %v580 = vadd.f32 0.0, %v579
      %v581 = vpop.f32.mrf.mxu0
      %v582 = vadd.f32 0.0, %v581
      %583 = vmatmul.bf16.gmra.mxu0 %v506
      %v584 = vpop.f32.mrf.mxu0
      %v585 = vadd.f32 0.0, %v584
      %v586 = vpop.f32.mrf.mxu0
      %v587 = vadd.f32 0.0, %v586
      %588 = vmatmul.bf16.gmra.mxu0 %v509
      %v589 = vpop.f32.mrf.mxu0
      %v590 = vadd.f32 0.0, %v589
      %v591 = vpop.f32.mrf.mxu0
      %v592 = vadd.f32 0.0, %v591
      %593 = vmatmul.bf16.gmra.mxu0 %v512
      %v594 = vpop.f32.mrf.mxu0
      %v595 = vadd.f32 0.0, %v594
      %v596 = vpop.f32.mrf.mxu0
      %v597 = vadd.f32 0.0, %v596
      %598 = vmatmul.bf16.gmra.mxu0 %v515
      %v599 = vpop.f32.mrf.mxu0
      %v600 = vadd.f32 0.0, %v599
      %v601 = vpop.f32.mrf.mxu0
      %v602 = vadd.f32 0.0, %v601
      %603 = vmatmul.bf16.gmra.mxu0 %v518
      %v604 = vpop.f32.mrf.mxu0
      %v605 = vadd.f32 0.0, %v604
      %v606 = vpop.f32.mrf.mxu0
      %v607 = vadd.f32 0.0, %v606
      %608 = vmatmul.bf16.gmra.mxu0 %v521
      %v609 = vpop.f32.mrf.mxu0
      %v610 = vadd.f32 0.0, %v609
      %v611 = vpop.f32.mrf.mxu0
      %v612 = vadd.f32 0.0, %v611
      %613 = vmatmul.bf16.gmra.mxu0 %v524
      %v614 = vpop.f32.mrf.mxu0
      %v615 = vadd.f32 0.0, %v614
      %v616 = vpop.f32.mrf.mxu0
      %v617 = vadd.f32 0.0, %v616
      %618 = vdwg.mxu0
      %v619 = vadd.f32 %v332, %v540
      %v620 = vadd.f32 %v333, %v542
      %v621 = vadd.f32 %v334, %v545
      %v622 = vadd.f32 %v335, %v547
      %v623 = vadd.f32 %v336, %v550
      %v624 = vadd.f32 %v337, %v552
      %v625 = vadd.f32 %v338, %v555
      %v626 = vadd.f32 %v339, %v557
      %v627 = vadd.f32 %v340, %v560
      %v628 = vadd.f32 %v341, %v562
      %v629 = vadd.f32 %v342, %v565
      %v630 = vadd.f32 %v343, %v567
      %v631 = vadd.f32 %v344, %v570
      %v632 = vadd.f32 %v345, %v572
      %v633 = vadd.f32 %v346, %v575
      %v634 = vadd.f32 %v347, %v577
      %v635 = vadd.f32 %v348, %v580
      %v636 = vadd.f32 %v349, %v582
      %v637 = vadd.f32 %v350, %v585
      %v638 = vadd.f32 %v351, %v587
      %v639 = vadd.f32 %v352, %v590
      %v640 = vadd.f32 %v353, %v592
      %v641 = vadd.f32 %v354, %v595
      %v642 = vadd.f32 %v355, %v597
      %v643 = vadd.f32 %v356, %v600
      %v644 = vadd.f32 %v357, %v602
      %v645 = vadd.f32 %v358, %v605
      %v646 = vadd.f32 %v359, %v607
      %v647 = vadd.f32 %v360, %v610
      %v648 = vadd.f32 %v361, %v612
      %v649 = vadd.f32 %v362, %v615
      %v650 = vadd.f32 %v363, %v617
      %651 = vst [vmem:[#allocation2] sm:$0xff] %v619
      %652 = vst [vmem:[#allocation2 + $0x8] sm:$0xff] %v620
      %653 = vst [vmem:[#allocation2 + $0x10] sm:$0xff] %v621
      %654 = vst [vmem:[#allocation2 + $0x18] sm:$0xff] %v622
      %655 = vst [vmem:[#allocation2 + $0x20] sm:$0xff] %v623
      %656 = vst [vmem:[#allocation2 + $0x28] sm:$0xff] %v624
      %657 = vst [vmem:[#allocation2 + $0x30] sm:$0xff] %v625
      %658 = vst [vmem:[#allocation2 + $0x38] sm:$0xff] %v626
      %659 = vst [vmem:[#allocation2 + $0x40] sm:$0xff] %v627
      %660 = vst [vmem:[#allocation2 + $0x48] sm:$0xff] %v628
      %661 = vst [vmem:[#allocation2 + $0x50] sm:$0xff] %v629
      %662 = vst [vmem:[#allocation2 + $0x58] sm:$0xff] %v630
      %663 = vst [vmem:[#allocation2 + $0x60] sm:$0xff] %v631
      %664 = vst [vmem:[#allocation2 + $0x68] sm:$0xff] %v632
      %665 = vst [vmem:[#allocation2 + $0x70] sm:$0xff] %v633
      %666 = vst [vmem:[#allocation2 + $0x78] sm:$0xff] %v634
      %667 = vst [vmem:[#allocation2 + $0x80] sm:$0xff] %v635
      %668 = vst [vmem:[#allocation2 + $0x88] sm:$0xff] %v636
      %669 = vst [vmem:[#allocation2 + $0x90] sm:$0xff] %v637
      %670 = vst [vmem:[#allocation2 + $0x98] sm:$0xff] %v638
      %671 = vst [vmem:[#allocation2 + $0xa0] sm:$0xff] %v639
      %672 = vst [vmem:[#allocation2 + $0xa8] sm:$0xff] %v640
      %673 = vst [vmem:[#allocation2 + $0xb0] sm:$0xff] %v641
      %674 = vst [vmem:[#allocation2 + $0xb8] sm:$0xff] %v642
      %675 = vst [vmem:[#allocation2 + $0xc0] sm:$0xff] %v643
      %676 = vst [vmem:[#allocation2 + $0xc8] sm:$0xff] %v644
      %677 = vst [vmem:[#allocation2 + $0xd0] sm:$0xff] %v645
      %678 = vst [vmem:[#allocation2 + $0xd8] sm:$0xff] %v646
      %679 = vst [vmem:[#allocation2 + $0xe0] sm:$0xff] %v647
      %680 = vst [vmem:[#allocation2 + $0xe8] sm:$0xff] %v648
      %681 = vst [vmem:[#allocation2 + $0xf0] sm:$0xff] %v649
      %682 = vst [vmem:[#allocation2 + $0xf8] sm:$0xff] %v650
      // Predicated region
      $region41: #{resnet_forward.11} parent=35 // pred_check
        %p683 = pneg %p296
      $region42: #{resnet_forward.11} parent=35 // pred_check_branch
        %685 = sbr.rel (%p683) target = $region44
      $region43: #{resnet_forward.11} parent=35 // pred_region
        %v686 = vld [vmem:[#allocation2] sm:$0xff]
        %v687 = vld [vmem:[#allocation2 + $0x8] sm:$0xff]
        %v688 = vld [vmem:[#allocation2 + $0x10] sm:$0xff]
        %v689 = vld [vmem:[#allocation2 + $0x18] sm:$0xff]
        %v690 = vld [vmem:[#allocation2 + $0x20] sm:$0xff]
        %v691 = vld [vmem:[#allocation2 + $0x28] sm:$0xff]
        %v692 = vld [vmem:[#allocation2 + $0x30] sm:$0xff]
        %v693 = vld [vmem:[#allocation2 + $0x38] sm:$0xff]
        %v694 = vld [vmem:[#allocation2 + $0x40] sm:$0xff]
        %v695 = vld [vmem:[#allocation2 + $0x48] sm:$0xff]
        %v696 = vld [vmem:[#allocation2 + $0x50] sm:$0xff]
        %v697 = vld [vmem:[#allocation2 + $0x58] sm:$0xff]
        %v698 = vld [vmem:[#allocation2 + $0x60] sm:$0xff]
        %v699 = vld [vmem:[#allocation2 + $0x68] sm:$0xff]
        %v700 = vld [vmem:[#allocation2 + $0x70] sm:$0xff]
        %v701 = vld [vmem:[#allocation2 + $0x78] sm:$0xff]
        %v702 = vld [vmem:[#allocation2 + $0x80] sm:$0xff]
        %v703 = vld [vmem:[#allocation2 + $0x88] sm:$0xff]
        %v704 = vld [vmem:[#allocation2 + $0x90] sm:$0xff]
        %v705 = vld [vmem:[#allocation2 + $0x98] sm:$0xff]
        %v706 = vld [vmem:[#allocation2 + $0xa0] sm:$0xff]
        %v707 = vld [vmem:[#allocation2 + $0xa8] sm:$0xff]
        %v708 = vld [vmem:[#allocation2 + $0xb0] sm:$0xff]
        %v709 = vld [vmem:[#allocation2 + $0xb8] sm:$0xff]
        %v710 = vld [vmem:[#allocation2 + $0xc0] sm:$0xff]
        %v711 = vld [vmem:[#allocation2 + $0xc8] sm:$0xff]
        %v712 = vld [vmem:[#allocation2 + $0xd0] sm:$0xff]
        %v713 = vld [vmem:[#allocation2 + $0xd8] sm:$0xff]
        %v714 = vld [vmem:[#allocation2 + $0xe0] sm:$0xff]
        %v715 = vld [vmem:[#allocation2 + $0xe8] sm:$0xff]
        %v716 = vld [vmem:[#allocation2 + $0xf0] sm:$0xff]
        %v717 = vld [vmem:[#allocation2 + $0xf8] sm:$0xff]
        %v718 = vld [vmem:[%s282] sm:$0x1]
        %v720 = vperm.slane %v718, 0
        %v722 = vmul.f32 %v686, %v720
        %v723 = vmul.f32 %v687, %v720
        %v724 = vmul.f32 %v688, %v720
        %v725 = vmul.f32 %v689, %v720
        %v726 = vmul.f32 %v690, %v720
        %v727 = vmul.f32 %v691, %v720
        %v728 = vmul.f32 %v692, %v720
        %v729 = vmul.f32 %v693, %v720
        %v730 = vmul.f32 %v694, %v720
        %v731 = vmul.f32 %v695, %v720
        %v732 = vmul.f32 %v696, %v720
        %v733 = vmul.f32 %v697, %v720
        %v734 = vmul.f32 %v698, %v720
        %v735 = vmul.f32 %v699, %v720
        %v736 = vmul.f32 %v700, %v720
        %v737 = vmul.f32 %v701, %v720
        %v738 = vmul.f32 %v702, %v720
        %v739 = vmul.f32 %v703, %v720
        %v740 = vmul.f32 %v704, %v720
        %v741 = vmul.f32 %v705, %v720
        %v742 = vmul.f32 %v706, %v720
        %v743 = vmul.f32 %v707, %v720
        %v744 = vmul.f32 %v708, %v720
        %v745 = vmul.f32 %v709, %v720
        %v746 = vmul.f32 %v710, %v720
        %v747 = vmul.f32 %v711, %v720
        %v748 = vmul.f32 %v712, %v720
        %v749 = vmul.f32 %v713, %v720
        %v750 = vmul.f32 %v714, %v720
        %v751 = vmul.f32 %v715, %v720
        %v752 = vmul.f32 %v716, %v720
        %v753 = vmul.f32 %v717, %v720
        %v754 = vld [vmem:[%s285] sm:$0x1]
        %v756 = vperm.slane %v754, 0
        %v758 = vadd.f32 %v722, %v756
        %v759 = vadd.f32 %v723, %v756
        %v760 = vadd.f32 %v724, %v756
        %v761 = vadd.f32 %v725, %v756
        %v762 = vadd.f32 %v726, %v756
        %v763 = vadd.f32 %v727, %v756
        %v764 = vadd.f32 %v728, %v756
        %v765 = vadd.f32 %v729, %v756
        %v766 = vadd.f32 %v730, %v756
        %v767 = vadd.f32 %v731, %v756
        %v768 = vadd.f32 %v732, %v756
        %v769 = vadd.f32 %v733, %v756
        %v770 = vadd.f32 %v734, %v756
        %v771 = vadd.f32 %v735, %v756
        %v772 = vadd.f32 %v736, %v756
        %v773 = vadd.f32 %v737, %v756
        %v774 = vadd.f32 %v738, %v756
        %v775 = vadd.f32 %v739, %v756
        %v776 = vadd.f32 %v740, %v756
        %v777 = vadd.f32 %v741, %v756
        %v778 = vadd.f32 %v742, %v756
        %v779 = vadd.f32 %v743, %v756
        %v780 = vadd.f32 %v744, %v756
        %v781 = vadd.f32 %v745, %v756
        %v782 = vadd.f32 %v746, %v756
        %v783 = vadd.f32 %v747, %v756
        %v784 = vadd.f32 %v748, %v756
        %v785 = vadd.f32 %v749, %v756
        %v786 = vadd.f32 %v750, %v756
        %v787 = vadd.f32 %v751, %v756
        %v788 = vadd.f32 %v752, %v756
        %v789 = vadd.f32 %v753, %v756
        %v790 = vpack.c.bf16 %v758, %v758
        %v791 = vpack.c.bf16 %v759, %v759
        %v792 = vpack.c.bf16 %v760, %v760
        %v793 = vpack.c.bf16 %v761, %v761
        %v794 = vpack.c.bf16 %v762, %v762
        %v795 = vpack.c.bf16 %v763, %v763
        %v796 = vpack.c.bf16 %v764, %v764
        %v797 = vpack.c.bf16 %v765, %v765
        %v798 = vpack.c.bf16 %v766, %v766
        %v799 = vpack.c.bf16 %v767, %v767
        %v800 = vpack.c.bf16 %v768, %v768
        %v801 = vpack.c.bf16 %v769, %v769
        %v802 = vpack.c.bf16 %v770, %v770
        %v803 = vpack.c.bf16 %v771, %v771
        %v804 = vpack.c.bf16 %v772, %v772
        %v805 = vpack.c.bf16 %v773, %v773
        %v806 = vpack.c.bf16 %v774, %v774
        %v807 = vpack.c.bf16 %v775, %v775
        %v808 = vpack.c.bf16 %v776, %v776
        %v809 = vpack.c.bf16 %v777, %v777
        %v810 = vpack.c.bf16 %v778, %v778
        %v811 = vpack.c.bf16 %v779, %v779
        %v812 = vpack.c.bf16 %v780, %v780
        %v813 = vpack.c.bf16 %v781, %v781
        %v814 = vpack.c.bf16 %v782, %v782
        %v815 = vpack.c.bf16 %v783, %v783
        %v816 = vpack.c.bf16 %v784, %v784
        %v817 = vpack.c.bf16 %v785, %v785
        %v818 = vpack.c.bf16 %v786, %v786
        %v819 = vpack.c.bf16 %v787, %v787
        %v820 = vpack.c.bf16 %v788, %v788
        %v821 = vpack.c.bf16 %v789, %v789
        %822 = vst [vmem:[%s293] sm:$0xf] %v790
        %823 = vst [vmem:[%s293 + $0x4] sm:$0xf] %v791
        %824 = vst [vmem:[%s293 + $0x8] sm:$0xf] %v792
        %825 = vst [vmem:[%s293 + $0xc] sm:$0xf] %v793
        %826 = vst [vmem:[%s293 + $0x10] sm:$0xf] %v794
        %827 = vst [vmem:[%s293 + $0x14] sm:$0xf] %v795
        %828 = vst [vmem:[%s293 + $0x18] sm:$0xf] %v796
        %829 = vst [vmem:[%s293 + $0x1c] sm:$0xf] %v797
        %830 = vst [vmem:[%s293 + $0x20] sm:$0xf] %v798
        %831 = vst [vmem:[%s293 + $0x24] sm:$0xf] %v799
        %832 = vst [vmem:[%s293 + $0x28] sm:$0xf] %v800
        %833 = vst [vmem:[%s293 + $0x2c] sm:$0xf] %v801
        %834 = vst [vmem:[%s293 + $0x30] sm:$0xf] %v802
        %835 = vst [vmem:[%s293 + $0x34] sm:$0xf] %v803
        %836 = vst [vmem:[%s293 + $0x38] sm:$0xf] %v804
        %837 = vst [vmem:[%s293 + $0x3c] sm:$0xf] %v805
        %838 = vst [vmem:[%s293 + $0x40] sm:$0xf] %v806
        %839 = vst [vmem:[%s293 + $0x44] sm:$0xf] %v807
        %840 = vst [vmem:[%s293 + $0x48] sm:$0xf] %v808
        %841 = vst [vmem:[%s293 + $0x4c] sm:$0xf] %v809
        %842 = vst [vmem:[%s293 + $0x50] sm:$0xf] %v810
        %843 = vst [vmem:[%s293 + $0x54] sm:$0xf] %v811
        %844 = vst [vmem:[%s293 + $0x58] sm:$0xf] %v812
        %845 = vst [vmem:[%s293 + $0x5c] sm:$0xf] %v813
        %846 = vst [vmem:[%s293 + $0x60] sm:$0xf] %v814
        %847 = vst [vmem:[%s293 + $0x64] sm:$0xf] %v815
        %848 = vst [vmem:[%s293 + $0x68] sm:$0xf] %v816
        %849 = vst [vmem:[%s293 + $0x6c] sm:$0xf] %v817
        %850 = vst [vmem:[%s293 + $0x70] sm:$0xf] %v818
        %851 = vst [vmem:[%s293 + $0x74] sm:$0xf] %v819
        %852 = vst [vmem:[%s293 + $0x78] sm:$0xf] %v820
        %853 = vst [vmem:[%s293 + $0x7c] sm:$0xf] %v821
      $region44: #{resnet_forward.11} parent=35 // pred_fallthru
        _
      %s854 = smul.u32 32, %s20
      %p855 = scmp.lt.s32.totalorder %s854, 63
      %s856 = scalar_select %p855, %s854, 63
      %p857 = scmp.lt.s32.totalorder %s21, 0
      %s858 = scalar_select %p857, %s21, 0
      %s859 = sadd.s32 %s858, %s856
      %s860 = smul.addr %s859, 4
      %s861 = scalar_lea.vmem %s4, %s860
      // Predicated region
      $region45: #{resnet_forward.11} parent=35 // pred_check
        %p862 = pneg %p162
      $region46: #{resnet_forward.11} parent=35 // pred_check_branch
        %864 = sbr.rel (%p862) target = $region48
      $region47: #{resnet_forward.11} parent=35 // pred_region
        %s865 = smul.u32 32, %s20
      $region48: #{resnet_forward.11} parent=35 // pred_fallthru
        _
    $region36: #{resnet_forward.11} parent=5 // pred_fallthru
      _
    %p866 = scmp.le.s32.totalorder 2, %s10
    // Predicated region
    $region49: #{resnet_forward.11} parent=5 // pred_check
      %p867 = pneg %p866
    $region50: #{resnet_forward.11} parent=5 // pred_check_branch
      %869 = sbr.rel (%p867) target = $region52
    $region51: #{resnet_forward.11} parent=5 // pred_region
      %s870 = ssub.s32 %s10, 2
      // Predicated region
      $region53: #{resnet_forward.11} parent=51 // pred_check
        %p871 = pneg %p168
      $region54: #{resnet_forward.11} parent=51 // pred_check_branch
        %873 = sbr.rel (%p871) target = $region56
      $region55: #{resnet_forward.11} parent=51 // pred_region
        %s874 = smul.u32 32, %s23
        %p875 = scmp.lt.s32.totalorder %s874, 63
        %s876 = scalar_select %p875, %s874, 63
        %p877 = scmp.lt.s32.totalorder %s24, 0
        %s878 = scalar_select %p877, %s24, 0
        %s879 = sadd.s32 %s878, %s876
        %s880 = smul.addr %s879, 4
        %s881 = scalar_lea.vmem %s4, %s880
      $region56: #{resnet_forward.11} parent=51 // pred_fallthru
        _
    $region52: #{resnet_forward.11} parent=5 // pred_fallthru
      _
  $region6: #{resnet_forward.11} parent=0 // loop_footer
    %s14 = sadd.s32 1, %s10
  $region7: #{resnet_forward.11} parent=0 // loop_footer_branch
    %9 = sbr.rel target = $region3
  $region8: #{resnet_forward.11} parent=0 // loop_exit
    _

// kernel: resnet_forward.10
$region0: #{resnet_forward.10}
  #allocation0 [shape = 'u32[]', space=smem, size = 0x4, offset = 0x4, fixed_abs, tag = 'smem constant byte address 0x4 - core index']
  #allocation1 [shape = 'u32[72,128]{1,0:T(1,128)}', space=vmem, size = 0x9000, scoped, tag = 'internal scratch']
  #allocation2 [shape = 'f32[256,128]{1,0:T(8,128)}', space=vmem, size = 0x20000, scoped, tag = 'scratch operand']
  %s0 = inlined_call_operand.vmem [shape: bf16[512,36], index: 0, kind: input, shape index: {}]
  %s1 = inlined_call_operand.vmem [shape: bf16[36,128], index: 1, kind: input, shape index: {}]
  %s2 = inlined_call_operand.vmem [shape: f32[1,128], index: 2, kind: input, shape index: {}]
  %s3 = inlined_call_operand.vmem [shape: f32[1,128], index: 3, kind: input, shape index: {}]
  %s4 = inlined_call_operand.vmem [shape: bf16[512,128], index: 4, kind: output, shape index: {}]
  %s5 = sld [smem:[#allocation0]]
  $region57: #{resnet_forward.10} parent=0
    _
  %s7 = ssub.s32 1, %s5
  %s8 = scalar_select 0, %s7, %s5
  loop: start=0, step=1, limit=4
  $region2: #{resnet_forward.10} parent=0 // loop_pre_header
    _
  $region3: #{resnet_forward.10} parent=0 // loop_header
    %s10 = sphi 0, %s14
    %p11 = scmp.ge.s32.totalorder %s10, 4
    %s17 = sphi 0, %s36
    %s18 = sphi 0, %s32
    %s19 = sphi 0, %s28
    %s20 = sphi 0, %s17
    %s21 = sphi 0, %s18
    %s22 = sphi 0, %s19
    %s23 = sphi 0, %s20
    %s24 = sphi 0, %s21
    %s25 = sphi 0, %s22
    %s41 = sphi 0, %s43
    %s44 = sphi 0, %s41
    %s45 = sphi 0, %s44
    %s61 = sphi 0, %s45
    %s69 = sphi 0, %s71
    %s72 = sphi 0, %s69
    %s73 = sphi 0, %s72
    %s89 = sphi 0, %s73
    %s95 = sphi 0, %s97
    %s98 = sphi 0, %s95
    %s99 = sphi 0, %s98
    %s115 = sphi 0, %s99
    %s121 = sphi 0, %s123
    %s124 = sphi 0, %s121
    %s125 = sphi 0, %s124
    %s141 = sphi 0, %s125
    %s149 = sphi 0, %s151
    %s152 = sphi 0, %s149
    %s153 = sphi 0, %s152
    %s169 = sphi 0, %s153
  $region4: #{resnet_forward.10} parent=0 // loop_header_branch
    %13 = sbr.rel (%p11) target = $region8
  $region5: #{resnet_forward.10} parent=0 // loop_body
    %s15 = ssub.s32 %s10, 1
    %s16 = ssub.s32 %s10, 2
    %s26 = sadd.s32 1, %s19
    %p27 = scmp.ge.s32.totalorder %s26, 1
    %s28 = scalar_select %p27, 0, %s26
    %s29 = sadd.s32 1, %s18
    %s30 = scalar_select %p27, %s29, %s18
    %p31 = scmp.ge.s32.totalorder %s30, 1
    %s32 = scalar_select %p31, 0, %s30
    %s33 = sadd.s32 1, %s17
    %s34 = scalar_select %p31, %s33, %s17
    %p35 = scmp.ge.s32.totalorder %s34, 2
    %s36 = scalar_select %p35, 0, %s34
    %s37 = ssub.s32 %s17, %s36
    %s38 = ssub.s32 %s19, %s28
    %s39 = sor.u32 %s37, %s38
    %p40 = scmp.eq.s32.totalorder %s39, 0
    %s42 = sadd.s32 %s41, 1
    %s43 = scalar_select %p40, %s41, %s42
    %p46 = pneg %p40
    %p47 = scmp.eq.s32.totalorder %s10, 1
    %p48 = por %p46, %p47
    %p49 = scmp.ne.s32.totalorder %s41, %s44
    %p50 = scmp.eq.s32.totalorder %s10, 0
    %p51 = por %p49, %p50
    %p52 = scmp.ne.s32.totalorder %s41, %s44
    %p53 = scmp.eq.s32.totalorder %s15, 1
    %p54 = por %p52, %p53
    %p55 = scmp.ne.s32.totalorder %s44, %s45
    %p56 = scmp.eq.s32.totalorder %s15, 0
    %p57 = por %p55, %p56
    %p58 = scmp.ne.s32.totalorder %s44, %s45
    %p59 = scmp.eq.s32.totalorder %s16, 1
    %p60 = por %p58, %p59
    %p62 = scmp.ne.s32.totalorder %s45, %s61
    %p63 = scmp.eq.s32.totalorder %s16, 0
    %p64 = por %p62, %p63
    %s65 = ssub.s32 %s19, %s28
    %s66 = ssub.s32 %s18, %s32
    %s67 = sor.u32 %s65, %s66
    %p68 = scmp.eq.s32.totalorder %s67, 0
    %s70 = sadd.s32 %s69, 1
    %s71 = scalar_select %p68, %s69, %s70
    %p74 = pneg %p68
    %p75 = scmp.eq.s32.totalorder %s10, 1
    %p76 = por %p74, %p75
    %p77 = scmp.ne.s32.totalorder %s69, %s72
    %p78 = scmp.eq.s32.totalorder %s10, 0
    %p79 = por %p77, %p78
    %p80 = scmp.ne.s32.totalorder %s69, %s72
    %p81 = scmp.eq.s32.totalorder %s15, 1
    %p82 = por %p80, %p81
    %p83 = scmp.ne.s32.totalorder %s72, %s73
    %p84 = scmp.eq.s32.totalorder %s15, 0
    %p85 = por %p83, %p84
    %p86 = scmp.ne.s32.totalorder %s72, %s73
    %p87 = scmp.eq.s32.totalorder %s16, 1
    %p88 = por %p86, %p87
    %p90 = scmp.ne.s32.totalorder %s73, %s89
    %p91 = scmp.eq.s32.totalorder %s16, 0
    %p92 = por %p90, %p91
    %s93 = ssub.s32 %s18, %s32
    %p94 = scmp.eq.s32.totalorder %s93, 0
    %s96 = sadd.s32 %s95, 1
    %s97 = scalar_select %p94, %s95, %s96
    %p100 = pneg %p94
    %p101 = scmp.eq.s32.totalorder %s10, 1
    %p102 = por %p100, %p101
    %p103 = scmp.ne.s32.totalorder %s95, %s98
    %p104 = scmp.eq.s32.totalorder %s10, 0
    %p105 = por %p103, %p104
    %p106 = scmp.ne.s32.totalorder %s95, %s98
    %p107 = scmp.eq.s32.totalorder %s15, 1
    %p108 = por %p106, %p107
    %p109 = scmp.ne.s32.totalorder %s98, %s99
    %p110 = scmp.eq.s32.totalorder %s15, 0
    %p111 = por %p109, %p110
    %p112 = scmp.ne.s32.totalorder %s98, %s99
    %p113 = scmp.eq.s32.totalorder %s16, 1
    %p114 = por %p112, %p113
    %p116 = scmp.ne.s32.totalorder %s99, %s115
    %p117 = scmp.eq.s32.totalorder %s16, 0
    %p118 = por %p116, %p117
    %s119 = ssub.s32 %s18, %s32
    %p120 = scmp.eq.s32.totalorder %s119, 0
    %s122 = sadd.s32 %s121, 1
    %s123 = scalar_select %p120, %s121, %s122
    %p126 = pneg %p120
    %p127 = scmp.eq.s32.totalorder %s10, 1
    %p128 = por %p126, %p127
    %p129 = scmp.ne.s32.totalorder %s121, %s124
    %p130 = scmp.eq.s32.totalorder %s10, 0
    %p131 = por %p129, %p130
    %p132 = scmp.ne.s32.totalorder %s121, %s124
    %p133 = scmp.eq.s32.totalorder %s15, 1
    %p134 = por %p132, %p133
    %p135 = scmp.ne.s32.totalorder %s124, %s125
    %p136 = scmp.eq.s32.totalorder %s15, 0
    %p137 = por %p135, %p136
    %p138 = scmp.ne.s32.totalorder %s124, %s125
    %p139 = scmp.eq.s32.totalorder %s16, 1
    %p140 = por %p138, %p139
    %p142 = scmp.ne.s32.totalorder %s125, %s141
    %p143 = scmp.eq.s32.totalorder %s16, 0
    %p144 = por %p142, %p143
    %s145 = ssub.s32 %s17, %s36
    %s146 = ssub.s32 %s18, %s32
    %s147 = sor.u32 %s145, %s146
    %p148 = scmp.eq.s32.totalorder %s147, 0
    %s150 = sadd.s32 %s149, 1
    %s151 = scalar_select %p148, %s149, %s150
    %p154 = pneg %p148
    %p155 = scmp.eq.s32.totalorder %s10, 1
    %p156 = por %p154, %p155
    %p157 = scmp.ne.s32.totalorder %s149, %s152
    %p158 = scmp.eq.s32.totalorder %s10, 0
    %p159 = por %p157, %p158
    %p160 = scmp.ne.s32.totalorder %s149, %s152
    %p161 = scmp.eq.s32.totalorder %s15, 1
    %p162 = por %p160, %p161
    %p163 = scmp.ne.s32.totalorder %s152, %s153
    %p164 = scmp.eq.s32.totalorder %s15, 0
    %p165 = por %p163, %p164
    %p166 = scmp.ne.s32.totalorder %s152, %s153
    %p167 = scmp.eq.s32.totalorder %s16, 1
    %p168 = por %p166, %p167
    %p170 = scmp.ne.s32.totalorder %s153, %s169
    %p171 = scmp.eq.s32.totalorder %s16, 0
    %p172 = por %p170, %p171
    %p173 = scmp.le.s32.totalorder 1, %s10
    %p174 = scmp.lt.s32.totalorder %s10, 3
    %p175 = pnand %p173, %p174
    %p176 = pneg %p175
    // Predicated region
    $region9: #{resnet_forward.10} parent=5 // pred_check
      _
    $region10: #{resnet_forward.10} parent=5 // pred_check_branch
      %178 = sbr.rel (%p175) target = $region12
    $region11: #{resnet_forward.10} parent=5 // pred_region
      %s179 = ssub.s32 %s10, 1
      // Predicated region
      $region13: #{resnet_forward.10} parent=11 // pred_check
        %p180 = pneg %p85
      $region14: #{resnet_forward.10} parent=11 // pred_check_branch
        %182 = sbr.rel (%p180) target = $region16
      $region15: #{resnet_forward.10} parent=11 // pred_region
        %s183 = smul.u32 5, %s22
        %p184 = scmp.lt.s32.totalorder %s183, 4
        %s185 = scalar_select %p184, %s183, 4
        %p186 = scmp.lt.s32.totalorder %s21, 0
        %s187 = scalar_select %p186, %s21, 0
        %s188 = sadd.s32 %s187, %s185
        %s189 = smul.addr %s188, 4
        %s190 = scalar_lea.vmem %s1, %s189
        %s191 = smul.u32 5, %s22
      $region16: #{resnet_forward.10} parent=11 // pred_fallthru
        _
      // Predicated region
      $region17: #{resnet_forward.10} parent=11 // pred_check
        %p192 = pneg %p111
      $region18: #{resnet_forward.10} parent=11 // pred_check_branch
        %194 = sbr.rel (%p192) target = $region20
      $region19: #{resnet_forward.10} parent=11 // pred_region
        %p195 = scmp.lt.s32.totalorder %s21, 0
        %s196 = scalar_select %p195, %s21, 0
        %s197 = scalar_lea.vmem %s2, %s196
      $region20: #{resnet_forward.10} parent=11 // pred_fallthru
        _
      // Predicated region
      $region21: #{resnet_forward.10} parent=11 // pred_check
        %p198 = pneg %p137
      $region22: #{resnet_forward.10} parent=11 // pred_check_branch
        %200 = sbr.rel (%p198) target = $region24
      $region23: #{resnet_forward.10} parent=11 // pred_region
        %p201 = scmp.lt.s32.totalorder %s21, 0
        %s202 = scalar_select %p201, %s21, 0
        %s203 = scalar_lea.vmem %s3, %s202
      $region24: #{resnet_forward.10} parent=11 // pred_fallthru
        _
    $region12: #{resnet_forward.10} parent=5 // pred_fallthru
      _
    %p204 = scmp.lt.s32.totalorder %s10, 2
    // Predicated region
    $region25: #{resnet_forward.10} parent=5 // pred_check
      %p205 = pneg %p204
    $region26: #{resnet_forward.10} parent=5 // pred_check_branch
      %207 = sbr.rel (%p205) target = $region28
    $region27: #{resnet_forward.10} parent=5 // pred_region
      // Predicated region
      $region29: #{resnet_forward.10} parent=27 // pred_check
        %p208 = pneg %p51
      $region30: #{resnet_forward.10} parent=27 // pred_check_branch
        %210 = sbr.rel (%p208) target = $region32
      $region31: #{resnet_forward.10} parent=27 // pred_region
        %s211 = smul.u32 32, %s17
        %p212 = scmp.lt.s32.totalorder %s211, 63
        %s213 = scalar_select %p212, %s211, 63
        %p214 = scmp.lt.s32.totalorder %s19, 0
        %s215 = scalar_select %p214, %s19, 0
        %s216 = sadd.s32 %s215, %s213
        %s217 = smul.addr %s216, 4
        %s218 = scalar_lea.vmem %s0, %s217
        %s219 = smul.u32 32, %s17
      $region32: #{resnet_forward.10} parent=27 // pred_fallthru
        _
    $region28: #{resnet_forward.10} parent=5 // pred_fallthru
      _
    %p220 = scmp.le.s32.totalorder 1, %s10
    %p221 = scmp.lt.s32.totalorder %s10, 3
    %p222 = pnand %p220, %p221
    %p223 = pneg %p222
    // Predicated region
    $region33: #{resnet_forward.10} parent=5 // pred_check
      _
    $region34: #{resnet_forward.10} parent=5 // pred_check_branch
      %225 = sbr.rel (%p222) target = $region36
    $region35: #{resnet_forward.10} parent=5 // pred_region
      %s226 = ssub.s32 %s10, 1
      %s227 = smul.u32 32, %s20
      %p228 = scmp.lt.s32.totalorder %s227, 63
      %s229 = scalar_select %p228, %s227, 63
      %p230 = scmp.lt.s32.totalorder %s22, 0
      %s231 = scalar_select %p230, %s22, 0
      %s232 = sadd.s32 %s231, %s229
      %s233 = smul.addr %s232, 4
      %s234 = scalar_lea.vmem %s0, %s233
      %p235 = pneg %p57
      %p236 = pneg %p54
      %s237 = smul.u32 5, %s22
      %p238 = scmp.lt.s32.totalorder %s237, 4
      %s239 = scalar_select %p238, %s237, 4
      %p240 = scmp.lt.s32.totalorder %s21, 0
      %s241 = scalar_select %p240, %s21, 0
      %s242 = sadd.s32 %s241, %s239
      %s243 = smul.addr %s242, 4
      %s244 = scalar_lea.vmem %s1, %s243
      %p245 = pneg %p85
      %p246 = pneg %p82
      %p247 = scmp.lt.s32.totalorder %s21, 0
      %s248 = scalar_select %p247, %s21, 0
      %s249 = scalar_lea.vmem %s2, %s248
      %p250 = pneg %p111
      %p251 = pneg %p108
      %p252 = scmp.lt.s32.totalorder %s21, 0
      %s253 = scalar_select %p252, %s21, 0
      %s254 = scalar_lea.vmem %s3, %s253
      %p255 = pneg %p137
      %p256 = pneg %p134
      %p257 = pneg %p165
      %p258 = pneg %p162
      %s259 = smul.u32 32, %s20
      %p260 = scmp.lt.s32.totalorder %s259, 63
      %s261 = scalar_select %p260, %s259, 63
      %p262 = scmp.lt.s32.totalorder %s21, 0
      %s263 = scalar_select %p262, %s21, 0
      %s264 = sadd.s32 %s263, %s261
      %s265 = smul.addr %s264, 4
      %s266 = scalar_lea.vmem %s4, %s265
      %s267 = smul.u32 32, %s20
      %p268 = scmp.lt.s32.totalorder %s267, 63
      %s269 = scalar_select %p268, %s267, 63
      %p270 = scmp.lt.s32.totalorder %s22, 0
      %s271 = scalar_select %p270, %s22, 0
      %s272 = sadd.s32 %s271, %s269
      %s273 = smul.addr %s272, 4
      %s274 = scalar_lea.vmem %s0, %s273
      %s275 = smul.u32 32, %s20
      %s276 = smul.u32 5, %s22
      %p277 = scmp.lt.s32.totalorder %s276, 4
      %s278 = scalar_select %p277, %s276, 4
      %p279 = scmp.lt.s32.totalorder %s21, 0
      %s280 = scalar_select %p279, %s21, 0
      %s281 = sadd.s32 %s280, %s278
      %s282 = smul.addr %s281, 4
      %s283 = scalar_lea.vmem %s1, %s282
      %s284 = smul.u32 5, %s22
      %p285 = scmp.lt.s32.totalorder %s21, 0
      %s286 = scalar_select %p285, %s21, 0
      %s287 = scalar_lea.vmem %s2, %s286
      %p288 = scmp.lt.s32.totalorder %s21, 0
      %s289 = scalar_select %p288, %s21, 0
      %s290 = scalar_lea.vmem %s3, %s289
      %s291 = smul.u32 32, %s20
      %p292 = scmp.lt.s32.totalorder %s291, 63
      %s293 = scalar_select %p292, %s291, 63
      %p294 = scmp.lt.s32.totalorder %s21, 0
      %s295 = scalar_select %p294, %s21, 0
      %s296 = sadd.s32 %s295, %s293
      %s297 = smul.addr %s296, 4
      %s298 = scalar_lea.vmem %s4, %s297
      %s299 = smul.u32 32, %s20
      %p301 = scmp.eq.s32.totalorder %s22, 0
      // Predicated region
      $region37: #{resnet_forward.10} parent=35 // pred_check
        %p302 = pneg %p301
      $region38: #{resnet_forward.10} parent=35 // pred_check_branch
        %304 = sbr.rel (%p302) target = $region40
      $region39: #{resnet_forward.10} parent=35 // pred_region
        %305 = vst [vmem:[#allocation2] sm:$0xff] 0.0
        %306 = vst [vmem:[#allocation2 + $0x8] sm:$0xff] 0.0
        %307 = vst [vmem:[#allocation2 + $0x10] sm:$0xff] 0.0
        %308 = vst [vmem:[#allocation2 + $0x18] sm:$0xff] 0.0
        %309 = vst [vmem:[#allocation2 + $0x20] sm:$0xff] 0.0
        %310 = vst [vmem:[#allocation2 + $0x28] sm:$0xff] 0.0
        %311 = vst [vmem:[#allocation2 + $0x30] sm:$0xff] 0.0
        %312 = vst [vmem:[#allocation2 + $0x38] sm:$0xff] 0.0
        %313 = vst [vmem:[#allocation2 + $0x40] sm:$0xff] 0.0
        %314 = vst [vmem:[#allocation2 + $0x48] sm:$0xff] 0.0
        %315 = vst [vmem:[#allocation2 + $0x50] sm:$0xff] 0.0
        %316 = vst [vmem:[#allocation2 + $0x58] sm:$0xff] 0.0
        %317 = vst [vmem:[#allocation2 + $0x60] sm:$0xff] 0.0
        %318 = vst [vmem:[#allocation2 + $0x68] sm:$0xff] 0.0
        %319 = vst [vmem:[#allocation2 + $0x70] sm:$0xff] 0.0
        %320 = vst [vmem:[#allocation2 + $0x78] sm:$0xff] 0.0
        %321 = vst [vmem:[#allocation2 + $0x80] sm:$0xff] 0.0
        %322 = vst [vmem:[#allocation2 + $0x88] sm:$0xff] 0.0
        %323 = vst [vmem:[#allocation2 + $0x90] sm:$0xff] 0.0
        %324 = vst [vmem:[#allocation2 + $0x98] sm:$0xff] 0.0
        %325 = vst [vmem:[#allocation2 + $0xa0] sm:$0xff] 0.0
        %326 = vst [vmem:[#allocation2 + $0xa8] sm:$0xff] 0.0
        %327 = vst [vmem:[#allocation2 + $0xb0] sm:$0xff] 0.0
        %328 = vst [vmem:[#allocation2 + $0xb8] sm:$0xff] 0.0
        %329 = vst [vmem:[#allocation2 + $0xc0] sm:$0xff] 0.0
        %330 = vst [vmem:[#allocation2 + $0xc8] sm:$0xff] 0.0
        %331 = vst [vmem:[#allocation2 + $0xd0] sm:$0xff] 0.0
        %332 = vst [vmem:[#allocation2 + $0xd8] sm:$0xff] 0.0
        %333 = vst [vmem:[#allocation2 + $0xe0] sm:$0xff] 0.0
        %334 = vst [vmem:[#allocation2 + $0xe8] sm:$0xff] 0.0
        %335 = vst [vmem:[#allocation2 + $0xf0] sm:$0xff] 0.0
        %336 = vst [vmem:[#allocation2 + $0xf8] sm:$0xff] 0.0
      $region40: #{resnet_forward.10} parent=35 // pred_fallthru
        _
      %v337 = vld [vmem:[#allocation2] sm:$0xff]
      %v338 = vld [vmem:[#allocation2 + $0x8] sm:$0xff]
      %v339 = vld [vmem:[#allocation2 + $0x10] sm:$0xff]
      %v340 = vld [vmem:[#allocation2 + $0x18] sm:$0xff]
      %v341 = vld [vmem:[#allocation2 + $0x20] sm:$0xff]
      %v342 = vld [vmem:[#allocation2 + $0x28] sm:$0xff]
      %v343 = vld [vmem:[#allocation2 + $0x30] sm:$0xff]
      %v344 = vld [vmem:[#allocation2 + $0x38] sm:$0xff]
      %v345 = vld [vmem:[#allocation2 + $0x40] sm:$0xff]
      %v346 = vld [vmem:[#allocation2 + $0x48] sm:$0xff]
      %v347 = vld [vmem:[#allocation2 + $0x50] sm:$0xff]
      %v348 = vld [vmem:[#allocation2 + $0x58] sm:$0xff]
      %v349 = vld [vmem:[#allocation2 + $0x60] sm:$0xff]
      %v350 = vld [vmem:[#allocation2 + $0x68] sm:$0xff]
      %v351 = vld [vmem:[#allocation2 + $0x70] sm:$0xff]
      %v352 = vld [vmem:[#allocation2 + $0x78] sm:$0xff]
      %v353 = vld [vmem:[#allocation2 + $0x80] sm:$0xff]
      %v354 = vld [vmem:[#allocation2 + $0x88] sm:$0xff]
      %v355 = vld [vmem:[#allocation2 + $0x90] sm:$0xff]
      %v356 = vld [vmem:[#allocation2 + $0x98] sm:$0xff]
      %v357 = vld [vmem:[#allocation2 + $0xa0] sm:$0xff]
      %v358 = vld [vmem:[#allocation2 + $0xa8] sm:$0xff]
      %v359 = vld [vmem:[#allocation2 + $0xb0] sm:$0xff]
      %v360 = vld [vmem:[#allocation2 + $0xb8] sm:$0xff]
      %v361 = vld [vmem:[#allocation2 + $0xc0] sm:$0xff]
      %v362 = vld [vmem:[#allocation2 + $0xc8] sm:$0xff]
      %v363 = vld [vmem:[#allocation2 + $0xd0] sm:$0xff]
      %v364 = vld [vmem:[#allocation2 + $0xd8] sm:$0xff]
      %v365 = vld [vmem:[#allocation2 + $0xe0] sm:$0xff]
      %v366 = vld [vmem:[#allocation2 + $0xe8] sm:$0xff]
      %v367 = vld [vmem:[#allocation2 + $0xf0] sm:$0xff]
      %v368 = vld [vmem:[#allocation2 + $0xf8] sm:$0xff]
      %v369 = vld [vmem:[%s274] sm:$0xf]
      %v370 = vld [vmem:[%s274 + $0x4] sm:$0xf]
      %v371 = vld [vmem:[%s274 + $0x8] sm:$0xf]
      %v372 = vld [vmem:[%s274 + $0xc] sm:$0xf]
      %v373 = vld [vmem:[%s274 + $0x10] sm:$0xf]
      %v374 = vld [vmem:[%s274 + $0x14] sm:$0xf]
      %v375 = vld [vmem:[%s274 + $0x18] sm:$0xf]
      %v376 = vld [vmem:[%s274 + $0x1c] sm:$0xf]
      %v377 = vld [vmem:[%s274 + $0x20] sm:$0xf]
      %v378 = vld [vmem:[%s274 + $0x24] sm:$0xf]
      %v379 = vld [vmem:[%s274 + $0x28] sm:$0xf]
      %v380 = vld [vmem:[%s274 + $0x2c] sm:$0xf]
      %v381 = vld [vmem:[%s274 + $0x30] sm:$0xf]
      %v382 = vld [vmem:[%s274 + $0x34] sm:$0xf]
      %v383 = vld [vmem:[%s274 + $0x38] sm:$0xf]
      %v384 = vld [vmem:[%s274 + $0x3c] sm:$0xf]
      %v385 = vld [vmem:[%s274 + $0x40] sm:$0xf]
      %v386 = vld [vmem:[%s274 + $0x44] sm:$0xf]
      %v387 = vld [vmem:[%s274 + $0x48] sm:$0xf]
      %v388 = vld [vmem:[%s274 + $0x4c] sm:$0xf]
      %v389 = vld [vmem:[%s274 + $0x50] sm:$0xf]
      %v390 = vld [vmem:[%s274 + $0x54] sm:$0xf]
      %v391 = vld [vmem:[%s274 + $0x58] sm:$0xf]
      %v392 = vld [vmem:[%s274 + $0x5c] sm:$0xf]
      %v393 = vld [vmem:[%s274 + $0x60] sm:$0xf]
      %v394 = vld [vmem:[%s274 + $0x64] sm:$0xf]
      %v395 = vld [vmem:[%s274 + $0x68] sm:$0xf]
      %v396 = vld [vmem:[%s274 + $0x6c] sm:$0xf]
      %v397 = vld [vmem:[%s274 + $0x70] sm:$0xf]
      %v398 = vld [vmem:[%s274 + $0x74] sm:$0xf]
      %v399 = vld [vmem:[%s274 + $0x78] sm:$0xf]
      %v400 = vld [vmem:[%s274 + $0x7c] sm:$0xf]
      %v401 = vld [vmem:[%s283] sm:$0xf]
      %v402 = vld [vmem:[%s283 + $0x4] sm:$0xf]
      %v403 = vld [vmem:[%s283 + $0x8] sm:$0xf]
      %v404 = vld [vmem:[%s283 + $0xc] sm:$0xf]
      %v405 = vld [vmem:[%s283 + $0x10] sm:$0x3]
      %v438 = vunpack.c.l.b16 %v369
      %v439 = vunpack.c.l.b16 %v370
      %v440 = vunpack.c.l.b16 %v371
      %v441 = vunpack.c.l.b16 %v372
      %v442 = vunpack.c.l.b16 %v373
      %v443 = vunpack.c.l.b16 %v374
      %v444 = vunpack.c.l.b16 %v375
      %v445 = vunpack.c.l.b16 %v376
      %v446 = vunpack.c.l.b16 %v377
      %v447 = vunpack.c.l.b16 %v378
      %v448 = vunpack.c.l.b16 %v379
      %v449 = vunpack.c.l.b16 %v380
      %v450 = vunpack.c.l.b16 %v381
      %v451 = vunpack.c.l.b16 %v382
      %v452 = vunpack.c.l.b16 %v383
      %v453 = vunpack.c.l.b16 %v384
      %v454 = vunpack.c.l.b16 %v385
      %v455 = vunpack.c.l.b16 %v386
      %v456 = vunpack.c.l.b16 %v387
      %v457 = vunpack.c.l.b16 %v388
      %v458 = vunpack.c.l.b16 %v389
      %v459 = vunpack.c.l.b16 %v390
      %v460 = vunpack.c.l.b16 %v391
      %v461 = vunpack.c.l.b16 %v392
      %v462 = vunpack.c.l.b16 %v393
      %v463 = vunpack.c.l.b16 %v394
      %v464 = vunpack.c.l.b16 %v395
      %v465 = vunpack.c.l.b16 %v396
      %v466 = vunpack.c.l.b16 %v397
      %v467 = vunpack.c.l.b16 %v398
      %v468 = vunpack.c.l.b16 %v399
      %v469 = vunpack.c.l.b16 %v400
      %v470 = vpack.c.b16 %v439, %v438
      %v471 = vpack.c.b16 %v441, %v440
      %v472 = vpack.c.b16 %v443, %v442
      %v473 = vpack.c.b16 %v445, %v444
      %v474 = vpack.c.b16 %v447, %v446
      %v475 = vpack.c.b16 %v449, %v448
      %v476 = vpack.c.b16 %v451, %v450
      %v477 = vpack.c.b16 %v453, %v452
      %v478 = vpack.c.b16 %v455, %v454
      %v479 = vpack.c.b16 %v457, %v456
      %v480 = vpack.c.b16 %v459, %v458
      %v481 = vpack.c.b16 %v461, %v460
      %v482 = vpack.c.b16 %v463, %v462
      %v483 = vpack.c.b16 %v465, %v464
      %v484 = vpack.c.b16 %v467, %v466
      %v485 = vpack.c.b16 %v469, %v468
      %v491 = vunpack.c.l.b16 %v401
      %v492 = vunpack.c.l.b16 %v402
      %v493 = vunpack.c.l.b16 %v403
      %v494 = vunpack.c.l.b16 %v404
      %v495 = vunpack.c.l.b16 %v405
      %v496 = vpack.c.b16 %v492, %v491
      %v497 = vpack.c.b16 %v494, %v493
      %v498 = vpack.c.b16 %v495, %v495
      %vm501 = vcmask 293888
      %v503 = vsel %vm501, %v470, 0
      %v506 = vsel %vm501, %v471, 0
      %v509 = vsel %vm501, %v472, 0
      %v512 = vsel %vm501, %v473, 0
      %v515 = vsel %vm501, %v474, 0
      %v518 = vsel %vm501, %v475, 0
      %v521 = vsel %vm501, %v476, 0
      %v524 = vsel %vm501, %v477, 0
      %v527 = vsel %vm501, %v478, 0
      %v530 = vsel %vm501, %v479, 0
      %v533 = vsel %vm501, %v480, 0
      %v536 = vsel %vm501, %v481, 0
      %v539 = vsel %vm501, %v482, 0
      %v542 = vsel %vm501, %v483, 0
      %v545 = vsel %vm501, %v484, 0
      %v548 = vsel %vm501, %v485, 0
      %vm550 = vcmask 1041408
      %v552 = vsel %vm550, %v498, 0
      %554 = vmatpush.bf16.msra.mxu0 0
      %555 = vmatpush.bf16.msra.mxu0 0
      %556 = vmatpush.bf16.msra.mxu0 0
      %557 = vmatpush.bf16.msra.mxu0 0
      %558 = vmatpush.bf16.msra.mxu0 0
      %559 = vmatpush.bf16.msra.mxu0 %v552
      %560 = vmatpush.bf16.msra.mxu0 %v497
      %561 = vmatpush.bf16.msra.mxu0 %v496
      %562 = vmatmul.bf16.gmra.mxu0 %v503
      %v563 = vpop.f32.mrf.mxu0
      %v564 = vadd.f32 0.0, %v563
      %v565 = vpop.f32.mrf.mxu0
      %v566 = vadd.f32 0.0, %v565
      %567 = vmatmul.bf16.gmra.mxu0 %v506
      %v568 = vpop.f32.mrf.mxu0
      %v569 = vadd.f32 0.0, %v568
      %v570 = vpop.f32.mrf.mxu0
      %v571 = vadd.f32 0.0, %v570
      %572 = vmatmul.bf16.gmra.mxu0 %v509
      %v573 = vpop.f32.mrf.mxu0
      %v574 = vadd.f32 0.0, %v573
      %v575 = vpop.f32.mrf.mxu0
      %v576 = vadd.f32 0.0, %v575
      %577 = vmatmul.bf16.gmra.mxu0 %v512
      %v578 = vpop.f32.mrf.mxu0
      %v579 = vadd.f32 0.0, %v578
      %v580 = vpop.f32.mrf.mxu0
      %v581 = vadd.f32 0.0, %v580
      %582 = vmatmul.bf16.gmra.mxu0 %v515
      %v583 = vpop.f32.mrf.mxu0
      %v584 = vadd.f32 0.0, %v583
      %v585 = vpop.f32.mrf.mxu0
      %v586 = vadd.f32 0.0, %v585
      %587 = vmatmul.bf16.gmra.mxu0 %v518
      %v588 = vpop.f32.mrf.mxu0
      %v589 = vadd.f32 0.0, %v588
      %v590 = vpop.f32.mrf.mxu0
      %v591 = vadd.f32 0.0, %v590
      %592 = vmatmul.bf16.gmra.mxu0 %v521
      %v593 = vpop.f32.mrf.mxu0
      %v594 = vadd.f32 0.0, %v593
      %v595 = vpop.f32.mrf.mxu0
      %v596 = vadd.f32 0.0, %v595
      %597 = vmatmul.bf16.gmra.mxu0 %v524
      %v598 = vpop.f32.mrf.mxu0
      %v599 = vadd.f32 0.0, %v598
      %v600 = vpop.f32.mrf.mxu0
      %v601 = vadd.f32 0.0, %v600
      %602 = vmatmul.bf16.gmra.mxu0 %v527
      %v603 = vpop.f32.mrf.mxu0
      %v604 = vadd.f32 0.0, %v603
      %v605 = vpop.f32.mrf.mxu0
      %v606 = vadd.f32 0.0, %v605
      %607 = vmatmul.bf16.gmra.mxu0 %v530
      %v608 = vpop.f32.mrf.mxu0
      %v609 = vadd.f32 0.0, %v608
      %v610 = vpop.f32.mrf.mxu0
      %v611 = vadd.f32 0.0, %v610
      %612 = vmatmul.bf16.gmra.mxu0 %v533
      %v613 = vpop.f32.mrf.mxu0
      %v614 = vadd.f32 0.0, %v613
      %v615 = vpop.f32.mrf.mxu0
      %v616 = vadd.f32 0.0, %v615
      %617 = vmatmul.bf16.gmra.mxu0 %v536
      %v618 = vpop.f32.mrf.mxu0
      %v619 = vadd.f32 0.0, %v618
      %v620 = vpop.f32.mrf.mxu0
      %v621 = vadd.f32 0.0, %v620
      %622 = vmatmul.bf16.gmra.mxu0 %v539
      %v623 = vpop.f32.mrf.mxu0
      %v624 = vadd.f32 0.0, %v623
      %v625 = vpop.f32.mrf.mxu0
      %v626 = vadd.f32 0.0, %v625
      %627 = vmatmul.bf16.gmra.mxu0 %v542
      %v628 = vpop.f32.mrf.mxu0
      %v629 = vadd.f32 0.0, %v628
      %v630 = vpop.f32.mrf.mxu0
      %v631 = vadd.f32 0.0, %v630
      %632 = vmatmul.bf16.gmra.mxu0 %v545
      %v633 = vpop.f32.mrf.mxu0
      %v634 = vadd.f32 0.0, %v633
      %v635 = vpop.f32.mrf.mxu0
      %v636 = vadd.f32 0.0, %v635
      %637 = vmatmul.bf16.gmra.mxu0 %v548
      %v638 = vpop.f32.mrf.mxu0
      %v639 = vadd.f32 0.0, %v638
      %v640 = vpop.f32.mrf.mxu0
      %v641 = vadd.f32 0.0, %v640
      %642 = vdwg.mxu0
      %v643 = vadd.f32 %v337, %v564
      %v644 = vadd.f32 %v338, %v566
      %v645 = vadd.f32 %v339, %v569
      %v646 = vadd.f32 %v340, %v571
      %v647 = vadd.f32 %v341, %v574
      %v648 = vadd.f32 %v342, %v576
      %v649 = vadd.f32 %v343, %v579
      %v650 = vadd.f32 %v344, %v581
      %v651 = vadd.f32 %v345, %v584
      %v652 = vadd.f32 %v346, %v586
      %v653 = vadd.f32 %v347, %v589
      %v654 = vadd.f32 %v348, %v591
      %v655 = vadd.f32 %v349, %v594
      %v656 = vadd.f32 %v350, %v596
      %v657 = vadd.f32 %v351, %v599
      %v658 = vadd.f32 %v352, %v601
      %v659 = vadd.f32 %v353, %v604
      %v660 = vadd.f32 %v354, %v606
      %v661 = vadd.f32 %v355, %v609
      %v662 = vadd.f32 %v356, %v611
      %v663 = vadd.f32 %v357, %v614
      %v664 = vadd.f32 %v358, %v616
      %v665 = vadd.f32 %v359, %v619
      %v666 = vadd.f32 %v360, %v621
      %v667 = vadd.f32 %v361, %v624
      %v668 = vadd.f32 %v362, %v626
      %v669 = vadd.f32 %v363, %v629
      %v670 = vadd.f32 %v364, %v631
      %v671 = vadd.f32 %v365, %v634
      %v672 = vadd.f32 %v366, %v636
      %v673 = vadd.f32 %v367, %v639
      %v674 = vadd.f32 %v368, %v641
      %675 = vst [vmem:[#allocation2] sm:$0xff] %v643
      %676 = vst [vmem:[#allocation2 + $0x8] sm:$0xff] %v644
      %677 = vst [vmem:[#allocation2 + $0x10] sm:$0xff] %v645
      %678 = vst [vmem:[#allocation2 + $0x18] sm:$0xff] %v646
      %679 = vst [vmem:[#allocation2 + $0x20] sm:$0xff] %v647
      %680 = vst [vmem:[#allocation2 + $0x28] sm:$0xff] %v648
      %681 = vst [vmem:[#allocation2 + $0x30] sm:$0xff] %v649
      %682 = vst [vmem:[#allocation2 + $0x38] sm:$0xff] %v650
      %683 = vst [vmem:[#allocation2 + $0x40] sm:$0xff] %v651
      %684 = vst [vmem:[#allocation2 + $0x48] sm:$0xff] %v652
      %685 = vst [vmem:[#allocation2 + $0x50] sm:$0xff] %v653
      %686 = vst [vmem:[#allocation2 + $0x58] sm:$0xff] %v654
      %687 = vst [vmem:[#allocation2 + $0x60] sm:$0xff] %v655
      %688 = vst [vmem:[#allocation2 + $0x68] sm:$0xff] %v656
      %689 = vst [vmem:[#allocation2 + $0x70] sm:$0xff] %v657
      %690 = vst [vmem:[#allocation2 + $0x78] sm:$0xff] %v658
      %691 = vst [vmem:[#allocation2 + $0x80] sm:$0xff] %v659
      %692 = vst [vmem:[#allocation2 + $0x88] sm:$0xff] %v660
      %693 = vst [vmem:[#allocation2 + $0x90] sm:$0xff] %v661
      %694 = vst [vmem:[#allocation2 + $0x98] sm:$0xff] %v662
      %695 = vst [vmem:[#allocation2 + $0xa0] sm:$0xff] %v663
      %696 = vst [vmem:[#allocation2 + $0xa8] sm:$0xff] %v664
      %697 = vst [vmem:[#allocation2 + $0xb0] sm:$0xff] %v665
      %698 = vst [vmem:[#allocation2 + $0xb8] sm:$0xff] %v666
      %699 = vst [vmem:[#allocation2 + $0xc0] sm:$0xff] %v667
      %700 = vst [vmem:[#allocation2 + $0xc8] sm:$0xff] %v668
      %701 = vst [vmem:[#allocation2 + $0xd0] sm:$0xff] %v669
      %702 = vst [vmem:[#allocation2 + $0xd8] sm:$0xff] %v670
      %703 = vst [vmem:[#allocation2 + $0xe0] sm:$0xff] %v671
      %704 = vst [vmem:[#allocation2 + $0xe8] sm:$0xff] %v672
      %705 = vst [vmem:[#allocation2 + $0xf0] sm:$0xff] %v673
      %706 = vst [vmem:[#allocation2 + $0xf8] sm:$0xff] %v674
      // Predicated region
      $region41: #{resnet_forward.10} parent=35 // pred_check
        %p707 = pneg %p301
      $region42: #{resnet_forward.10} parent=35 // pred_check_branch
        %709 = sbr.rel (%p707) target = $region44
      $region43: #{resnet_forward.10} parent=35 // pred_region
        %v710 = vld [vmem:[#allocation2] sm:$0xff]
        %v711 = vld [vmem:[#allocation2 + $0x8] sm:$0xff]
        %v712 = vld [vmem:[#allocation2 + $0x10] sm:$0xff]
        %v713 = vld [vmem:[#allocation2 + $0x18] sm:$0xff]
        %v714 = vld [vmem:[#allocation2 + $0x20] sm:$0xff]
        %v715 = vld [vmem:[#allocation2 + $0x28] sm:$0xff]
        %v716 = vld [vmem:[#allocation2 + $0x30] sm:$0xff]
        %v717 = vld [vmem:[#allocation2 + $0x38] sm:$0xff]
        %v718 = vld [vmem:[#allocation2 + $0x40] sm:$0xff]
        %v719 = vld [vmem:[#allocation2 + $0x48] sm:$0xff]
        %v720 = vld [vmem:[#allocation2 + $0x50] sm:$0xff]
        %v721 = vld [vmem:[#allocation2 + $0x58] sm:$0xff]
        %v722 = vld [vmem:[#allocation2 + $0x60] sm:$0xff]
        %v723 = vld [vmem:[#allocation2 + $0x68] sm:$0xff]
        %v724 = vld [vmem:[#allocation2 + $0x70] sm:$0xff]
        %v725 = vld [vmem:[#allocation2 + $0x78] sm:$0xff]
        %v726 = vld [vmem:[#allocation2 + $0x80] sm:$0xff]
        %v727 = vld [vmem:[#allocation2 + $0x88] sm:$0xff]
        %v728 = vld [vmem:[#allocation2 + $0x90] sm:$0xff]
        %v729 = vld [vmem:[#allocation2 + $0x98] sm:$0xff]
        %v730 = vld [vmem:[#allocation2 + $0xa0] sm:$0xff]
        %v731 = vld [vmem:[#allocation2 + $0xa8] sm:$0xff]
        %v732 = vld [vmem:[#allocation2 + $0xb0] sm:$0xff]
        %v733 = vld [vmem:[#allocation2 + $0xb8] sm:$0xff]
        %v734 = vld [vmem:[#allocation2 + $0xc0] sm:$0xff]
        %v735 = vld [vmem:[#allocation2 + $0xc8] sm:$0xff]
        %v736 = vld [vmem:[#allocation2 + $0xd0] sm:$0xff]
        %v737 = vld [vmem:[#allocation2 + $0xd8] sm:$0xff]
        %v738 = vld [vmem:[#allocation2 + $0xe0] sm:$0xff]
        %v739 = vld [vmem:[#allocation2 + $0xe8] sm:$0xff]
        %v740 = vld [vmem:[#allocation2 + $0xf0] sm:$0xff]
        %v741 = vld [vmem:[#allocation2 + $0xf8] sm:$0xff]
        %v742 = vld [vmem:[%s287] sm:$0x1]
        %v744 = vperm.slane %v742, 0
        %v746 = vmul.f32 %v710, %v744
        %v747 = vmul.f32 %v711, %v744
        %v748 = vmul.f32 %v712, %v744
        %v749 = vmul.f32 %v713, %v744
        %v750 = vmul.f32 %v714, %v744
        %v751 = vmul.f32 %v715, %v744
        %v752 = vmul.f32 %v716, %v744
        %v753 = vmul.f32 %v717, %v744
        %v754 = vmul.f32 %v718, %v744
        %v755 = vmul.f32 %v719, %v744
        %v756 = vmul.f32 %v720, %v744
        %v757 = vmul.f32 %v721, %v744
        %v758 = vmul.f32 %v722, %v744
        %v759 = vmul.f32 %v723, %v744
        %v760 = vmul.f32 %v724, %v744
        %v761 = vmul.f32 %v725, %v744
        %v762 = vmul.f32 %v726, %v744
        %v763 = vmul.f32 %v727, %v744
        %v764 = vmul.f32 %v728, %v744
        %v765 = vmul.f32 %v729, %v744
        %v766 = vmul.f32 %v730, %v744
        %v767 = vmul.f32 %v731, %v744
        %v768 = vmul.f32 %v732, %v744
        %v769 = vmul.f32 %v733, %v744
        %v770 = vmul.f32 %v734, %v744
        %v771 = vmul.f32 %v735, %v744
        %v772 = vmul.f32 %v736, %v744
        %v773 = vmul.f32 %v737, %v744
        %v774 = vmul.f32 %v738, %v744
        %v775 = vmul.f32 %v739, %v744
        %v776 = vmul.f32 %v740, %v744
        %v777 = vmul.f32 %v741, %v744
        %v778 = vld [vmem:[%s290] sm:$0x1]
        %v780 = vperm.slane %v778, 0
        %v782 = vadd.f32 %v746, %v780
        %v783 = vadd.f32 %v747, %v780
        %v784 = vadd.f32 %v748, %v780
        %v785 = vadd.f32 %v749, %v780
        %v786 = vadd.f32 %v750, %v780
        %v787 = vadd.f32 %v751, %v780
        %v788 = vadd.f32 %v752, %v780
        %v789 = vadd.f32 %v753, %v780
        %v790 = vadd.f32 %v754, %v780
        %v791 = vadd.f32 %v755, %v780
        %v792 = vadd.f32 %v756, %v780
        %v793 = vadd.f32 %v757, %v780
        %v794 = vadd.f32 %v758, %v780
        %v795 = vadd.f32 %v759, %v780
        %v796 = vadd.f32 %v760, %v780
        %v797 = vadd.f32 %v761, %v780
        %v798 = vadd.f32 %v762, %v780
        %v799 = vadd.f32 %v763, %v780
        %v800 = vadd.f32 %v764, %v780
        %v801 = vadd.f32 %v765, %v780
        %v802 = vadd.f32 %v766, %v780
        %v803 = vadd.f32 %v767, %v780
        %v804 = vadd.f32 %v768, %v780
        %v805 = vadd.f32 %v769, %v780
        %v806 = vadd.f32 %v770, %v780
        %v807 = vadd.f32 %v771, %v780
        %v808 = vadd.f32 %v772, %v780
        %v809 = vadd.f32 %v773, %v780
        %v810 = vadd.f32 %v774, %v780
        %v811 = vadd.f32 %v775, %v780
        %v812 = vadd.f32 %v776, %v780
        %v813 = vadd.f32 %v777, %v780
        %v814 = vmax.f32 %v782, 0.0
        %v815 = vmax.f32 %v783, 0.0
        %v816 = vmax.f32 %v784, 0.0
        %v817 = vmax.f32 %v785, 0.0
        %v818 = vmax.f32 %v786, 0.0
        %v819 = vmax.f32 %v787, 0.0
        %v820 = vmax.f32 %v788, 0.0
        %v821 = vmax.f32 %v789, 0.0
        %v822 = vmax.f32 %v790, 0.0
        %v823 = vmax.f32 %v791, 0.0
        %v824 = vmax.f32 %v792, 0.0
        %v825 = vmax.f32 %v793, 0.0
        %v826 = vmax.f32 %v794, 0.0
        %v827 = vmax.f32 %v795, 0.0
        %v828 = vmax.f32 %v796, 0.0
        %v829 = vmax.f32 %v797, 0.0
        %v830 = vmax.f32 %v798, 0.0
        %v831 = vmax.f32 %v799, 0.0
        %v832 = vmax.f32 %v800, 0.0
        %v833 = vmax.f32 %v801, 0.0
        %v834 = vmax.f32 %v802, 0.0
        %v835 = vmax.f32 %v803, 0.0
        %v836 = vmax.f32 %v804, 0.0
        %v837 = vmax.f32 %v805, 0.0
        %v838 = vmax.f32 %v806, 0.0
        %v839 = vmax.f32 %v807, 0.0
        %v840 = vmax.f32 %v808, 0.0
        %v841 = vmax.f32 %v809, 0.0
        %v842 = vmax.f32 %v810, 0.0
        %v843 = vmax.f32 %v811, 0.0
        %v844 = vmax.f32 %v812, 0.0
        %v845 = vmax.f32 %v813, 0.0
        %v846 = vpack.c.bf16 %v814, %v814
        %v847 = vpack.c.bf16 %v815, %v815
        %v848 = vpack.c.bf16 %v816, %v816
        %v849 = vpack.c.bf16 %v817, %v817
        %v850 = vpack.c.bf16 %v818, %v818
        %v851 = vpack.c.bf16 %v819, %v819
        %v852 = vpack.c.bf16 %v820, %v820
        %v853 = vpack.c.bf16 %v821, %v821
        %v854 = vpack.c.bf16 %v822, %v822
        %v855 = vpack.c.bf16 %v823, %v823
        %v856 = vpack.c.bf16 %v824, %v824
        %v857 = vpack.c.bf16 %v825, %v825
        %v858 = vpack.c.bf16 %v826, %v826
        %v859 = vpack.c.bf16 %v827, %v827
        %v860 = vpack.c.bf16 %v828, %v828
        %v861 = vpack.c.bf16 %v829, %v829
        %v862 = vpack.c.bf16 %v830, %v830
        %v863 = vpack.c.bf16 %v831, %v831
        %v864 = vpack.c.bf16 %v832, %v832
        %v865 = vpack.c.bf16 %v833, %v833
        %v866 = vpack.c.bf16 %v834, %v834
        %v867 = vpack.c.bf16 %v835, %v835
        %v868 = vpack.c.bf16 %v836, %v836
        %v869 = vpack.c.bf16 %v837, %v837
        %v870 = vpack.c.bf16 %v838, %v838
        %v871 = vpack.c.bf16 %v839, %v839
        %v872 = vpack.c.bf16 %v840, %v840
        %v873 = vpack.c.bf16 %v841, %v841
        %v874 = vpack.c.bf16 %v842, %v842
        %v875 = vpack.c.bf16 %v843, %v843
        %v876 = vpack.c.bf16 %v844, %v844
        %v877 = vpack.c.bf16 %v845, %v845
        %878 = vst [vmem:[%s298] sm:$0xf] %v846
        %879 = vst [vmem:[%s298 + $0x4] sm:$0xf] %v847
        %880 = vst [vmem:[%s298 + $0x8] sm:$0xf] %v848
        %881 = vst [vmem:[%s298 + $0xc] sm:$0xf] %v849
        %882 = vst [vmem:[%s298 + $0x10] sm:$0xf] %v850
        %883 = vst [vmem:[%s298 + $0x14] sm:$0xf] %v851
        %884 = vst [vmem:[%s298 + $0x18] sm:$0xf] %v852
        %885 = vst [vmem:[%s298 + $0x1c] sm:$0xf] %v853
        %886 = vst [vmem:[%s298 + $0x20] sm:$0xf] %v854
        %887 = vst [vmem:[%s298 + $0x24] sm:$0xf] %v855
        %888 = vst [vmem:[%s298 + $0x28] sm:$0xf] %v856
        %889 = vst [vmem:[%s298 + $0x2c] sm:$0xf] %v857
        %890 = vst [vmem:[%s298 + $0x30] sm:$0xf] %v858
        %891 = vst [vmem:[%s298 + $0x34] sm:$0xf] %v859
        %892 = vst [vmem:[%s298 + $0x38] sm:$0xf] %v860
        %893 = vst [vmem:[%s298 + $0x3c] sm:$0xf] %v861
        %894 = vst [vmem:[%s298 + $0x40] sm:$0xf] %v862
        %895 = vst [vmem:[%s298 + $0x44] sm:$0xf] %v863
        %896 = vst [vmem:[%s298 + $0x48] sm:$0xf] %v864
        %897 = vst [vmem:[%s298 + $0x4c] sm:$0xf] %v865
        %898 = vst [vmem:[%s298 + $0x50] sm:$0xf] %v866
        %899 = vst [vmem:[%s298 + $0x54] sm:$0xf] %v867
        %900 = vst [vmem:[%s298 + $0x58] sm:$0xf] %v868
        %901 = vst [vmem:[%s298 + $0x5c] sm:$0xf] %v869
        %902 = vst [vmem:[%s298 + $0x60] sm:$0xf] %v870
        %903 = vst [vmem:[%s298 + $0x64] sm:$0xf] %v871
        %904 = vst [vmem:[%s298 + $0x68] sm:$0xf] %v872
        %905 = vst [vmem:[%s298 + $0x6c] sm:$0xf] %v873
        %906 = vst [vmem:[%s298 + $0x70] sm:$0xf] %v874
        %907 = vst [vmem:[%s298 + $0x74] sm:$0xf] %v875
        %908 = vst [vmem:[%s298 + $0x78] sm:$0xf] %v876
        %909 = vst [vmem:[%s298 + $0x7c] sm:$0xf] %v877
      $region44: #{resnet_forward.10} parent=35 // pred_fallthru
        _
      %s910 = smul.u32 32, %s20
      %p911 = scmp.lt.s32.totalorder %s910, 63
      %s912 = scalar_select %p911, %s910, 63
      %p913 = scmp.lt.s32.totalorder %s21, 0
      %s914 = scalar_select %p913, %s21, 0
      %s915 = sadd.s32 %s914, %s912
      %s916 = smul.addr %s915, 4
      %s917 = scalar_lea.vmem %s4, %s916
      // Predicated region
      $region45: #{resnet_forward.10} parent=35 // pred_check
        %p918 = pneg %p162
      $region46: #{resnet_forward.10} parent=35 // pred_check_branch
        %920 = sbr.rel (%p918) target = $region48
      $region47: #{resnet_forward.10} parent=35 // pred_region
        %s921 = smul.u32 32, %s20
      $region48: #{resnet_forward.10} parent=35 // pred_fallthru
        _
    $region36: #{resnet_forward.10} parent=5 // pred_fallthru
      _
    %p922 = scmp.le.s32.totalorder 2, %s10
    // Predicated region
    $region49: #{resnet_forward.10} parent=5 // pred_check
      %p923 = pneg %p922
    $region50: #{resnet_forward.10} parent=5 // pred_check_branch
      %925 = sbr.rel (%p923) target = $region52
    $region51: #{resnet_forward.10} parent=5 // pred_region
      %s926 = ssub.s32 %s10, 2
      // Predicated region
      $region53: #{resnet_forward.10} parent=51 // pred_check
        %p927 = pneg %p168
      $region54: #{resnet_forward.10} parent=51 // pred_check_branch
        %929 = sbr.rel (%p927) target = $region56
      $region55: #{resnet_forward.10} parent=51 // pred_region
        %s930 = smul.u32 32, %s23
        %p931 = scmp.lt.s32.totalorder %s930, 63
        %s932 = scalar_select %p931, %s930, 63
        %p933 = scmp.lt.s32.totalorder %s24, 0
        %s934 = scalar_select %p933, %s24, 0
        %s935 = sadd.s32 %s934, %s932
        %s936 = smul.addr %s935, 4
        %s937 = scalar_lea.vmem %s4, %s936
      $region56: #{resnet_forward.10} parent=51 // pred_fallthru
        _
    $region52: #{resnet_forward.10} parent=5 // pred_fallthru
      _
  $region6: #{resnet_forward.10} parent=0 // loop_footer
    %s14 = sadd.s32 1, %s10
  $region7: #{resnet_forward.10} parent=0 // loop_footer_branch
    %9 = sbr.rel target = $region3
  $region8: #{resnet_forward.10} parent=0 // loop_exit
    _

// kernel: resnet_forward.12
$region0: #{resnet_forward.12}
  #allocation0 [shape = 'u32[]', space=smem, size = 0x4, offset = 0x4, fixed_abs, tag = 'smem constant byte address 0x4 - core index']
  #allocation1 [shape = 'u32[72,128]{1,0:T(1,128)}', space=vmem, size = 0x9000, scoped, tag = 'internal scratch']
  #allocation2 [shape = 'f32[256,128]{1,0:T(8,128)}', space=vmem, size = 0x20000, scoped, tag = 'scratch operand']
  %s0 = inlined_call_operand.vmem [shape: bf16[512,72], index: 0, kind: input, shape index: {}]
  %s1 = inlined_call_operand.vmem [shape: bf16[72,128], index: 1, kind: input, shape index: {}]
  %s2 = inlined_call_operand.vmem [shape: f32[1,128], index: 2, kind: input, shape index: {}]
  %s3 = inlined_call_operand.vmem [shape: f32[1,128], index: 3, kind: input, shape index: {}]
  %s4 = inlined_call_operand.vmem [shape: bf16[512,128], index: 4, kind: input, shape index: {}]
  %s5 = inlined_call_operand.vmem [shape: bf16[512,128], index: 5, kind: output, shape index: {}]
  %s6 = sld [smem:[#allocation0]]
  $region61: #{resnet_forward.12} parent=0
    _
  %s8 = ssub.s32 1, %s6
  %s9 = scalar_select 0, %s8, %s6
  loop: start=0, step=1, limit=4
  $region2: #{resnet_forward.12} parent=0 // loop_pre_header
    _
  $region3: #{resnet_forward.12} parent=0 // loop_header
    %s11 = sphi 0, %s15
    %p12 = scmp.ge.s32.totalorder %s11, 4
    %s18 = sphi 0, %s37
    %s19 = sphi 0, %s33
    %s20 = sphi 0, %s29
    %s21 = sphi 0, %s18
    %s22 = sphi 0, %s19
    %s23 = sphi 0, %s20
    %s24 = sphi 0, %s21
    %s25 = sphi 0, %s22
    %s26 = sphi 0, %s23
    %s42 = sphi 0, %s44
    %s45 = sphi 0, %s42
    %s46 = sphi 0, %s45
    %s62 = sphi 0, %s46
    %s70 = sphi 0, %s72
    %s73 = sphi 0, %s70
    %s74 = sphi 0, %s73
    %s90 = sphi 0, %s74
    %s96 = sphi 0, %s98
    %s99 = sphi 0, %s96
    %s100 = sphi 0, %s99
    %s116 = sphi 0, %s100
    %s122 = sphi 0, %s124
    %s125 = sphi 0, %s122
    %s126 = sphi 0, %s125
    %s142 = sphi 0, %s126
    %s150 = sphi 0, %s152
    %s153 = sphi 0, %s150
    %s154 = sphi 0, %s153
    %s170 = sphi 0, %s154
    %s178 = sphi 0, %s180
    %s181 = sphi 0, %s178
    %s182 = sphi 0, %s181
    %s198 = sphi 0, %s182
  $region4: #{resnet_forward.12} parent=0 // loop_header_branch
    %14 = sbr.rel (%p12) target = $region8
  $region5: #{resnet_forward.12} parent=0 // loop_body
    %s16 = ssub.s32 %s11, 1
    %s17 = ssub.s32 %s11, 2
    %s27 = sadd.s32 1, %s20
    %p28 = scmp.ge.s32.totalorder %s27, 1
    %s29 = scalar_select %p28, 0, %s27
    %s30 = sadd.s32 1, %s19
    %s31 = scalar_select %p28, %s30, %s19
    %p32 = scmp.ge.s32.totalorder %s31, 1
    %s33 = scalar_select %p32, 0, %s31
    %s34 = sadd.s32 1, %s18
    %s35 = scalar_select %p32, %s34, %s18
    %p36 = scmp.ge.s32.totalorder %s35, 2
    %s37 = scalar_select %p36, 0, %s35
    %s38 = ssub.s32 %s18, %s37
    %s39 = ssub.s32 %s20, %s29
    %s40 = sor.u32 %s38, %s39
    %p41 = scmp.eq.s32.totalorder %s40, 0
    %s43 = sadd.s32 %s42, 1
    %s44 = scalar_select %p41, %s42, %s43
    %p47 = pneg %p41
    %p48 = scmp.eq.s32.totalorder %s11, 1
    %p49 = por %p47, %p48
    %p50 = scmp.ne.s32.totalorder %s42, %s45
    %p51 = scmp.eq.s32.totalorder %s11, 0
    %p52 = por %p50, %p51
    %p53 = scmp.ne.s32.totalorder %s42, %s45
    %p54 = scmp.eq.s32.totalorder %s16, 1
    %p55 = por %p53, %p54
    %p56 = scmp.ne.s32.totalorder %s45, %s46
    %p57 = scmp.eq.s32.totalorder %s16, 0
    %p58 = por %p56, %p57
    %p59 = scmp.ne.s32.totalorder %s45, %s46
    %p60 = scmp.eq.s32.totalorder %s17, 1
    %p61 = por %p59, %p60
    %p63 = scmp.ne.s32.totalorder %s46, %s62
    %p64 = scmp.eq.s32.totalorder %s17, 0
    %p65 = por %p63, %p64
    %s66 = ssub.s32 %s20, %s29
    %s67 = ssub.s32 %s19, %s33
    %s68 = sor.u32 %s66, %s67
    %p69 = scmp.eq.s32.totalorder %s68, 0
    %s71 = sadd.s32 %s70, 1
    %s72 = scalar_select %p69, %s70, %s71
    %p75 = pneg %p69
    %p76 = scmp.eq.s32.totalorder %s11, 1
    %p77 = por %p75, %p76
    %p78 = scmp.ne.s32.totalorder %s70, %s73
    %p79 = scmp.eq.s32.totalorder %s11, 0
    %p80 = por %p78, %p79
    %p81 = scmp.ne.s32.totalorder %s70, %s73
    %p82 = scmp.eq.s32.totalorder %s16, 1
    %p83 = por %p81, %p82
    %p84 = scmp.ne.s32.totalorder %s73, %s74
    %p85 = scmp.eq.s32.totalorder %s16, 0
    %p86 = por %p84, %p85
    %p87 = scmp.ne.s32.totalorder %s73, %s74
    %p88 = scmp.eq.s32.totalorder %s17, 1
    %p89 = por %p87, %p88
    %p91 = scmp.ne.s32.totalorder %s74, %s90
    %p92 = scmp.eq.s32.totalorder %s17, 0
    %p93 = por %p91, %p92
    %s94 = ssub.s32 %s19, %s33
    %p95 = scmp.eq.s32.totalorder %s94, 0
    %s97 = sadd.s32 %s96, 1
    %s98 = scalar_select %p95, %s96, %s97
    %p101 = pneg %p95
    %p102 = scmp.eq.s32.totalorder %s11, 1
    %p103 = por %p101, %p102
    %p104 = scmp.ne.s32.totalorder %s96, %s99
    %p105 = scmp.eq.s32.totalorder %s11, 0
    %p106 = por %p104, %p105
    %p107 = scmp.ne.s32.totalorder %s96, %s99
    %p108 = scmp.eq.s32.totalorder %s16, 1
    %p109 = por %p107, %p108
    %p110 = scmp.ne.s32.totalorder %s99, %s100
    %p111 = scmp.eq.s32.totalorder %s16, 0
    %p112 = por %p110, %p111
    %p113 = scmp.ne.s32.totalorder %s99, %s100
    %p114 = scmp.eq.s32.totalorder %s17, 1
    %p115 = por %p113, %p114
    %p117 = scmp.ne.s32.totalorder %s100, %s116
    %p118 = scmp.eq.s32.totalorder %s17, 0
    %p119 = por %p117, %p118
    %s120 = ssub.s32 %s19, %s33
    %p121 = scmp.eq.s32.totalorder %s120, 0
    %s123 = sadd.s32 %s122, 1
    %s124 = scalar_select %p121, %s122, %s123
    %p127 = pneg %p121
    %p128 = scmp.eq.s32.totalorder %s11, 1
    %p129 = por %p127, %p128
    %p130 = scmp.ne.s32.totalorder %s122, %s125
    %p131 = scmp.eq.s32.totalorder %s11, 0
    %p132 = por %p130, %p131
    %p133 = scmp.ne.s32.totalorder %s122, %s125
    %p134 = scmp.eq.s32.totalorder %s16, 1
    %p135 = por %p133, %p134
    %p136 = scmp.ne.s32.totalorder %s125, %s126
    %p137 = scmp.eq.s32.totalorder %s16, 0
    %p138 = por %p136, %p137
    %p139 = scmp.ne.s32.totalorder %s125, %s126
    %p140 = scmp.eq.s32.totalorder %s17, 1
    %p141 = por %p139, %p140
    %p143 = scmp.ne.s32.totalorder %s126, %s142
    %p144 = scmp.eq.s32.totalorder %s17, 0
    %p145 = por %p143, %p144
    %s146 = ssub.s32 %s18, %s37
    %s147 = ssub.s32 %s19, %s33
    %s148 = sor.u32 %s146, %s147
    %p149 = scmp.eq.s32.totalorder %s148, 0
    %s151 = sadd.s32 %s150, 1
    %s152 = scalar_select %p149, %s150, %s151
    %p155 = pneg %p149
    %p156 = scmp.eq.s32.totalorder %s11, 1
    %p157 = por %p155, %p156
    %p158 = scmp.ne.s32.totalorder %s150, %s153
    %p159 = scmp.eq.s32.totalorder %s11, 0
    %p160 = por %p158, %p159
    %p161 = scmp.ne.s32.totalorder %s150, %s153
    %p162 = scmp.eq.s32.totalorder %s16, 1
    %p163 = por %p161, %p162
    %p164 = scmp.ne.s32.totalorder %s153, %s154
    %p165 = scmp.eq.s32.totalorder %s16, 0
    %p166 = por %p164, %p165
    %p167 = scmp.ne.s32.totalorder %s153, %s154
    %p168 = scmp.eq.s32.totalorder %s17, 1
    %p169 = por %p167, %p168
    %p171 = scmp.ne.s32.totalorder %s154, %s170
    %p172 = scmp.eq.s32.totalorder %s17, 0
    %p173 = por %p171, %p172
    %s174 = ssub.s32 %s18, %s37
    %s175 = ssub.s32 %s19, %s33
    %s176 = sor.u32 %s174, %s175
    %p177 = scmp.eq.s32.totalorder %s176, 0
    %s179 = sadd.s32 %s178, 1
    %s180 = scalar_select %p177, %s178, %s179
    %p183 = pneg %p177
    %p184 = scmp.eq.s32.totalorder %s11, 1
    %p185 = por %p183, %p184
    %p186 = scmp.ne.s32.totalorder %s178, %s181
    %p187 = scmp.eq.s32.totalorder %s11, 0
    %p188 = por %p186, %p187
    %p189 = scmp.ne.s32.totalorder %s178, %s181
    %p190 = scmp.eq.s32.totalorder %s16, 1
    %p191 = por %p189, %p190
    %p192 = scmp.ne.s32.totalorder %s181, %s182
    %p193 = scmp.eq.s32.totalorder %s16, 0
    %p194 = por %p192, %p193
    %p195 = scmp.ne.s32.totalorder %s181, %s182
    %p196 = scmp.eq.s32.totalorder %s17, 1
    %p197 = por %p195, %p196
    %p199 = scmp.ne.s32.totalorder %s182, %s198
    %p200 = scmp.eq.s32.totalorder %s17, 0
    %p201 = por %p199, %p200
    %p202 = scmp.le.s32.totalorder 1, %s11
    %p203 = scmp.lt.s32.totalorder %s11, 3
    %p204 = pnand %p202, %p203
    %p205 = pneg %p204
    // Predicated region
    $region9: #{resnet_forward.12} parent=5 // pred_check
      _
    $region10: #{resnet_forward.12} parent=5 // pred_check_branch
      %207 = sbr.rel (%p204) target = $region12
    $region11: #{resnet_forward.12} parent=5 // pred_region
      %s208 = ssub.s32 %s11, 1
      // Predicated region
      $region13: #{resnet_forward.12} parent=11 // pred_check
        %p209 = pneg %p86
      $region14: #{resnet_forward.12} parent=11 // pred_check_branch
        %211 = sbr.rel (%p209) target = $region16
      $region15: #{resnet_forward.12} parent=11 // pred_region
        %s212 = smul.u32 9, %s23
        %p213 = scmp.lt.s32.totalorder %s212, 8
        %s214 = scalar_select %p213, %s212, 8
        %p215 = scmp.lt.s32.totalorder %s22, 0
        %s216 = scalar_select %p215, %s22, 0
        %s217 = sadd.s32 %s216, %s214
        %s218 = smul.addr %s217, 4
        %s219 = scalar_lea.vmem %s1, %s218
        %s220 = smul.u32 9, %s23
      $region16: #{resnet_forward.12} parent=11 // pred_fallthru
        _
      // Predicated region
      $region17: #{resnet_forward.12} parent=11 // pred_check
        %p221 = pneg %p112
      $region18: #{resnet_forward.12} parent=11 // pred_check_branch
        %223 = sbr.rel (%p221) target = $region20
      $region19: #{resnet_forward.12} parent=11 // pred_region
        %p224 = scmp.lt.s32.totalorder %s22, 0
        %s225 = scalar_select %p224, %s22, 0
        %s226 = scalar_lea.vmem %s2, %s225
      $region20: #{resnet_forward.12} parent=11 // pred_fallthru
        _
      // Predicated region
      $region21: #{resnet_forward.12} parent=11 // pred_check
        %p227 = pneg %p138
      $region22: #{resnet_forward.12} parent=11 // pred_check_branch
        %229 = sbr.rel (%p227) target = $region24
      $region23: #{resnet_forward.12} parent=11 // pred_region
        %p230 = scmp.lt.s32.totalorder %s22, 0
        %s231 = scalar_select %p230, %s22, 0
        %s232 = scalar_lea.vmem %s3, %s231
      $region24: #{resnet_forward.12} parent=11 // pred_fallthru
        _
    $region12: #{resnet_forward.12} parent=5 // pred_fallthru
      _
    %p233 = scmp.lt.s32.totalorder %s11, 2
    // Predicated region
    $region25: #{resnet_forward.12} parent=5 // pred_check
      %p234 = pneg %p233
    $region26: #{resnet_forward.12} parent=5 // pred_check_branch
      %236 = sbr.rel (%p234) target = $region28
    $region27: #{resnet_forward.12} parent=5 // pred_region
      // Predicated region
      $region29: #{resnet_forward.12} parent=27 // pred_check
        %p237 = pneg %p52
      $region30: #{resnet_forward.12} parent=27 // pred_check_branch
        %239 = sbr.rel (%p237) target = $region32
      $region31: #{resnet_forward.12} parent=27 // pred_region
        %s240 = smul.u32 32, %s18
        %p241 = scmp.lt.s32.totalorder %s240, 63
        %s242 = scalar_select %p241, %s240, 63
        %p243 = scmp.lt.s32.totalorder %s20, 0
        %s244 = scalar_select %p243, %s20, 0
        %s245 = sadd.s32 %s244, %s242
        %s246 = smul.addr %s245, 4
        %s247 = scalar_lea.vmem %s0, %s246
        %s248 = smul.u32 32, %s18
      $region32: #{resnet_forward.12} parent=27 // pred_fallthru
        _
      // Predicated region
      $region33: #{resnet_forward.12} parent=27 // pred_check
        %p249 = pneg %p160
      $region34: #{resnet_forward.12} parent=27 // pred_check_branch
        %251 = sbr.rel (%p249) target = $region36
      $region35: #{resnet_forward.12} parent=27 // pred_region
        %s252 = smul.u32 32, %s18
        %p253 = scmp.lt.s32.totalorder %s252, 63
        %s254 = scalar_select %p253, %s252, 63
        %p255 = scmp.lt.s32.totalorder %s19, 0
        %s256 = scalar_select %p255, %s19, 0
        %s257 = sadd.s32 %s256, %s254
        %s258 = smul.addr %s257, 4
        %s259 = scalar_lea.vmem %s4, %s258
        %s260 = smul.u32 32, %s18
      $region36: #{resnet_forward.12} parent=27 // pred_fallthru
        _
    $region28: #{resnet_forward.12} parent=5 // pred_fallthru
      _
    %p261 = scmp.le.s32.totalorder 1, %s11
    %p262 = scmp.lt.s32.totalorder %s11, 3
    %p263 = pnand %p261, %p262
    %p264 = pneg %p263
    // Predicated region
    $region37: #{resnet_forward.12} parent=5 // pred_check
      _
    $region38: #{resnet_forward.12} parent=5 // pred_check_branch
      %266 = sbr.rel (%p263) target = $region40
    $region39: #{resnet_forward.12} parent=5 // pred_region
      %s267 = ssub.s32 %s11, 1
      %s268 = smul.u32 32, %s21
      %p269 = scmp.lt.s32.totalorder %s268, 63
      %s270 = scalar_select %p269, %s268, 63
      %p271 = scmp.lt.s32.totalorder %s23, 0
      %s272 = scalar_select %p271, %s23, 0
      %s273 = sadd.s32 %s272, %s270
      %s274 = smul.addr %s273, 4
      %s275 = scalar_lea.vmem %s0, %s274
      %p276 = pneg %p58
      %p277 = pneg %p55
      %s278 = smul.u32 9, %s23
      %p279 = scmp.lt.s32.totalorder %s278, 8
      %s280 = scalar_select %p279, %s278, 8
      %p281 = scmp.lt.s32.totalorder %s22, 0
      %s282 = scalar_select %p281, %s22, 0
      %s283 = sadd.s32 %s282, %s280
      %s284 = smul.addr %s283, 4
      %s285 = scalar_lea.vmem %s1, %s284
      %p286 = pneg %p86
      %p287 = pneg %p83
      %p288 = scmp.lt.s32.totalorder %s22, 0
      %s289 = scalar_select %p288, %s22, 0
      %s290 = scalar_lea.vmem %s2, %s289
      %p291 = pneg %p112
      %p292 = pneg %p109
      %p293 = scmp.lt.s32.totalorder %s22, 0
      %s294 = scalar_select %p293, %s22, 0
      %s295 = scalar_lea.vmem %s3, %s294
      %p296 = pneg %p138
      %p297 = pneg %p135
      %s298 = smul.u32 32, %s21
      %p299 = scmp.lt.s32.totalorder %s298, 63
      %s300 = scalar_select %p299, %s298, 63
      %p301 = scmp.lt.s32.totalorder %s22, 0
      %s302 = scalar_select %p301, %s22, 0
      %s303 = sadd.s32 %s302, %s300
      %s304 = smul.addr %s303, 4
      %s305 = scalar_lea.vmem %s4, %s304
      %p306 = pneg %p166
      %p307 = pneg %p163
      %p308 = pneg %p194
      %p309 = pneg %p191
      %s310 = smul.u32 32, %s21
      %p311 = scmp.lt.s32.totalorder %s310, 63
      %s312 = scalar_select %p311, %s310, 63
      %p313 = scmp.lt.s32.totalorder %s22, 0
      %s314 = scalar_select %p313, %s22, 0
      %s315 = sadd.s32 %s314, %s312
      %s316 = smul.addr %s315, 4
      %s317 = scalar_lea.vmem %s5, %s316
      %s318 = smul.u32 32, %s21
      %p319 = scmp.lt.s32.totalorder %s318, 63
      %s320 = scalar_select %p319, %s318, 63
      %p321 = scmp.lt.s32.totalorder %s23, 0
      %s322 = scalar_select %p321, %s23, 0
      %s323 = sadd.s32 %s322, %s320
      %s324 = smul.addr %s323, 4
      %s325 = scalar_lea.vmem %s0, %s324
      %s326 = smul.u32 32, %s21
      %s327 = smul.u32 9, %s23
      %p328 = scmp.lt.s32.totalorder %s327, 8
      %s329 = scalar_select %p328, %s327, 8
      %p330 = scmp.lt.s32.totalorder %s22, 0
      %s331 = scalar_select %p330, %s22, 0
      %s332 = sadd.s32 %s331, %s329
      %s333 = smul.addr %s332, 4
      %s334 = scalar_lea.vmem %s1, %s333
      %s335 = smul.u32 9, %s23
      %p336 = scmp.lt.s32.totalorder %s22, 0
      %s337 = scalar_select %p336, %s22, 0
      %s338 = scalar_lea.vmem %s2, %s337
      %p339 = scmp.lt.s32.totalorder %s22, 0
      %s340 = scalar_select %p339, %s22, 0
      %s341 = scalar_lea.vmem %s3, %s340
      %s342 = smul.u32 32, %s21
      %p343 = scmp.lt.s32.totalorder %s342, 63
      %s344 = scalar_select %p343, %s342, 63
      %p345 = scmp.lt.s32.totalorder %s22, 0
      %s346 = scalar_select %p345, %s22, 0
      %s347 = sadd.s32 %s346, %s344
      %s348 = smul.addr %s347, 4
      %s349 = scalar_lea.vmem %s4, %s348
      %s350 = smul.u32 32, %s21
      %s351 = smul.u32 32, %s21
      %p352 = scmp.lt.s32.totalorder %s351, 63
      %s353 = scalar_select %p352, %s351, 63
      %p354 = scmp.lt.s32.totalorder %s22, 0
      %s355 = scalar_select %p354, %s22, 0
      %s356 = sadd.s32 %s355, %s353
      %s357 = smul.addr %s356, 4
      %s358 = scalar_lea.vmem %s5, %s357
      %s359 = smul.u32 32, %s21
      %p361 = scmp.eq.s32.totalorder %s23, 0
      // Predicated region
      $region41: #{resnet_forward.12} parent=39 // pred_check
        %p362 = pneg %p361
      $region42: #{resnet_forward.12} parent=39 // pred_check_branch
        %364 = sbr.rel (%p362) target = $region44
      $region43: #{resnet_forward.12} parent=39 // pred_region
        %365 = vst [vmem:[#allocation2] sm:$0xff] 0.0
        %366 = vst [vmem:[#allocation2 + $0x8] sm:$0xff] 0.0
        %367 = vst [vmem:[#allocation2 + $0x10] sm:$0xff] 0.0
        %368 = vst [vmem:[#allocation2 + $0x18] sm:$0xff] 0.0
        %369 = vst [vmem:[#allocation2 + $0x20] sm:$0xff] 0.0
        %370 = vst [vmem:[#allocation2 + $0x28] sm:$0xff] 0.0
        %371 = vst [vmem:[#allocation2 + $0x30] sm:$0xff] 0.0
        %372 = vst [vmem:[#allocation2 + $0x38] sm:$0xff] 0.0
        %373 = vst [vmem:[#allocation2 + $0x40] sm:$0xff] 0.0
        %374 = vst [vmem:[#allocation2 + $0x48] sm:$0xff] 0.0
        %375 = vst [vmem:[#allocation2 + $0x50] sm:$0xff] 0.0
        %376 = vst [vmem:[#allocation2 + $0x58] sm:$0xff] 0.0
        %377 = vst [vmem:[#allocation2 + $0x60] sm:$0xff] 0.0
        %378 = vst [vmem:[#allocation2 + $0x68] sm:$0xff] 0.0
        %379 = vst [vmem:[#allocation2 + $0x70] sm:$0xff] 0.0
        %380 = vst [vmem:[#allocation2 + $0x78] sm:$0xff] 0.0
        %381 = vst [vmem:[#allocation2 + $0x80] sm:$0xff] 0.0
        %382 = vst [vmem:[#allocation2 + $0x88] sm:$0xff] 0.0
        %383 = vst [vmem:[#allocation2 + $0x90] sm:$0xff] 0.0
        %384 = vst [vmem:[#allocation2 + $0x98] sm:$0xff] 0.0
        %385 = vst [vmem:[#allocation2 + $0xa0] sm:$0xff] 0.0
        %386 = vst [vmem:[#allocation2 + $0xa8] sm:$0xff] 0.0
        %387 = vst [vmem:[#allocation2 + $0xb0] sm:$0xff] 0.0
        %388 = vst [vmem:[#allocation2 + $0xb8] sm:$0xff] 0.0
        %389 = vst [vmem:[#allocation2 + $0xc0] sm:$0xff] 0.0
        %390 = vst [vmem:[#allocation2 + $0xc8] sm:$0xff] 0.0
        %391 = vst [vmem:[#allocation2 + $0xd0] sm:$0xff] 0.0
        %392 = vst [vmem:[#allocation2 + $0xd8] sm:$0xff] 0.0
        %393 = vst [vmem:[#allocation2 + $0xe0] sm:$0xff] 0.0
        %394 = vst [vmem:[#allocation2 + $0xe8] sm:$0xff] 0.0
        %395 = vst [vmem:[#allocation2 + $0xf0] sm:$0xff] 0.0
        %396 = vst [vmem:[#allocation2 + $0xf8] sm:$0xff] 0.0
      $region44: #{resnet_forward.12} parent=39 // pred_fallthru
        _
      %v397 = vld [vmem:[#allocation2] sm:$0xff]
      %v398 = vld [vmem:[#allocation2 + $0x8] sm:$0xff]
      %v399 = vld [vmem:[#allocation2 + $0x10] sm:$0xff]
      %v400 = vld [vmem:[#allocation2 + $0x18] sm:$0xff]
      %v401 = vld [vmem:[#allocation2 + $0x20] sm:$0xff]
      %v402 = vld [vmem:[#allocation2 + $0x28] sm:$0xff]
      %v403 = vld [vmem:[#allocation2 + $0x30] sm:$0xff]
      %v404 = vld [vmem:[#allocation2 + $0x38] sm:$0xff]
      %v405 = vld [vmem:[#allocation2 + $0x40] sm:$0xff]
      %v406 = vld [vmem:[#allocation2 + $0x48] sm:$0xff]
      %v407 = vld [vmem:[#allocation2 + $0x50] sm:$0xff]
      %v408 = vld [vmem:[#allocation2 + $0x58] sm:$0xff]
      %v409 = vld [vmem:[#allocation2 + $0x60] sm:$0xff]
      %v410 = vld [vmem:[#allocation2 + $0x68] sm:$0xff]
      %v411 = vld [vmem:[#allocation2 + $0x70] sm:$0xff]
      %v412 = vld [vmem:[#allocation2 + $0x78] sm:$0xff]
      %v413 = vld [vmem:[#allocation2 + $0x80] sm:$0xff]
      %v414 = vld [vmem:[#allocation2 + $0x88] sm:$0xff]
      %v415 = vld [vmem:[#allocation2 + $0x90] sm:$0xff]
      %v416 = vld [vmem:[#allocation2 + $0x98] sm:$0xff]
      %v417 = vld [vmem:[#allocation2 + $0xa0] sm:$0xff]
      %v418 = vld [vmem:[#allocation2 + $0xa8] sm:$0xff]
      %v419 = vld [vmem:[#allocation2 + $0xb0] sm:$0xff]
      %v420 = vld [vmem:[#allocation2 + $0xb8] sm:$0xff]
      %v421 = vld [vmem:[#allocation2 + $0xc0] sm:$0xff]
      %v422 = vld [vmem:[#allocation2 + $0xc8] sm:$0xff]
      %v423 = vld [vmem:[#allocation2 + $0xd0] sm:$0xff]
      %v424 = vld [vmem:[#allocation2 + $0xd8] sm:$0xff]
      %v425 = vld [vmem:[#allocation2 + $0xe0] sm:$0xff]
      %v426 = vld [vmem:[#allocation2 + $0xe8] sm:$0xff]
      %v427 = vld [vmem:[#allocation2 + $0xf0] sm:$0xff]
      %v428 = vld [vmem:[#allocation2 + $0xf8] sm:$0xff]
      %v429 = vld [vmem:[%s325] sm:$0xf]
      %v430 = vld [vmem:[%s325 + $0x4] sm:$0xf]
      %v431 = vld [vmem:[%s325 + $0x8] sm:$0xf]
      %v432 = vld [vmem:[%s325 + $0xc] sm:$0xf]
      %v433 = vld [vmem:[%s325 + $0x10] sm:$0xf]
      %v434 = vld [vmem:[%s325 + $0x14] sm:$0xf]
      %v435 = vld [vmem:[%s325 + $0x18] sm:$0xf]
      %v436 = vld [vmem:[%s325 + $0x1c] sm:$0xf]
      %v437 = vld [vmem:[%s325 + $0x20] sm:$0xf]
      %v438 = vld [vmem:[%s325 + $0x24] sm:$0xf]
      %v439 = vld [vmem:[%s325 + $0x28] sm:$0xf]
      %v440 = vld [vmem:[%s325 + $0x2c] sm:$0xf]
      %v441 = vld [vmem:[%s325 + $0x30] sm:$0xf]
      %v442 = vld [vmem:[%s325 + $0x34] sm:$0xf]
      %v443 = vld [vmem:[%s325 + $0x38] sm:$0xf]
      %v444 = vld [vmem:[%s325 + $0x3c] sm:$0xf]
      %v445 = vld [vmem:[%s325 + $0x40] sm:$0xf]
      %v446 = vld [vmem:[%s325 + $0x44] sm:$0xf]
      %v447 = vld [vmem:[%s325 + $0x48] sm:$0xf]
      %v448 = vld [vmem:[%s325 + $0x4c] sm:$0xf]
      %v449 = vld [vmem:[%s325 + $0x50] sm:$0xf]
      %v450 = vld [vmem:[%s325 + $0x54] sm:$0xf]
      %v451 = vld [vmem:[%s325 + $0x58] sm:$0xf]
      %v452 = vld [vmem:[%s325 + $0x5c] sm:$0xf]
      %v453 = vld [vmem:[%s325 + $0x60] sm:$0xf]
      %v454 = vld [vmem:[%s325 + $0x64] sm:$0xf]
      %v455 = vld [vmem:[%s325 + $0x68] sm:$0xf]
      %v456 = vld [vmem:[%s325 + $0x6c] sm:$0xf]
      %v457 = vld [vmem:[%s325 + $0x70] sm:$0xf]
      %v458 = vld [vmem:[%s325 + $0x74] sm:$0xf]
      %v459 = vld [vmem:[%s325 + $0x78] sm:$0xf]
      %v460 = vld [vmem:[%s325 + $0x7c] sm:$0xf]
      %v461 = vld [vmem:[%s334] sm:$0xf]
      %v462 = vld [vmem:[%s334 + $0x4] sm:$0xf]
      %v463 = vld [vmem:[%s334 + $0x8] sm:$0xf]
      %v464 = vld [vmem:[%s334 + $0xc] sm:$0xf]
      %v465 = vld [vmem:[%s334 + $0x10] sm:$0xf]
      %v466 = vld [vmem:[%s334 + $0x14] sm:$0xf]
      %v467 = vld [vmem:[%s334 + $0x18] sm:$0xf]
      %v468 = vld [vmem:[%s334 + $0x1c] sm:$0xf]
      %v469 = vld [vmem:[%s334 + $0x20] sm:$0xf]
      %v502 = vunpack.c.l.b16 %v429
      %v503 = vunpack.c.l.b16 %v430
      %v504 = vunpack.c.l.b16 %v431
      %v505 = vunpack.c.l.b16 %v432
      %v506 = vunpack.c.l.b16 %v433
      %v507 = vunpack.c.l.b16 %v434
      %v508 = vunpack.c.l.b16 %v435
      %v509 = vunpack.c.l.b16 %v436
      %v510 = vunpack.c.l.b16 %v437
      %v511 = vunpack.c.l.b16 %v438
      %v512 = vunpack.c.l.b16 %v439
      %v513 = vunpack.c.l.b16 %v440
      %v514 = vunpack.c.l.b16 %v441
      %v515 = vunpack.c.l.b16 %v442
      %v516 = vunpack.c.l.b16 %v443
      %v517 = vunpack.c.l.b16 %v444
      %v518 = vunpack.c.l.b16 %v445
      %v519 = vunpack.c.l.b16 %v446
      %v520 = vunpack.c.l.b16 %v447
      %v521 = vunpack.c.l.b16 %v448
      %v522 = vunpack.c.l.b16 %v449
      %v523 = vunpack.c.l.b16 %v450
      %v524 = vunpack.c.l.b16 %v451
      %v525 = vunpack.c.l.b16 %v452
      %v526 = vunpack.c.l.b16 %v453
      %v527 = vunpack.c.l.b16 %v454
      %v528 = vunpack.c.l.b16 %v455
      %v529 = vunpack.c.l.b16 %v456
      %v530 = vunpack.c.l.b16 %v457
      %v531 = vunpack.c.l.b16 %v458
      %v532 = vunpack.c.l.b16 %v459
      %v533 = vunpack.c.l.b16 %v460
      %v534 = vpack.c.b16 %v503, %v502
      %v535 = vpack.c.b16 %v505, %v504
      %v536 = vpack.c.b16 %v507, %v506
      %v537 = vpack.c.b16 %v509, %v508
      %v538 = vpack.c.b16 %v511, %v510
      %v539 = vpack.c.b16 %v513, %v512
      %v540 = vpack.c.b16 %v515, %v514
      %v541 = vpack.c.b16 %v517, %v516
      %v542 = vpack.c.b16 %v519, %v518
      %v543 = vpack.c.b16 %v521, %v520
      %v544 = vpack.c.b16 %v523, %v522
      %v545 = vpack.c.b16 %v525, %v524
      %v546 = vpack.c.b16 %v527, %v526
      %v547 = vpack.c.b16 %v529, %v528
      %v548 = vpack.c.b16 %v531, %v530
      %v549 = vpack.c.b16 %v533, %v532
      %v559 = vunpack.c.l.b16 %v461
      %v560 = vunpack.c.l.b16 %v462
      %v561 = vunpack.c.l.b16 %v463
      %v562 = vunpack.c.l.b16 %v464
      %v563 = vunpack.c.l.b16 %v465
      %v564 = vunpack.c.l.b16 %v466
      %v565 = vunpack.c.l.b16 %v467
      %v566 = vunpack.c.l.b16 %v468
      %v567 = vunpack.c.l.b16 %v469
      %v568 = vpack.c.b16 %v560, %v559
      %v569 = vpack.c.b16 %v562, %v561
      %v570 = vpack.c.b16 %v564, %v563
      %v571 = vpack.c.b16 %v566, %v565
      %v572 = vpack.c.b16 %v567, %v567
      %vm577 = vcmask 588800
      %v579 = vsel %vm577, %v534, 0
      %v582 = vsel %vm577, %v535, 0
      %v585 = vsel %vm577, %v536, 0
      %v588 = vsel %vm577, %v537, 0
      %v591 = vsel %vm577, %v538, 0
      %v594 = vsel %vm577, %v539, 0
      %v597 = vsel %vm577, %v540, 0
      %v600 = vsel %vm577, %v541, 0
      %v603 = vsel %vm577, %v542, 0
      %v606 = vsel %vm577, %v543, 0
      %v609 = vsel %vm577, %v544, 0
      %v612 = vsel %vm577, %v545, 0
      %v615 = vsel %vm577, %v546, 0
      %v618 = vsel %vm577, %v547, 0
      %v621 = vsel %vm577, %v548, 0
      %v624 = vsel %vm577, %v549, 0
      %vm626 = vcmask 1043456
      %v628 = vsel %vm626, %v572, 0
      %630 = vmatpush.bf16.msra.mxu0 0
      %631 = vmatpush.bf16.msra.mxu0 0
      %632 = vmatpush.bf16.msra.mxu0 0
      %633 = vmatpush.bf16.msra.mxu0 %v628
      %634 = vmatpush.bf16.msra.mxu0 %v571
      %635 = vmatpush.bf16.msra.mxu0 %v570
      %636 = vmatpush.bf16.msra.mxu0 %v569
      %637 = vmatpush.bf16.msra.mxu0 %v568
      %638 = vmatmul.bf16.gmra.mxu0 %v579
      %v639 = vpop.f32.mrf.mxu0
      %v640 = vadd.f32 0.0, %v639
      %v641 = vpop.f32.mrf.mxu0
      %v642 = vadd.f32 0.0, %v641
      %643 = vmatmul.bf16.gmra.mxu0 %v582
      %v644 = vpop.f32.mrf.mxu0
      %v645 = vadd.f32 0.0, %v644
      %v646 = vpop.f32.mrf.mxu0
      %v647 = vadd.f32 0.0, %v646
      %648 = vmatmul.bf16.gmra.mxu0 %v585
      %v649 = vpop.f32.mrf.mxu0
      %v650 = vadd.f32 0.0, %v649
      %v651 = vpop.f32.mrf.mxu0
      %v652 = vadd.f32 0.0, %v651
      %653 = vmatmul.bf16.gmra.mxu0 %v588
      %v654 = vpop.f32.mrf.mxu0
      %v655 = vadd.f32 0.0, %v654
      %v656 = vpop.f32.mrf.mxu0
      %v657 = vadd.f32 0.0, %v656
      %658 = vmatmul.bf16.gmra.mxu0 %v591
      %v659 = vpop.f32.mrf.mxu0
      %v660 = vadd.f32 0.0, %v659
      %v661 = vpop.f32.mrf.mxu0
      %v662 = vadd.f32 0.0, %v661
      %663 = vmatmul.bf16.gmra.mxu0 %v594
      %v664 = vpop.f32.mrf.mxu0
      %v665 = vadd.f32 0.0, %v664
      %v666 = vpop.f32.mrf.mxu0
      %v667 = vadd.f32 0.0, %v666
      %668 = vmatmul.bf16.gmra.mxu0 %v597
      %v669 = vpop.f32.mrf.mxu0
      %v670 = vadd.f32 0.0, %v669
      %v671 = vpop.f32.mrf.mxu0
      %v672 = vadd.f32 0.0, %v671
      %673 = vmatmul.bf16.gmra.mxu0 %v600
      %v674 = vpop.f32.mrf.mxu0
      %v675 = vadd.f32 0.0, %v674
      %v676 = vpop.f32.mrf.mxu0
      %v677 = vadd.f32 0.0, %v676
      %678 = vmatmul.bf16.gmra.mxu0 %v603
      %v679 = vpop.f32.mrf.mxu0
      %v680 = vadd.f32 0.0, %v679
      %v681 = vpop.f32.mrf.mxu0
      %v682 = vadd.f32 0.0, %v681
      %683 = vmatmul.bf16.gmra.mxu0 %v606
      %v684 = vpop.f32.mrf.mxu0
      %v685 = vadd.f32 0.0, %v684
      %v686 = vpop.f32.mrf.mxu0
      %v687 = vadd.f32 0.0, %v686
      %688 = vmatmul.bf16.gmra.mxu0 %v609
      %v689 = vpop.f32.mrf.mxu0
      %v690 = vadd.f32 0.0, %v689
      %v691 = vpop.f32.mrf.mxu0
      %v692 = vadd.f32 0.0, %v691
      %693 = vmatmul.bf16.gmra.mxu0 %v612
      %v694 = vpop.f32.mrf.mxu0
      %v695 = vadd.f32 0.0, %v694
      %v696 = vpop.f32.mrf.mxu0
      %v697 = vadd.f32 0.0, %v696
      %698 = vmatmul.bf16.gmra.mxu0 %v615
      %v699 = vpop.f32.mrf.mxu0
      %v700 = vadd.f32 0.0, %v699
      %v701 = vpop.f32.mrf.mxu0
      %v702 = vadd.f32 0.0, %v701
      %703 = vmatmul.bf16.gmra.mxu0 %v618
      %v704 = vpop.f32.mrf.mxu0
      %v705 = vadd.f32 0.0, %v704
      %v706 = vpop.f32.mrf.mxu0
      %v707 = vadd.f32 0.0, %v706
      %708 = vmatmul.bf16.gmra.mxu0 %v621
      %v709 = vpop.f32.mrf.mxu0
      %v710 = vadd.f32 0.0, %v709
      %v711 = vpop.f32.mrf.mxu0
      %v712 = vadd.f32 0.0, %v711
      %713 = vmatmul.bf16.gmra.mxu0 %v624
      %v714 = vpop.f32.mrf.mxu0
      %v715 = vadd.f32 0.0, %v714
      %v716 = vpop.f32.mrf.mxu0
      %v717 = vadd.f32 0.0, %v716
      %718 = vdwg.mxu0
      %v719 = vadd.f32 %v397, %v640
      %v720 = vadd.f32 %v398, %v642
      %v721 = vadd.f32 %v399, %v645
      %v722 = vadd.f32 %v400, %v647
      %v723 = vadd.f32 %v401, %v650
      %v724 = vadd.f32 %v402, %v652
      %v725 = vadd.f32 %v403, %v655
      %v726 = vadd.f32 %v404, %v657
      %v727 = vadd.f32 %v405, %v660
      %v728 = vadd.f32 %v406, %v662
      %v729 = vadd.f32 %v407, %v665
      %v730 = vadd.f32 %v408, %v667
      %v731 = vadd.f32 %v409, %v670
      %v732 = vadd.f32 %v410, %v672
      %v733 = vadd.f32 %v411, %v675
      %v734 = vadd.f32 %v412, %v677
      %v735 = vadd.f32 %v413, %v680
      %v736 = vadd.f32 %v414, %v682
      %v737 = vadd.f32 %v415, %v685
      %v738 = vadd.f32 %v416, %v687
      %v739 = vadd.f32 %v417, %v690
      %v740 = vadd.f32 %v418, %v692
      %v741 = vadd.f32 %v419, %v695
      %v742 = vadd.f32 %v420, %v697
      %v743 = vadd.f32 %v421, %v700
      %v744 = vadd.f32 %v422, %v702
      %v745 = vadd.f32 %v423, %v705
      %v746 = vadd.f32 %v424, %v707
      %v747 = vadd.f32 %v425, %v710
      %v748 = vadd.f32 %v426, %v712
      %v749 = vadd.f32 %v427, %v715
      %v750 = vadd.f32 %v428, %v717
      %751 = vst [vmem:[#allocation2] sm:$0xff] %v719
      %752 = vst [vmem:[#allocation2 + $0x8] sm:$0xff] %v720
      %753 = vst [vmem:[#allocation2 + $0x10] sm:$0xff] %v721
      %754 = vst [vmem:[#allocation2 + $0x18] sm:$0xff] %v722
      %755 = vst [vmem:[#allocation2 + $0x20] sm:$0xff] %v723
      %756 = vst [vmem:[#allocation2 + $0x28] sm:$0xff] %v724
      %757 = vst [vmem:[#allocation2 + $0x30] sm:$0xff] %v725
      %758 = vst [vmem:[#allocation2 + $0x38] sm:$0xff] %v726
      %759 = vst [vmem:[#allocation2 + $0x40] sm:$0xff] %v727
      %760 = vst [vmem:[#allocation2 + $0x48] sm:$0xff] %v728
      %761 = vst [vmem:[#allocation2 + $0x50] sm:$0xff] %v729
      %762 = vst [vmem:[#allocation2 + $0x58] sm:$0xff] %v730
      %763 = vst [vmem:[#allocation2 + $0x60] sm:$0xff] %v731
      %764 = vst [vmem:[#allocation2 + $0x68] sm:$0xff] %v732
      %765 = vst [vmem:[#allocation2 + $0x70] sm:$0xff] %v733
      %766 = vst [vmem:[#allocation2 + $0x78] sm:$0xff] %v734
      %767 = vst [vmem:[#allocation2 + $0x80] sm:$0xff] %v735
      %768 = vst [vmem:[#allocation2 + $0x88] sm:$0xff] %v736
      %769 = vst [vmem:[#allocation2 + $0x90] sm:$0xff] %v737
      %770 = vst [vmem:[#allocation2 + $0x98] sm:$0xff] %v738
      %771 = vst [vmem:[#allocation2 + $0xa0] sm:$0xff] %v739
      %772 = vst [vmem:[#allocation2 + $0xa8] sm:$0xff] %v740
      %773 = vst [vmem:[#allocation2 + $0xb0] sm:$0xff] %v741
      %774 = vst [vmem:[#allocation2 + $0xb8] sm:$0xff] %v742
      %775 = vst [vmem:[#allocation2 + $0xc0] sm:$0xff] %v743
      %776 = vst [vmem:[#allocation2 + $0xc8] sm:$0xff] %v744
      %777 = vst [vmem:[#allocation2 + $0xd0] sm:$0xff] %v745
      %778 = vst [vmem:[#allocation2 + $0xd8] sm:$0xff] %v746
      %779 = vst [vmem:[#allocation2 + $0xe0] sm:$0xff] %v747
      %780 = vst [vmem:[#allocation2 + $0xe8] sm:$0xff] %v748
      %781 = vst [vmem:[#allocation2 + $0xf0] sm:$0xff] %v749
      %782 = vst [vmem:[#allocation2 + $0xf8] sm:$0xff] %v750
      // Predicated region
      $region45: #{resnet_forward.12} parent=39 // pred_check
        %p783 = pneg %p361
      $region46: #{resnet_forward.12} parent=39 // pred_check_branch
        %785 = sbr.rel (%p783) target = $region48
      $region47: #{resnet_forward.12} parent=39 // pred_region
        %v786 = vld [vmem:[#allocation2] sm:$0xff]
        %v787 = vld [vmem:[#allocation2 + $0x8] sm:$0xff]
        %v788 = vld [vmem:[#allocation2 + $0x10] sm:$0xff]
        %v789 = vld [vmem:[#allocation2 + $0x18] sm:$0xff]
        %v790 = vld [vmem:[#allocation2 + $0x20] sm:$0xff]
        %v791 = vld [vmem:[#allocation2 + $0x28] sm:$0xff]
        %v792 = vld [vmem:[#allocation2 + $0x30] sm:$0xff]
        %v793 = vld [vmem:[#allocation2 + $0x38] sm:$0xff]
        %v794 = vld [vmem:[#allocation2 + $0x40] sm:$0xff]
        %v795 = vld [vmem:[#allocation2 + $0x48] sm:$0xff]
        %v796 = vld [vmem:[#allocation2 + $0x50] sm:$0xff]
        %v797 = vld [vmem:[#allocation2 + $0x58] sm:$0xff]
        %v798 = vld [vmem:[#allocation2 + $0x60] sm:$0xff]
        %v799 = vld [vmem:[#allocation2 + $0x68] sm:$0xff]
        %v800 = vld [vmem:[#allocation2 + $0x70] sm:$0xff]
        %v801 = vld [vmem:[#allocation2 + $0x78] sm:$0xff]
        %v802 = vld [vmem:[#allocation2 + $0x80] sm:$0xff]
        %v803 = vld [vmem:[#allocation2 + $0x88] sm:$0xff]
        %v804 = vld [vmem:[#allocation2 + $0x90] sm:$0xff]
        %v805 = vld [vmem:[#allocation2 + $0x98] sm:$0xff]
        %v806 = vld [vmem:[#allocation2 + $0xa0] sm:$0xff]
        %v807 = vld [vmem:[#allocation2 + $0xa8] sm:$0xff]
        %v808 = vld [vmem:[#allocation2 + $0xb0] sm:$0xff]
        %v809 = vld [vmem:[#allocation2 + $0xb8] sm:$0xff]
        %v810 = vld [vmem:[#allocation2 + $0xc0] sm:$0xff]
        %v811 = vld [vmem:[#allocation2 + $0xc8] sm:$0xff]
        %v812 = vld [vmem:[#allocation2 + $0xd0] sm:$0xff]
        %v813 = vld [vmem:[#allocation2 + $0xd8] sm:$0xff]
        %v814 = vld [vmem:[#allocation2 + $0xe0] sm:$0xff]
        %v815 = vld [vmem:[#allocation2 + $0xe8] sm:$0xff]
        %v816 = vld [vmem:[#allocation2 + $0xf0] sm:$0xff]
        %v817 = vld [vmem:[#allocation2 + $0xf8] sm:$0xff]
        %v818 = vld [vmem:[%s338] sm:$0x1]
        %v820 = vperm.slane %v818, 0
        %v822 = vmul.f32 %v786, %v820
        %v823 = vmul.f32 %v787, %v820
        %v824 = vmul.f32 %v788, %v820
        %v825 = vmul.f32 %v789, %v820
        %v826 = vmul.f32 %v790, %v820
        %v827 = vmul.f32 %v791, %v820
        %v828 = vmul.f32 %v792, %v820
        %v829 = vmul.f32 %v793, %v820
        %v830 = vmul.f32 %v794, %v820
        %v831 = vmul.f32 %v795, %v820
        %v832 = vmul.f32 %v796, %v820
        %v833 = vmul.f32 %v797, %v820
        %v834 = vmul.f32 %v798, %v820
        %v835 = vmul.f32 %v799, %v820
        %v836 = vmul.f32 %v800, %v820
        %v837 = vmul.f32 %v801, %v820
        %v838 = vmul.f32 %v802, %v820
        %v839 = vmul.f32 %v803, %v820
        %v840 = vmul.f32 %v804, %v820
        %v841 = vmul.f32 %v805, %v820
        %v842 = vmul.f32 %v806, %v820
        %v843 = vmul.f32 %v807, %v820
        %v844 = vmul.f32 %v808, %v820
        %v845 = vmul.f32 %v809, %v820
        %v846 = vmul.f32 %v810, %v820
        %v847 = vmul.f32 %v811, %v820
        %v848 = vmul.f32 %v812, %v820
        %v849 = vmul.f32 %v813, %v820
        %v850 = vmul.f32 %v814, %v820
        %v851 = vmul.f32 %v815, %v820
        %v852 = vmul.f32 %v816, %v820
        %v853 = vmul.f32 %v817, %v820
        %v854 = vld [vmem:[%s341] sm:$0x1]
        %v856 = vperm.slane %v854, 0
        %v858 = vadd.f32 %v822, %v856
        %v859 = vadd.f32 %v823, %v856
        %v860 = vadd.f32 %v824, %v856
        %v861 = vadd.f32 %v825, %v856
        %v862 = vadd.f32 %v826, %v856
        %v863 = vadd.f32 %v827, %v856
        %v864 = vadd.f32 %v828, %v856
        %v865 = vadd.f32 %v829, %v856
        %v866 = vadd.f32 %v830, %v856
        %v867 = vadd.f32 %v831, %v856
        %v868 = vadd.f32 %v832, %v856
        %v869 = vadd.f32 %v833, %v856
        %v870 = vadd.f32 %v834, %v856
        %v871 = vadd.f32 %v835, %v856
        %v872 = vadd.f32 %v836, %v856
        %v873 = vadd.f32 %v837, %v856
        %v874 = vadd.f32 %v838, %v856
        %v875 = vadd.f32 %v839, %v856
        %v876 = vadd.f32 %v840, %v856
        %v877 = vadd.f32 %v841, %v856
        %v878 = vadd.f32 %v842, %v856
        %v879 = vadd.f32 %v843, %v856
        %v880 = vadd.f32 %v844, %v856
        %v881 = vadd.f32 %v845, %v856
        %v882 = vadd.f32 %v846, %v856
        %v883 = vadd.f32 %v847, %v856
        %v884 = vadd.f32 %v848, %v856
        %v885 = vadd.f32 %v849, %v856
        %v886 = vadd.f32 %v850, %v856
        %v887 = vadd.f32 %v851, %v856
        %v888 = vadd.f32 %v852, %v856
        %v889 = vadd.f32 %v853, %v856
        %v890 = vld [vmem:[%s349] sm:$0xf]
        %v891 = vld [vmem:[%s349 + $0x4] sm:$0xf]
        %v892 = vld [vmem:[%s349 + $0x8] sm:$0xf]
        %v893 = vld [vmem:[%s349 + $0xc] sm:$0xf]
        %v894 = vld [vmem:[%s349 + $0x10] sm:$0xf]
        %v895 = vld [vmem:[%s349 + $0x14] sm:$0xf]
        %v896 = vld [vmem:[%s349 + $0x18] sm:$0xf]
        %v897 = vld [vmem:[%s349 + $0x1c] sm:$0xf]
        %v898 = vld [vmem:[%s349 + $0x20] sm:$0xf]
        %v899 = vld [vmem:[%s349 + $0x24] sm:$0xf]
        %v900 = vld [vmem:[%s349 + $0x28] sm:$0xf]
        %v901 = vld [vmem:[%s349 + $0x2c] sm:$0xf]
        %v902 = vld [vmem:[%s349 + $0x30] sm:$0xf]
        %v903 = vld [vmem:[%s349 + $0x34] sm:$0xf]
        %v904 = vld [vmem:[%s349 + $0x38] sm:$0xf]
        %v905 = vld [vmem:[%s349 + $0x3c] sm:$0xf]
        %v906 = vld [vmem:[%s349 + $0x40] sm:$0xf]
        %v907 = vld [vmem:[%s349 + $0x44] sm:$0xf]
        %v908 = vld [vmem:[%s349 + $0x48] sm:$0xf]
        %v909 = vld [vmem:[%s349 + $0x4c] sm:$0xf]
        %v910 = vld [vmem:[%s349 + $0x50] sm:$0xf]
        %v911 = vld [vmem:[%s349 + $0x54] sm:$0xf]
        %v912 = vld [vmem:[%s349 + $0x58] sm:$0xf]
        %v913 = vld [vmem:[%s349 + $0x5c] sm:$0xf]
        %v914 = vld [vmem:[%s349 + $0x60] sm:$0xf]
        %v915 = vld [vmem:[%s349 + $0x64] sm:$0xf]
        %v916 = vld [vmem:[%s349 + $0x68] sm:$0xf]
        %v917 = vld [vmem:[%s349 + $0x6c] sm:$0xf]
        %v918 = vld [vmem:[%s349 + $0x70] sm:$0xf]
        %v919 = vld [vmem:[%s349 + $0x74] sm:$0xf]
        %v920 = vld [vmem:[%s349 + $0x78] sm:$0xf]
        %v921 = vld [vmem:[%s349 + $0x7c] sm:$0xf]
        %v922 = vunpack.c.l.bf16 %v890
        %v923 = vunpack.c.l.bf16 %v891
        %v924 = vunpack.c.l.bf16 %v892
        %v925 = vunpack.c.l.bf16 %v893
        %v926 = vunpack.c.l.bf16 %v894
        %v927 = vunpack.c.l.bf16 %v895
        %v928 = vunpack.c.l.bf16 %v896
        %v929 = vunpack.c.l.bf16 %v897
        %v930 = vunpack.c.l.bf16 %v898
        %v931 = vunpack.c.l.bf16 %v899
        %v932 = vunpack.c.l.bf16 %v900
        %v933 = vunpack.c.l.bf16 %v901
        %v934 = vunpack.c.l.bf16 %v902
        %v935 = vunpack.c.l.bf16 %v903
        %v936 = vunpack.c.l.bf16 %v904
        %v937 = vunpack.c.l.bf16 %v905
        %v938 = vunpack.c.l.bf16 %v906
        %v939 = vunpack.c.l.bf16 %v907
        %v940 = vunpack.c.l.bf16 %v908
        %v941 = vunpack.c.l.bf16 %v909
        %v942 = vunpack.c.l.bf16 %v910
        %v943 = vunpack.c.l.bf16 %v911
        %v944 = vunpack.c.l.bf16 %v912
        %v945 = vunpack.c.l.bf16 %v913
        %v946 = vunpack.c.l.bf16 %v914
        %v947 = vunpack.c.l.bf16 %v915
        %v948 = vunpack.c.l.bf16 %v916
        %v949 = vunpack.c.l.bf16 %v917
        %v950 = vunpack.c.l.bf16 %v918
        %v951 = vunpack.c.l.bf16 %v919
        %v952 = vunpack.c.l.bf16 %v920
        %v953 = vunpack.c.l.bf16 %v921
        %v954 = vadd.f32 %v858, %v922
        %v955 = vadd.f32 %v859, %v923
        %v956 = vadd.f32 %v860, %v924
        %v957 = vadd.f32 %v861, %v925
        %v958 = vadd.f32 %v862, %v926
        %v959 = vadd.f32 %v863, %v927
        %v960 = vadd.f32 %v864, %v928
        %v961 = vadd.f32 %v865, %v929
        %v962 = vadd.f32 %v866, %v930
        %v963 = vadd.f32 %v867, %v931
        %v964 = vadd.f32 %v868, %v932
        %v965 = vadd.f32 %v869, %v933
        %v966 = vadd.f32 %v870, %v934
        %v967 = vadd.f32 %v871, %v935
        %v968 = vadd.f32 %v872, %v936
        %v969 = vadd.f32 %v873, %v937
        %v970 = vadd.f32 %v874, %v938
        %v971 = vadd.f32 %v875, %v939
        %v972 = vadd.f32 %v876, %v940
        %v973 = vadd.f32 %v877, %v941
        %v974 = vadd.f32 %v878, %v942
        %v975 = vadd.f32 %v879, %v943
        %v976 = vadd.f32 %v880, %v944
        %v977 = vadd.f32 %v881, %v945
        %v978 = vadd.f32 %v882, %v946
        %v979 = vadd.f32 %v883, %v947
        %v980 = vadd.f32 %v884, %v948
        %v981 = vadd.f32 %v885, %v949
        %v982 = vadd.f32 %v886, %v950
        %v983 = vadd.f32 %v887, %v951
        %v984 = vadd.f32 %v888, %v952
        %v985 = vadd.f32 %v889, %v953
        %v986 = vmax.f32 %v954, 0.0
        %v987 = vmax.f32 %v955, 0.0
        %v988 = vmax.f32 %v956, 0.0
        %v989 = vmax.f32 %v957, 0.0
        %v990 = vmax.f32 %v958, 0.0
        %v991 = vmax.f32 %v959, 0.0
        %v992 = vmax.f32 %v960, 0.0
        %v993 = vmax.f32 %v961, 0.0
        %v994 = vmax.f32 %v962, 0.0
        %v995 = vmax.f32 %v963, 0.0
        %v996 = vmax.f32 %v964, 0.0
        %v997 = vmax.f32 %v965, 0.0
        %v998 = vmax.f32 %v966, 0.0
        %v999 = vmax.f32 %v967, 0.0
        %v1000 = vmax.f32 %v968, 0.0
        %v1001 = vmax.f32 %v969, 0.0
        %v1002 = vmax.f32 %v970, 0.0
        %v1003 = vmax.f32 %v971, 0.0
        %v1004 = vmax.f32 %v972, 0.0
        %v1005 = vmax.f32 %v973, 0.0
        %v1006 = vmax.f32 %v974, 0.0
        %v1007 = vmax.f32 %v975, 0.0
        %v1008 = vmax.f32 %v976, 0.0
        %v1009 = vmax.f32 %v977, 0.0
        %v1010 = vmax.f32 %v978, 0.0
        %v1011 = vmax.f32 %v979, 0.0
        %v1012 = vmax.f32 %v980, 0.0
        %v1013 = vmax.f32 %v981, 0.0
        %v1014 = vmax.f32 %v982, 0.0
        %v1015 = vmax.f32 %v983, 0.0
        %v1016 = vmax.f32 %v984, 0.0
        %v1017 = vmax.f32 %v985, 0.0
        %v1018 = vpack.c.bf16 %v986, %v986
        %v1019 = vpack.c.bf16 %v987, %v987
        %v1020 = vpack.c.bf16 %v988, %v988
        %v1021 = vpack.c.bf16 %v989, %v989
        %v1022 = vpack.c.bf16 %v990, %v990
        %v1023 = vpack.c.bf16 %v991, %v991
        %v1024 = vpack.c.bf16 %v992, %v992
        %v1025 = vpack.c.bf16 %v993, %v993
        %v1026 = vpack.c.bf16 %v994, %v994
        %v1027 = vpack.c.bf16 %v995, %v995
        %v1028 = vpack.c.bf16 %v996, %v996
        %v1029 = vpack.c.bf16 %v997, %v997
        %v1030 = vpack.c.bf16 %v998, %v998
        %v1031 = vpack.c.bf16 %v999, %v999
        %v1032 = vpack.c.bf16 %v1000, %v1000
        %v1033 = vpack.c.bf16 %v1001, %v1001
        %v1034 = vpack.c.bf16 %v1002, %v1002
        %v1035 = vpack.c.bf16 %v1003, %v1003
        %v1036 = vpack.c.bf16 %v1004, %v1004
        %v1037 = vpack.c.bf16 %v1005, %v1005
        %v1038 = vpack.c.bf16 %v1006, %v1006
        %v1039 = vpack.c.bf16 %v1007, %v1007
        %v1040 = vpack.c.bf16 %v1008, %v1008
        %v1041 = vpack.c.bf16 %v1009, %v1009
        %v1042 = vpack.c.bf16 %v1010, %v1010
        %v1043 = vpack.c.bf16 %v1011, %v1011
        %v1044 = vpack.c.bf16 %v1012, %v1012
        %v1045 = vpack.c.bf16 %v1013, %v1013
        %v1046 = vpack.c.bf16 %v1014, %v1014
        %v1047 = vpack.c.bf16 %v1015, %v1015
        %v1048 = vpack.c.bf16 %v1016, %v1016
        %v1049 = vpack.c.bf16 %v1017, %v1017
        %1050 = vst [vmem:[%s358] sm:$0xf] %v1018
        %1051 = vst [vmem:[%s358 + $0x4] sm:$0xf] %v1019
        %1052 = vst [vmem:[%s358 + $0x8] sm:$0xf] %v1020
        %1053 = vst [vmem:[%s358 + $0xc] sm:$0xf] %v1021
        %1054 = vst [vmem:[%s358 + $0x10] sm:$0xf] %v1022
        %1055 = vst [vmem:[%s358 + $0x14] sm:$0xf] %v1023
        %1056 = vst [vmem:[%s358 + $0x18] sm:$0xf] %v1024
        %1057 = vst [vmem:[%s358 + $0x1c] sm:$0xf] %v1025
        %1058 = vst [vmem:[%s358 + $0x20] sm:$0xf] %v1026
        %1059 = vst [vmem:[%s358 + $0x24] sm:$0xf] %v1027
        %1060 = vst [vmem:[%s358 + $0x28] sm:$0xf] %v1028
        %1061 = vst [vmem:[%s358 + $0x2c] sm:$0xf] %v1029
        %1062 = vst [vmem:[%s358 + $0x30] sm:$0xf] %v1030
        %1063 = vst [vmem:[%s358 + $0x34] sm:$0xf] %v1031
        %1064 = vst [vmem:[%s358 + $0x38] sm:$0xf] %v1032
        %1065 = vst [vmem:[%s358 + $0x3c] sm:$0xf] %v1033
        %1066 = vst [vmem:[%s358 + $0x40] sm:$0xf] %v1034
        %1067 = vst [vmem:[%s358 + $0x44] sm:$0xf] %v1035
        %1068 = vst [vmem:[%s358 + $0x48] sm:$0xf] %v1036
        %1069 = vst [vmem:[%s358 + $0x4c] sm:$0xf] %v1037
        %1070 = vst [vmem:[%s358 + $0x50] sm:$0xf] %v1038
        %1071 = vst [vmem:[%s358 + $0x54] sm:$0xf] %v1039
        %1072 = vst [vmem:[%s358 + $0x58] sm:$0xf] %v1040
        %1073 = vst [vmem:[%s358 + $0x5c] sm:$0xf] %v1041
        %1074 = vst [vmem:[%s358 + $0x60] sm:$0xf] %v1042
        %1075 = vst [vmem:[%s358 + $0x64] sm:$0xf] %v1043
        %1076 = vst [vmem:[%s358 + $0x68] sm:$0xf] %v1044
        %1077 = vst [vmem:[%s358 + $0x6c] sm:$0xf] %v1045
        %1078 = vst [vmem:[%s358 + $0x70] sm:$0xf] %v1046
        %1079 = vst [vmem:[%s358 + $0x74] sm:$0xf] %v1047
        %1080 = vst [vmem:[%s358 + $0x78] sm:$0xf] %v1048
        %1081 = vst [vmem:[%s358 + $0x7c] sm:$0xf] %v1049
      $region48: #{resnet_forward.12} parent=39 // pred_fallthru
        _
      %s1082 = smul.u32 32, %s21
      %p1083 = scmp.lt.s32.totalorder %s1082, 63
      %s1084 = scalar_select %p1083, %s1082, 63
      %p1085 = scmp.lt.s32.totalorder %s22, 0
      %s1086 = scalar_select %p1085, %s22, 0
      %s1087 = sadd.s32 %s1086, %s1084
      %s1088 = smul.addr %s1087, 4
      %s1089 = scalar_lea.vmem %s5, %s1088
      // Predicated region
      $region49: #{resnet_forward.12} parent=39 // pred_check
        %p1090 = pneg %p191
      $region50: #{resnet_forward.12} parent=39 // pred_check_branch
        %1092 = sbr.rel (%p1090) target = $region52
      $region51: #{resnet_forward.12} parent=39 // pred_region
        %s1093 = smul.u32 32, %s21
      $region52: #{resnet_forward.12} parent=39 // pred_fallthru
        _
    $region40: #{resnet_forward.12} parent=5 // pred_fallthru
      _
    %p1094 = scmp.le.s32.totalorder 2, %s11
    // Predicated region
    $region53: #{resnet_forward.12} parent=5 // pred_check
      %p1095 = pneg %p1094
    $region54: #{resnet_forward.12} parent=5 // pred_check_branch
      %1097 = sbr.rel (%p1095) target = $region56
    $region55: #{resnet_forward.12} parent=5 // pred_region
      %s1098 = ssub.s32 %s11, 2
      // Predicated region
      $region57: #{resnet_forward.12} parent=55 // pred_check
        %p1099 = pneg %p197
      $region58: #{resnet_forward.12} parent=55 // pred_check_branch
        %1101 = sbr.rel (%p1099) target = $region60
      $region59: #{resnet_forward.12} parent=55 // pred_region
        %s1102 = smul.u32 32, %s24
        %p1103 = scmp.lt.s32.totalorder %s1102, 63
        %s1104 = scalar_select %p1103, %s1102, 63
        %p1105 = scmp.lt.s32.totalorder %s25, 0
        %s1106 = scalar_select %p1105, %s25, 0
        %s1107 = sadd.s32 %s1106, %s1104
        %s1108 = smul.addr %s1107, 4
        %s1109 = scalar_lea.vmem %s5, %s1108
      $region60: #{resnet_forward.12} parent=55 // pred_fallthru
        _
    $region56: #{resnet_forward.12} parent=5 // pred_fallthru
      _
  $region6: #{resnet_forward.12} parent=0 // loop_footer
    %s15 = sadd.s32 1, %s11
  $region7: #{resnet_forward.12} parent=0 // loop_footer_branch
    %10 = sbr.rel target = $region3
  $region8: #{resnet_forward.12} parent=0 // loop_exit
    _

// kernel: resnet_forward.13
$region0: #{resnet_forward.13}
  #allocation0 [shape = 'u32[]', space=smem, size = 0x4, offset = 0x4, fixed_abs, tag = 'smem constant byte address 0x4 - core index']
  #allocation1 [shape = 'u32[72,128]{1,0:T(1,128)}', space=vmem, size = 0x9000, scoped, tag = 'internal scratch']
  #allocation2 [shape = 'f32[2,128]{1,0:T(2,128)}', space=vmem, size = 0x400, scoped, tag = 'scratch operand']
  %s0 = inlined_call_operand.vmem [shape: bf16[2,2048], index: 0, kind: input, shape index: {}]
  %s1 = inlined_call_operand.vmem [shape: bf16[2048,128], index: 1, kind: input, shape index: {}]
  %s2 = inlined_call_operand.vmem [shape: f32[1,128], index: 2, kind: input, shape index: {}]
  %s3 = inlined_call_operand.hbm [shape: f32[2,128], index: 3, kind: output, shape index: {}]
  %s4 = sld [smem:[#allocation0]]
  $region53: #{resnet_forward.13} parent=0
    _
  %s6 = ssub.s32 1, %s4
  %s7 = scalar_select 0, %s6, %s4
  $region1: #{resnet_forward.13} parent=0
    #allocation3 [shape = 'u8[1024]{0}', space=vmem, size = 0x400, scoped, tag = 'output window, operand 0, single buffered']
    #allocation4 [shape = 's32[2]{0}', space=sflag, size = 0x8, scoped, tag = 'scoped memory for resnet_forward.13']
    %8 = vsyncpa [#allocation4], 0
    loop: start=0, step=1, limit=6
    $region2: #{resnet_forward.13} parent=1 // loop_pre_header
      _
    $region3: #{resnet_forward.13} parent=1 // loop_header
      %s10 = sphi 0, %s14
      %p11 = scmp.ge.s32.totalorder %s10, 6
      %s17 = sphi 0, %s36
      %s18 = sphi 0, %s32
      %s19 = sphi 0, %s28
      %s20 = sphi 0, %s17
      %s21 = sphi 0, %s18
      %s22 = sphi 0, %s19
      %s23 = sphi 0, %s20
      %s24 = sphi 0, %s21
      %s25 = sphi 0, %s22
      %s41 = sphi 0, %s43
      %s44 = sphi 0, %s41
      %s45 = sphi 0, %s44
      %s61 = sphi 0, %s45
      %s69 = sphi 0, %s71
      %s72 = sphi 0, %s69
      %s73 = sphi 0, %s72
      %s89 = sphi 0, %s73
      %s95 = sphi 0, %s97
      %s98 = sphi 0, %s95
      %s99 = sphi 0, %s98
      %s115 = sphi 0, %s99
      %s123 = sphi 0, %s125
      %s126 = sphi 0, %s123
      %s127 = sphi 0, %s126
      %s143 = sphi 0, %s127
    $region4: #{resnet_forward.13} parent=1 // loop_header_branch
      %13 = sbr.rel (%p11) target = $region8
    $region5: #{resnet_forward.13} parent=1 // loop_body
      %s15 = ssub.s32 %s10, 1
      %s16 = ssub.s32 %s10, 2
      %s26 = sadd.s32 1, %s19
      %p27 = scmp.ge.s32.totalorder %s26, 4
      %s28 = scalar_select %p27, 0, %s26
      %s29 = sadd.s32 1, %s18
      %s30 = scalar_select %p27, %s29, %s18
      %p31 = scmp.ge.s32.totalorder %s30, 1
      %s32 = scalar_select %p31, 0, %s30
      %s33 = sadd.s32 1, %s17
      %s34 = scalar_select %p31, %s33, %s17
      %p35 = scmp.ge.s32.totalorder %s34, 1
      %s36 = scalar_select %p35, 0, %s34
      %s37 = ssub.s32 %s17, %s36
      %s38 = ssub.s32 %s19, %s28
      %s39 = sor.u32 %s37, %s38
      %p40 = scmp.eq.s32.totalorder %s39, 0
      %s42 = sadd.s32 %s41, 1
      %s43 = scalar_select %p40, %s41, %s42
      %p46 = pneg %p40
      %p47 = scmp.eq.s32.totalorder %s10, 3
      %p48 = por %p46, %p47
      %p49 = scmp.ne.s32.totalorder %s41, %s44
      %p50 = scmp.eq.s32.totalorder %s10, 0
      %p51 = por %p49, %p50
      %p52 = scmp.ne.s32.totalorder %s41, %s44
      %p53 = scmp.eq.s32.totalorder %s15, 3
      %p54 = por %p52, %p53
      %p55 = scmp.ne.s32.totalorder %s44, %s45
      %p56 = scmp.eq.s32.totalorder %s15, 0
      %p57 = por %p55, %p56
      %p58 = scmp.ne.s32.totalorder %s44, %s45
      %p59 = scmp.eq.s32.totalorder %s16, 3
      %p60 = por %p58, %p59
      %p62 = scmp.ne.s32.totalorder %s45, %s61
      %p63 = scmp.eq.s32.totalorder %s16, 0
      %p64 = por %p62, %p63
      %s65 = ssub.s32 %s19, %s28
      %s66 = ssub.s32 %s18, %s32
      %s67 = sor.u32 %s65, %s66
      %p68 = scmp.eq.s32.totalorder %s67, 0
      %s70 = sadd.s32 %s69, 1
      %s71 = scalar_select %p68, %s69, %s70
      %p74 = pneg %p68
      %p75 = scmp.eq.s32.totalorder %s10, 3
      %p76 = por %p74, %p75
      %p77 = scmp.ne.s32.totalorder %s69, %s72
      %p78 = scmp.eq.s32.totalorder %s10, 0
      %p79 = por %p77, %p78
      %p80 = scmp.ne.s32.totalorder %s69, %s72
      %p81 = scmp.eq.s32.totalorder %s15, 3
      %p82 = por %p80, %p81
      %p83 = scmp.ne.s32.totalorder %s72, %s73
      %p84 = scmp.eq.s32.totalorder %s15, 0
      %p85 = por %p83, %p84
      %p86 = scmp.ne.s32.totalorder %s72, %s73
      %p87 = scmp.eq.s32.totalorder %s16, 3
      %p88 = por %p86, %p87
      %p90 = scmp.ne.s32.totalorder %s73, %s89
      %p91 = scmp.eq.s32.totalorder %s16, 0
      %p92 = por %p90, %p91
      %s93 = ssub.s32 %s18, %s32
      %p94 = scmp.eq.s32.totalorder %s93, 0
      %s96 = sadd.s32 %s95, 1
      %s97 = scalar_select %p94, %s95, %s96
      %p100 = pneg %p94
      %p101 = scmp.eq.s32.totalorder %s10, 3
      %p102 = por %p100, %p101
      %p103 = scmp.ne.s32.totalorder %s95, %s98
      %p104 = scmp.eq.s32.totalorder %s10, 0
      %p105 = por %p103, %p104
      %p106 = scmp.ne.s32.totalorder %s95, %s98
      %p107 = scmp.eq.s32.totalorder %s15, 3
      %p108 = por %p106, %p107
      %p109 = scmp.ne.s32.totalorder %s98, %s99
      %p110 = scmp.eq.s32.totalorder %s15, 0
      %p111 = por %p109, %p110
      %p112 = scmp.ne.s32.totalorder %s98, %s99
      %p113 = scmp.eq.s32.totalorder %s16, 3
      %p114 = por %p112, %p113
      %p116 = scmp.ne.s32.totalorder %s99, %s115
      %p117 = scmp.eq.s32.totalorder %s16, 0
      %p118 = por %p116, %p117
      %s119 = ssub.s32 %s17, %s36
      %s120 = ssub.s32 %s18, %s32
      %s121 = sor.u32 %s119, %s120
      %p122 = scmp.eq.s32.totalorder %s121, 0
      %s124 = sadd.s32 %s123, 1
      %s125 = scalar_select %p122, %s123, %s124
      %p128 = pneg %p122
      %p129 = scmp.eq.s32.totalorder %s10, 3
      %p130 = por %p128, %p129
      %p131 = scmp.ne.s32.totalorder %s123, %s126
      %p132 = scmp.eq.s32.totalorder %s10, 0
      %p133 = por %p131, %p132
      %p134 = scmp.ne.s32.totalorder %s123, %s126
      %p135 = scmp.eq.s32.totalorder %s15, 3
      %p136 = por %p134, %p135
      %p137 = scmp.ne.s32.totalorder %s126, %s127
      %p138 = scmp.eq.s32.totalorder %s15, 0
      %p139 = por %p137, %p138
      %p140 = scmp.ne.s32.totalorder %s126, %s127
      %p141 = scmp.eq.s32.totalorder %s16, 3
      %p142 = por %p140, %p141
      %p144 = scmp.ne.s32.totalorder %s127, %s143
      %p145 = scmp.eq.s32.totalorder %s16, 0
      %p146 = por %p144, %p145
      %p147 = scmp.le.s32.totalorder 1, %s10
      %p148 = scmp.lt.s32.totalorder %s10, 5
      %p149 = pnand %p147, %p148
      %p150 = pneg %p149
      // Predicated region
      $region9: #{resnet_forward.13} parent=5 // pred_check
        _
      $region10: #{resnet_forward.13} parent=5 // pred_check_branch
        %152 = sbr.rel (%p149) target = $region12
      $region11: #{resnet_forward.13} parent=5 // pred_region
        %s153 = ssub.s32 %s10, 1
        // Predicated region
        $region13: #{resnet_forward.13} parent=11 // pred_check
          %p154 = pneg %p111
        $region14: #{resnet_forward.13} parent=11 // pred_check_branch
          %156 = sbr.rel (%p154) target = $region16
        $region15: #{resnet_forward.13} parent=11 // pred_region
          %p157 = scmp.lt.s32.totalorder %s21, 0
          %s158 = scalar_select %p157, %s21, 0
          %s159 = scalar_lea.vmem %s2, %s158
        $region16: #{resnet_forward.13} parent=11 // pred_fallthru
          _
      $region12: #{resnet_forward.13} parent=5 // pred_fallthru
        _
      %p160 = scmp.lt.s32.totalorder %s10, 4
      // Predicated region
      $region17: #{resnet_forward.13} parent=5 // pred_check
        %p161 = pneg %p160
      $region18: #{resnet_forward.13} parent=5 // pred_check_branch
        %163 = sbr.rel (%p161) target = $region20
      $region19: #{resnet_forward.13} parent=5 // pred_region
        // Predicated region
        $region21: #{resnet_forward.13} parent=19 // pred_check
          %p164 = pneg %p51
        $region22: #{resnet_forward.13} parent=19 // pred_check_branch
          %166 = sbr.rel (%p164) target = $region24
        $region23: #{resnet_forward.13} parent=19 // pred_region
          %s167 = smul.u32 4, %s19
          %p168 = scmp.lt.s32.totalorder %s17, 0
          %s169 = scalar_select %p168, %s17, 0
          %p170 = scmp.lt.s32.totalorder %s167, 15
          %s171 = scalar_select %p170, %s167, 15
          %s172 = smul.addr %s169, 16
          %s173 = sadd.s32 %s171, %s172
          %s174 = scalar_lea.vmem %s0, %s173
          %s175 = smul.u32 4, %s19
        $region24: #{resnet_forward.13} parent=19 // pred_fallthru
          _
        // Predicated region
        $region25: #{resnet_forward.13} parent=19 // pred_check
          %p176 = pneg %p79
        $region26: #{resnet_forward.13} parent=19 // pred_check_branch
          %178 = sbr.rel (%p176) target = $region28
        $region27: #{resnet_forward.13} parent=19 // pred_region
          %s179 = smul.u32 64, %s19
          %p180 = scmp.lt.s32.totalorder %s179, 255
          %s181 = scalar_select %p180, %s179, 255
          %p182 = scmp.lt.s32.totalorder %s18, 0
          %s183 = scalar_select %p182, %s18, 0
          %s184 = sadd.s32 %s183, %s181
          %s185 = smul.addr %s184, 4
          %s186 = scalar_lea.vmem %s1, %s185
          %s187 = smul.u32 64, %s19
        $region28: #{resnet_forward.13} parent=19 // pred_fallthru
          _
      $region20: #{resnet_forward.13} parent=5 // pred_fallthru
        _
      %p188 = scmp.le.s32.totalorder 1, %s10
      %p189 = scmp.lt.s32.totalorder %s10, 5
      %p190 = pnand %p188, %p189
      %p191 = pneg %p190
      // Predicated region
      $region29: #{resnet_forward.13} parent=5 // pred_check
        _
      $region30: #{resnet_forward.13} parent=5 // pred_check_branch
        %193 = sbr.rel (%p190) target = $region32
      $region31: #{resnet_forward.13} parent=5 // pred_region
        %s194 = ssub.s32 %s10, 1
        %s195 = smul.u32 4, %s22
        %p196 = scmp.lt.s32.totalorder %s20, 0
        %s197 = scalar_select %p196, %s20, 0
        %p198 = scmp.lt.s32.totalorder %s195, 15
        %s199 = scalar_select %p198, %s195, 15
        %s200 = smul.addr %s197, 16
        %s201 = sadd.s32 %s199, %s200
        %s202 = scalar_lea.vmem %s0, %s201
        %p203 = pneg %p57
        %p204 = pneg %p54
        %s205 = smul.u32 64, %s22
        %p206 = scmp.lt.s32.totalorder %s205, 255
        %s207 = scalar_select %p206, %s205, 255
        %p208 = scmp.lt.s32.totalorder %s21, 0
        %s209 = scalar_select %p208, %s21, 0
        %s210 = sadd.s32 %s209, %s207
        %s211 = smul.addr %s210, 4
        %s212 = scalar_lea.vmem %s1, %s211
        %p213 = pneg %p85
        %p214 = pneg %p82
        %p215 = scmp.lt.s32.totalorder %s21, 0
        %s216 = scalar_select %p215, %s21, 0
        %s217 = scalar_lea.vmem %s2, %s216
        %p218 = pneg %p111
        %p219 = pneg %p108
        %p220 = pneg %p139
        %p221 = pneg %p136
        %s222 = smul.u32 4, %s22
        %p223 = scmp.lt.s32.totalorder %s20, 0
        %s224 = scalar_select %p223, %s20, 0
        %p225 = scmp.lt.s32.totalorder %s222, 15
        %s226 = scalar_select %p225, %s222, 15
        %s227 = smul.addr %s224, 16
        %s228 = sadd.s32 %s226, %s227
        %s229 = scalar_lea.vmem %s0, %s228
        %s230 = smul.u32 4, %s22
        %s231 = smul.u32 64, %s22
        %p232 = scmp.lt.s32.totalorder %s231, 255
        %s233 = scalar_select %p232, %s231, 255
        %p234 = scmp.lt.s32.totalorder %s21, 0
        %s235 = scalar_select %p234, %s21, 0
        %s236 = sadd.s32 %s235, %s233
        %s237 = smul.addr %s236, 4
        %s238 = scalar_lea.vmem %s1, %s237
        %s239 = smul.u32 64, %s22
        %p240 = scmp.lt.s32.totalorder %s21, 0
        %s241 = scalar_select %p240, %s21, 0
        %s242 = scalar_lea.vmem %s2, %s241
        %p243 = scmp.eq.s32.totalorder %s22, 0
        // Predicated region
        $region33: #{resnet_forward.13} parent=31 // pred_check
          %p244 = pneg %p243
        $region34: #{resnet_forward.13} parent=31 // pred_check_branch
          %246 = sbr.rel (%p244) target = $region36
        $region35: #{resnet_forward.13} parent=31 // pred_region
          %247 = vst [vmem:[#allocation2] sm:$0x3] 0.0
        $region36: #{resnet_forward.13} parent=31 // pred_fallthru
          _
        %v248 = vld [vmem:[#allocation2] sm:$0x3]
        %v249 = vld [vmem:[%s229] sm:$0xf]
        %v250 = vld [vmem:[%s238] sm:$0xf]
        %v251 = vld [vmem:[%s238 + $0x4] sm:$0xf]
        %v252 = vld [vmem:[%s238 + $0x8] sm:$0xf]
        %v253 = vld [vmem:[%s238 + $0xc] sm:$0xf]
        %v254 = vld [vmem:[%s238 + $0x10] sm:$0xf]
        %v255 = vld [vmem:[%s238 + $0x14] sm:$0xf]
        %v256 = vld [vmem:[%s238 + $0x18] sm:$0xf]
        %v257 = vld [vmem:[%s238 + $0x1c] sm:$0xf]
        %v258 = vld [vmem:[%s238 + $0x20] sm:$0xf]
        %v259 = vld [vmem:[%s238 + $0x24] sm:$0xf]
        %v260 = vld [vmem:[%s238 + $0x28] sm:$0xf]
        %v261 = vld [vmem:[%s238 + $0x2c] sm:$0xf]
        %v262 = vld [vmem:[%s238 + $0x30] sm:$0xf]
        %v263 = vld [vmem:[%s238 + $0x34] sm:$0xf]
        %v264 = vld [vmem:[%s238 + $0x38] sm:$0xf]
        %v265 = vld [vmem:[%s238 + $0x3c] sm:$0xf]
        %v266 = vld [vmem:[%s238 + $0x40] sm:$0xf]
        %v267 = vld [vmem:[%s238 + $0x44] sm:$0xf]
        %v268 = vld [vmem:[%s238 + $0x48] sm:$0xf]
        %v269 = vld [vmem:[%s238 + $0x4c] sm:$0xf]
        %v270 = vld [vmem:[%s238 + $0x50] sm:$0xf]
        %v271 = vld [vmem:[%s238 + $0x54] sm:$0xf]
        %v272 = vld [vmem:[%s238 + $0x58] sm:$0xf]
        %v273 = vld [vmem:[%s238 + $0x5c] sm:$0xf]
        %v274 = vld [vmem:[%s238 + $0x60] sm:$0xf]
        %v275 = vld [vmem:[%s238 + $0x64] sm:$0xf]
        %v276 = vld [vmem:[%s238 + $0x68] sm:$0xf]
        %v277 = vld [vmem:[%s238 + $0x6c] sm:$0xf]
        %v278 = vld [vmem:[%s238 + $0x70] sm:$0xf]
        %v279 = vld [vmem:[%s238 + $0x74] sm:$0xf]
        %v280 = vld [vmem:[%s238 + $0x78] sm:$0xf]
        %v281 = vld [vmem:[%s238 + $0x7c] sm:$0xf]
        %v282 = vld [vmem:[%s238 + $0x80] sm:$0xf]
        %v283 = vld [vmem:[%s238 + $0x84] sm:$0xf]
        %v284 = vld [vmem:[%s238 + $0x88] sm:$0xf]
        %v285 = vld [vmem:[%s238 + $0x8c] sm:$0xf]
        %v286 = vld [vmem:[%s238 + $0x90] sm:$0xf]
        %v287 = vld [vmem:[%s238 + $0x94] sm:$0xf]
        %v288 = vld [vmem:[%s238 + $0x98] sm:$0xf]
        %v289 = vld [vmem:[%s238 + $0x9c] sm:$0xf]
        %v290 = vld [vmem:[%s238 + $0xa0] sm:$0xf]
        %v291 = vld [vmem:[%s238 + $0xa4] sm:$0xf]
        %v292 = vld [vmem:[%s238 + $0xa8] sm:$0xf]
        %v293 = vld [vmem:[%s238 + $0xac] sm:$0xf]
        %v294 = vld [vmem:[%s238 + $0xb0] sm:$0xf]
        %v295 = vld [vmem:[%s238 + $0xb4] sm:$0xf]
        %v296 = vld [vmem:[%s238 + $0xb8] sm:$0xf]
        %v297 = vld [vmem:[%s238 + $0xbc] sm:$0xf]
        %v298 = vld [vmem:[%s238 + $0xc0] sm:$0xf]
        %v299 = vld [vmem:[%s238 + $0xc4] sm:$0xf]
        %v300 = vld [vmem:[%s238 + $0xc8] sm:$0xf]
        %v301 = vld [vmem:[%s238 + $0xcc] sm:$0xf]
        %v302 = vld [vmem:[%s238 + $0xd0] sm:$0xf]
        %v303 = vld [vmem:[%s238 + $0xd4] sm:$0xf]
        %v304 = vld [vmem:[%s238 + $0xd8] sm:$0xf]
        %v305 = vld [vmem:[%s238 + $0xdc] sm:$0xf]
        %v306 = vld [vmem:[%s238 + $0xe0] sm:$0xf]
        %v307 = vld [vmem:[%s238 + $0xe4] sm:$0xf]
        %v308 = vld [vmem:[%s238 + $0xe8] sm:$0xf]
        %v309 = vld [vmem:[%s238 + $0xec] sm:$0xf]
        %v310 = vld [vmem:[%s238 + $0xf0] sm:$0xf]
        %v311 = vld [vmem:[%s238 + $0xf4] sm:$0xf]
        %v312 = vld [vmem:[%s238 + $0xf8] sm:$0xf]
        %v313 = vld [vmem:[%s238 + $0xfc] sm:$0xf]
        %315 = vst [vmem:[#allocation1] ss:$9 sm:$0xff] %v249
        %v316 = vld [vmem:[#allocation1] sm:$0xff]
        %v317 = vld [vmem:[#allocation1 + $0x9] sm:$0xff]
        %v318 = vld [vmem:[#allocation1 + $0x12] sm:$0xff]
        %v319 = vld [vmem:[#allocation1 + $0x1b] sm:$0xff]
        %v388 = vunpack.c.l.b16 %v250
        %v389 = vunpack.c.l.b16 %v251
        %v390 = vunpack.c.l.b16 %v252
        %v391 = vunpack.c.l.b16 %v253
        %v392 = vunpack.c.l.b16 %v254
        %v393 = vunpack.c.l.b16 %v255
        %v394 = vunpack.c.l.b16 %v256
        %v395 = vunpack.c.l.b16 %v257
        %v396 = vunpack.c.l.b16 %v258
        %v397 = vunpack.c.l.b16 %v259
        %v398 = vunpack.c.l.b16 %v260
        %v399 = vunpack.c.l.b16 %v261
        %v400 = vunpack.c.l.b16 %v262
        %v401 = vunpack.c.l.b16 %v263
        %v402 = vunpack.c.l.b16 %v264
        %v403 = vunpack.c.l.b16 %v265
        %v404 = vunpack.c.l.b16 %v266
        %v405 = vunpack.c.l.b16 %v267
        %v406 = vunpack.c.l.b16 %v268
        %v407 = vunpack.c.l.b16 %v269
        %v408 = vunpack.c.l.b16 %v270
        %v409 = vunpack.c.l.b16 %v271
        %v410 = vunpack.c.l.b16 %v272
        %v411 = vunpack.c.l.b16 %v273
        %v412 = vunpack.c.l.b16 %v274
        %v413 = vunpack.c.l.b16 %v275
        %v414 = vunpack.c.l.b16 %v276
        %v415 = vunpack.c.l.b16 %v277
        %v416 = vunpack.c.l.b16 %v278
        %v417 = vunpack.c.l.b16 %v279
        %v418 = vunpack.c.l.b16 %v280
        %v419 = vunpack.c.l.b16 %v281
        %v420 = vunpack.c.l.b16 %v282
        %v421 = vunpack.c.l.b16 %v283
        %v422 = vunpack.c.l.b16 %v284
        %v423 = vunpack.c.l.b16 %v285
        %v424 = vunpack.c.l.b16 %v286
        %v425 = vunpack.c.l.b16 %v287
        %v426 = vunpack.c.l.b16 %v288
        %v427 = vunpack.c.l.b16 %v289
        %v428 = vunpack.c.l.b16 %v290
        %v429 = vunpack.c.l.b16 %v291
        %v430 = vunpack.c.l.b16 %v292
        %v431 = vunpack.c.l.b16 %v293
        %v432 = vunpack.c.l.b16 %v294
        %v433 = vunpack.c.l.b16 %v295
        %v434 = vunpack.c.l.b16 %v296
        %v435 = vunpack.c.l.b16 %v297
        %v436 = vunpack.c.l.b16 %v298
        %v437 = vunpack.c.l.b16 %v299
        %v438 = vunpack.c.l.b16 %v300
        %v439 = vunpack.c.l.b16 %v301
        %v440 = vunpack.c.l.b16 %v302
        %v441 = vunpack.c.l.b16 %v303
        %v442 = vunpack.c.l.b16 %v304
        %v443 = vunpack.c.l.b16 %v305
        %v444 = vunpack.c.l.b16 %v306
        %v445 = vunpack.c.l.b16 %v307
        %v446 = vunpack.c.l.b16 %v308
        %v447 = vunpack.c.l.b16 %v309
        %v448 = vunpack.c.l.b16 %v310
        %v449 = vunpack.c.l.b16 %v311
        %v450 = vunpack.c.l.b16 %v312
        %v451 = vunpack.c.l.b16 %v313
        %v452 = vpack.c.b16 %v389, %v388
        %v453 = vpack.c.b16 %v391, %v390
        %v454 = vpack.c.b16 %v393, %v392
        %v455 = vpack.c.b16 %v395, %v394
        %v456 = vpack.c.b16 %v397, %v396
        %v457 = vpack.c.b16 %v399, %v398
        %v458 = vpack.c.b16 %v401, %v400
        %v459 = vpack.c.b16 %v403, %v402
        %v460 = vpack.c.b16 %v405, %v404
        %v461 = vpack.c.b16 %v407, %v406
        %v462 = vpack.c.b16 %v409, %v408
        %v463 = vpack.c.b16 %v411, %v410
        %v464 = vpack.c.b16 %v413, %v412
        %v465 = vpack.c.b16 %v415, %v414
        %v466 = vpack.c.b16 %v417, %v416
        %v467 = vpack.c.b16 %v419, %v418
        %v468 = vpack.c.b16 %v421, %v420
        %v469 = vpack.c.b16 %v423, %v422
        %v470 = vpack.c.b16 %v425, %v424
        %v471 = vpack.c.b16 %v427, %v426
        %v472 = vpack.c.b16 %v429, %v428
        %v473 = vpack.c.b16 %v431, %v430
        %v474 = vpack.c.b16 %v433, %v432
        %v475 = vpack.c.b16 %v435, %v434
        %v476 = vpack.c.b16 %v437, %v436
        %v477 = vpack.c.b16 %v439, %v438
        %v478 = vpack.c.b16 %v441, %v440
        %v479 = vpack.c.b16 %v443, %v442
        %v480 = vpack.c.b16 %v445, %v444
        %v481 = vpack.c.b16 %v447, %v446
        %v482 = vpack.c.b16 %v449, %v448
        %v483 = vpack.c.b16 %v451, %v450
        %516 = vmatpush.bf16.msra.mxu0 %v459
        %517 = vmatpush.bf16.msra.mxu0 %v458
        %518 = vmatpush.bf16.msra.mxu0 %v457
        %519 = vmatpush.bf16.msra.mxu0 %v456
        %520 = vmatpush.bf16.msra.mxu0 %v455
        %521 = vmatpush.bf16.msra.mxu0 %v454
        %522 = vmatpush.bf16.msra.mxu0 %v453
        %523 = vmatpush.bf16.msra.mxu0 %v452
        %524 = vmatmul.bf16.gmra.mxu0 %v316
        %v525 = vpop.f32.mrf.mxu0
        %v526 = vadd.f32 0.0, %v525
        %v527 = vpop.f32.mrf.mxu0
        %528 = vdwg.mxu0
        %529 = vmatpush.bf16.msra.mxu0 %v467
        %530 = vmatpush.bf16.msra.mxu0 %v466
        %531 = vmatpush.bf16.msra.mxu0 %v465
        %532 = vmatpush.bf16.msra.mxu0 %v464
        %533 = vmatpush.bf16.msra.mxu0 %v463
        %534 = vmatpush.bf16.msra.mxu0 %v462
        %535 = vmatpush.bf16.msra.mxu0 %v461
        %536 = vmatpush.bf16.msra.mxu0 %v460
        %537 = vmatmul.bf16.gmra.mxu0 %v317
        %v538 = vpop.f32.mrf.mxu0
        %v539 = vadd.f32 %v526, %v538
        %v540 = vpop.f32.mrf.mxu0
        %541 = vdwg.mxu0
        %542 = vmatpush.bf16.msra.mxu0 %v475
        %543 = vmatpush.bf16.msra.mxu0 %v474
        %544 = vmatpush.bf16.msra.mxu0 %v473
        %545 = vmatpush.bf16.msra.mxu0 %v472
        %546 = vmatpush.bf16.msra.mxu0 %v471
        %547 = vmatpush.bf16.msra.mxu0 %v470
        %548 = vmatpush.bf16.msra.mxu0 %v469
        %549 = vmatpush.bf16.msra.mxu0 %v468
        %550 = vmatmul.bf16.gmra.mxu0 %v318
        %v551 = vpop.f32.mrf.mxu0
        %v552 = vadd.f32 %v539, %v551
        %v553 = vpop.f32.mrf.mxu0
        %554 = vdwg.mxu0
        %555 = vmatpush.bf16.msra.mxu0 %v483
        %556 = vmatpush.bf16.msra.mxu0 %v482
        %557 = vmatpush.bf16.msra.mxu0 %v481
        %558 = vmatpush.bf16.msra.mxu0 %v480
        %559 = vmatpush.bf16.msra.mxu0 %v479
        %560 = vmatpush.bf16.msra.mxu0 %v478
        %561 = vmatpush.bf16.msra.mxu0 %v477
        %562 = vmatpush.bf16.msra.mxu0 %v476
        %563 = vmatmul.bf16.gmra.mxu0 %v319
        %v564 = vpop.f32.mrf.mxu0
        %v565 = vadd.f32 %v552, %v564
        %v566 = vpop.f32.mrf.mxu0
        %567 = vdwg.mxu0
        %v568 = vadd.f32 %v248, %v565
        %569 = vst [vmem:[#allocation2] sm:$0x3] %v568
        %p570 = scmp.eq.s32.totalorder %s22, 3
        // Predicated region
        $region37: #{resnet_forward.13} parent=31 // pred_check
          %p571 = pneg %p570
        $region38: #{resnet_forward.13} parent=31 // pred_check_branch
          %573 = sbr.rel (%p571) target = $region40
        $region39: #{resnet_forward.13} parent=31 // pred_region
          %v574 = vld [vmem:[#allocation2] sm:$0x3]
          %v575 = vld [vmem:[%s242] sm:$0x1]
          %v577 = vperm.slane %v575, 0
          %v579 = vadd.f32 %v574, %v577
          %580 = vst [vmem:[#allocation3] sm:$0x3] %v579
        $region40: #{resnet_forward.13} parent=31 // pred_fallthru
          _
        // Predicated region
        $region41: #{resnet_forward.13} parent=31 // pred_check
          %p581 = pneg %p136
        $region42: #{resnet_forward.13} parent=31 // pred_check_branch
          %583 = sbr.rel (%p581) target = $region44
        $region43: #{resnet_forward.13} parent=31 // pred_region
          %585 = vsyncadd [#allocation4], 0
          %s586 = sadd.s32 %s21, %s20
          %s587 = smul.addr %s586, 2
          %s588 = scalar_lea.hbm %s3, %s587
          %s590 = sshll.u32 [#allocation3], 4
          %s591 = int_to_ptr.vmem [resolvable:$true] %s590
          %s592 = sshll.u32 %s588, 4
          %s593 = int_to_ptr.hbm [resolvable:$true] %s592
          %595 = dma.vmem_to_hbm [thread:$0]  %s591, 32, %s593, [#allocation4]
        $region44: #{resnet_forward.13} parent=31 // pred_fallthru
          _
        // Predicated region
        $region45: #{resnet_forward.13} parent=31 // pred_check
          %p596 = pneg %p136
        $region46: #{resnet_forward.13} parent=31 // pred_check_branch
          %598 = sbr.rel (%p596) target = $region48
        $region47: #{resnet_forward.13} parent=31 // pred_region
          %600 = dma.done [#allocation4], 32
        $region48: #{resnet_forward.13} parent=31 // pred_fallthru
          _
      $region32: #{resnet_forward.13} parent=5 // pred_fallthru
        _
      %p601 = scmp.le.s32.totalorder 2, %s10
      // Predicated region
      $region49: #{resnet_forward.13} parent=5 // pred_check
        %p602 = pneg %p601
      $region50: #{resnet_forward.13} parent=5 // pred_check_branch
        %604 = sbr.rel (%p602) target = $region52
      $region51: #{resnet_forward.13} parent=5 // pred_region
        %s605 = ssub.s32 %s10, 2
      $region52: #{resnet_forward.13} parent=5 // pred_fallthru
        _
    $region6: #{resnet_forward.13} parent=1 // loop_footer
      %s14 = sadd.s32 1, %s10
    $region7: #{resnet_forward.13} parent=1 // loop_footer_branch
      %9 = sbr.rel target = $region3
    $region8: #{resnet_forward.13} parent=1 // loop_exit
      _
    %606 = vsyncpa [#allocation4], 1
    %s607 = scalar_lea.sflag [#allocation4], 1
    %608 = vsyncpa %s607, 1

</llo_original>
